<compile_context>
chip_gen: v6e
topology: v6e:2x2x1
jax: 0.10.0
libtpu: 0.0.40
codegen_flags: <defaults>
</compile_context>

<pallas_src>
import functools

import jax
import jax.numpy as jnp
from jax.experimental import pallas as pl
from jax.experimental.pallas import tpu as pltpu

COMPUTE_DTYPE = jnp.bfloat16   # MXU operand dtype; accumulation / epilogue stay f32


# ----------------------------------------------------------------------------
# In-kernel helpers
# ----------------------------------------------------------------------------
def _shift_cat(x, B, H):
    """Implicit-im2col operand for a 3x3 conv (vertical taps, pad=1).

    x: (B*H, W*C) f32, batch-major rows.
    Returns (B*H, 3*W*C) = [row h-1 | row h | row h+1] per row, with zeros at
    each batch element's vertical boundaries.
    """
    M, WC = x.shape
    z = jnp.zeros((1, WC), x.dtype)
    up = jnp.concatenate([z, x[:M - 1, :]], axis=0)     # row h-1
    dn = jnp.concatenate([x[1:, :], z], axis=0)         # row h+1
    if B > 1:  # zero rows that crossed a batch boundary
        h = jax.lax.broadcasted_iota(jnp.int32, (M, 1), 0) % H
        up = jnp.where(h == 0, 0.0, up)
        dn = jnp.where(h == H - 1, 0.0, dn)
    return jnp.concatenate([up, x, dn], axis=1)


def _resnet_kernel(*refs, B, H0, strides, has_sc, cd):
    """Whole ResNet forward: stem + all BasicBlocks + avgpool/linear head."""
    out_ref = refs[-1]
    it = iter(refs[:-1])

    def nx():
        return next(it)[...]

    # ---- stem: conv3x3(s1,p1) + BN + ReLU (one wide-K matmul) ----
    x = nx().astype(jnp.float32)                        # (B*H0, W*Cin_pad)
    S0, g0, b0 = nx(), nx(), nx()
    A = _shift_cat(x, B, H0)
    act = jnp.dot(A.astype(cd), S0, preferred_element_type=jnp.float32)
    act = jnp.maximum(act * g0 + b0, 0.0)               # (B*H0, W*C0) f32
    H = H0

    # ---- BasicBlocks ----
    for s, sc_flag in zip(strides, has_sc):
        Ho = H // s
        P = nx() if s != 1 else None                    # (B*Ho, B*H) row-subsample
        S1, g1, b1 = nx(), nx(), nx()
        S2, g2, b2 = nx(), nx(), nx()
        if sc_flag:
            Ssc, gsc, bsc = nx(), nx(), nx()

        WC = act.shape[-1]
        A = _shift_cat(act, B, H)                       # (B*H, 3*WC)
        if P is not None:                               # vertical stride 2
            A = jnp.dot(P, A.astype(cd), preferred_element_type=jnp.float32)

        # conv1 + BN + ReLU (stays in VMEM)
        h1 = jnp.dot(A.astype(cd), S1, preferred_element_type=jnp.float32)
        h1 = jnp.maximum(h1 * g1 + b1, 0.0)             # (B*Ho, Wo*C1)

        # conv2 + BN
        A2 = _shift_cat(h1, B, Ho)
        out2 = jnp.dot(A2.astype(cd), S2, preferred_element_type=jnp.float32)
        out2 = out2 * g2 + b2                           # (B*Ho, Wo*C2)

        # shortcut
        if sc_flag:
            xs = A[:, WC:2 * WC]                        # centre tap == (subsampled) x
            sc = jnp.dot(xs.astype(cd), Ssc, preferred_element_type=jnp.float32)
            sc = sc * gsc + bsc
        else:
            sc = act                                    # identity (Cin == C2, stride 1)

        act = jnp.maximum(out2 + sc, 0.0)
        H = Ho

    # ---- head: avg_pool2d(4) + Linear (H-pool as matmul; W-pool folded into wh) ----
    Pool, wh, bh = nx(), nx(), nx()
    pooled = jnp.dot(Pool, act.astype(cd), preferred_element_type=jnp.float32)
    logits = jnp.dot(pooled.astype(cd), wh, preferred_element_type=jnp.float32) + bh
    out_ref[...] = logits.astype(out_ref.dtype)


# ----------------------------------------------------------------------------
# Wrapper-side weight folding (runs ONCE at build time)
# ----------------------------------------------------------------------------
def fold_conv_weight(w, w_in, w_out, stride, pad):
    """w: (kh, kw, Cin, Cout) -> S: (kh, w_in*Cin, w_out*Cout) such that
    out[i, j*Cout+o] = sum_dy rowpad(x)[stride*i+dy, :] @ S[dy].
    Horizontal taps/stride/padding are folded into the sparsity pattern of S."""
    kh, kw, cin, cout = w.shape
    p = jnp.arange(w_in)[:, None, None]
    dx = jnp.arange(kw)[None, :, None]
    j = jnp.arange(w_out)[None, None, :]
    sel = (p == stride * j + dx - pad).astype(w.dtype)            # (w_in, kw, w_out)
    s = jnp.einsum("pxj,yxco->ypcjo", sel, w)                     # (kh, w_in, cin, w_out, cout)
    return s.reshape(kh, w_in * cin, w_out * cout)


def _tile_bn(bn, w_out):
    """Tile folded per-channel BN scale/bias across the interleaved lane dim."""
    g = jnp.tile(bn[0], w_out).reshape(1, -1).astype(jnp.float32)
    b = jnp.tile(bn[1], w_out).reshape(1, -1).astype(jnp.float32)
    return g, b


def _pad_cin(w, cin_p):
    """Zero-pad input channels of a (kh,kw,Cin,Cout) conv weight to cin_p."""
    kh, kw, cin, cout = w.shape
    if cin == cin_p:
        return w
    return jnp.concatenate([w, jnp.zeros((kh, kw, cin_p - cin, cout), w.dtype)], axis=2)


def make_row_subsample(B, H, stride):
    """P (B*Ho, B*H): P @ X selects rows b*H + stride*i (per-batch row subsample)."""
    Ho = H // stride
    r = jnp.arange(B * Ho)
    c = jnp.arange(B * H)
    sel_col = (r // Ho) * H + (r % Ho) * stride
    return (c[None, :] == sel_col[:, None]).astype(jnp.float32)


def make_pool_matrix(B, Hf):
    """Pool (B, B*Hf): Pool @ X averages each batch element's Hf rows."""
    r = jnp.arange(B)
    c = jnp.arange(B * Hf)
    return ((c[None, :] // Hf) == r[:, None]).astype(jnp.float32) / float(Hf)


# ----------------------------------------------------------------------------
# Build the fused forward (folds weights once, returns a jitted callable)
# ----------------------------------------------------------------------------
def build_resnet_forward(params, x_shape, num_classes, compute_dtype=COMPUTE_DTYPE):
    B, Cin, H, W = (int(d) for d in x_shape)

    # Pad input channels so the stem lane width (W * cin_p) is a multiple of 128.
    cin_p = Cin
    while (W * cin_p) % 128 != 0:
        cin_p += 1

    flat = []
    strides, has_sc = [], []

    # stem
    c0 = int(params["conv1"].shape[-1])
    w0 = _pad_cin(params["conv1"], cin_p)
    S0 = fold_conv_weight(w0, W, W, 1, 1).reshape(3 * W * cin_p, W * c0).astype(compute_dtype)
    g0, b0 = _tile_bn(params["bn1"], W)
    flat += [S0, g0, b0]

    # blocks
    curH, curW, curC = H, W, c0
    for layer in params["layers"]:
        for bp in layer:
            s = int(bp["stride"])
            Ho, Wo = curH // s, curW // s
            C1, C2 = int(bp["conv1"].shape[-1]), int(bp["conv2"].shape[-1])
            sc = "sc_conv" in bp
            strides.append(s)
            has_sc.append(sc)
            if s != 1:
                flat.append(make_row_subsample(B, curH, s).astype(compute_dtype))
            S1 = fold_conv_weight(bp["conv1"], curW, Wo, s, 1)
            S1 = S1.reshape(3 * curW * curC, Wo * C1).astype(compute_dtype)
            g1, b1 = _tile_bn(bp["bn1"], Wo)
            S2 = fold_conv_weight(bp["conv2"], Wo, Wo, 1, 1)
            S2 = S2.reshape(3 * Wo * C1, Wo * C2).astype(compute_dtype)
            g2, b2 = _tile_bn(bp["bn2"], Wo)
            flat += [S1, g1, b1, S2, g2, b2]
            if sc:
                Ssc = fold_conv_weight(bp["sc_conv"], curW, Wo, s, 0)[0].astype(compute_dtype)
                gsc, bsc = _tile_bn(bp["sc_bn"], Wo)
                flat += [Ssc, gsc, bsc]
            curH, curW, curC = Ho, Wo, C2

    # head (avg_pool2d(4) == global mean only for a 4x4 final map)
    assert curH == 4 and curW == 4, "head assumes a 4x4 final feature map (32x32 input)"
    nc = int(num_classes)
    npad = ((nc + 127) // 128) * 128
    Pool = make_pool_matrix(B, curH).astype(compute_dtype)
    wf = jnp.broadcast_to(params["linear_w"][None] / float(curW),
                          (curW, curC, nc)).reshape(curW * curC, nc)
    wh = jnp.zeros((curW * curC, npad), jnp.float32).at[:, :nc].set(wf).astype(compute_dtype)
    bh = jnp.zeros((1, npad), jnp.float32).at[:, :nc].set(params["linear_b"][None, :])
    flat += [Pool, wh, bh]

    weights = tuple(flat)
    kernel = functools.partial(_resnet_kernel, B=B, H0=H,
                               strides=tuple(strides), has_sc=tuple(has_sc),
                               cd=compute_dtype)
    call = pl.pallas_call(
        kernel,
        out_shape=jax.ShapeDtypeStruct((B, npad), jnp.float32),
        compiler_params=pltpu.CompilerParams(vmem_limit_bytes=32 * 1024 * 1024),
    )

    def forward(x_nchw):
        xt = jnp.transpose(x_nchw, (0, 2, 3, 1))                 # (B, H, W, Cin)
        if cin_p != Cin:
            xt = jnp.pad(xt, ((0, 0), (0, 0), (0, 0), (0, cin_p - Cin)))
        x2d = xt.reshape(B * H, W * cin_p).astype(jnp.float32)   # lane-dense (B*H, W*Cin)
        return call(x2d, *weights)[:, :nc]

    return jax.jit(forward)


# ----------------------------------------------------------------------------
# Parameters (deterministic, synthetic)
# ----------------------------------------------------------------------------
def init_conv(key, cin, cout, k):
    fan_in = cin * k * k
    return jax.random.normal(key, (k, k, cin, cout), jnp.float32) * (2.0 / fan_in) ** 0.5


def init_bn(key, c, eps=1e-5):
    k1, k2, k3, k4 = jax.random.split(key, 4)
    gamma = 1.0 + 0.1 * jax.random.normal(k1, (c,), jnp.float32)
    beta = 0.1 * jax.random.normal(k2, (c,), jnp.float32)
    mean = 0.1 * jax.random.normal(k3, (c,), jnp.float32)
    var = 0.5 + jax.random.uniform(k4, (c,), jnp.float32)
    scale = gamma / jnp.sqrt(var + eps)
    bias = beta - mean * scale
    return scale, bias


def build_params(key, cfg, num_blocks, num_classes):
    keys = iter(jax.random.split(key, 256))
    params = {
        "conv1": init_conv(next(keys), 3, cfg[0][0], 3),
        "bn1": init_bn(next(keys), cfg[0][0]),
    }
    layers = []
    last = cfg[0][0]
    for li in range(4):
        layer_cfg = cfg[li + 1]
        stride0 = 1 if li == 0 else 2
        strides = [stride0] + [1] * (num_blocks[li] - 1)
        blocks = []
        for bi, s in enumerate(strides):
            bc = layer_cfg[bi]                      # per-block channel list [c1, c2]
            in_c, c1, c2 = last, bc[0], bc[-1]
            bp = {
                "stride": s,
                "conv1": init_conv(next(keys), in_c, c1, 3),
                "bn1": init_bn(next(keys), c1),
                "conv2": init_conv(next(keys), c1, c2, 3),
                "bn2": init_bn(next(keys), c2),
            }
            if s != 1 or in_c != c2:
                bp["sc_conv"] = init_conv(next(keys), in_c, c2, 1)
                bp["sc_bn"] = init_bn(next(keys), c2)
            blocks.append(bp)
            last = c2
        layers.append(blocks)
    params["layers"] = layers
    kw_, kb_ = jax.random.split(next(keys))
    params["linear_w"] = jax.random.normal(kw_, (last, num_classes), jnp.float32) * (1.0 / last) ** 0.5
    params["linear_b"] = 0.01 * jax.random.normal(kb_, (num_classes,), jnp.float32)
    return params


# ----------------------------------------------------------------------------
if __name__ == "__main__":
    # Small ResNet config: stem=8, layers [[8,8]], [[16,16]], [[16,16]], [[32,32]]
    cfg = [[8], [[8, 8]], [[16, 16]], [[16, 16]], [[32, 32]]]
    num_blocks = [1, 1, 1, 1]
    num_classes = 10

    key = jax.random.PRNGKey(0)
    kp, kx = jax.random.split(key)
    params = build_params(kp, cfg, num_blocks, num_classes)

    # 3-channel 32x32 input so the final 4x4 avg-pool matches the reference.
    x = jax.random.normal(kx, (2, 3, 32, 32), jnp.float32)

    forward = build_resnet_forward(params, x.shape, num_classes)
    logits = jax.block_until_ready(forward(x))
    assert logits.shape == (2, num_classes)
    print("KERNEL_OK")
</pallas_src>

<mosaic_0001>
module attributes {stable_mosaic.version = 11 : i64} {
  func.func @_resnet_kernel(%arg0: memref<64x128xf32, #tpu.memory_space<vmem>>, %arg1: memref<384x256xbf16, #tpu.memory_space<vmem>>, %arg2: memref<1x256xf32, #tpu.memory_space<vmem>>, %arg3: memref<1x256xf32, #tpu.memory_space<vmem>>, %arg4: memref<768x256xbf16, #tpu.memory_space<vmem>>, %arg5: memref<1x256xf32, #tpu.memory_space<vmem>>, %arg6: memref<1x256xf32, #tpu.memory_space<vmem>>, %arg7: memref<768x256xbf16, #tpu.memory_space<vmem>>, %arg8: memref<1x256xf32, #tpu.memory_space<vmem>>, %arg9: memref<1x256xf32, #tpu.memory_space<vmem>>, %arg10: memref<32x64xbf16, #tpu.memory_space<vmem>>, %arg11: memref<768x256xbf16, #tpu.memory_space<vmem>>, %arg12: memref<1x256xf32, #tpu.memory_space<vmem>>, %arg13: memref<1x256xf32, #tpu.memory_space<vmem>>, %arg14: memref<768x256xbf16, #tpu.memory_space<vmem>>, %arg15: memref<1x256xf32, #tpu.memory_space<vmem>>, %arg16: memref<1x256xf32, #tpu.memory_space<vmem>>, %arg17: memref<256x256xbf16, #tpu.memory_space<vmem>>, %arg18: memref<1x256xf32, #tpu.memory_space<vmem>>, %arg19: memref<1x256xf32, #tpu.memory_space<vmem>>, %arg20: memref<16x32xbf16, #tpu.memory_space<vmem>>, %arg21: memref<768x128xbf16, #tpu.memory_space<vmem>>, %arg22: memref<1x128xf32, #tpu.memory_space<vmem>>, %arg23: memref<1x128xf32, #tpu.memory_space<vmem>>, %arg24: memref<384x128xbf16, #tpu.memory_space<vmem>>, %arg25: memref<1x128xf32, #tpu.memory_space<vmem>>, %arg26: memref<1x128xf32, #tpu.memory_space<vmem>>, %arg27: memref<256x128xbf16, #tpu.memory_space<vmem>>, %arg28: memref<1x128xf32, #tpu.memory_space<vmem>>, %arg29: memref<1x128xf32, #tpu.memory_space<vmem>>, %arg30: memref<8x16xbf16, #tpu.memory_space<vmem>>, %arg31: memref<384x128xbf16, #tpu.memory_space<vmem>>, %arg32: memref<1x128xf32, #tpu.memory_space<vmem>>, %arg33: memref<1x128xf32, #tpu.memory_space<vmem>>, %arg34: memref<384x128xbf16, #tpu.memory_space<vmem>>, %arg35: memref<1x128xf32, #tpu.memory_space<vmem>>, %arg36: memref<1x128xf32, #tpu.memory_space<vmem>>, %arg37: memref<128x128xbf16, #tpu.memory_space<vmem>>, %arg38: memref<1x128xf32, #tpu.memory_space<vmem>>, %arg39: memref<1x128xf32, #tpu.memory_space<vmem>>, %arg40: memref<2x8xbf16, #tpu.memory_space<vmem>>, %arg41: memref<128x128xbf16, #tpu.memory_space<vmem>>, %arg42: memref<1x128xf32, #tpu.memory_space<vmem>>, %arg43: memref<2x128xf32, #tpu.memory_space<vmem>>) attributes {dimension_semantics = [], scalar_prefetch = 0 : i64, scratch_operands = 0 : i64, tpu.core_type = #tpu.core_type<tc>} {
    %c0 = arith.constant 0 : index
    %c0_0 = arith.constant 0 : index
    %0 = vector.load %arg0[%c0, %c0_0] : memref<64x128xf32, #tpu.memory_space<vmem>>, vector<64x128xf32>
    %c0_1 = arith.constant 0 : index
    %c0_2 = arith.constant 0 : index
    %1 = vector.load %arg1[%c0_1, %c0_2] : memref<384x256xbf16, #tpu.memory_space<vmem>>, vector<384x256xbf16>
    %c0_3 = arith.constant 0 : index
    %c0_4 = arith.constant 0 : index
    %2 = vector.load %arg2[%c0_3, %c0_4] : memref<1x256xf32, #tpu.memory_space<vmem>>, vector<1x256xf32>
    %c0_5 = arith.constant 0 : index
    %c0_6 = arith.constant 0 : index
    %3 = vector.load %arg3[%c0_5, %c0_6] : memref<1x256xf32, #tpu.memory_space<vmem>>, vector<1x256xf32>
    %cst = arith.constant 0.000000e+00 : f32
    %4 = vector.broadcast %cst : f32 to vector<1x128xf32>
    %5 = vector.extract_strided_slice %0 {offsets = [0, 0], sizes = [63, 128], strides = [1, 1]} : vector<64x128xf32> to vector<63x128xf32>
    %6 = tpu.concatenate %4, %5 in 0 : vector<1x128xf32>, vector<63x128xf32> -> vector<64x128xf32>
    %7 = vector.extract_strided_slice %0 {offsets = [1, 0], sizes = [63, 128], strides = [1, 1]} : vector<64x128xf32> to vector<63x128xf32>
    %8 = tpu.concatenate %7, %4 in 0 : vector<63x128xf32>, vector<1x128xf32> -> vector<64x128xf32>
    %9 = tpu.iota {dimensions = array<i32: 0>} : vector<64x1xi32>
    %c32_i32 = arith.constant 32 : i32
    %c0_i32 = arith.constant 0 : i32
    %10 = arith.cmpi eq, %c32_i32, %c0_i32 : i32
    %c1_i32 = arith.constant 1 : i32
    %11 = arith.select %10, %c1_i32, %c32_i32 : i32
    %12 = vector.broadcast %11 : i32 to vector<64x1xi32>
    %13 = arith.remsi %9, %12 : vector<64x1xi32>
    %c0_i32_7 = arith.constant 0 : i32
    %14 = vector.broadcast %c0_i32_7 : i32 to vector<64x1xi32>
    %15 = arith.cmpi ne, %13, %14 : vector<64x1xi32>
    %c0_i32_8 = arith.constant 0 : i32
    %16 = vector.broadcast %c0_i32_8 : i32 to vector<64x1xi32>
    %17 = arith.cmpi slt, %13, %16 : vector<64x1xi32>
    %c0_i32_9 = arith.constant 0 : i32
    %18 = arith.cmpi slt, %11, %c0_i32_9 : i32
    %19 = vector.broadcast %18 : i1 to vector<64x1xi1>
    %20 = vector.broadcast %19 : vector<64x1xi1> to vector<64x1xi1>
    %21 = arith.xori %17, %20 : vector<64x1xi1>
    %22 = arith.andi %21, %15 : vector<64x1xi1>
    %23 = vector.broadcast %11 : i32 to vector<64x1xi32>
    %24 = arith.addi %13, %23 : vector<64x1xi32>
    %25 = arith.select %22, %24, %13 : vector<64x1xi1>, vector<64x1xi32>
    %c0_i32_10 = arith.constant 0 : i32
    %26 = vector.broadcast %c0_i32_10 : i32 to vector<64x1xi32>
    %27 = arith.cmpi eq, %25, %26 : vector<64x1xi32>
    %cst_11 = arith.constant 0.000000e+00 : f32
    %28 = vector.shape_cast %27 : vector<64x1xi1> to vector<64x1xi1>
    %29 = vector.broadcast %28 : vector<64x1xi1> to vector<64x128xi1>
    %30 = vector.broadcast %cst_11 : f32 to vector<64x128xf32>
    %31 = arith.select %29, %30, %6 : vector<64x128xi1>, vector<64x128xf32>
    %c31_i32 = arith.constant 31 : i32
    %32 = vector.broadcast %c31_i32 : i32 to vector<64x1xi32>
    %33 = arith.cmpi eq, %25, %32 : vector<64x1xi32>
    %cst_12 = arith.constant 0.000000e+00 : f32
    %34 = vector.shape_cast %33 : vector<64x1xi1> to vector<64x1xi1>
    %35 = vector.broadcast %34 : vector<64x1xi1> to vector<64x128xi1>
    %36 = vector.broadcast %cst_12 : f32 to vector<64x128xf32>
    %37 = arith.select %35, %36, %8 : vector<64x128xi1>, vector<64x128xf32>
    %38 = tpu.concatenate %31, %0, %37 in 1 : vector<64x128xf32>, vector<64x128xf32>, vector<64x128xf32> -> vector<64x384xf32>
    %39 = arith.truncf %38 : vector<64x384xf32> to vector<64x384xbf16>
    %cst_13 = arith.constant dense<0.000000e+00> : vector<64x256xf32>
    %40 = tpu.matmul %39, %1, %cst_13 {dimension_numbers = #tpu.dot_dimension_numbers<[1], [0], [0], [1], [0, 0, 1, 1], [], []>} : vector<64x384xbf16>, vector<384x256xbf16>, vector<64x256xf32> -> vector<64x256xf32>
    %41 = vector.broadcast %2 : vector<1x256xf32> to vector<64x256xf32>
    %42 = arith.mulf %40, %41 : vector<64x256xf32>
    %43 = vector.broadcast %3 : vector<1x256xf32> to vector<64x256xf32>
    %44 = arith.addf %42, %43 : vector<64x256xf32>
    %cst_14 = arith.constant 0.000000e+00 : f32
    %45 = vector.broadcast %cst_14 : f32 to vector<64x256xf32>
    %46 = arith.maximumf %44, %45 : vector<64x256xf32>
    %c0_15 = arith.constant 0 : index
    %c0_16 = arith.constant 0 : index
    %47 = vector.load %arg4[%c0_15, %c0_16] : memref<768x256xbf16, #tpu.memory_space<vmem>>, vector<768x256xbf16>
    %c0_17 = arith.constant 0 : index
    %c0_18 = arith.constant 0 : index
    %48 = vector.load %arg5[%c0_17, %c0_18] : memref<1x256xf32, #tpu.memory_space<vmem>>, vector<1x256xf32>
    %c0_19 = arith.constant 0 : index
    %c0_20 = arith.constant 0 : index
    %49 = vector.load %arg6[%c0_19, %c0_20] : memref<1x256xf32, #tpu.memory_space<vmem>>, vector<1x256xf32>
    %c0_21 = arith.constant 0 : index
    %c0_22 = arith.constant 0 : index
    %50 = vector.load %arg7[%c0_21, %c0_22] : memref<768x256xbf16, #tpu.memory_space<vmem>>, vector<768x256xbf16>
    %c0_23 = arith.constant 0 : index
    %c0_24 = arith.constant 0 : index
    %51 = vector.load %arg8[%c0_23, %c0_24] : memref<1x256xf32, #tpu.memory_space<vmem>>, vector<1x256xf32>
    %c0_25 = arith.constant 0 : index
    %c0_26 = arith.constant 0 : index
    %52 = vector.load %arg9[%c0_25, %c0_26] : memref<1x256xf32, #tpu.memory_space<vmem>>, vector<1x256xf32>
    %cst_27 = arith.constant 0.000000e+00 : f32
    %53 = vector.broadcast %cst_27 : f32 to vector<1x256xf32>
    %54 = vector.extract_strided_slice %46 {offsets = [0, 0], sizes = [63, 256], strides = [1, 1]} : vector<64x256xf32> to vector<63x256xf32>
    %55 = tpu.concatenate %53, %54 in 0 : vector<1x256xf32>, vector<63x256xf32> -> vector<64x256xf32>
    %56 = vector.extract_strided_slice %46 {offsets = [1, 0], sizes = [63, 256], strides = [1, 1]} : vector<64x256xf32> to vector<63x256xf32>
    %57 = tpu.concatenate %56, %53 in 0 : vector<63x256xf32>, vector<1x256xf32> -> vector<64x256xf32>
    %58 = tpu.iota {dimensions = array<i32: 0>} : vector<64x1xi32>
    %c32_i32_28 = arith.constant 32 : i32
    %c0_i32_29 = arith.constant 0 : i32
    %59 = arith.cmpi eq, %c32_i32_28, %c0_i32_29 : i32
    %c1_i32_30 = arith.constant 1 : i32
    %60 = arith.select %59, %c1_i32_30, %c32_i32_28 : i32
    %61 = vector.broadcast %60 : i32 to vector<64x1xi32>
    %62 = arith.remsi %58, %61 : vector<64x1xi32>
    %c0_i32_31 = arith.constant 0 : i32
    %63 = vector.broadcast %c0_i32_31 : i32 to vector<64x1xi32>
    %64 = arith.cmpi ne, %62, %63 : vector<64x1xi32>
    %c0_i32_32 = arith.constant 0 : i32
    %65 = vector.broadcast %c0_i32_32 : i32 to vector<64x1xi32>
    %66 = arith.cmpi slt, %62, %65 : vector<64x1xi32>
    %c0_i32_33 = arith.constant 0 : i32
    %67 = arith.cmpi slt, %60, %c0_i32_33 : i32
    %68 = vector.broadcast %67 : i1 to vector<64x1xi1>
    %69 = vector.broadcast %68 : vector<64x1xi1> to vector<64x1xi1>
    %70 = arith.xori %66, %69 : vector<64x1xi1>
    %71 = arith.andi %70, %64 : vector<64x1xi1>
    %72 = vector.broadcast %60 : i32 to vector<64x1xi32>
    %73 = arith.addi %62, %72 : vector<64x1xi32>
    %74 = arith.select %71, %73, %62 : vector<64x1xi1>, vector<64x1xi32>
    %c0_i32_34 = arith.constant 0 : i32
    %75 = vector.broadcast %c0_i32_34 : i32 to vector<64x1xi32>
    %76 = arith.cmpi eq, %74, %75 : vector<64x1xi32>
    %cst_35 = arith.constant 0.000000e+00 : f32
    %77 = vector.shape_cast %76 : vector<64x1xi1> to vector<64x1xi1>
    %78 = vector.broadcast %77 : vector<64x1xi1> to vector<64x256xi1>
    %79 = vector.broadcast %cst_35 : f32 to vector<64x256xf32>
    %80 = arith.select %78, %79, %55 : vector<64x256xi1>, vector<64x256xf32>
    %c31_i32_36 = arith.constant 31 : i32
    %81 = vector.broadcast %c31_i32_36 : i32 to vector<64x1xi32>
    %82 = arith.cmpi eq, %74, %81 : vector<64x1xi32>
    %cst_37 = arith.constant 0.000000e+00 : f32
    %83 = vector.shape_cast %82 : vector<64x1xi1> to vector<64x1xi1>
    %84 = vector.broadcast %83 : vector<64x1xi1> to vector<64x256xi1>
    %85 = vector.broadcast %cst_37 : f32 to vector<64x256xf32>
    %86 = arith.select %84, %85, %57 : vector<64x256xi1>, vector<64x256xf32>
    %87 = tpu.concatenate %80, %46, %86 in 1 : vector<64x256xf32>, vector<64x256xf32>, vector<64x256xf32> -> vector<64x768xf32>
    %88 = arith.truncf %87 : vector<64x768xf32> to vector<64x768xbf16>
    %cst_38 = arith.constant dense<0.000000e+00> : vector<64x256xf32>
    %89 = tpu.matmul %88, %47, %cst_38 {dimension_numbers = #tpu.dot_dimension_numbers<[1], [0], [0], [1], [0, 0, 1, 1], [], []>} : vector<64x768xbf16>, vector<768x256xbf16>, vector<64x256xf32> -> vector<64x256xf32>
    %90 = vector.broadcast %48 : vector<1x256xf32> to vector<64x256xf32>
    %91 = arith.mulf %89, %90 : vector<64x256xf32>
    %92 = vector.broadcast %49 : vector<1x256xf32> to vector<64x256xf32>
    %93 = arith.addf %91, %92 : vector<64x256xf32>
    %cst_39 = arith.constant 0.000000e+00 : f32
    %94 = vector.broadcast %cst_39 : f32 to vector<64x256xf32>
    %95 = arith.maximumf %93, %94 : vector<64x256xf32>
    %cst_40 = arith.constant 0.000000e+00 : f32
    %96 = vector.broadcast %cst_40 : f32 to vector<1x256xf32>
    %97 = vector.extract_strided_slice %95 {offsets = [0, 0], sizes = [63, 256], strides = [1, 1]} : vector<64x256xf32> to vector<63x256xf32>
    %98 = tpu.concatenate %96, %97 in 0 : vector<1x256xf32>, vector<63x256xf32> -> vector<64x256xf32>
    %99 = vector.extract_strided_slice %95 {offsets = [1, 0], sizes = [63, 256], strides = [1, 1]} : vector<64x256xf32> to vector<63x256xf32>
    %100 = tpu.concatenate %99, %96 in 0 : vector<63x256xf32>, vector<1x256xf32> -> vector<64x256xf32>
    %101 = tpu.iota {dimensions = array<i32: 0>} : vector<64x1xi32>
    %c32_i32_41 = arith.constant 32 : i32
    %c0_i32_42 = arith.constant 0 : i32
    %102 = arith.cmpi eq, %c32_i32_41, %c0_i32_42 : i32
    %c1_i32_43 = arith.constant 1 : i32
    %103 = arith.select %102, %c1_i32_43, %c32_i32_41 : i32
    %104 = vector.broadcast %103 : i32 to vector<64x1xi32>
    %105 = arith.remsi %101, %104 : vector<64x1xi32>
    %c0_i32_44 = arith.constant 0 : i32
    %106 = vector.broadcast %c0_i32_44 : i32 to vector<64x1xi32>
    %107 = arith.cmpi ne, %105, %106 : vector<64x1xi32>
    %c0_i32_45 = arith.constant 0 : i32
    %108 = vector.broadcast %c0_i32_45 : i32 to vector<64x1xi32>
    %109 = arith.cmpi slt, %105, %108 : vector<64x1xi32>
    %c0_i32_46 = arith.constant 0 : i32
    %110 = arith.cmpi slt, %103, %c0_i32_46 : i32
    %111 = vector.broadcast %110 : i1 to vector<64x1xi1>
    %112 = vector.broadcast %111 : vector<64x1xi1> to vector<64x1xi1>
    %113 = arith.xori %109, %112 : vector<64x1xi1>
    %114 = arith.andi %113, %107 : vector<64x1xi1>
    %115 = vector.broadcast %103 : i32 to vector<64x1xi32>
    %116 = arith.addi %105, %115 : vector<64x1xi32>
    %117 = arith.select %114, %116, %105 : vector<64x1xi1>, vector<64x1xi32>
    %c0_i32_47 = arith.constant 0 : i32
    %118 = vector.broadcast %c0_i32_47 : i32 to vector<64x1xi32>
    %119 = arith.cmpi eq, %117, %118 : vector<64x1xi32>
    %cst_48 = arith.constant 0.000000e+00 : f32
    %120 = vector.shape_cast %119 : vector<64x1xi1> to vector<64x1xi1>
    %121 = vector.broadcast %120 : vector<64x1xi1> to vector<64x256xi1>
    %122 = vector.broadcast %cst_48 : f32 to vector<64x256xf32>
    %123 = arith.select %121, %122, %98 : vector<64x256xi1>, vector<64x256xf32>
    %c31_i32_49 = arith.constant 31 : i32
    %124 = vector.broadcast %c31_i32_49 : i32 to vector<64x1xi32>
    %125 = arith.cmpi eq, %117, %124 : vector<64x1xi32>
    %cst_50 = arith.constant 0.000000e+00 : f32
    %126 = vector.shape_cast %125 : vector<64x1xi1> to vector<64x1xi1>
    %127 = vector.broadcast %126 : vector<64x1xi1> to vector<64x256xi1>
    %128 = vector.broadcast %cst_50 : f32 to vector<64x256xf32>
    %129 = arith.select %127, %128, %100 : vector<64x256xi1>, vector<64x256xf32>
    %130 = tpu.concatenate %123, %95, %129 in 1 : vector<64x256xf32>, vector<64x256xf32>, vector<64x256xf32> -> vector<64x768xf32>
    %131 = arith.truncf %130 : vector<64x768xf32> to vector<64x768xbf16>
    %cst_51 = arith.constant dense<0.000000e+00> : vector<64x256xf32>
    %132 = tpu.matmul %131, %50, %cst_51 {dimension_numbers = #tpu.dot_dimension_numbers<[1], [0], [0], [1], [0, 0, 1, 1], [], []>} : vector<64x768xbf16>, vector<768x256xbf16>, vector<64x256xf32> -> vector<64x256xf32>
    %133 = vector.broadcast %51 : vector<1x256xf32> to vector<64x256xf32>
    %134 = arith.mulf %132, %133 : vector<64x256xf32>
    %135 = vector.broadcast %52 : vector<1x256xf32> to vector<64x256xf32>
    %136 = arith.addf %134, %135 : vector<64x256xf32>
    %137 = arith.addf %136, %46 : vector<64x256xf32>
    %cst_52 = arith.constant 0.000000e+00 : f32
    %138 = vector.broadcast %cst_52 : f32 to vector<64x256xf32>
    %139 = arith.maximumf %137, %138 : vector<64x256xf32>
    %c0_53 = arith.constant 0 : index
    %c0_54 = arith.constant 0 : index
    %140 = vector.load %arg10[%c0_53, %c0_54] : memref<32x64xbf16, #tpu.memory_space<vmem>>, vector<32x64xbf16>
    %c0_55 = arith.constant 0 : index
    %c0_56 = arith.constant 0 : index
    %141 = vector.load %arg11[%c0_55, %c0_56] : memref<768x256xbf16, #tpu.memory_space<vmem>>, vector<768x256xbf16>
    %c0_57 = arith.constant 0 : index
    %c0_58 = arith.constant 0 : index
    %142 = vector.load %arg12[%c0_57, %c0_58] : memref<1x256xf32, #tpu.memory_space<vmem>>, vector<1x256xf32>
    %c0_59 = arith.constant 0 : index
    %c0_60 = arith.constant 0 : index
    %143 = vector.load %arg13[%c0_59, %c0_60] : memref<1x256xf32, #tpu.memory_space<vmem>>, vector<1x256xf32>
    %c0_61 = arith.constant 0 : index
    %c0_62 = arith.constant 0 : index
    %144 = vector.load %arg14[%c0_61, %c0_62] : memref<768x256xbf16, #tpu.memory_space<vmem>>, vector<768x256xbf16>
    %c0_63 = arith.constant 0 : index
    %c0_64 = arith.constant 0 : index
    %145 = vector.load %arg15[%c0_63, %c0_64] : memref<1x256xf32, #tpu.memory_space<vmem>>, vector<1x256xf32>
    %c0_65 = arith.constant 0 : index
    %c0_66 = arith.constant 0 : index
    %146 = vector.load %arg16[%c0_65, %c0_66] : memref<1x256xf32, #tpu.memory_space<vmem>>, vector<1x256xf32>
    %c0_67 = arith.constant 0 : index
    %c0_68 = arith.constant 0 : index
    %147 = vector.load %arg17[%c0_67, %c0_68] : memref<256x256xbf16, #tpu.memory_space<vmem>>, vector<256x256xbf16>
    %c0_69 = arith.constant 0 : index
    %c0_70 = arith.constant 0 : index
    %148 = vector.load %arg18[%c0_69, %c0_70] : memref<1x256xf32, #tpu.memory_space<vmem>>, vector<1x256xf32>
    %c0_71 = arith.constant 0 : index
    %c0_72 = arith.constant 0 : index
    %149 = vector.load %arg19[%c0_71, %c0_72] : memref<1x256xf32, #tpu.memory_space<vmem>>, vector<1x256xf32>
    %cst_73 = arith.constant 0.000000e+00 : f32
    %150 = vector.broadcast %cst_73 : f32 to vector<1x256xf32>
    %151 = vector.extract_strided_slice %139 {offsets = [0, 0], sizes = [63, 256], strides = [1, 1]} : vector<64x256xf32> to vector<63x256xf32>
    %152 = tpu.concatenate %150, %151 in 0 : vector<1x256xf32>, vector<63x256xf32> -> vector<64x256xf32>
    %153 = vector.extract_strided_slice %139 {offsets = [1, 0], sizes = [63, 256], strides = [1, 1]} : vector<64x256xf32> to vector<63x256xf32>
    %154 = tpu.concatenate %153, %150 in 0 : vector<63x256xf32>, vector<1x256xf32> -> vector<64x256xf32>
    %155 = tpu.iota {dimensions = array<i32: 0>} : vector<64x1xi32>
    %c32_i32_74 = arith.constant 32 : i32
    %c0_i32_75 = arith.constant 0 : i32
    %156 = arith.cmpi eq, %c32_i32_74, %c0_i32_75 : i32
    %c1_i32_76 = arith.constant 1 : i32
    %157 = arith.select %156, %c1_i32_76, %c32_i32_74 : i32
    %158 = vector.broadcast %157 : i32 to vector<64x1xi32>
    %159 = arith.remsi %155, %158 : vector<64x1xi32>
    %c0_i32_77 = arith.constant 0 : i32
    %160 = vector.broadcast %c0_i32_77 : i32 to vector<64x1xi32>
    %161 = arith.cmpi ne, %159, %160 : vector<64x1xi32>
    %c0_i32_78 = arith.constant 0 : i32
    %162 = vector.broadcast %c0_i32_78 : i32 to vector<64x1xi32>
    %163 = arith.cmpi slt, %159, %162 : vector<64x1xi32>
    %c0_i32_79 = arith.constant 0 : i32
    %164 = arith.cmpi slt, %157, %c0_i32_79 : i32
    %165 = vector.broadcast %164 : i1 to vector<64x1xi1>
    %166 = vector.broadcast %165 : vector<64x1xi1> to vector<64x1xi1>
    %167 = arith.xori %163, %166 : vector<64x1xi1>
    %168 = arith.andi %167, %161 : vector<64x1xi1>
    %169 = vector.broadcast %157 : i32 to vector<64x1xi32>
    %170 = arith.addi %159, %169 : vector<64x1xi32>
    %171 = arith.select %168, %170, %159 : vector<64x1xi1>, vector<64x1xi32>
    %c0_i32_80 = arith.constant 0 : i32
    %172 = vector.broadcast %c0_i32_80 : i32 to vector<64x1xi32>
    %173 = arith.cmpi eq, %171, %172 : vector<64x1xi32>
    %cst_81 = arith.constant 0.000000e+00 : f32
    %174 = vector.shape_cast %173 : vector<64x1xi1> to vector<64x1xi1>
    %175 = vector.broadcast %174 : vector<64x1xi1> to vector<64x256xi1>
    %176 = vector.broadcast %cst_81 : f32 to vector<64x256xf32>
    %177 = arith.select %175, %176, %152 : vector<64x256xi1>, vector<64x256xf32>
    %c31_i32_82 = arith.constant 31 : i32
    %178 = vector.broadcast %c31_i32_82 : i32 to vector<64x1xi32>
    %179 = arith.cmpi eq, %171, %178 : vector<64x1xi32>
    %cst_83 = arith.constant 0.000000e+00 : f32
    %180 = vector.shape_cast %179 : vector<64x1xi1> to vector<64x1xi1>
    %181 = vector.broadcast %180 : vector<64x1xi1> to vector<64x256xi1>
    %182 = vector.broadcast %cst_83 : f32 to vector<64x256xf32>
    %183 = arith.select %181, %182, %154 : vector<64x256xi1>, vector<64x256xf32>
    %184 = tpu.concatenate %177, %139, %183 in 1 : vector<64x256xf32>, vector<64x256xf32>, vector<64x256xf32> -> vector<64x768xf32>
    %185 = arith.truncf %184 : vector<64x768xf32> to vector<64x768xbf16>
    %cst_84 = arith.constant dense<0.000000e+00> : vector<32x768xf32>
    %186 = tpu.matmul %140, %185, %cst_84 {dimension_numbers = #tpu.dot_dimension_numbers<[1], [0], [0], [1], [0, 0, 1, 1], [], []>} : vector<32x64xbf16>, vector<64x768xbf16>, vector<32x768xf32> -> vector<32x768xf32>
    %187 = arith.truncf %186 : vector<32x768xf32> to vector<32x768xbf16>
    %cst_85 = arith.constant dense<0.000000e+00> : vector<32x256xf32>
    %188 = tpu.matmul %187, %141, %cst_85 {dimension_numbers = #tpu.dot_dimension_numbers<[1], [0], [0], [1], [0, 0, 1, 1], [], []>} : vector<32x768xbf16>, vector<768x256xbf16>, vector<32x256xf32> -> vector<32x256xf32>
    %189 = vector.broadcast %142 : vector<1x256xf32> to vector<32x256xf32>
    %190 = arith.mulf %188, %189 : vector<32x256xf32>
    %191 = vector.broadcast %143 : vector<1x256xf32> to vector<32x256xf32>
    %192 = arith.addf %190, %191 : vector<32x256xf32>
    %cst_86 = arith.constant 0.000000e+00 : f32
    %193 = vector.broadcast %cst_86 : f32 to vector<32x256xf32>
    %194 = arith.maximumf %192, %193 : vector<32x256xf32>
    %cst_87 = arith.constant 0.000000e+00 : f32
    %195 = vector.broadcast %cst_87 : f32 to vector<1x256xf32>
    %196 = vector.extract_strided_slice %194 {offsets = [0, 0], sizes = [31, 256], strides = [1, 1]} : vector<32x256xf32> to vector<31x256xf32>
    %197 = tpu.concatenate %195, %196 in 0 : vector<1x256xf32>, vector<31x256xf32> -> vector<32x256xf32>
    %198 = vector.extract_strided_slice %194 {offsets = [1, 0], sizes = [31, 256], strides = [1, 1]} : vector<32x256xf32> to vector<31x256xf32>
    %199 = tpu.concatenate %198, %195 in 0 : vector<31x256xf32>, vector<1x256xf32> -> vector<32x256xf32>
    %200 = tpu.iota {dimensions = array<i32: 0>} : vector<32x1xi32>
    %c16_i32 = arith.constant 16 : i32
    %c0_i32_88 = arith.constant 0 : i32
    %201 = arith.cmpi eq, %c16_i32, %c0_i32_88 : i32
    %c1_i32_89 = arith.constant 1 : i32
    %202 = arith.select %201, %c1_i32_89, %c16_i32 : i32
    %203 = vector.broadcast %202 : i32 to vector<32x1xi32>
    %204 = arith.remsi %200, %203 : vector<32x1xi32>
    %c0_i32_90 = arith.constant 0 : i32
    %205 = vector.broadcast %c0_i32_90 : i32 to vector<32x1xi32>
    %206 = arith.cmpi ne, %204, %205 : vector<32x1xi32>
    %c0_i32_91 = arith.constant 0 : i32
    %207 = vector.broadcast %c0_i32_91 : i32 to vector<32x1xi32>
    %208 = arith.cmpi slt, %204, %207 : vector<32x1xi32>
    %c0_i32_92 = arith.constant 0 : i32
    %209 = arith.cmpi slt, %202, %c0_i32_92 : i32
    %210 = vector.broadcast %209 : i1 to vector<32x1xi1>
    %211 = vector.broadcast %210 : vector<32x1xi1> to vector<32x1xi1>
    %212 = arith.xori %208, %211 : vector<32x1xi1>
    %213 = arith.andi %212, %206 : vector<32x1xi1>
    %214 = vector.broadcast %202 : i32 to vector<32x1xi32>
    %215 = arith.addi %204, %214 : vector<32x1xi32>
    %216 = arith.select %213, %215, %204 : vector<32x1xi1>, vector<32x1xi32>
    %c0_i32_93 = arith.constant 0 : i32
    %217 = vector.broadcast %c0_i32_93 : i32 to vector<32x1xi32>
    %218 = arith.cmpi eq, %216, %217 : vector<32x1xi32>
    %cst_94 = arith.constant 0.000000e+00 : f32
    %219 = vector.shape_cast %218 : vector<32x1xi1> to vector<32x1xi1>
    %220 = vector.broadcast %219 : vector<32x1xi1> to vector<32x256xi1>
    %221 = vector.broadcast %cst_94 : f32 to vector<32x256xf32>
    %222 = arith.select %220, %221, %197 : vector<32x256xi1>, vector<32x256xf32>
    %c15_i32 = arith.constant 15 : i32
    %223 = vector.broadcast %c15_i32 : i32 to vector<32x1xi32>
    %224 = arith.cmpi eq, %216, %223 : vector<32x1xi32>
    %cst_95 = arith.constant 0.000000e+00 : f32
    %225 = vector.shape_cast %224 : vector<32x1xi1> to vector<32x1xi1>
    %226 = vector.broadcast %225 : vector<32x1xi1> to vector<32x256xi1>
    %227 = vector.broadcast %cst_95 : f32 to vector<32x256xf32>
    %228 = arith.select %226, %227, %199 : vector<32x256xi1>, vector<32x256xf32>
    %229 = tpu.concatenate %222, %194, %228 in 1 : vector<32x256xf32>, vector<32x256xf32>, vector<32x256xf32> -> vector<32x768xf32>
    %230 = arith.truncf %229 : vector<32x768xf32> to vector<32x768xbf16>
    %cst_96 = arith.constant dense<0.000000e+00> : vector<32x256xf32>
    %231 = tpu.matmul %230, %144, %cst_96 {dimension_numbers = #tpu.dot_dimension_numbers<[1], [0], [0], [1], [0, 0, 1, 1], [], []>} : vector<32x768xbf16>, vector<768x256xbf16>, vector<32x256xf32> -> vector<32x256xf32>
    %232 = vector.broadcast %145 : vector<1x256xf32> to vector<32x256xf32>
    %233 = arith.mulf %231, %232 : vector<32x256xf32>
    %234 = vector.broadcast %146 : vector<1x256xf32> to vector<32x256xf32>
    %235 = arith.addf %233, %234 : vector<32x256xf32>
    %236 = vector.extract_strided_slice %186 {offsets = [0, 256], sizes = [32, 256], strides = [1, 1]} : vector<32x768xf32> to vector<32x256xf32>
    %237 = arith.truncf %236 : vector<32x256xf32> to vector<32x256xbf16>
    %cst_97 = arith.constant dense<0.000000e+00> : vector<32x256xf32>
    %238 = tpu.matmul %237, %147, %cst_97 {dimension_numbers = #tpu.dot_dimension_numbers<[1], [0], [0], [1], [0, 0, 1, 1], [], []>} : vector<32x256xbf16>, vector<256x256xbf16>, vector<32x256xf32> -> vector<32x256xf32>
    %239 = vector.broadcast %148 : vector<1x256xf32> to vector<32x256xf32>
    %240 = arith.mulf %238, %239 : vector<32x256xf32>
    %241 = vector.broadcast %149 : vector<1x256xf32> to vector<32x256xf32>
    %242 = arith.addf %240, %241 : vector<32x256xf32>
    %243 = arith.addf %235, %242 : vector<32x256xf32>
    %cst_98 = arith.constant 0.000000e+00 : f32
    %244 = vector.broadcast %cst_98 : f32 to vector<32x256xf32>
    %245 = arith.maximumf %243, %244 : vector<32x256xf32>
    %c0_99 = arith.constant 0 : index
    %c0_100 = arith.constant 0 : index
    %246 = vector.load %arg20[%c0_99, %c0_100] : memref<16x32xbf16, #tpu.memory_space<vmem>>, vector<16x32xbf16>
    %c0_101 = arith.constant 0 : index
    %c0_102 = arith.constant 0 : index
    %247 = vector.load %arg21[%c0_101, %c0_102] : memref<768x128xbf16, #tpu.memory_space<vmem>>, vector<768x128xbf16>
    %c0_103 = arith.constant 0 : index
    %c0_104 = arith.constant 0 : index
    %248 = vector.load %arg22[%c0_103, %c0_104] : memref<1x128xf32, #tpu.memory_space<vmem>>, vector<1x128xf32>
    %c0_105 = arith.constant 0 : index
    %c0_106 = arith.constant 0 : index
    %249 = vector.load %arg23[%c0_105, %c0_106] : memref<1x128xf32, #tpu.memory_space<vmem>>, vector<1x128xf32>
    %c0_107 = arith.constant 0 : index
    %c0_108 = arith.constant 0 : index
    %250 = vector.load %arg24[%c0_107, %c0_108] : memref<384x128xbf16, #tpu.memory_space<vmem>>, vector<384x128xbf16>
    %c0_109 = arith.constant 0 : index
    %c0_110 = arith.constant 0 : index
    %251 = vector.load %arg25[%c0_109, %c0_110] : memref<1x128xf32, #tpu.memory_space<vmem>>, vector<1x128xf32>
    %c0_111 = arith.constant 0 : index
    %c0_112 = arith.constant 0 : index
    %252 = vector.load %arg26[%c0_111, %c0_112] : memref<1x128xf32, #tpu.memory_space<vmem>>, vector<1x128xf32>
    %c0_113 = arith.constant 0 : index
    %c0_114 = arith.constant 0 : index
    %253 = vector.load %arg27[%c0_113, %c0_114] : memref<256x128xbf16, #tpu.memory_space<vmem>>, vector<256x128xbf16>
    %c0_115 = arith.constant 0 : index
    %c0_116 = arith.constant 0 : index
    %254 = vector.load %arg28[%c0_115, %c0_116] : memref<1x128xf32, #tpu.memory_space<vmem>>, vector<1x128xf32>
    %c0_117 = arith.constant 0 : index
    %c0_118 = arith.constant 0 : index
    %255 = vector.load %arg29[%c0_117, %c0_118] : memref<1x128xf32, #tpu.memory_space<vmem>>, vector<1x128xf32>
    %cst_119 = arith.constant 0.000000e+00 : f32
    %256 = vector.broadcast %cst_119 : f32 to vector<1x256xf32>
    %257 = vector.extract_strided_slice %245 {offsets = [0, 0], sizes = [31, 256], strides = [1, 1]} : vector<32x256xf32> to vector<31x256xf32>
    %258 = tpu.concatenate %256, %257 in 0 : vector<1x256xf32>, vector<31x256xf32> -> vector<32x256xf32>
    %259 = vector.extract_strided_slice %245 {offsets = [1, 0], sizes = [31, 256], strides = [1, 1]} : vector<32x256xf32> to vector<31x256xf32>
    %260 = tpu.concatenate %259, %256 in 0 : vector<31x256xf32>, vector<1x256xf32> -> vector<32x256xf32>
    %261 = tpu.iota {dimensions = array<i32: 0>} : vector<32x1xi32>
    %c16_i32_120 = arith.constant 16 : i32
    %c0_i32_121 = arith.constant 0 : i32
    %262 = arith.cmpi eq, %c16_i32_120, %c0_i32_121 : i32
    %c1_i32_122 = arith.constant 1 : i32
    %263 = arith.select %262, %c1_i32_122, %c16_i32_120 : i32
    %264 = vector.broadcast %263 : i32 to vector<32x1xi32>
    %265 = arith.remsi %261, %264 : vector<32x1xi32>
    %c0_i32_123 = arith.constant 0 : i32
    %266 = vector.broadcast %c0_i32_123 : i32 to vector<32x1xi32>
    %267 = arith.cmpi ne, %265, %266 : vector<32x1xi32>
    %c0_i32_124 = arith.constant 0 : i32
    %268 = vector.broadcast %c0_i32_124 : i32 to vector<32x1xi32>
    %269 = arith.cmpi slt, %265, %268 : vector<32x1xi32>
    %c0_i32_125 = arith.constant 0 : i32
    %270 = arith.cmpi slt, %263, %c0_i32_125 : i32
    %271 = vector.broadcast %270 : i1 to vector<32x1xi1>
    %272 = vector.broadcast %271 : vector<32x1xi1> to vector<32x1xi1>
    %273 = arith.xori %269, %272 : vector<32x1xi1>
    %274 = arith.andi %273, %267 : vector<32x1xi1>
    %275 = vector.broadcast %263 : i32 to vector<32x1xi32>
    %276 = arith.addi %265, %275 : vector<32x1xi32>
    %277 = arith.select %274, %276, %265 : vector<32x1xi1>, vector<32x1xi32>
    %c0_i32_126 = arith.constant 0 : i32
    %278 = vector.broadcast %c0_i32_126 : i32 to vector<32x1xi32>
    %279 = arith.cmpi eq, %277, %278 : vector<32x1xi32>
    %cst_127 = arith.constant 0.000000e+00 : f32
    %280 = vector.shape_cast %279 : vector<32x1xi1> to vector<32x1xi1>
    %281 = vector.broadcast %280 : vector<32x1xi1> to vector<32x256xi1>
    %282 = vector.broadcast %cst_127 : f32 to vector<32x256xf32>
    %283 = arith.select %281, %282, %258 : vector<32x256xi1>, vector<32x256xf32>
    %c15_i32_128 = arith.constant 15 : i32
    %284 = vector.broadcast %c15_i32_128 : i32 to vector<32x1xi32>
    %285 = arith.cmpi eq, %277, %284 : vector<32x1xi32>
    %cst_129 = arith.constant 0.000000e+00 : f32
    %286 = vector.shape_cast %285 : vector<32x1xi1> to vector<32x1xi1>
    %287 = vector.broadcast %286 : vector<32x1xi1> to vector<32x256xi1>
    %288 = vector.broadcast %cst_129 : f32 to vector<32x256xf32>
    %289 = arith.select %287, %288, %260 : vector<32x256xi1>, vector<32x256xf32>
    %290 = tpu.concatenate %283, %245, %289 in 1 : vector<32x256xf32>, vector<32x256xf32>, vector<32x256xf32> -> vector<32x768xf32>
    %291 = arith.truncf %290 : vector<32x768xf32> to vector<32x768xbf16>
    %cst_130 = arith.constant dense<0.000000e+00> : vector<16x768xf32>
    %292 = tpu.matmul %246, %291, %cst_130 {dimension_numbers = #tpu.dot_dimension_numbers<[1], [0], [0], [1], [0, 0, 1, 1], [], []>} : vector<16x32xbf16>, vector<32x768xbf16>, vector<16x768xf32> -> vector<16x768xf32>
    %293 = arith.truncf %292 : vector<16x768xf32> to vector<16x768xbf16>
    %cst_131 = arith.constant dense<0.000000e+00> : vector<16x128xf32>
    %294 = tpu.matmul %293, %247, %cst_131 {dimension_numbers = #tpu.dot_dimension_numbers<[1], [0], [0], [1], [0, 0, 1, 1], [], []>} : vector<16x768xbf16>, vector<768x128xbf16>, vector<16x128xf32> -> vector<16x128xf32>
    %295 = vector.broadcast %248 : vector<1x128xf32> to vector<16x128xf32>
    %296 = arith.mulf %294, %295 : vector<16x128xf32>
    %297 = vector.broadcast %249 : vector<1x128xf32> to vector<16x128xf32>
    %298 = arith.addf %296, %297 : vector<16x128xf32>
    %cst_132 = arith.constant 0.000000e+00 : f32
    %299 = vector.broadcast %cst_132 : f32 to vector<16x128xf32>
    %300 = arith.maximumf %298, %299 : vector<16x128xf32>
    %cst_133 = arith.constant 0.000000e+00 : f32
    %301 = vector.broadcast %cst_133 : f32 to vector<1x128xf32>
    %302 = vector.extract_strided_slice %300 {offsets = [0, 0], sizes = [15, 128], strides = [1, 1]} : vector<16x128xf32> to vector<15x128xf32>
    %303 = tpu.concatenate %301, %302 in 0 : vector<1x128xf32>, vector<15x128xf32> -> vector<16x128xf32>
    %304 = vector.extract_strided_slice %300 {offsets = [1, 0], sizes = [15, 128], strides = [1, 1]} : vector<16x128xf32> to vector<15x128xf32>
    %305 = tpu.concatenate %304, %301 in 0 : vector<15x128xf32>, vector<1x128xf32> -> vector<16x128xf32>
    %306 = tpu.iota {dimensions = array<i32: 0>} : vector<16x1xi32>
    %c8_i32 = arith.constant 8 : i32
    %c0_i32_134 = arith.constant 0 : i32
    %307 = arith.cmpi eq, %c8_i32, %c0_i32_134 : i32
    %c1_i32_135 = arith.constant 1 : i32
    %308 = arith.select %307, %c1_i32_135, %c8_i32 : i32
    %309 = vector.broadcast %308 : i32 to vector<16x1xi32>
    %310 = arith.remsi %306, %309 : vector<16x1xi32>
    %c0_i32_136 = arith.constant 0 : i32
    %311 = vector.broadcast %c0_i32_136 : i32 to vector<16x1xi32>
    %312 = arith.cmpi ne, %310, %311 : vector<16x1xi32>
    %c0_i32_137 = arith.constant 0 : i32
    %313 = vector.broadcast %c0_i32_137 : i32 to vector<16x1xi32>
    %314 = arith.cmpi slt, %310, %313 : vector<16x1xi32>
    %c0_i32_138 = arith.constant 0 : i32
    %315 = arith.cmpi slt, %308, %c0_i32_138 : i32
    %316 = vector.broadcast %315 : i1 to vector<16x1xi1>
    %317 = vector.broadcast %316 : vector<16x1xi1> to vector<16x1xi1>
    %318 = arith.xori %314, %317 : vector<16x1xi1>
    %319 = arith.andi %318, %312 : vector<16x1xi1>
    %320 = vector.broadcast %308 : i32 to vector<16x1xi32>
    %321 = arith.addi %310, %320 : vector<16x1xi32>
    %322 = arith.select %319, %321, %310 : vector<16x1xi1>, vector<16x1xi32>
    %c0_i32_139 = arith.constant 0 : i32
    %323 = vector.broadcast %c0_i32_139 : i32 to vector<16x1xi32>
    %324 = arith.cmpi eq, %322, %323 : vector<16x1xi32>
    %cst_140 = arith.constant 0.000000e+00 : f32
    %325 = vector.shape_cast %324 : vector<16x1xi1> to vector<16x1xi1>
    %326 = vector.broadcast %325 : vector<16x1xi1> to vector<16x128xi1>
    %327 = vector.broadcast %cst_140 : f32 to vector<16x128xf32>
    %328 = arith.select %326, %327, %303 : vector<16x128xi1>, vector<16x128xf32>
    %c7_i32 = arith.constant 7 : i32
    %329 = vector.broadcast %c7_i32 : i32 to vector<16x1xi32>
    %330 = arith.cmpi eq, %322, %329 : vector<16x1xi32>
    %cst_141 = arith.constant 0.000000e+00 : f32
    %331 = vector.shape_cast %330 : vector<16x1xi1> to vector<16x1xi1>
    %332 = vector.broadcast %331 : vector<16x1xi1> to vector<16x128xi1>
    %333 = vector.broadcast %cst_141 : f32 to vector<16x128xf32>
    %334 = arith.select %332, %333, %305 : vector<16x128xi1>, vector<16x128xf32>
    %335 = tpu.concatenate %328, %300, %334 in 1 : vector<16x128xf32>, vector<16x128xf32>, vector<16x128xf32> -> vector<16x384xf32>
    %336 = arith.truncf %335 : vector<16x384xf32> to vector<16x384xbf16>
    %cst_142 = arith.constant dense<0.000000e+00> : vector<16x128xf32>
    %337 = tpu.matmul %336, %250, %cst_142 {dimension_numbers = #tpu.dot_dimension_numbers<[1], [0], [0], [1], [0, 0, 1, 1], [], []>} : vector<16x384xbf16>, vector<384x128xbf16>, vector<16x128xf32> -> vector<16x128xf32>
    %338 = vector.broadcast %251 : vector<1x128xf32> to vector<16x128xf32>
    %339 = arith.mulf %337, %338 : vector<16x128xf32>
    %340 = vector.broadcast %252 : vector<1x128xf32> to vector<16x128xf32>
    %341 = arith.addf %339, %340 : vector<16x128xf32>
    %342 = vector.extract_strided_slice %292 {offsets = [0, 256], sizes = [16, 256], strides = [1, 1]} : vector<16x768xf32> to vector<16x256xf32>
    %343 = arith.truncf %342 : vector<16x256xf32> to vector<16x256xbf16>
    %cst_143 = arith.constant dense<0.000000e+00> : vector<16x128xf32>
    %344 = tpu.matmul %343, %253, %cst_143 {dimension_numbers = #tpu.dot_dimension_numbers<[1], [0], [0], [1], [0, 0, 1, 1], [], []>} : vector<16x256xbf16>, vector<256x128xbf16>, vector<16x128xf32> -> vector<16x128xf32>
    %345 = vector.broadcast %254 : vector<1x128xf32> to vector<16x128xf32>
    %346 = arith.mulf %344, %345 : vector<16x128xf32>
    %347 = vector.broadcast %255 : vector<1x128xf32> to vector<16x128xf32>
    %348 = arith.addf %346, %347 : vector<16x128xf32>
    %349 = arith.addf %341, %348 : vector<16x128xf32>
    %cst_144 = arith.constant 0.000000e+00 : f32
    %350 = vector.broadcast %cst_144 : f32 to vector<16x128xf32>
    %351 = arith.maximumf %349, %350 : vector<16x128xf32>
    %c0_145 = arith.constant 0 : index
    %c0_146 = arith.constant 0 : index
    %352 = vector.load %arg30[%c0_145, %c0_146] : memref<8x16xbf16, #tpu.memory_space<vmem>>, vector<8x16xbf16>
    %c0_147 = arith.constant 0 : index
    %c0_148 = arith.constant 0 : index
    %353 = vector.load %arg31[%c0_147, %c0_148] : memref<384x128xbf16, #tpu.memory_space<vmem>>, vector<384x128xbf16>
    %c0_149 = arith.constant 0 : index
    %c0_150 = arith.constant 0 : index
    %354 = vector.load %arg32[%c0_149, %c0_150] : memref<1x128xf32, #tpu.memory_space<vmem>>, vector<1x128xf32>
    %c0_151 = arith.constant 0 : index
    %c0_152 = arith.constant 0 : index
    %355 = vector.load %arg33[%c0_151, %c0_152] : memref<1x128xf32, #tpu.memory_space<vmem>>, vector<1x128xf32>
    %c0_153 = arith.constant 0 : index
    %c0_154 = arith.constant 0 : index
    %356 = vector.load %arg34[%c0_153, %c0_154] : memref<384x128xbf16, #tpu.memory_space<vmem>>, vector<384x128xbf16>
    %c0_155 = arith.constant 0 : index
    %c0_156 = arith.constant 0 : index
    %357 = vector.load %arg35[%c0_155, %c0_156] : memref<1x128xf32, #tpu.memory_space<vmem>>, vector<1x128xf32>
    %c0_157 = arith.constant 0 : index
    %c0_158 = arith.constant 0 : index
    %358 = vector.load %arg36[%c0_157, %c0_158] : memref<1x128xf32, #tpu.memory_space<vmem>>, vector<1x128xf32>
    %c0_159 = arith.constant 0 : index
    %c0_160 = arith.constant 0 : index
    %359 = vector.load %arg37[%c0_159, %c0_160] : memref<128x128xbf16, #tpu.memory_space<vmem>>, vector<128x128xbf16>
    %c0_161 = arith.constant 0 : index
    %c0_162 = arith.constant 0 : index
    %360 = vector.load %arg38[%c0_161, %c0_162] : memref<1x128xf32, #tpu.memory_space<vmem>>, vector<1x128xf32>
    %c0_163 = arith.constant 0 : index
    %c0_164 = arith.constant 0 : index
    %361 = vector.load %arg39[%c0_163, %c0_164] : memref<1x128xf32, #tpu.memory_space<vmem>>, vector<1x128xf32>
    %cst_165 = arith.constant 0.000000e+00 : f32
    %362 = vector.broadcast %cst_165 : f32 to vector<1x128xf32>
    %363 = vector.extract_strided_slice %351 {offsets = [0, 0], sizes = [15, 128], strides = [1, 1]} : vector<16x128xf32> to vector<15x128xf32>
    %364 = tpu.concatenate %362, %363 in 0 : vector<1x128xf32>, vector<15x128xf32> -> vector<16x128xf32>
    %365 = vector.extract_strided_slice %351 {offsets = [1, 0], sizes = [15, 128], strides = [1, 1]} : vector<16x128xf32> to vector<15x128xf32>
    %366 = tpu.concatenate %365, %362 in 0 : vector<15x128xf32>, vector<1x128xf32> -> vector<16x128xf32>
    %367 = tpu.iota {dimensions = array<i32: 0>} : vector<16x1xi32>
    %c8_i32_166 = arith.constant 8 : i32
    %c0_i32_167 = arith.constant 0 : i32
    %368 = arith.cmpi eq, %c8_i32_166, %c0_i32_167 : i32
    %c1_i32_168 = arith.constant 1 : i32
    %369 = arith.select %368, %c1_i32_168, %c8_i32_166 : i32
    %370 = vector.broadcast %369 : i32 to vector<16x1xi32>
    %371 = arith.remsi %367, %370 : vector<16x1xi32>
    %c0_i32_169 = arith.constant 0 : i32
    %372 = vector.broadcast %c0_i32_169 : i32 to vector<16x1xi32>
    %373 = arith.cmpi ne, %371, %372 : vector<16x1xi32>
    %c0_i32_170 = arith.constant 0 : i32
    %374 = vector.broadcast %c0_i32_170 : i32 to vector<16x1xi32>
    %375 = arith.cmpi slt, %371, %374 : vector<16x1xi32>
    %c0_i32_171 = arith.constant 0 : i32
    %376 = arith.cmpi slt, %369, %c0_i32_171 : i32
    %377 = vector.broadcast %376 : i1 to vector<16x1xi1>
    %378 = vector.broadcast %377 : vector<16x1xi1> to vector<16x1xi1>
    %379 = arith.xori %375, %378 : vector<16x1xi1>
    %380 = arith.andi %379, %373 : vector<16x1xi1>
    %381 = vector.broadcast %369 : i32 to vector<16x1xi32>
    %382 = arith.addi %371, %381 : vector<16x1xi32>
    %383 = arith.select %380, %382, %371 : vector<16x1xi1>, vector<16x1xi32>
    %c0_i32_172 = arith.constant 0 : i32
    %384 = vector.broadcast %c0_i32_172 : i32 to vector<16x1xi32>
    %385 = arith.cmpi eq, %383, %384 : vector<16x1xi32>
    %cst_173 = arith.constant 0.000000e+00 : f32
    %386 = vector.shape_cast %385 : vector<16x1xi1> to vector<16x1xi1>
    %387 = vector.broadcast %386 : vector<16x1xi1> to vector<16x128xi1>
    %388 = vector.broadcast %cst_173 : f32 to vector<16x128xf32>
    %389 = arith.select %387, %388, %364 : vector<16x128xi1>, vector<16x128xf32>
    %c7_i32_174 = arith.constant 7 : i32
    %390 = vector.broadcast %c7_i32_174 : i32 to vector<16x1xi32>
    %391 = arith.cmpi eq, %383, %390 : vector<16x1xi32>
    %cst_175 = arith.constant 0.000000e+00 : f32
    %392 = vector.shape_cast %391 : vector<16x1xi1> to vector<16x1xi1>
    %393 = vector.broadcast %392 : vector<16x1xi1> to vector<16x128xi1>
    %394 = vector.broadcast %cst_175 : f32 to vector<16x128xf32>
    %395 = arith.select %393, %394, %366 : vector<16x128xi1>, vector<16x128xf32>
    %396 = tpu.concatenate %389, %351, %395 in 1 : vector<16x128xf32>, vector<16x128xf32>, vector<16x128xf32> -> vector<16x384xf32>
    %397 = arith.truncf %396 : vector<16x384xf32> to vector<16x384xbf16>
    %cst_176 = arith.constant dense<0.000000e+00> : vector<8x384xf32>
    %398 = tpu.matmul %352, %397, %cst_176 {dimension_numbers = #tpu.dot_dimension_numbers<[1], [0], [0], [1], [0, 0, 1, 1], [], []>} : vector<8x16xbf16>, vector<16x384xbf16>, vector<8x384xf32> -> vector<8x384xf32>
    %399 = arith.truncf %398 : vector<8x384xf32> to vector<8x384xbf16>
    %cst_177 = arith.constant dense<0.000000e+00> : vector<8x128xf32>
    %400 = tpu.matmul %399, %353, %cst_177 {dimension_numbers = #tpu.dot_dimension_numbers<[1], [0], [0], [1], [0, 0, 1, 1], [], []>} : vector<8x384xbf16>, vector<384x128xbf16>, vector<8x128xf32> -> vector<8x128xf32>
    %401 = vector.broadcast %354 : vector<1x128xf32> to vector<8x128xf32>
    %402 = arith.mulf %400, %401 : vector<8x128xf32>
    %403 = vector.broadcast %355 : vector<1x128xf32> to vector<8x128xf32>
    %404 = arith.addf %402, %403 : vector<8x128xf32>
    %cst_178 = arith.constant 0.000000e+00 : f32
    %405 = vector.broadcast %cst_178 : f32 to vector<8x128xf32>
    %406 = arith.maximumf %404, %405 : vector<8x128xf32>
    %cst_179 = arith.constant 0.000000e+00 : f32
    %407 = vector.broadcast %cst_179 : f32 to vector<1x128xf32>
    %408 = vector.extract_strided_slice %406 {offsets = [0, 0], sizes = [7, 128], strides = [1, 1]} : vector<8x128xf32> to vector<7x128xf32>
    %409 = tpu.concatenate %407, %408 in 0 : vector<1x128xf32>, vector<7x128xf32> -> vector<8x128xf32>
    %410 = vector.extract_strided_slice %406 {offsets = [1, 0], sizes = [7, 128], strides = [1, 1]} : vector<8x128xf32> to vector<7x128xf32>
    %411 = tpu.concatenate %410, %407 in 0 : vector<7x128xf32>, vector<1x128xf32> -> vector<8x128xf32>
    %412 = tpu.iota {dimensions = array<i32: 0>} : vector<8x1xi32>
    %c4_i32 = arith.constant 4 : i32
    %c0_i32_180 = arith.constant 0 : i32
    %413 = arith.cmpi eq, %c4_i32, %c0_i32_180 : i32
    %c1_i32_181 = arith.constant 1 : i32
    %414 = arith.select %413, %c1_i32_181, %c4_i32 : i32
    %415 = vector.broadcast %414 : i32 to vector<8x1xi32>
    %416 = arith.remsi %412, %415 : vector<8x1xi32>
    %c0_i32_182 = arith.constant 0 : i32
    %417 = vector.broadcast %c0_i32_182 : i32 to vector<8x1xi32>
    %418 = arith.cmpi ne, %416, %417 : vector<8x1xi32>
    %c0_i32_183 = arith.constant 0 : i32
    %419 = vector.broadcast %c0_i32_183 : i32 to vector<8x1xi32>
    %420 = arith.cmpi slt, %416, %419 : vector<8x1xi32>
    %c0_i32_184 = arith.constant 0 : i32
    %421 = arith.cmpi slt, %414, %c0_i32_184 : i32
    %422 = vector.broadcast %421 : i1 to vector<8x1xi1>
    %423 = vector.broadcast %422 : vector<8x1xi1> to vector<8x1xi1>
    %424 = arith.xori %420, %423 : vector<8x1xi1>
    %425 = arith.andi %424, %418 : vector<8x1xi1>
    %426 = vector.broadcast %414 : i32 to vector<8x1xi32>
    %427 = arith.addi %416, %426 : vector<8x1xi32>
    %428 = arith.select %425, %427, %416 : vector<8x1xi1>, vector<8x1xi32>
    %c0_i32_185 = arith.constant 0 : i32
    %429 = vector.broadcast %c0_i32_185 : i32 to vector<8x1xi32>
    %430 = arith.cmpi eq, %428, %429 : vector<8x1xi32>
    %cst_186 = arith.constant 0.000000e+00 : f32
    %431 = vector.shape_cast %430 : vector<8x1xi1> to vector<8x1xi1>
    %432 = vector.broadcast %431 : vector<8x1xi1> to vector<8x128xi1>
    %433 = vector.broadcast %cst_186 : f32 to vector<8x128xf32>
    %434 = arith.select %432, %433, %409 : vector<8x128xi1>, vector<8x128xf32>
    %c3_i32 = arith.constant 3 : i32
    %435 = vector.broadcast %c3_i32 : i32 to vector<8x1xi32>
    %436 = arith.cmpi eq, %428, %435 : vector<8x1xi32>
    %cst_187 = arith.constant 0.000000e+00 : f32
    %437 = vector.shape_cast %436 : vector<8x1xi1> to vector<8x1xi1>
    %438 = vector.broadcast %437 : vector<8x1xi1> to vector<8x128xi1>
    %439 = vector.broadcast %cst_187 : f32 to vector<8x128xf32>
    %440 = arith.select %438, %439, %411 : vector<8x128xi1>, vector<8x128xf32>
    %441 = tpu.concatenate %434, %406, %440 in 1 : vector<8x128xf32>, vector<8x128xf32>, vector<8x128xf32> -> vector<8x384xf32>
    %442 = arith.truncf %441 : vector<8x384xf32> to vector<8x384xbf16>
    %cst_188 = arith.constant dense<0.000000e+00> : vector<8x128xf32>
    %443 = tpu.matmul %442, %356, %cst_188 {dimension_numbers = #tpu.dot_dimension_numbers<[1], [0], [0], [1], [0, 0, 1, 1], [], []>} : vector<8x384xbf16>, vector<384x128xbf16>, vector<8x128xf32> -> vector<8x128xf32>
    %444 = vector.broadcast %357 : vector<1x128xf32> to vector<8x128xf32>
    %445 = arith.mulf %443, %444 : vector<8x128xf32>
    %446 = vector.broadcast %358 : vector<1x128xf32> to vector<8x128xf32>
    %447 = arith.addf %445, %446 : vector<8x128xf32>
    %448 = vector.extract_strided_slice %398 {offsets = [0, 128], sizes = [8, 128], strides = [1, 1]} : vector<8x384xf32> to vector<8x128xf32>
    %449 = arith.truncf %448 : vector<8x128xf32> to vector<8x128xbf16>
    %cst_189 = arith.constant dense<0.000000e+00> : vector<8x128xf32>
    %450 = tpu.matmul %449, %359, %cst_189 {dimension_numbers = #tpu.dot_dimension_numbers<[1], [0], [0], [1], [0, 0, 1, 1], [], []>} : vector<8x128xbf16>, vector<128x128xbf16>, vector<8x128xf32> -> vector<8x128xf32>
    %451 = vector.broadcast %360 : vector<1x128xf32> to vector<8x128xf32>
    %452 = arith.mulf %450, %451 : vector<8x128xf32>
    %453 = vector.broadcast %361 : vector<1x128xf32> to vector<8x128xf32>
    %454 = arith.addf %452, %453 : vector<8x128xf32>
    %455 = arith.addf %447, %454 : vector<8x128xf32>
    %cst_190 = arith.constant 0.000000e+00 : f32
    %456 = vector.broadcast %cst_190 : f32 to vector<8x128xf32>
    %457 = arith.maximumf %455, %456 : vector<8x128xf32>
    %c0_191 = arith.constant 0 : index
    %c0_192 = arith.constant 0 : index
    %458 = vector.load %arg40[%c0_191, %c0_192] : memref<2x8xbf16, #tpu.memory_space<vmem>>, vector<2x8xbf16>
    %c0_193 = arith.constant 0 : index
    %c0_194 = arith.constant 0 : index
    %459 = vector.load %arg41[%c0_193, %c0_194] : memref<128x128xbf16, #tpu.memory_space<vmem>>, vector<128x128xbf16>
    %c0_195 = arith.constant 0 : index
    %c0_196 = arith.constant 0 : index
    %460 = vector.load %arg42[%c0_195, %c0_196] : memref<1x128xf32, #tpu.memory_space<vmem>>, vector<1x128xf32>
    %461 = arith.truncf %457 : vector<8x128xf32> to vector<8x128xbf16>
    %cst_197 = arith.constant dense<0.000000e+00> : vector<2x128xf32>
    %462 = tpu.matmul %458, %461, %cst_197 {dimension_numbers = #tpu.dot_dimension_numbers<[1], [0], [0], [1], [0, 0, 1, 1], [], []>} : vector<2x8xbf16>, vector<8x128xbf16>, vector<2x128xf32> -> vector<2x128xf32>
    %463 = arith.truncf %462 : vector<2x128xf32> to vector<2x128xbf16>
    %cst_198 = arith.constant dense<0.000000e+00> : vector<2x128xf32>
    %464 = tpu.matmul %463, %459, %cst_198 {dimension_numbers = #tpu.dot_dimension_numbers<[1], [0], [0], [1], [0, 0, 1, 1], [], []>} : vector<2x128xbf16>, vector<128x128xbf16>, vector<2x128xf32> -> vector<2x128xf32>
    %465 = vector.broadcast %460 : vector<1x128xf32> to vector<2x128xf32>
    %466 = arith.addf %464, %465 : vector<2x128xf32>
    %c0_199 = arith.constant 0 : index
    %c0_200 = arith.constant 0 : index
    %467 = vector.load %arg43[%c0_199, %c0_200] : memref<2x128xf32, #tpu.memory_space<vmem>>, vector<2x128xf32>
    tpu.vector_store %arg43[%c0_199, %c0_200], %466 {strides = array<i32>} : memref<2x128xf32, #tpu.memory_space<vmem>>, vector<2x128xf32>,
    return
  }
}

</mosaic_0001>

<llo_original>
// kernel: forward.1
$region0: #{forward.1}
  #allocation0 [shape = 'u32[]', space=smem, size = 0x4, offset = 0x4, fixed_abs, tag = 'smem constant byte address 0x4 - core index']
  #allocation1 [shape = 'u32[144,128]{1,0:T(1,128)}', space=vmem, size = 0x12000, scoped, tag = 'internal scratch']
  %s0 = inlined_call_operand.smem [shape: u32[44], index: -1, kind: input, shape index: {}]
  %s1 = sld [smem:[%s0]]
  %s2 = scalar_lea.smem %s0, 1
  %s3 = sld [smem:[%s2]]
  %s4 = scalar_lea.smem %s0, 2
  %s5 = sld [smem:[%s4]]
  %s6 = scalar_lea.smem %s0, 3
  %s7 = sld [smem:[%s6]]
  %s8 = scalar_lea.smem %s0, 4
  %s9 = sld [smem:[%s8]]
  %s10 = scalar_lea.smem %s0, 5
  %s11 = sld [smem:[%s10]]
  %s12 = scalar_lea.smem %s0, 6
  %s13 = sld [smem:[%s12]]
  %s14 = scalar_lea.smem %s0, 7
  %s15 = sld [smem:[%s14]]
  %s16 = scalar_lea.smem %s0, 8
  %s17 = sld [smem:[%s16]]
  %s18 = scalar_lea.smem %s0, 9
  %s19 = sld [smem:[%s18]]
  %s20 = scalar_lea.smem %s0, 10
  %s21 = sld [smem:[%s20]]
  %s22 = scalar_lea.smem %s0, 11
  %s23 = sld [smem:[%s22]]
  %s24 = scalar_lea.smem %s0, 12
  %s25 = sld [smem:[%s24]]
  %s26 = scalar_lea.smem %s0, 13
  %s27 = sld [smem:[%s26]]
  %s28 = scalar_lea.smem %s0, 14
  %s29 = sld [smem:[%s28]]
  %s30 = scalar_lea.smem %s0, 15
  %s31 = sld [smem:[%s30]]
  %s32 = scalar_lea.smem %s0, 16
  %s33 = sld [smem:[%s32]]
  %s34 = scalar_lea.smem %s0, 17
  %s35 = sld [smem:[%s34]]
  %s36 = scalar_lea.smem %s0, 18
  %s37 = sld [smem:[%s36]]
  %s38 = scalar_lea.smem %s0, 19
  %s39 = sld [smem:[%s38]]
  %s40 = scalar_lea.smem %s0, 20
  %s41 = sld [smem:[%s40]]
  %s42 = scalar_lea.smem %s0, 21
  %s43 = sld [smem:[%s42]]
  %s44 = scalar_lea.smem %s0, 22
  %s45 = sld [smem:[%s44]]
  %s46 = scalar_lea.smem %s0, 23
  %s47 = sld [smem:[%s46]]
  %s48 = scalar_lea.smem %s0, 24
  %s49 = sld [smem:[%s48]]
  %s50 = scalar_lea.smem %s0, 25
  %s51 = sld [smem:[%s50]]
  %s52 = scalar_lea.smem %s0, 26
  %s53 = sld [smem:[%s52]]
  %s54 = scalar_lea.smem %s0, 27
  %s55 = sld [smem:[%s54]]
  %s56 = scalar_lea.smem %s0, 28
  %s57 = sld [smem:[%s56]]
  %s58 = scalar_lea.smem %s0, 29
  %s59 = sld [smem:[%s58]]
  %s60 = scalar_lea.smem %s0, 30
  %s61 = sld [smem:[%s60]]
  %s62 = scalar_lea.smem %s0, 31
  %s63 = sld [smem:[%s62]]
  %s64 = scalar_lea.smem %s0, 32
  %s65 = sld [smem:[%s64]]
  %s66 = scalar_lea.smem %s0, 33
  %s67 = sld [smem:[%s66]]
  %s68 = scalar_lea.smem %s0, 34
  %s69 = sld [smem:[%s68]]
  %s70 = scalar_lea.smem %s0, 35
  %s71 = sld [smem:[%s70]]
  %s72 = scalar_lea.smem %s0, 36
  %s73 = sld [smem:[%s72]]
  %s74 = scalar_lea.smem %s0, 37
  %s75 = sld [smem:[%s74]]
  %s76 = scalar_lea.smem %s0, 38
  %s77 = sld [smem:[%s76]]
  %s78 = scalar_lea.smem %s0, 39
  %s79 = sld [smem:[%s78]]
  %s80 = scalar_lea.smem %s0, 40
  %s81 = sld [smem:[%s80]]
  %s82 = scalar_lea.smem %s0, 41
  %s83 = sld [smem:[%s82]]
  %s84 = scalar_lea.smem %s0, 42
  %s85 = sld [smem:[%s84]]
  %s86 = scalar_lea.smem %s0, 43
  %s87 = sld [smem:[%s86]]
  %s88 = sld [smem:[#allocation0]]
  $region330: #{forward.1} parent=0
    _
  %s90 = ssub.s32 1, %s88
  %s91 = scalar_select 0, %s90, %s88
  $region1: #{forward.1} parent=0
    #allocation2 [shape = 'u8[196608]{0}', space=vmem, size = 0x30000, scoped, tag = 'input window, operand 1, single buffered']
    #allocation3 [shape = 's32[1]{0}', space=sflag, size = 0x4, scoped, tag = 'scoped memory for forward.1']
    #allocation4 [shape = 's32[1]{0}', space=sflag, size = 0x4, scoped, tag = 'scoped memory for forward.1']
    #allocation5 [shape = 'u8[1024]{0}', space=vmem, size = 0x400, scoped, tag = 'input window, operand 2, single buffered']
    #allocation6 [shape = 's32[1]{0}', space=sflag, size = 0x4, scoped, tag = 'scoped memory for forward.1']
    #allocation7 [shape = 'u8[1024]{0}', space=vmem, size = 0x400, scoped, tag = 'input window, operand 3, single buffered']
    #allocation8 [shape = 'u8[393216]{0}', space=vmem, size = 0x60000, scoped, tag = 'input window, operand 4, single buffered']
    #allocation9 [shape = 's32[1]{0}', space=sflag, size = 0x4, scoped, tag = 'scoped memory for forward.1']
    #allocation10 [shape = 'u8[1024]{0}', space=vmem, size = 0x400, scoped, tag = 'input window, operand 5, single buffered']
    #allocation11 [shape = 'u8[1024]{0}', space=vmem, size = 0x400, scoped, tag = 'input window, operand 6, single buffered']
    #allocation12 [shape = 's32[1]{0}', space=sflag, size = 0x4, scoped, tag = 'scoped memory for forward.1']
    #allocation13 [shape = 'u8[393216]{0}', space=vmem, size = 0x60000, scoped, tag = 'input window, operand 7, single buffered']
    #allocation14 [shape = 'u8[1024]{0}', space=vmem, size = 0x400, scoped, tag = 'input window, operand 8, single buffered']
    #allocation15 [shape = 's32[1]{0}', space=sflag, size = 0x4, scoped, tag = 'scoped memory for forward.1']
    #allocation16 [shape = 'u8[1024]{0}', space=vmem, size = 0x400, scoped, tag = 'input window, operand 9, single buffered']
    #allocation17 [shape = 'u8[8192]{0}', space=vmem, size = 0x2000, scoped, tag = 'input window, operand 10, single buffered']
    #allocation18 [shape = 's32[1]{0}', space=sflag, size = 0x4, scoped, tag = 'scoped memory for forward.1']
    #allocation19 [shape = 'u8[393216]{0}', space=vmem, size = 0x60000, scoped, tag = 'input window, operand 11, single buffered']
    #allocation20 [shape = 'u8[1024]{0}', space=vmem, size = 0x400, scoped, tag = 'input window, operand 12, single buffered']
    #allocation21 [shape = 's32[1]{0}', space=sflag, size = 0x4, scoped, tag = 'scoped memory for forward.1']
    #allocation22 [shape = 'u8[1024]{0}', space=vmem, size = 0x400, scoped, tag = 'input window, operand 13, single buffered']
    #allocation23 [shape = 'u8[1024]{0}', space=vmem, size = 0x400, scoped, tag = 'input window, operand 15, single buffered']
    #allocation24 [shape = 's32[1]{0}', space=sflag, size = 0x4, scoped, tag = 'scoped memory for forward.1']
    #allocation25 [shape = 'u8[1024]{0}', space=vmem, size = 0x400, scoped, tag = 'input window, operand 16, single buffered']
    #allocation26 [shape = 'u8[1024]{0}', space=vmem, size = 0x400, scoped, tag = 'input window, operand 18, single buffered']
    #allocation27 [shape = 's32[1]{0}', space=sflag, size = 0x4, scoped, tag = 'scoped memory for forward.1']
    #allocation28 [shape = 'u8[4096]{0}', space=vmem, size = 0x1000, scoped, tag = 'input window, operand 20, single buffered']
    #allocation29 [shape = 'u8[512]{0}', space=vmem, size = 0x400, scoped, tag = 'input window, operand 22, single buffered']
    #allocation30 [shape = 's32[1]{0}', space=sflag, size = 0x4, scoped, tag = 'scoped memory for forward.1']
    #allocation31 [shape = 'u8[512]{0}', space=vmem, size = 0x400, scoped, tag = 'input window, operand 23, single buffered']
    #allocation32 [shape = 'u8[98304]{0}', space=vmem, size = 0x18000, scoped, tag = 'input window, operand 24, single buffered']
    #allocation33 [shape = 's32[1]{0}', space=sflag, size = 0x4, scoped, tag = 'scoped memory for forward.1']
    #allocation34 [shape = 'u8[512]{0}', space=vmem, size = 0x400, scoped, tag = 'input window, operand 25, single buffered']
    #allocation35 [shape = 'u8[512]{0}', space=vmem, size = 0x400, scoped, tag = 'input window, operand 26, single buffered']
    #allocation36 [shape = 's32[1]{0}', space=sflag, size = 0x4, scoped, tag = 'scoped memory for forward.1']
    #allocation37 [shape = 'u8[65536]{0}', space=vmem, size = 0x10000, scoped, tag = 'input window, operand 27, single buffered']
    #allocation38 [shape = 'u8[512]{0}', space=vmem, size = 0x400, scoped, tag = 'input window, operand 28, single buffered']
    #allocation39 [shape = 's32[1]{0}', space=sflag, size = 0x4, scoped, tag = 'scoped memory for forward.1']
    #allocation40 [shape = 'u8[512]{0}', space=vmem, size = 0x400, scoped, tag = 'input window, operand 29, single buffered']
    #allocation41 [shape = 'u8[2048]{0}', space=vmem, size = 0x800, scoped, tag = 'input window, operand 30, single buffered']
    #allocation42 [shape = 's32[1]{0}', space=sflag, size = 0x4, scoped, tag = 'scoped memory for forward.1']
    #allocation43 [shape = 'u8[98304]{0}', space=vmem, size = 0x18000, scoped, tag = 'input window, operand 31, single buffered']
    #allocation44 [shape = 'u8[512]{0}', space=vmem, size = 0x400, scoped, tag = 'input window, operand 32, single buffered']
    #allocation45 [shape = 's32[1]{0}', space=sflag, size = 0x4, scoped, tag = 'scoped memory for forward.1']
    #allocation46 [shape = 'u8[512]{0}', space=vmem, size = 0x400, scoped, tag = 'input window, operand 33, single buffered']
    #allocation47 [shape = 'u8[98304]{0}', space=vmem, size = 0x18000, scoped, tag = 'input window, operand 34, single buffered']
    #allocation48 [shape = 's32[1]{0}', space=sflag, size = 0x4, scoped, tag = 'scoped memory for forward.1']
    #allocation49 [shape = 'u8[512]{0}', space=vmem, size = 0x400, scoped, tag = 'input window, operand 35, single buffered']
    #allocation50 [shape = 'u8[512]{0}', space=vmem, size = 0x400, scoped, tag = 'input window, operand 36, single buffered']
    #allocation51 [shape = 's32[1]{0}', space=sflag, size = 0x4, scoped, tag = 'scoped memory for forward.1']
    #allocation52 [shape = 'u8[32768]{0}', space=vmem, size = 0x8000, scoped, tag = 'input window, operand 37, single buffered']
    #allocation53 [shape = 'u8[512]{0}', space=vmem, size = 0x400, scoped, tag = 'input window, operand 38, single buffered']
    #allocation54 [shape = 's32[1]{0}', space=sflag, size = 0x4, scoped, tag = 'scoped memory for forward.1']
    #allocation55 [shape = 'u8[512]{0}', space=vmem, size = 0x400, scoped, tag = 'input window, operand 39, single buffered']
    #allocation56 [shape = 'u8[512]{0}', space=vmem, size = 0x400, scoped, tag = 'input window, operand 40, single buffered']
    #allocation57 [shape = 's32[1]{0}', space=sflag, size = 0x4, scoped, tag = 'scoped memory for forward.1']
    #allocation58 [shape = 'u8[512]{0}', space=vmem, size = 0x400, scoped, tag = 'input window, operand 42, single buffered']
    #allocation59 [shape = 'u8[1024]{0}', space=vmem, size = 0x400, scoped, tag = 'output window, operand 0, single buffered']
    %92 = vsyncpa [#allocation3], 0
    %93 = vsyncpa [#allocation6], 0
    %94 = vsyncpa [#allocation9], 0
    %95 = vsyncpa [#allocation12], 0
    %96 = vsyncpa [#allocation15], 0
    %97 = vsyncpa [#allocation18], 0
    %98 = vsyncpa [#allocation21], 0
    %99 = vsyncpa [#allocation24], 0
    %100 = vsyncpa [#allocation27], 0
    %101 = vsyncpa [#allocation30], 0
    %102 = vsyncpa [#allocation33], 0
    %103 = vsyncpa [#allocation36], 0
    %104 = vsyncpa [#allocation39], 0
    %105 = vsyncpa [#allocation42], 0
    %106 = vsyncpa [#allocation45], 0
    %107 = vsyncpa [#allocation48], 0
    %108 = vsyncpa [#allocation51], 0
    %109 = vsyncpa [#allocation54], 0
    %110 = vsyncpa [#allocation57], 0
    %111 = vsyncpa [#allocation4], 0
    // Predicated region
    $region2: #{forward.1} parent=1 // pred_check
      _
    $region3: #{forward.1} parent=1 // pred_check_branch
      %113 = sbr.rel (0) target = $region5
    $region4: #{forward.1} parent=1 // pred_region
      _
    $region5: #{forward.1} parent=1 // pred_fallthru
      _
    // Predicated region
    $region6: #{forward.1} parent=1 // pred_check
      _
    $region7: #{forward.1} parent=1 // pred_check_branch
      %115 = sbr.rel (0) target = $region9
    $region8: #{forward.1} parent=1 // pred_region
      %s117 = ssub.s32 6144, 6144
      %118 = vsyncadd [#allocation3], %s117
      %s119 = sshll.u32 [#allocation2], 4
      %s120 = int_to_ptr.vmem [resolvable:$true] %s119
      %125 = dma.hbm_to_vmem [thread:$0]  %s3, 6144, %s120, [#allocation3], 128, 128, 8
    $region9: #{forward.1} parent=1 // pred_fallthru
      _
    // Predicated region
    $region10: #{forward.1} parent=1 // pred_check
      _
    $region11: #{forward.1} parent=1 // pred_check_branch
      %127 = sbr.rel (0) target = $region13
    $region12: #{forward.1} parent=1 // pred_region
      %s129 = ssub.s32 32, 32
      %130 = vsyncadd [#allocation6], %s129
      %s132 = sshll.u32 [#allocation5], 4
      %s133 = int_to_ptr.vmem [resolvable:$true] %s132
      %135 = dma.hbm_to_vmem [thread:$0]  %s5, 32, %s133, [#allocation6]
    $region13: #{forward.1} parent=1 // pred_fallthru
      _
    // Predicated region
    $region14: #{forward.1} parent=1 // pred_check
      _
    $region15: #{forward.1} parent=1 // pred_check_branch
      %137 = sbr.rel (0) target = $region17
    $region16: #{forward.1} parent=1 // pred_region
      %s139 = ssub.s32 32, 32
      %140 = vsyncadd [#allocation6], %s139
      %s142 = sshll.u32 [#allocation7], 4
      %s143 = int_to_ptr.vmem [resolvable:$true] %s142
      %145 = dma.hbm_to_vmem [thread:$0]  %s7, 32, %s143, [#allocation6]
    $region17: #{forward.1} parent=1 // pred_fallthru
      _
    // Predicated region
    $region18: #{forward.1} parent=1 // pred_check
      _
    $region19: #{forward.1} parent=1 // pred_check_branch
      %147 = sbr.rel (0) target = $region21
    $region20: #{forward.1} parent=1 // pred_region
      %s149 = ssub.s32 12288, 12288
      %150 = vsyncadd [#allocation9], %s149
      %s151 = sshll.u32 [#allocation8], 4
      %s152 = int_to_ptr.vmem [resolvable:$true] %s151
      %157 = dma.hbm_to_vmem [thread:$0]  %s9, 12288, %s152, [#allocation9], 128, 128, 8
    $region21: #{forward.1} parent=1 // pred_fallthru
      _
    // Predicated region
    $region22: #{forward.1} parent=1 // pred_check
      _
    $region23: #{forward.1} parent=1 // pred_check_branch
      %159 = sbr.rel (0) target = $region25
    $region24: #{forward.1} parent=1 // pred_region
      %s161 = ssub.s32 32, 32
      %162 = vsyncadd [#allocation9], %s161
      %s164 = sshll.u32 [#allocation10], 4
      %s165 = int_to_ptr.vmem [resolvable:$true] %s164
      %167 = dma.hbm_to_vmem [thread:$0]  %s11, 32, %s165, [#allocation9]
    $region25: #{forward.1} parent=1 // pred_fallthru
      _
    // Predicated region
    $region26: #{forward.1} parent=1 // pred_check
      _
    $region27: #{forward.1} parent=1 // pred_check_branch
      %169 = sbr.rel (0) target = $region29
    $region28: #{forward.1} parent=1 // pred_region
      %s171 = ssub.s32 32, 32
      %172 = vsyncadd [#allocation12], %s171
      %s174 = sshll.u32 [#allocation11], 4
      %s175 = int_to_ptr.vmem [resolvable:$true] %s174
      %177 = dma.hbm_to_vmem [thread:$0]  %s13, 32, %s175, [#allocation12]
    $region29: #{forward.1} parent=1 // pred_fallthru
      _
    // Predicated region
    $region30: #{forward.1} parent=1 // pred_check
      _
    $region31: #{forward.1} parent=1 // pred_check_branch
      %179 = sbr.rel (0) target = $region33
    $region32: #{forward.1} parent=1 // pred_region
      %s181 = ssub.s32 12288, 12288
      %182 = vsyncadd [#allocation12], %s181
      %s183 = sshll.u32 [#allocation13], 4
      %s184 = int_to_ptr.vmem [resolvable:$true] %s183
      %189 = dma.hbm_to_vmem [thread:$0]  %s15, 12288, %s184, [#allocation12], 128, 128, 8
    $region33: #{forward.1} parent=1 // pred_fallthru
      _
    // Predicated region
    $region34: #{forward.1} parent=1 // pred_check
      _
    $region35: #{forward.1} parent=1 // pred_check_branch
      %191 = sbr.rel (0) target = $region37
    $region36: #{forward.1} parent=1 // pred_region
      %s193 = ssub.s32 32, 32
      %194 = vsyncadd [#allocation15], %s193
      %s196 = sshll.u32 [#allocation14], 4
      %s197 = int_to_ptr.vmem [resolvable:$true] %s196
      %199 = dma.hbm_to_vmem [thread:$0]  %s17, 32, %s197, [#allocation15]
    $region37: #{forward.1} parent=1 // pred_fallthru
      _
    // Predicated region
    $region38: #{forward.1} parent=1 // pred_check
      _
    $region39: #{forward.1} parent=1 // pred_check_branch
      %201 = sbr.rel (0) target = $region41
    $region40: #{forward.1} parent=1 // pred_region
      %s203 = ssub.s32 32, 32
      %204 = vsyncadd [#allocation15], %s203
      %s206 = sshll.u32 [#allocation16], 4
      %s207 = int_to_ptr.vmem [resolvable:$true] %s206
      %209 = dma.hbm_to_vmem [thread:$0]  %s19, 32, %s207, [#allocation15]
    $region41: #{forward.1} parent=1 // pred_fallthru
      _
    // Predicated region
    $region42: #{forward.1} parent=1 // pred_check
      _
    $region43: #{forward.1} parent=1 // pred_check_branch
      %211 = sbr.rel (0) target = $region45
    $region44: #{forward.1} parent=1 // pred_region
      %s213 = ssub.s32 256, 256
      %214 = vsyncadd [#allocation18], %s213
      %s215 = sshll.u32 [#allocation17], 4
      %s216 = int_to_ptr.vmem [resolvable:$true] %s215
      %221 = dma.hbm_to_vmem [thread:$0]  %s21, 256, %s216, [#allocation18], 64, 64, 4
    $region45: #{forward.1} parent=1 // pred_fallthru
      _
    // Predicated region
    $region46: #{forward.1} parent=1 // pred_check
      _
    $region47: #{forward.1} parent=1 // pred_check_branch
      %223 = sbr.rel (0) target = $region49
    $region48: #{forward.1} parent=1 // pred_region
      %s225 = ssub.s32 12288, 12288
      %226 = vsyncadd [#allocation18], %s225
      %s227 = sshll.u32 [#allocation19], 4
      %s228 = int_to_ptr.vmem [resolvable:$true] %s227
      %233 = dma.hbm_to_vmem [thread:$0]  %s23, 12288, %s228, [#allocation18], 128, 128, 8
    $region49: #{forward.1} parent=1 // pred_fallthru
      _
    // Predicated region
    $region50: #{forward.1} parent=1 // pred_check
      _
    $region51: #{forward.1} parent=1 // pred_check_branch
      %235 = sbr.rel (0) target = $region53
    $region52: #{forward.1} parent=1 // pred_region
      %s237 = ssub.s32 32, 32
      %238 = vsyncadd [#allocation21], %s237
      %s240 = sshll.u32 [#allocation20], 4
      %s241 = int_to_ptr.vmem [resolvable:$true] %s240
      %243 = dma.hbm_to_vmem [thread:$0]  %s25, 32, %s241, [#allocation21]
    $region53: #{forward.1} parent=1 // pred_fallthru
      _
    // Predicated region
    $region54: #{forward.1} parent=1 // pred_check
      _
    $region55: #{forward.1} parent=1 // pred_check_branch
      %245 = sbr.rel (0) target = $region57
    $region56: #{forward.1} parent=1 // pred_region
      %s247 = ssub.s32 32, 32
      %248 = vsyncadd [#allocation21], %s247
      %s250 = sshll.u32 [#allocation22], 4
      %s251 = int_to_ptr.vmem [resolvable:$true] %s250
      %253 = dma.hbm_to_vmem [thread:$0]  %s27, 32, %s251, [#allocation21]
    $region57: #{forward.1} parent=1 // pred_fallthru
      _
    // Predicated region
    $region58: #{forward.1} parent=1 // pred_check
      _
    $region59: #{forward.1} parent=1 // pred_check_branch
      %255 = sbr.rel (0) target = $region61
    $region60: #{forward.1} parent=1 // pred_region
      _
    $region61: #{forward.1} parent=1 // pred_fallthru
      _
    // Predicated region
    $region62: #{forward.1} parent=1 // pred_check
      _
    $region63: #{forward.1} parent=1 // pred_check_branch
      %257 = sbr.rel (0) target = $region65
    $region64: #{forward.1} parent=1 // pred_region
      %s259 = ssub.s32 32, 32
      %260 = vsyncadd [#allocation24], %s259
      %s262 = sshll.u32 [#allocation23], 4
      %s263 = int_to_ptr.vmem [resolvable:$true] %s262
      %265 = dma.hbm_to_vmem [thread:$0]  %s31, 32, %s263, [#allocation24]
    $region65: #{forward.1} parent=1 // pred_fallthru
      _
    // Predicated region
    $region66: #{forward.1} parent=1 // pred_check
      _
    $region67: #{forward.1} parent=1 // pred_check_branch
      %267 = sbr.rel (0) target = $region69
    $region68: #{forward.1} parent=1 // pred_region
      %s269 = ssub.s32 32, 32
      %270 = vsyncadd [#allocation24], %s269
      %s272 = sshll.u32 [#allocation25], 4
      %s273 = int_to_ptr.vmem [resolvable:$true] %s272
      %275 = dma.hbm_to_vmem [thread:$0]  %s33, 32, %s273, [#allocation24]
    $region69: #{forward.1} parent=1 // pred_fallthru
      _
    // Predicated region
    $region70: #{forward.1} parent=1 // pred_check
      _
    $region71: #{forward.1} parent=1 // pred_check_branch
      %277 = sbr.rel (0) target = $region73
    $region72: #{forward.1} parent=1 // pred_region
      _
    $region73: #{forward.1} parent=1 // pred_fallthru
      _
    // Predicated region
    $region74: #{forward.1} parent=1 // pred_check
      _
    $region75: #{forward.1} parent=1 // pred_check_branch
      %279 = sbr.rel (0) target = $region77
    $region76: #{forward.1} parent=1 // pred_region
      %s281 = ssub.s32 32, 32
      %282 = vsyncadd [#allocation27], %s281
      %s284 = sshll.u32 [#allocation26], 4
      %s285 = int_to_ptr.vmem [resolvable:$true] %s284
      %287 = dma.hbm_to_vmem [thread:$0]  %s37, 32, %s285, [#allocation27]
    $region77: #{forward.1} parent=1 // pred_fallthru
      _
    // Predicated region
    $region78: #{forward.1} parent=1 // pred_check
      _
    $region79: #{forward.1} parent=1 // pred_check_branch
      %289 = sbr.rel (0) target = $region81
    $region80: #{forward.1} parent=1 // pred_region
      _
    $region81: #{forward.1} parent=1 // pred_fallthru
      _
    // Predicated region
    $region82: #{forward.1} parent=1 // pred_check
      _
    $region83: #{forward.1} parent=1 // pred_check_branch
      %291 = sbr.rel (0) target = $region85
    $region84: #{forward.1} parent=1 // pred_region
      %s293 = ssub.s32 128, 128
      %294 = vsyncadd [#allocation27], %s293
      %s295 = sshll.u32 [#allocation28], 4
      %s296 = int_to_ptr.vmem [resolvable:$true] %s295
      %301 = dma.hbm_to_vmem [thread:$0]  %s41, 128, %s296, [#allocation27], 64, 64, 4
    $region85: #{forward.1} parent=1 // pred_fallthru
      _
    // Predicated region
    $region86: #{forward.1} parent=1 // pred_check
      _
    $region87: #{forward.1} parent=1 // pred_check_branch
      %303 = sbr.rel (0) target = $region89
    $region88: #{forward.1} parent=1 // pred_region
      _
    $region89: #{forward.1} parent=1 // pred_fallthru
      _
    // Predicated region
    $region90: #{forward.1} parent=1 // pred_check
      _
    $region91: #{forward.1} parent=1 // pred_check_branch
      %305 = sbr.rel (0) target = $region93
    $region92: #{forward.1} parent=1 // pred_region
      %s307 = ssub.s32 16, 16
      %308 = vsyncadd [#allocation30], %s307
      %s310 = sshll.u32 [#allocation29], 4
      %s311 = int_to_ptr.vmem [resolvable:$true] %s310
      %313 = dma.hbm_to_vmem [thread:$0]  %s45, 16, %s311, [#allocation30]
    $region93: #{forward.1} parent=1 // pred_fallthru
      _
    // Predicated region
    $region94: #{forward.1} parent=1 // pred_check
      _
    $region95: #{forward.1} parent=1 // pred_check_branch
      %315 = sbr.rel (0) target = $region97
    $region96: #{forward.1} parent=1 // pred_region
      %s317 = ssub.s32 16, 16
      %318 = vsyncadd [#allocation30], %s317
      %s320 = sshll.u32 [#allocation31], 4
      %s321 = int_to_ptr.vmem [resolvable:$true] %s320
      %323 = dma.hbm_to_vmem [thread:$0]  %s47, 16, %s321, [#allocation30]
    $region97: #{forward.1} parent=1 // pred_fallthru
      _
    // Predicated region
    $region98: #{forward.1} parent=1 // pred_check
      _
    $region99: #{forward.1} parent=1 // pred_check_branch
      %325 = sbr.rel (0) target = $region101
    $region100: #{forward.1} parent=1 // pred_region
      %s327 = ssub.s32 3072, 3072
      %328 = vsyncadd [#allocation33], %s327
      %s329 = sshll.u32 [#allocation32], 4
      %s330 = int_to_ptr.vmem [resolvable:$true] %s329
      %335 = dma.hbm_to_vmem [thread:$0]  %s49, 3072, %s330, [#allocation33], 64, 64, 4
    $region101: #{forward.1} parent=1 // pred_fallthru
      _
    // Predicated region
    $region102: #{forward.1} parent=1 // pred_check
      _
    $region103: #{forward.1} parent=1 // pred_check_branch
      %337 = sbr.rel (0) target = $region105
    $region104: #{forward.1} parent=1 // pred_region
      %s339 = ssub.s32 16, 16
      %340 = vsyncadd [#allocation33], %s339
      %s342 = sshll.u32 [#allocation34], 4
      %s343 = int_to_ptr.vmem [resolvable:$true] %s342
      %345 = dma.hbm_to_vmem [thread:$0]  %s51, 16, %s343, [#allocation33]
    $region105: #{forward.1} parent=1 // pred_fallthru
      _
    // Predicated region
    $region106: #{forward.1} parent=1 // pred_check
      _
    $region107: #{forward.1} parent=1 // pred_check_branch
      %347 = sbr.rel (0) target = $region109
    $region108: #{forward.1} parent=1 // pred_region
      %s349 = ssub.s32 16, 16
      %350 = vsyncadd [#allocation36], %s349
      %s352 = sshll.u32 [#allocation35], 4
      %s353 = int_to_ptr.vmem [resolvable:$true] %s352
      %355 = dma.hbm_to_vmem [thread:$0]  %s53, 16, %s353, [#allocation36]
    $region109: #{forward.1} parent=1 // pred_fallthru
      _
    // Predicated region
    $region110: #{forward.1} parent=1 // pred_check
      _
    $region111: #{forward.1} parent=1 // pred_check_branch
      %357 = sbr.rel (0) target = $region113
    $region112: #{forward.1} parent=1 // pred_region
      %s359 = ssub.s32 2048, 2048
      %360 = vsyncadd [#allocation36], %s359
      %s361 = sshll.u32 [#allocation37], 4
      %s362 = int_to_ptr.vmem [resolvable:$true] %s361
      %367 = dma.hbm_to_vmem [thread:$0]  %s55, 2048, %s362, [#allocation36], 64, 64, 4
    $region113: #{forward.1} parent=1 // pred_fallthru
      _
    // Predicated region
    $region114: #{forward.1} parent=1 // pred_check
      _
    $region115: #{forward.1} parent=1 // pred_check_branch
      %369 = sbr.rel (0) target = $region117
    $region116: #{forward.1} parent=1 // pred_region
      %s371 = ssub.s32 16, 16
      %372 = vsyncadd [#allocation39], %s371
      %s374 = sshll.u32 [#allocation38], 4
      %s375 = int_to_ptr.vmem [resolvable:$true] %s374
      %377 = dma.hbm_to_vmem [thread:$0]  %s57, 16, %s375, [#allocation39]
    $region117: #{forward.1} parent=1 // pred_fallthru
      _
    // Predicated region
    $region118: #{forward.1} parent=1 // pred_check
      _
    $region119: #{forward.1} parent=1 // pred_check_branch
      %379 = sbr.rel (0) target = $region121
    $region120: #{forward.1} parent=1 // pred_region
      %s381 = ssub.s32 16, 16
      %382 = vsyncadd [#allocation39], %s381
      %s384 = sshll.u32 [#allocation40], 4
      %s385 = int_to_ptr.vmem [resolvable:$true] %s384
      %387 = dma.hbm_to_vmem [thread:$0]  %s59, 16, %s385, [#allocation39]
    $region121: #{forward.1} parent=1 // pred_fallthru
      _
    // Predicated region
    $region122: #{forward.1} parent=1 // pred_check
      _
    $region123: #{forward.1} parent=1 // pred_check_branch
      %389 = sbr.rel (0) target = $region125
    $region124: #{forward.1} parent=1 // pred_region
      %s391 = ssub.s32 64, 64
      %392 = vsyncadd [#allocation42], %s391
      %s394 = sshll.u32 [#allocation41], 4
      %s395 = int_to_ptr.vmem [resolvable:$true] %s394
      %397 = dma.hbm_to_vmem [thread:$0]  %s61, 64, %s395, [#allocation42]
    $region125: #{forward.1} parent=1 // pred_fallthru
      _
    // Predicated region
    $region126: #{forward.1} parent=1 // pred_check
      _
    $region127: #{forward.1} parent=1 // pred_check_branch
      %399 = sbr.rel (0) target = $region129
    $region128: #{forward.1} parent=1 // pred_region
      %s401 = ssub.s32 3072, 3072
      %402 = vsyncadd [#allocation42], %s401
      %s403 = sshll.u32 [#allocation43], 4
      %s404 = int_to_ptr.vmem [resolvable:$true] %s403
      %409 = dma.hbm_to_vmem [thread:$0]  %s63, 3072, %s404, [#allocation42], 64, 64, 4
    $region129: #{forward.1} parent=1 // pred_fallthru
      _
    // Predicated region
    $region130: #{forward.1} parent=1 // pred_check
      _
    $region131: #{forward.1} parent=1 // pred_check_branch
      %411 = sbr.rel (0) target = $region133
    $region132: #{forward.1} parent=1 // pred_region
      %s413 = ssub.s32 16, 16
      %414 = vsyncadd [#allocation45], %s413
      %s416 = sshll.u32 [#allocation44], 4
      %s417 = int_to_ptr.vmem [resolvable:$true] %s416
      %419 = dma.hbm_to_vmem [thread:$0]  %s65, 16, %s417, [#allocation45]
    $region133: #{forward.1} parent=1 // pred_fallthru
      _
    // Predicated region
    $region134: #{forward.1} parent=1 // pred_check
      _
    $region135: #{forward.1} parent=1 // pred_check_branch
      %421 = sbr.rel (0) target = $region137
    $region136: #{forward.1} parent=1 // pred_region
      %s423 = ssub.s32 16, 16
      %424 = vsyncadd [#allocation45], %s423
      %s426 = sshll.u32 [#allocation46], 4
      %s427 = int_to_ptr.vmem [resolvable:$true] %s426
      %429 = dma.hbm_to_vmem [thread:$0]  %s67, 16, %s427, [#allocation45]
    $region137: #{forward.1} parent=1 // pred_fallthru
      _
    // Predicated region
    $region138: #{forward.1} parent=1 // pred_check
      _
    $region139: #{forward.1} parent=1 // pred_check_branch
      %431 = sbr.rel (0) target = $region141
    $region140: #{forward.1} parent=1 // pred_region
      %s433 = ssub.s32 3072, 3072
      %434 = vsyncadd [#allocation48], %s433
      %s435 = sshll.u32 [#allocation47], 4
      %s436 = int_to_ptr.vmem [resolvable:$true] %s435
      %441 = dma.hbm_to_vmem [thread:$0]  %s69, 3072, %s436, [#allocation48], 64, 64, 4
    $region141: #{forward.1} parent=1 // pred_fallthru
      _
    // Predicated region
    $region142: #{forward.1} parent=1 // pred_check
      _
    $region143: #{forward.1} parent=1 // pred_check_branch
      %443 = sbr.rel (0) target = $region145
    $region144: #{forward.1} parent=1 // pred_region
      %s445 = ssub.s32 16, 16
      %446 = vsyncadd [#allocation48], %s445
      %s448 = sshll.u32 [#allocation49], 4
      %s449 = int_to_ptr.vmem [resolvable:$true] %s448
      %451 = dma.hbm_to_vmem [thread:$0]  %s71, 16, %s449, [#allocation48]
    $region145: #{forward.1} parent=1 // pred_fallthru
      _
    // Predicated region
    $region146: #{forward.1} parent=1 // pred_check
      _
    $region147: #{forward.1} parent=1 // pred_check_branch
      %453 = sbr.rel (0) target = $region149
    $region148: #{forward.1} parent=1 // pred_region
      %s455 = ssub.s32 16, 16
      %456 = vsyncadd [#allocation51], %s455
      %s458 = sshll.u32 [#allocation50], 4
      %s459 = int_to_ptr.vmem [resolvable:$true] %s458
      %461 = dma.hbm_to_vmem [thread:$0]  %s73, 16, %s459, [#allocation51]
    $region149: #{forward.1} parent=1 // pred_fallthru
      _
    // Predicated region
    $region150: #{forward.1} parent=1 // pred_check
      _
    $region151: #{forward.1} parent=1 // pred_check_branch
      %463 = sbr.rel (0) target = $region153
    $region152: #{forward.1} parent=1 // pred_region
      %s465 = ssub.s32 1024, 1024
      %466 = vsyncadd [#allocation51], %s465
      %s467 = sshll.u32 [#allocation52], 4
      %s468 = int_to_ptr.vmem [resolvable:$true] %s467
      %473 = dma.hbm_to_vmem [thread:$0]  %s75, 1024, %s468, [#allocation51], 64, 64, 4
    $region153: #{forward.1} parent=1 // pred_fallthru
      _
    // Predicated region
    $region154: #{forward.1} parent=1 // pred_check
      _
    $region155: #{forward.1} parent=1 // pred_check_branch
      %475 = sbr.rel (0) target = $region157
    $region156: #{forward.1} parent=1 // pred_region
      %s477 = ssub.s32 16, 16
      %478 = vsyncadd [#allocation54], %s477
      %s480 = sshll.u32 [#allocation53], 4
      %s481 = int_to_ptr.vmem [resolvable:$true] %s480
      %483 = dma.hbm_to_vmem [thread:$0]  %s77, 16, %s481, [#allocation54]
    $region157: #{forward.1} parent=1 // pred_fallthru
      _
    // Predicated region
    $region158: #{forward.1} parent=1 // pred_check
      _
    $region159: #{forward.1} parent=1 // pred_check_branch
      %485 = sbr.rel (0) target = $region161
    $region160: #{forward.1} parent=1 // pred_region
      %s487 = ssub.s32 16, 16
      %488 = vsyncadd [#allocation54], %s487
      %s490 = sshll.u32 [#allocation55], 4
      %s491 = int_to_ptr.vmem [resolvable:$true] %s490
      %493 = dma.hbm_to_vmem [thread:$0]  %s79, 16, %s491, [#allocation54]
    $region161: #{forward.1} parent=1 // pred_fallthru
      _
    // Predicated region
    $region162: #{forward.1} parent=1 // pred_check
      _
    $region163: #{forward.1} parent=1 // pred_check_branch
      %495 = sbr.rel (0) target = $region165
    $region164: #{forward.1} parent=1 // pred_region
      %s497 = ssub.s32 16, 16
      %498 = vsyncadd [#allocation57], %s497
      %s500 = sshll.u32 [#allocation56], 4
      %s501 = int_to_ptr.vmem [resolvable:$true] %s500
      %503 = dma.hbm_to_vmem [thread:$0]  %s81, 16, %s501, [#allocation57]
    $region165: #{forward.1} parent=1 // pred_fallthru
      _
    // Predicated region
    $region166: #{forward.1} parent=1 // pred_check
      _
    $region167: #{forward.1} parent=1 // pred_check_branch
      %505 = sbr.rel (0) target = $region169
    $region168: #{forward.1} parent=1 // pred_region
      _
    $region169: #{forward.1} parent=1 // pred_fallthru
      _
    // Predicated region
    $region170: #{forward.1} parent=1 // pred_check
      _
    $region171: #{forward.1} parent=1 // pred_check_branch
      %507 = sbr.rel (0) target = $region173
    $region172: #{forward.1} parent=1 // pred_region
      %s509 = ssub.s32 16, 16
      %510 = vsyncadd [#allocation57], %s509
      %s512 = sshll.u32 [#allocation58], 4
      %s513 = int_to_ptr.vmem [resolvable:$true] %s512
      %515 = dma.hbm_to_vmem [thread:$0]  %s85, 16, %s513, [#allocation57]
    $region173: #{forward.1} parent=1 // pred_fallthru
      _
    // Predicated region
    $region174: #{forward.1} parent=1 // pred_check
      _
    $region175: #{forward.1} parent=1 // pred_check_branch
      %517 = sbr.rel (0) target = $region177
    $region176: #{forward.1} parent=1 // pred_region
      %518 = dma.done [#allocation3], 6144
    $region177: #{forward.1} parent=1 // pred_fallthru
      _
    // Predicated region
    $region178: #{forward.1} parent=1 // pred_check
      _
    $region179: #{forward.1} parent=1 // pred_check_branch
      %520 = sbr.rel (0) target = $region181
    $region180: #{forward.1} parent=1 // pred_region
      %521 = dma.done [#allocation6], 32
    $region181: #{forward.1} parent=1 // pred_fallthru
      _
    // Predicated region
    $region182: #{forward.1} parent=1 // pred_check
      _
    $region183: #{forward.1} parent=1 // pred_check_branch
      %523 = sbr.rel (0) target = $region185
    $region184: #{forward.1} parent=1 // pred_region
      %524 = dma.done [#allocation6], 32
    $region185: #{forward.1} parent=1 // pred_fallthru
      _
    // Predicated region
    $region186: #{forward.1} parent=1 // pred_check
      _
    $region187: #{forward.1} parent=1 // pred_check_branch
      %526 = sbr.rel (0) target = $region189
    $region188: #{forward.1} parent=1 // pred_region
      %527 = dma.done [#allocation9], 12288
    $region189: #{forward.1} parent=1 // pred_fallthru
      _
    // Predicated region
    $region190: #{forward.1} parent=1 // pred_check
      _
    $region191: #{forward.1} parent=1 // pred_check_branch
      %529 = sbr.rel (0) target = $region193
    $region192: #{forward.1} parent=1 // pred_region
      %530 = dma.done [#allocation9], 32
    $region193: #{forward.1} parent=1 // pred_fallthru
      _
    // Predicated region
    $region194: #{forward.1} parent=1 // pred_check
      _
    $region195: #{forward.1} parent=1 // pred_check_branch
      %532 = sbr.rel (0) target = $region197
    $region196: #{forward.1} parent=1 // pred_region
      %533 = dma.done [#allocation12], 32
    $region197: #{forward.1} parent=1 // pred_fallthru
      _
    // Predicated region
    $region198: #{forward.1} parent=1 // pred_check
      _
    $region199: #{forward.1} parent=1 // pred_check_branch
      %535 = sbr.rel (0) target = $region201
    $region200: #{forward.1} parent=1 // pred_region
      %536 = dma.done [#allocation12], 12288
    $region201: #{forward.1} parent=1 // pred_fallthru
      _
    // Predicated region
    $region202: #{forward.1} parent=1 // pred_check
      _
    $region203: #{forward.1} parent=1 // pred_check_branch
      %538 = sbr.rel (0) target = $region205
    $region204: #{forward.1} parent=1 // pred_region
      %539 = dma.done [#allocation15], 32
    $region205: #{forward.1} parent=1 // pred_fallthru
      _
    // Predicated region
    $region206: #{forward.1} parent=1 // pred_check
      _
    $region207: #{forward.1} parent=1 // pred_check_branch
      %541 = sbr.rel (0) target = $region209
    $region208: #{forward.1} parent=1 // pred_region
      %542 = dma.done [#allocation15], 32
    $region209: #{forward.1} parent=1 // pred_fallthru
      _
    // Predicated region
    $region210: #{forward.1} parent=1 // pred_check
      _
    $region211: #{forward.1} parent=1 // pred_check_branch
      %544 = sbr.rel (0) target = $region213
    $region212: #{forward.1} parent=1 // pred_region
      %545 = dma.done [#allocation18], 256
    $region213: #{forward.1} parent=1 // pred_fallthru
      _
    // Predicated region
    $region214: #{forward.1} parent=1 // pred_check
      _
    $region215: #{forward.1} parent=1 // pred_check_branch
      %547 = sbr.rel (0) target = $region217
    $region216: #{forward.1} parent=1 // pred_region
      %548 = dma.done [#allocation18], 12288
    $region217: #{forward.1} parent=1 // pred_fallthru
      _
    // Predicated region
    $region218: #{forward.1} parent=1 // pred_check
      _
    $region219: #{forward.1} parent=1 // pred_check_branch
      %550 = sbr.rel (0) target = $region221
    $region220: #{forward.1} parent=1 // pred_region
      %551 = dma.done [#allocation21], 32
    $region221: #{forward.1} parent=1 // pred_fallthru
      _
    // Predicated region
    $region222: #{forward.1} parent=1 // pred_check
      _
    $region223: #{forward.1} parent=1 // pred_check_branch
      %553 = sbr.rel (0) target = $region225
    $region224: #{forward.1} parent=1 // pred_region
      %554 = dma.done [#allocation21], 32
    $region225: #{forward.1} parent=1 // pred_fallthru
      _
    // Predicated region
    $region226: #{forward.1} parent=1 // pred_check
      _
    $region227: #{forward.1} parent=1 // pred_check_branch
      %556 = sbr.rel (0) target = $region229
    $region228: #{forward.1} parent=1 // pred_region
      %557 = dma.done [#allocation24], 32
    $region229: #{forward.1} parent=1 // pred_fallthru
      _
    // Predicated region
    $region230: #{forward.1} parent=1 // pred_check
      _
    $region231: #{forward.1} parent=1 // pred_check_branch
      %559 = sbr.rel (0) target = $region233
    $region232: #{forward.1} parent=1 // pred_region
      %560 = dma.done [#allocation24], 32
    $region233: #{forward.1} parent=1 // pred_fallthru
      _
    // Predicated region
    $region234: #{forward.1} parent=1 // pred_check
      _
    $region235: #{forward.1} parent=1 // pred_check_branch
      %562 = sbr.rel (0) target = $region237
    $region236: #{forward.1} parent=1 // pred_region
      %563 = dma.done [#allocation27], 32
    $region237: #{forward.1} parent=1 // pred_fallthru
      _
    // Predicated region
    $region238: #{forward.1} parent=1 // pred_check
      _
    $region239: #{forward.1} parent=1 // pred_check_branch
      %565 = sbr.rel (0) target = $region241
    $region240: #{forward.1} parent=1 // pred_region
      %566 = dma.done [#allocation27], 128
    $region241: #{forward.1} parent=1 // pred_fallthru
      _
    // Predicated region
    $region242: #{forward.1} parent=1 // pred_check
      _
    $region243: #{forward.1} parent=1 // pred_check_branch
      %568 = sbr.rel (0) target = $region245
    $region244: #{forward.1} parent=1 // pred_region
      %569 = dma.done [#allocation30], 16
    $region245: #{forward.1} parent=1 // pred_fallthru
      _
    // Predicated region
    $region246: #{forward.1} parent=1 // pred_check
      _
    $region247: #{forward.1} parent=1 // pred_check_branch
      %571 = sbr.rel (0) target = $region249
    $region248: #{forward.1} parent=1 // pred_region
      %572 = dma.done [#allocation30], 16
    $region249: #{forward.1} parent=1 // pred_fallthru
      _
    // Predicated region
    $region250: #{forward.1} parent=1 // pred_check
      _
    $region251: #{forward.1} parent=1 // pred_check_branch
      %574 = sbr.rel (0) target = $region253
    $region252: #{forward.1} parent=1 // pred_region
      %575 = dma.done [#allocation33], 3072
    $region253: #{forward.1} parent=1 // pred_fallthru
      _
    // Predicated region
    $region254: #{forward.1} parent=1 // pred_check
      _
    $region255: #{forward.1} parent=1 // pred_check_branch
      %577 = sbr.rel (0) target = $region257
    $region256: #{forward.1} parent=1 // pred_region
      %578 = dma.done [#allocation33], 16
    $region257: #{forward.1} parent=1 // pred_fallthru
      _
    // Predicated region
    $region258: #{forward.1} parent=1 // pred_check
      _
    $region259: #{forward.1} parent=1 // pred_check_branch
      %580 = sbr.rel (0) target = $region261
    $region260: #{forward.1} parent=1 // pred_region
      %581 = dma.done [#allocation36], 16
    $region261: #{forward.1} parent=1 // pred_fallthru
      _
    // Predicated region
    $region262: #{forward.1} parent=1 // pred_check
      _
    $region263: #{forward.1} parent=1 // pred_check_branch
      %583 = sbr.rel (0) target = $region265
    $region264: #{forward.1} parent=1 // pred_region
      %584 = dma.done [#allocation36], 2048
    $region265: #{forward.1} parent=1 // pred_fallthru
      _
    // Predicated region
    $region266: #{forward.1} parent=1 // pred_check
      _
    $region267: #{forward.1} parent=1 // pred_check_branch
      %586 = sbr.rel (0) target = $region269
    $region268: #{forward.1} parent=1 // pred_region
      %587 = dma.done [#allocation39], 16
    $region269: #{forward.1} parent=1 // pred_fallthru
      _
    // Predicated region
    $region270: #{forward.1} parent=1 // pred_check
      _
    $region271: #{forward.1} parent=1 // pred_check_branch
      %589 = sbr.rel (0) target = $region273
    $region272: #{forward.1} parent=1 // pred_region
      %590 = dma.done [#allocation39], 16
    $region273: #{forward.1} parent=1 // pred_fallthru
      _
    // Predicated region
    $region274: #{forward.1} parent=1 // pred_check
      _
    $region275: #{forward.1} parent=1 // pred_check_branch
      %592 = sbr.rel (0) target = $region277
    $region276: #{forward.1} parent=1 // pred_region
      %593 = dma.done [#allocation42], 64
    $region277: #{forward.1} parent=1 // pred_fallthru
      _
    // Predicated region
    $region278: #{forward.1} parent=1 // pred_check
      _
    $region279: #{forward.1} parent=1 // pred_check_branch
      %595 = sbr.rel (0) target = $region281
    $region280: #{forward.1} parent=1 // pred_region
      %596 = dma.done [#allocation42], 3072
    $region281: #{forward.1} parent=1 // pred_fallthru
      _
    // Predicated region
    $region282: #{forward.1} parent=1 // pred_check
      _
    $region283: #{forward.1} parent=1 // pred_check_branch
      %598 = sbr.rel (0) target = $region285
    $region284: #{forward.1} parent=1 // pred_region
      %599 = dma.done [#allocation45], 16
    $region285: #{forward.1} parent=1 // pred_fallthru
      _
    // Predicated region
    $region286: #{forward.1} parent=1 // pred_check
      _
    $region287: #{forward.1} parent=1 // pred_check_branch
      %601 = sbr.rel (0) target = $region289
    $region288: #{forward.1} parent=1 // pred_region
      %602 = dma.done [#allocation45], 16
    $region289: #{forward.1} parent=1 // pred_fallthru
      _
    // Predicated region
    $region290: #{forward.1} parent=1 // pred_check
      _
    $region291: #{forward.1} parent=1 // pred_check_branch
      %604 = sbr.rel (0) target = $region293
    $region292: #{forward.1} parent=1 // pred_region
      %605 = dma.done [#allocation48], 3072
    $region293: #{forward.1} parent=1 // pred_fallthru
      _
    // Predicated region
    $region294: #{forward.1} parent=1 // pred_check
      _
    $region295: #{forward.1} parent=1 // pred_check_branch
      %607 = sbr.rel (0) target = $region297
    $region296: #{forward.1} parent=1 // pred_region
      %608 = dma.done [#allocation48], 16
    $region297: #{forward.1} parent=1 // pred_fallthru
      _
    // Predicated region
    $region298: #{forward.1} parent=1 // pred_check
      _
    $region299: #{forward.1} parent=1 // pred_check_branch
      %610 = sbr.rel (0) target = $region301
    $region300: #{forward.1} parent=1 // pred_region
      %611 = dma.done [#allocation51], 16
    $region301: #{forward.1} parent=1 // pred_fallthru
      _
    // Predicated region
    $region302: #{forward.1} parent=1 // pred_check
      _
    $region303: #{forward.1} parent=1 // pred_check_branch
      %613 = sbr.rel (0) target = $region305
    $region304: #{forward.1} parent=1 // pred_region
      %614 = dma.done [#allocation51], 1024
    $region305: #{forward.1} parent=1 // pred_fallthru
      _
    // Predicated region
    $region306: #{forward.1} parent=1 // pred_check
      _
    $region307: #{forward.1} parent=1 // pred_check_branch
      %616 = sbr.rel (0) target = $region309
    $region308: #{forward.1} parent=1 // pred_region
      %617 = dma.done [#allocation54], 16
    $region309: #{forward.1} parent=1 // pred_fallthru
      _
    // Predicated region
    $region310: #{forward.1} parent=1 // pred_check
      _
    $region311: #{forward.1} parent=1 // pred_check_branch
      %619 = sbr.rel (0) target = $region313
    $region312: #{forward.1} parent=1 // pred_region
      %620 = dma.done [#allocation54], 16
    $region313: #{forward.1} parent=1 // pred_fallthru
      _
    // Predicated region
    $region314: #{forward.1} parent=1 // pred_check
      _
    $region315: #{forward.1} parent=1 // pred_check_branch
      %622 = sbr.rel (0) target = $region317
    $region316: #{forward.1} parent=1 // pred_region
      %623 = dma.done [#allocation57], 16
    $region317: #{forward.1} parent=1 // pred_fallthru
      _
    // Predicated region
    $region318: #{forward.1} parent=1 // pred_check
      _
    $region319: #{forward.1} parent=1 // pred_check_branch
      %625 = sbr.rel (0) target = $region321
    $region320: #{forward.1} parent=1 // pred_region
      %626 = dma.done [#allocation57], 16
    $region321: #{forward.1} parent=1 // pred_fallthru
      _
    %v628 = vld [vmem:[%s1] sm:$0xff]
    %v629 = vld [vmem:[%s1 + $0x8] sm:$0xff]
    %v630 = vld [vmem:[%s1 + $0x10] sm:$0xff]
    %v631 = vld [vmem:[%s1 + $0x18] sm:$0xff]
    %v632 = vld [vmem:[%s1 + $0x20] sm:$0xff]
    %v633 = vld [vmem:[%s1 + $0x28] sm:$0xff]
    %v634 = vld [vmem:[%s1 + $0x30] sm:$0xff]
    %v635 = vld [vmem:[%s1 + $0x38] sm:$0xff]
    %v636 = vld [vmem:[#allocation2] sm:$0xff]
    %v637 = vld [vmem:[#allocation2 + $0x8] sm:$0xff]
    %v638 = vld [vmem:[#allocation2 + $0x10] sm:$0xff]
    %v639 = vld [vmem:[#allocation2 + $0x18] sm:$0xff]
    %v640 = vld [vmem:[#allocation2 + $0x20] sm:$0xff]
    %v641 = vld [vmem:[#allocation2 + $0x28] sm:$0xff]
    %v642 = vld [vmem:[#allocation2 + $0x30] sm:$0xff]
    %v643 = vld [vmem:[#allocation2 + $0x38] sm:$0xff]
    %v644 = vld [vmem:[#allocation2 + $0x40] sm:$0xff]
    %v645 = vld [vmem:[#allocation2 + $0x48] sm:$0xff]
    %v646 = vld [vmem:[#allocation2 + $0x50] sm:$0xff]
    %v647 = vld [vmem:[#allocation2 + $0x58] sm:$0xff]
    %v648 = vld [vmem:[#allocation2 + $0x60] sm:$0xff]
    %v649 = vld [vmem:[#allocation2 + $0x68] sm:$0xff]
    %v650 = vld [vmem:[#allocation2 + $0x70] sm:$0xff]
    %v651 = vld [vmem:[#allocation2 + $0x78] sm:$0xff]
    %v652 = vld [vmem:[#allocation2 + $0x80] sm:$0xff]
    %v653 = vld [vmem:[#allocation2 + $0x88] sm:$0xff]
    %v654 = vld [vmem:[#allocation2 + $0x90] sm:$0xff]
    %v655 = vld [vmem:[#allocation2 + $0x98] sm:$0xff]
    %v656 = vld [vmem:[#allocation2 + $0xa0] sm:$0xff]
    %v657 = vld [vmem:[#allocation2 + $0xa8] sm:$0xff]
    %v658 = vld [vmem:[#allocation2 + $0xb0] sm:$0xff]
    %v659 = vld [vmem:[#allocation2 + $0xb8] sm:$0xff]
    %v660 = vld [vmem:[#allocation2 + $0xc0] sm:$0xff]
    %v661 = vld [vmem:[#allocation2 + $0xc8] sm:$0xff]
    %v662 = vld [vmem:[#allocation2 + $0xd0] sm:$0xff]
    %v663 = vld [vmem:[#allocation2 + $0xd8] sm:$0xff]
    %v664 = vld [vmem:[#allocation2 + $0xe0] sm:$0xff]
    %v665 = vld [vmem:[#allocation2 + $0xe8] sm:$0xff]
    %v666 = vld [vmem:[#allocation2 + $0xf0] sm:$0xff]
    %v667 = vld [vmem:[#allocation2 + $0xf8] sm:$0xff]
    %v668 = vld [vmem:[#allocation2 + $0x100] sm:$0xff]
    %v669 = vld [vmem:[#allocation2 + $0x108] sm:$0xff]
    %v670 = vld [vmem:[#allocation2 + $0x110] sm:$0xff]
    %v671 = vld [vmem:[#allocation2 + $0x118] sm:$0xff]
    %v672 = vld [vmem:[#allocation2 + $0x120] sm:$0xff]
    %v673 = vld [vmem:[#allocation2 + $0x128] sm:$0xff]
    %v674 = vld [vmem:[#allocation2 + $0x130] sm:$0xff]
    %v675 = vld [vmem:[#allocation2 + $0x138] sm:$0xff]
    %v676 = vld [vmem:[#allocation2 + $0x140] sm:$0xff]
    %v677 = vld [vmem:[#allocation2 + $0x148] sm:$0xff]
    %v678 = vld [vmem:[#allocation2 + $0x150] sm:$0xff]
    %v679 = vld [vmem:[#allocation2 + $0x158] sm:$0xff]
    %v680 = vld [vmem:[#allocation2 + $0x160] sm:$0xff]
    %v681 = vld [vmem:[#allocation2 + $0x168] sm:$0xff]
    %v682 = vld [vmem:[#allocation2 + $0x170] sm:$0xff]
    %v683 = vld [vmem:[#allocation2 + $0x178] sm:$0xff]
    %v684 = vld [vmem:[#allocation5] sm:$0x3]
    %v685 = vld [vmem:[#allocation7] sm:$0x3]
    %vm694 = vcmask 1040384
    %v695 = vrot.slane %v628, 7
    %v696 = vrot.slane %v629, 7
    %v697 = vsel %vm694, %v695, %v696
    %v698 = vrot.slane %v630, 7
    %v699 = vsel %vm694, %v696, %v698
    %v700 = vrot.slane %v631, 7
    %v701 = vsel %vm694, %v698, %v700
    %v702 = vrot.slane %v632, 7
    %v703 = vsel %vm694, %v700, %v702
    %v704 = vrot.slane %v633, 7
    %v705 = vsel %vm694, %v702, %v704
    %v706 = vrot.slane %v634, 7
    %v707 = vsel %vm694, %v704, %v706
    %v708 = vrot.slane %v635, 7
    %v709 = vsel %vm694, %v706, %v708
    %v718 = vsel %vm694, 0.0, %v695
    %vm719 = vcmask 1046528
    %v720 = vrot.slane %v628, 1
    %v721 = vrot.slane %v629, 1
    %v722 = vsel %vm719, %v720, %v721
    %v723 = vrot.slane %v630, 1
    %v724 = vsel %vm719, %v721, %v723
    %v725 = vrot.slane %v631, 1
    %v726 = vsel %vm719, %v723, %v725
    %v727 = vrot.slane %v632, 1
    %v728 = vsel %vm719, %v725, %v727
    %v729 = vrot.slane %v633, 1
    %v730 = vsel %vm719, %v727, %v729
    %v731 = vrot.slane %v634, 1
    %v732 = vsel %vm719, %v729, %v731
    %v733 = vrot.slane %v635, 1
    %v734 = vsel %vm719, %v731, %v733
    %v743 = vsel %vm719, %v733, 0.0
    %v744 = vlaneseq
    %v745 = vshrl.u32 %v744, 7
    %v746 = vadd.s32 %v745, 8
    %v747 = vadd.s32 %v745, 16
    %v748 = vadd.s32 %v745, 24
    %v749 = vadd.s32 %v745, 32
    %v750 = vadd.s32 %v745, 40
    %v751 = vadd.s32 %v745, 48
    %v752 = vadd.s32 %v745, 56
    %vm753 = vcmp.lt.s32.totalorder %v745, 0
    %v754 = vsub.s32 0, %v745
    %v755 = vsel %vm753, %v754, %v745
    %v756 = vshrl.u32 %v755, 5
    %v757 = vand.u32 %v755, 31
    %v758 = vsub.s32 0, %v757
    %v759 = vsel %vm753, %v758, %v757
    %vm760 = vcmp.lt.s32.totalorder %v746, 0
    %v761 = vsub.s32 0, %v746
    %v762 = vsel %vm760, %v761, %v746
    %v763 = vshrl.u32 %v762, 5
    %v764 = vand.u32 %v762, 31
    %v765 = vsub.s32 0, %v764
    %v766 = vsel %vm760, %v765, %v764
    %vm767 = vcmp.lt.s32.totalorder %v747, 0
    %v768 = vsub.s32 0, %v747
    %v769 = vsel %vm767, %v768, %v747
    %v770 = vshrl.u32 %v769, 5
    %v771 = vand.u32 %v769, 31
    %v772 = vsub.s32 0, %v771
    %v773 = vsel %vm767, %v772, %v771
    %vm774 = vcmp.lt.s32.totalorder %v748, 0
    %v775 = vsub.s32 0, %v748
    %v776 = vsel %vm774, %v775, %v748
    %v777 = vshrl.u32 %v776, 5
    %v778 = vand.u32 %v776, 31
    %v779 = vsub.s32 0, %v778
    %v780 = vsel %vm774, %v779, %v778
    %vm781 = vcmp.lt.s32.totalorder %v749, 0
    %v782 = vsub.s32 0, %v749
    %v783 = vsel %vm781, %v782, %v749
    %v784 = vshrl.u32 %v783, 5
    %v785 = vand.u32 %v783, 31
    %v786 = vsub.s32 0, %v785
    %v787 = vsel %vm781, %v786, %v785
    %vm788 = vcmp.lt.s32.totalorder %v750, 0
    %v789 = vsub.s32 0, %v750
    %v790 = vsel %vm788, %v789, %v750
    %v791 = vshrl.u32 %v790, 5
    %v792 = vand.u32 %v790, 31
    %v793 = vsub.s32 0, %v792
    %v794 = vsel %vm788, %v793, %v792
    %vm795 = vcmp.lt.s32.totalorder %v751, 0
    %v796 = vsub.s32 0, %v751
    %v797 = vsel %vm795, %v796, %v751
    %v798 = vshrl.u32 %v797, 5
    %v799 = vand.u32 %v797, 31
    %v800 = vsub.s32 0, %v799
    %v801 = vsel %vm795, %v800, %v799
    %vm802 = vcmp.lt.s32.totalorder %v752, 0
    %v803 = vsub.s32 0, %v752
    %v804 = vsel %vm802, %v803, %v752
    %v805 = vshrl.u32 %v804, 5
    %v806 = vand.u32 %v804, 31
    %v807 = vsub.s32 0, %v806
    %v808 = vsel %vm802, %v807, %v806
    %vm809 = vcmp.ne.s32.totalorder %v759, 0
    %vm810 = vcmp.ne.s32.totalorder %v766, 0
    %vm811 = vcmp.ne.s32.totalorder %v773, 0
    %vm812 = vcmp.ne.s32.totalorder %v780, 0
    %vm813 = vcmp.ne.s32.totalorder %v787, 0
    %vm814 = vcmp.ne.s32.totalorder %v794, 0
    %vm815 = vcmp.ne.s32.totalorder %v801, 0
    %vm816 = vcmp.ne.s32.totalorder %v808, 0
    %vm817 = vcmp.lt.s32.totalorder %v759, 0
    %vm818 = vcmp.lt.s32.totalorder %v766, 0
    %vm819 = vcmp.lt.s32.totalorder %v773, 0
    %vm820 = vcmp.lt.s32.totalorder %v780, 0
    %vm821 = vcmp.lt.s32.totalorder %v787, 0
    %vm822 = vcmp.lt.s32.totalorder %v794, 0
    %vm823 = vcmp.lt.s32.totalorder %v801, 0
    %vm824 = vcmp.lt.s32.totalorder %v808, 0
    %vm825 = vmand %vm817, %vm809
    %vm826 = vmand %vm818, %vm810
    %vm827 = vmand %vm819, %vm811
    %vm828 = vmand %vm820, %vm812
    %vm829 = vmand %vm821, %vm813
    %vm830 = vmand %vm822, %vm814
    %vm831 = vmand %vm823, %vm815
    %vm832 = vmand %vm824, %vm816
    %v833 = vadd.s32 %v759, 32
    %v834 = vadd.s32 %v766, 32
    %v835 = vadd.s32 %v773, 32
    %v836 = vadd.s32 %v780, 32
    %v837 = vadd.s32 %v787, 32
    %v838 = vadd.s32 %v794, 32
    %v839 = vadd.s32 %v801, 32
    %v840 = vadd.s32 %v808, 32
    %v841 = vsel %vm825, %v833, %v759
    %v842 = vsel %vm826, %v834, %v766
    %v843 = vsel %vm827, %v835, %v773
    %v844 = vsel %vm828, %v836, %v780
    %v845 = vsel %vm829, %v837, %v787
    %v846 = vsel %vm830, %v838, %v794
    %v847 = vsel %vm831, %v839, %v801
    %v848 = vsel %vm832, %v840, %v808
    %vm849 = vcmp.eq.s32.totalorder %v841, 0
    %vm850 = vcmp.eq.s32.totalorder %v842, 0
    %vm851 = vcmp.eq.s32.totalorder %v843, 0
    %vm852 = vcmp.eq.s32.totalorder %v844, 0
    %vm853 = vcmp.eq.s32.totalorder %v845, 0
    %vm854 = vcmp.eq.s32.totalorder %v846, 0
    %vm855 = vcmp.eq.s32.totalorder %v847, 0
    %vm856 = vcmp.eq.s32.totalorder %v848, 0
    %v857 = vsel %vm849, 1, 0
    %v858 = vsel %vm850, 1, 0
    %v859 = vsel %vm851, 1, 0
    %v860 = vsel %vm852, 1, 0
    %v861 = vsel %vm853, 1, 0
    %v862 = vsel %vm854, 1, 0
    %v863 = vsel %vm855, 1, 0
    %v864 = vsel %vm856, 1, 0
    %vm865 = vcmp.eq.s32.totalorder %v857, 1
    %vm866 = vcmp.eq.s32.totalorder %v858, 1
    %vm867 = vcmp.eq.s32.totalorder %v859, 1
    %vm868 = vcmp.eq.s32.totalorder %v860, 1
    %vm869 = vcmp.eq.s32.totalorder %v861, 1
    %vm870 = vcmp.eq.s32.totalorder %v862, 1
    %vm871 = vcmp.eq.s32.totalorder %v863, 1
    %vm872 = vcmp.eq.s32.totalorder %v864, 1
    %v873 = vsel %vm865, 0.0, %v718
    %v874 = vsel %vm866, 0.0, %v697
    %v875 = vsel %vm867, 0.0, %v699
    %v876 = vsel %vm868, 0.0, %v701
    %v877 = vsel %vm869, 0.0, %v703
    %v878 = vsel %vm870, 0.0, %v705
    %v879 = vsel %vm871, 0.0, %v707
    %v880 = vsel %vm872, 0.0, %v709
    %vm881 = vcmp.eq.s32.totalorder %v841, 31
    %vm882 = vcmp.eq.s32.totalorder %v842, 31
    %vm883 = vcmp.eq.s32.totalorder %v843, 31
    %vm884 = vcmp.eq.s32.totalorder %v844, 31
    %vm885 = vcmp.eq.s32.totalorder %v845, 31
    %vm886 = vcmp.eq.s32.totalorder %v846, 31
    %vm887 = vcmp.eq.s32.totalorder %v847, 31
    %vm888 = vcmp.eq.s32.totalorder %v848, 31
    %v889 = vsel %vm881, 1, 0
    %v890 = vsel %vm882, 1, 0
    %v891 = vsel %vm883, 1, 0
    %v892 = vsel %vm884, 1, 0
    %v893 = vsel %vm885, 1, 0
    %v894 = vsel %vm886, 1, 0
    %v895 = vsel %vm887, 1, 0
    %v896 = vsel %vm888, 1, 0
    %vm897 = vcmp.eq.s32.totalorder %v889, 1
    %vm898 = vcmp.eq.s32.totalorder %v890, 1
    %vm899 = vcmp.eq.s32.totalorder %v891, 1
    %vm900 = vcmp.eq.s32.totalorder %v892, 1
    %vm901 = vcmp.eq.s32.totalorder %v893, 1
    %vm902 = vcmp.eq.s32.totalorder %v894, 1
    %vm903 = vcmp.eq.s32.totalorder %v895, 1
    %vm904 = vcmp.eq.s32.totalorder %v896, 1
    %v905 = vsel %vm897, 0.0, %v722
    %v906 = vsel %vm898, 0.0, %v724
    %v907 = vsel %vm899, 0.0, %v726
    %v908 = vsel %vm900, 0.0, %v728
    %v909 = vsel %vm901, 0.0, %v730
    %v910 = vsel %vm902, 0.0, %v732
    %v911 = vsel %vm903, 0.0, %v734
    %v912 = vsel %vm904, 0.0, %v743
    %v913 = vpack.c.bf16 %v874, %v873
    %v914 = vpack.c.bf16 %v629, %v628
    %v915 = vpack.c.bf16 %v906, %v905
    %v916 = vpack.c.bf16 %v876, %v875
    %v917 = vpack.c.bf16 %v631, %v630
    %v918 = vpack.c.bf16 %v908, %v907
    %v919 = vpack.c.bf16 %v878, %v877
    %v920 = vpack.c.bf16 %v633, %v632
    %v921 = vpack.c.bf16 %v910, %v909
    %v922 = vpack.c.bf16 %v880, %v879
    %v923 = vpack.c.bf16 %v635, %v634
    %v924 = vpack.c.bf16 %v912, %v911
    %v973 = vunpack.c.l.b16 %v636
    %v974 = vunpack.c.h.b16 %v636
    %v975 = vunpack.c.l.b16 %v637
    %v976 = vunpack.c.h.b16 %v637
    %v977 = vunpack.c.l.b16 %v638
    %v978 = vunpack.c.h.b16 %v638
    %v979 = vunpack.c.l.b16 %v639
    %v980 = vunpack.c.h.b16 %v639
    %v981 = vunpack.c.l.b16 %v640
    %v982 = vunpack.c.h.b16 %v640
    %v983 = vunpack.c.l.b16 %v641
    %v984 = vunpack.c.h.b16 %v641
    %v985 = vunpack.c.l.b16 %v642
    %v986 = vunpack.c.h.b16 %v642
    %v987 = vunpack.c.l.b16 %v643
    %v988 = vunpack.c.h.b16 %v643
    %v989 = vunpack.c.l.b16 %v644
    %v990 = vunpack.c.h.b16 %v644
    %v991 = vunpack.c.l.b16 %v645
    %v992 = vunpack.c.h.b16 %v645
    %v993 = vunpack.c.l.b16 %v646
    %v994 = vunpack.c.h.b16 %v646
    %v995 = vunpack.c.l.b16 %v647
    %v996 = vunpack.c.h.b16 %v647
    %v997 = vunpack.c.l.b16 %v648
    %v998 = vunpack.c.h.b16 %v648
    %v999 = vunpack.c.l.b16 %v649
    %v1000 = vunpack.c.h.b16 %v649
    %v1001 = vunpack.c.l.b16 %v650
    %v1002 = vunpack.c.h.b16 %v650
    %v1003 = vunpack.c.l.b16 %v651
    %v1004 = vunpack.c.h.b16 %v651
    %v1005 = vunpack.c.l.b16 %v652
    %v1006 = vunpack.c.h.b16 %v652
    %v1007 = vunpack.c.l.b16 %v653
    %v1008 = vunpack.c.h.b16 %v653
    %v1009 = vunpack.c.l.b16 %v654
    %v1010 = vunpack.c.h.b16 %v654
    %v1011 = vunpack.c.l.b16 %v655
    %v1012 = vunpack.c.h.b16 %v655
    %v1013 = vunpack.c.l.b16 %v656
    %v1014 = vunpack.c.h.b16 %v656
    %v1015 = vunpack.c.l.b16 %v657
    %v1016 = vunpack.c.h.b16 %v657
    %v1017 = vunpack.c.l.b16 %v658
    %v1018 = vunpack.c.h.b16 %v658
    %v1019 = vunpack.c.l.b16 %v659
    %v1020 = vunpack.c.h.b16 %v659
    %v1021 = vunpack.c.l.b16 %v660
    %v1022 = vunpack.c.h.b16 %v660
    %v1023 = vunpack.c.l.b16 %v661
    %v1024 = vunpack.c.h.b16 %v661
    %v1025 = vunpack.c.l.b16 %v662
    %v1026 = vunpack.c.h.b16 %v662
    %v1027 = vunpack.c.l.b16 %v663
    %v1028 = vunpack.c.h.b16 %v663
    %v1029 = vunpack.c.l.b16 %v664
    %v1030 = vunpack.c.h.b16 %v664
    %v1031 = vunpack.c.l.b16 %v665
    %v1032 = vunpack.c.h.b16 %v665
    %v1033 = vunpack.c.l.b16 %v666
    %v1034 = vunpack.c.h.b16 %v666
    %v1035 = vunpack.c.l.b16 %v667
    %v1036 = vunpack.c.h.b16 %v667
    %v1037 = vunpack.c.l.b16 %v668
    %v1038 = vunpack.c.h.b16 %v668
    %v1039 = vunpack.c.l.b16 %v669
    %v1040 = vunpack.c.h.b16 %v669
    %v1041 = vunpack.c.l.b16 %v670
    %v1042 = vunpack.c.h.b16 %v670
    %v1043 = vunpack.c.l.b16 %v671
    %v1044 = vunpack.c.h.b16 %v671
    %v1045 = vunpack.c.l.b16 %v672
    %v1046 = vunpack.c.h.b16 %v672
    %v1047 = vunpack.c.l.b16 %v673
    %v1048 = vunpack.c.h.b16 %v673
    %v1049 = vunpack.c.l.b16 %v674
    %v1050 = vunpack.c.h.b16 %v674
    %v1051 = vunpack.c.l.b16 %v675
    %v1052 = vunpack.c.h.b16 %v675
    %v1053 = vunpack.c.l.b16 %v676
    %v1054 = vunpack.c.h.b16 %v676
    %v1055 = vunpack.c.l.b16 %v677
    %v1056 = vunpack.c.h.b16 %v677
    %v1057 = vunpack.c.l.b16 %v678
    %v1058 = vunpack.c.h.b16 %v678
    %v1059 = vunpack.c.l.b16 %v679
    %v1060 = vunpack.c.h.b16 %v679
    %v1061 = vunpack.c.l.b16 %v680
    %v1062 = vunpack.c.h.b16 %v680
    %v1063 = vunpack.c.l.b16 %v681
    %v1064 = vunpack.c.h.b16 %v681
    %v1065 = vunpack.c.l.b16 %v682
    %v1066 = vunpack.c.h.b16 %v682
    %v1067 = vunpack.c.l.b16 %v683
    %v1068 = vunpack.c.h.b16 %v683
    %v1069 = vpack.c.b16 %v975, %v973
    %v1070 = vpack.c.b16 %v976, %v974
    %v1071 = vpack.c.b16 %v979, %v977
    %v1072 = vpack.c.b16 %v980, %v978
    %v1073 = vpack.c.b16 %v983, %v981
    %v1074 = vpack.c.b16 %v984, %v982
    %v1075 = vpack.c.b16 %v987, %v985
    %v1076 = vpack.c.b16 %v988, %v986
    %v1077 = vpack.c.b16 %v991, %v989
    %v1078 = vpack.c.b16 %v992, %v990
    %v1079 = vpack.c.b16 %v995, %v993
    %v1080 = vpack.c.b16 %v996, %v994
    %v1081 = vpack.c.b16 %v999, %v997
    %v1082 = vpack.c.b16 %v1000, %v998
    %v1083 = vpack.c.b16 %v1003, %v1001
    %v1084 = vpack.c.b16 %v1004, %v1002
    %v1085 = vpack.c.b16 %v1007, %v1005
    %v1086 = vpack.c.b16 %v1008, %v1006
    %v1087 = vpack.c.b16 %v1011, %v1009
    %v1088 = vpack.c.b16 %v1012, %v1010
    %v1089 = vpack.c.b16 %v1015, %v1013
    %v1090 = vpack.c.b16 %v1016, %v1014
    %v1091 = vpack.c.b16 %v1019, %v1017
    %v1092 = vpack.c.b16 %v1020, %v1018
    %v1093 = vpack.c.b16 %v1023, %v1021
    %v1094 = vpack.c.b16 %v1024, %v1022
    %v1095 = vpack.c.b16 %v1027, %v1025
    %v1096 = vpack.c.b16 %v1028, %v1026
    %v1097 = vpack.c.b16 %v1031, %v1029
    %v1098 = vpack.c.b16 %v1032, %v1030
    %v1099 = vpack.c.b16 %v1035, %v1033
    %v1100 = vpack.c.b16 %v1036, %v1034
    %v1101 = vpack.c.b16 %v1039, %v1037
    %v1102 = vpack.c.b16 %v1040, %v1038
    %v1103 = vpack.c.b16 %v1043, %v1041
    %v1104 = vpack.c.b16 %v1044, %v1042
    %v1105 = vpack.c.b16 %v1047, %v1045
    %v1106 = vpack.c.b16 %v1048, %v1046
    %v1107 = vpack.c.b16 %v1051, %v1049
    %v1108 = vpack.c.b16 %v1052, %v1050
    %v1109 = vpack.c.b16 %v1055, %v1053
    %v1110 = vpack.c.b16 %v1056, %v1054
    %v1111 = vpack.c.b16 %v1059, %v1057
    %v1112 = vpack.c.b16 %v1060, %v1058
    %v1113 = vpack.c.b16 %v1063, %v1061
    %v1114 = vpack.c.b16 %v1064, %v1062
    %v1115 = vpack.c.b16 %v1067, %v1065
    %v1116 = vpack.c.b16 %v1068, %v1066
    %1165 = vmatprep.subr.bf16.mxu0 %v1084
    %1166 = vmatpush1.bf16.msra.mxu0 %v1083
    %1167 = vmatprep.subr.bf16.mxu0 %v1082
    %1168 = vmatpush1.bf16.msra.mxu0 %v1081
    %1169 = vmatprep.subr.bf16.mxu0 %v1080
    %1170 = vmatpush1.bf16.msra.mxu0 %v1079
    %1171 = vmatprep.subr.bf16.mxu0 %v1078
    %1172 = vmatpush1.bf16.msra.mxu0 %v1077
    %1173 = vmatprep.subr.bf16.mxu0 %v1076
    %1174 = vmatpush1.bf16.msra.mxu0 %v1075
    %1175 = vmatprep.subr.bf16.mxu0 %v1074
    %1176 = vmatpush1.bf16.msra.mxu0 %v1073
    %1177 = vmatprep.subr.bf16.mxu0 %v1072
    %1178 = vmatpush1.bf16.msra.mxu0 %v1071
    %1179 = vmatprep.subr.bf16.mxu0 %v1070
    %1180 = vmatpush1.bf16.msra.mxu0 %v1069
    %1181 = vmatprep.subr.bf16.mxu0 %v1100
    %1182 = vmatpush2.bf16.msra.mxu0 %v1099
    %1183 = vmatprep.subr.bf16.mxu0 %v1098
    %1184 = vmatpush2.bf16.msra.mxu0 %v1097
    %1185 = vmatprep.subr.bf16.mxu0 %v1096
    %1186 = vmatpush2.bf16.msra.mxu0 %v1095
    %1187 = vmatprep.subr.bf16.mxu0 %v1094
    %1188 = vmatpush2.bf16.msra.mxu0 %v1093
    %1189 = vmatprep.subr.bf16.mxu0 %v1092
    %1190 = vmatpush2.bf16.msra.mxu0 %v1091
    %1191 = vmatprep.subr.bf16.mxu0 %v1090
    %1192 = vmatpush2.bf16.msra.mxu0 %v1089
    %1193 = vmatprep.subr.bf16.mxu0 %v1088
    %1194 = vmatpush2.bf16.msra.mxu0 %v1087
    %1195 = vmatprep.subr.bf16.mxu0 %v1086
    %1196 = vmatpush2.bf16.msra.mxu0 %v1085
    %1197 = vmatprep.mubr.bf16.mxu0 %v914
    %1198 = vmatmul.mubr.bf16.gmra.mxu0 %v913
    %v1199 = vpop.f32.mrf.mxu0
    %v1200 = vadd.f32 0.0, %v1199
    %v1201 = vpop.f32.mrf.mxu0
    %v1202 = vadd.f32 0.0, %v1201
    %v1203 = vpop.f32.mrf.mxu0
    %v1204 = vadd.f32 0.0, %v1203
    %v1205 = vpop.f32.mrf.mxu0
    %v1206 = vadd.f32 0.0, %v1205
    %1207 = vmatprep.mubr.bf16.mxu0 %v917
    %1208 = vmatmul.mubr.bf16.gmra.mxu0 %v916
    %v1209 = vpop.f32.mrf.mxu0
    %v1210 = vadd.f32 0.0, %v1209
    %v1211 = vpop.f32.mrf.mxu0
    %v1212 = vadd.f32 0.0, %v1211
    %v1213 = vpop.f32.mrf.mxu0
    %v1214 = vadd.f32 0.0, %v1213
    %v1215 = vpop.f32.mrf.mxu0
    %v1216 = vadd.f32 0.0, %v1215
    %1217 = vmatprep.mubr.bf16.mxu0 %v920
    %1218 = vmatmul.mubr.bf16.gmra.mxu0 %v919
    %v1219 = vpop.f32.mrf.mxu0
    %v1220 = vadd.f32 0.0, %v1219
    %v1221 = vpop.f32.mrf.mxu0
    %v1222 = vadd.f32 0.0, %v1221
    %v1223 = vpop.f32.mrf.mxu0
    %v1224 = vadd.f32 0.0, %v1223
    %v1225 = vpop.f32.mrf.mxu0
    %v1226 = vadd.f32 0.0, %v1225
    %1227 = vmatprep.mubr.bf16.mxu0 %v923
    %1228 = vmatmul.mubr.bf16.gmra.mxu0 %v922
    %v1229 = vpop.f32.mrf.mxu0
    %v1230 = vadd.f32 0.0, %v1229
    %v1231 = vpop.f32.mrf.mxu0
    %v1232 = vadd.f32 0.0, %v1231
    %v1233 = vpop.f32.mrf.mxu0
    %v1234 = vadd.f32 0.0, %v1233
    %v1235 = vpop.f32.mrf.mxu0
    %v1236 = vadd.f32 0.0, %v1235
    %1237 = vdwg.mxu0
    %1238 = vmatprep.subr.bf16.mxu0 %v1116
    %1239 = vmatpush1.bf16.msra.mxu0 %v1115
    %1240 = vmatprep.subr.bf16.mxu0 %v1114
    %1241 = vmatpush1.bf16.msra.mxu0 %v1113
    %1242 = vmatprep.subr.bf16.mxu0 %v1112
    %1243 = vmatpush1.bf16.msra.mxu0 %v1111
    %1244 = vmatprep.subr.bf16.mxu0 %v1110
    %1245 = vmatpush1.bf16.msra.mxu0 %v1109
    %1246 = vmatprep.subr.bf16.mxu0 %v1108
    %1247 = vmatpush1.bf16.msra.mxu0 %v1107
    %1248 = vmatprep.subr.bf16.mxu0 %v1106
    %1249 = vmatpush1.bf16.msra.mxu0 %v1105
    %1250 = vmatprep.subr.bf16.mxu0 %v1104
    %1251 = vmatpush1.bf16.msra.mxu0 %v1103
    %1252 = vmatprep.subr.bf16.mxu0 %v1102
    %1253 = vmatpush1.bf16.msra.mxu0 %v1101
    %1254 = vmatprep.subr.bf16.mxu0 0
    %1255 = vmatpush2.bf16.msra.mxu0 0
    %1256 = vmatprep.subr.bf16.mxu0 0
    %1257 = vmatpush2.bf16.msra.mxu0 0
    %1258 = vmatprep.subr.bf16.mxu0 0
    %1259 = vmatpush2.bf16.msra.mxu0 0
    %1260 = vmatprep.subr.bf16.mxu0 0
    %1261 = vmatpush2.bf16.msra.mxu0 0
    %1262 = vmatprep.subr.bf16.mxu0 0
    %1263 = vmatpush2.bf16.msra.mxu0 0
    %1264 = vmatprep.subr.bf16.mxu0 0
    %1265 = vmatpush2.bf16.msra.mxu0 0
    %1266 = vmatprep.subr.bf16.mxu0 0
    %1267 = vmatpush2.bf16.msra.mxu0 0
    %1268 = vmatprep.subr.bf16.mxu0 0
    %1269 = vmatpush2.bf16.msra.mxu0 0
    %1270 = vmatprep.mubr.bf16.mxu0 0
    %1271 = vmatmul.mubr.bf16.gmra.mxu0 %v915
    %v1272 = vpop.f32.mrf.mxu0
    %v1273 = vadd.f32 %v1200, %v1272
    %v1274 = vpop.f32.mrf.mxu0
    %v1275 = vadd.f32 %v1202, %v1274
    %v1276 = vpop.f32.mrf.mxu0
    %v1277 = vadd.f32 %v1204, %v1276
    %v1278 = vpop.f32.mrf.mxu0
    %v1279 = vadd.f32 %v1206, %v1278
    %1280 = vmatprep.mubr.bf16.mxu0 0
    %1281 = vmatmul.mubr.bf16.gmra.mxu0 %v918
    %v1282 = vpop.f32.mrf.mxu0
    %v1283 = vadd.f32 %v1210, %v1282
    %v1284 = vpop.f32.mrf.mxu0
    %v1285 = vadd.f32 %v1212, %v1284
    %v1286 = vpop.f32.mrf.mxu0
    %v1287 = vadd.f32 %v1214, %v1286
    %v1288 = vpop.f32.mrf.mxu0
    %v1289 = vadd.f32 %v1216, %v1288
    %1290 = vmatprep.mubr.bf16.mxu0 0
    %1291 = vmatmul.mubr.bf16.gmra.mxu0 %v921
    %v1292 = vpop.f32.mrf.mxu0
    %v1293 = vadd.f32 %v1220, %v1292
    %v1294 = vpop.f32.mrf.mxu0
    %v1295 = vadd.f32 %v1222, %v1294
    %v1296 = vpop.f32.mrf.mxu0
    %v1297 = vadd.f32 %v1224, %v1296
    %v1298 = vpop.f32.mrf.mxu0
    %v1299 = vadd.f32 %v1226, %v1298
    %1300 = vmatprep.mubr.bf16.mxu0 0
    %1301 = vmatmul.mubr.bf16.gmra.mxu0 %v924
    %v1302 = vpop.f32.mrf.mxu0
    %v1303 = vadd.f32 %v1230, %v1302
    %v1304 = vpop.f32.mrf.mxu0
    %v1305 = vadd.f32 %v1232, %v1304
    %v1306 = vpop.f32.mrf.mxu0
    %v1307 = vadd.f32 %v1234, %v1306
    %v1308 = vpop.f32.mrf.mxu0
    %v1309 = vadd.f32 %v1236, %v1308
    %1310 = vdwg.mxu0
    %v1312 = vlaneseq
    %v1313 = vshrl.u32 %v1312, 7
    %v1314 = vsub.s32 0, %v1313
    %v1315 = vrot.slane %v684, %v1314
    %v1316 = vlaneseq
    %v1317 = vshrl.u32 %v1316, 7
    %v1318 = vsub.s32 1, %v1317
    %v1319 = vrot.slane %v684, %v1318
    %v1322 = vmul.f32 %v1273, %v1315
    %v1323 = vmul.f32 %v1275, %v1319
    %v1324 = vmul.f32 %v1277, %v1315
    %v1325 = vmul.f32 %v1279, %v1319
    %v1326 = vmul.f32 %v1283, %v1315
    %v1327 = vmul.f32 %v1285, %v1319
    %v1328 = vmul.f32 %v1287, %v1315
    %v1329 = vmul.f32 %v1289, %v1319
    %v1330 = vmul.f32 %v1293, %v1315
    %v1331 = vmul.f32 %v1295, %v1319
    %v1332 = vmul.f32 %v1297, %v1315
    %v1333 = vmul.f32 %v1299, %v1319
    %v1334 = vmul.f32 %v1303, %v1315
    %v1335 = vmul.f32 %v1305, %v1319
    %v1336 = vmul.f32 %v1307, %v1315
    %v1337 = vmul.f32 %v1309, %v1319
    %v1339 = vlaneseq
    %v1340 = vshrl.u32 %v1339, 7
    %v1341 = vsub.s32 0, %v1340
    %v1342 = vrot.slane %v685, %v1341
    %v1343 = vlaneseq
    %v1344 = vshrl.u32 %v1343, 7
    %v1345 = vsub.s32 1, %v1344
    %v1346 = vrot.slane %v685, %v1345
    %v1349 = vadd.f32 %v1322, %v1342
    %v1350 = vadd.f32 %v1323, %v1346
    %v1351 = vadd.f32 %v1324, %v1342
    %v1352 = vadd.f32 %v1325, %v1346
    %v1353 = vadd.f32 %v1326, %v1342
    %v1354 = vadd.f32 %v1327, %v1346
    %v1355 = vadd.f32 %v1328, %v1342
    %v1356 = vadd.f32 %v1329, %v1346
    %v1357 = vadd.f32 %v1330, %v1342
    %v1358 = vadd.f32 %v1331, %v1346
    %v1359 = vadd.f32 %v1332, %v1342
    %v1360 = vadd.f32 %v1333, %v1346
    %v1361 = vadd.f32 %v1334, %v1342
    %v1362 = vadd.f32 %v1335, %v1346
    %v1363 = vadd.f32 %v1336, %v1342
    %v1364 = vadd.f32 %v1337, %v1346
    %v1365 = vmax.f32 %v1349, 0.0
    %v1366 = vmax.f32 %v1350, 0.0
    %v1367 = vmax.f32 %v1351, 0.0
    %v1368 = vmax.f32 %v1352, 0.0
    %v1369 = vmax.f32 %v1353, 0.0
    %v1370 = vmax.f32 %v1354, 0.0
    %v1371 = vmax.f32 %v1355, 0.0
    %v1372 = vmax.f32 %v1356, 0.0
    %v1373 = vmax.f32 %v1357, 0.0
    %v1374 = vmax.f32 %v1358, 0.0
    %v1375 = vmax.f32 %v1359, 0.0
    %v1376 = vmax.f32 %v1360, 0.0
    %v1377 = vmax.f32 %v1361, 0.0
    %v1378 = vmax.f32 %v1362, 0.0
    %v1379 = vmax.f32 %v1363, 0.0
    %v1380 = vmax.f32 %v1364, 0.0
    %v1381 = vld [vmem:[#allocation8] sm:$0xff]
    %v1382 = vld [vmem:[#allocation8 + $0x8] sm:$0xff]
    %v1383 = vld [vmem:[#allocation8 + $0x10] sm:$0xff]
    %v1384 = vld [vmem:[#allocation8 + $0x18] sm:$0xff]
    %v1385 = vld [vmem:[#allocation8 + $0x20] sm:$0xff]
    %v1386 = vld [vmem:[#allocation8 + $0x28] sm:$0xff]
    %v1387 = vld [vmem:[#allocation8 + $0x30] sm:$0xff]
    %v1388 = vld [vmem:[#allocation8 + $0x38] sm:$0xff]
    %v1389 = vld [vmem:[#allocation8 + $0x40] sm:$0xff]
    %v1390 = vld [vmem:[#allocation8 + $0x48] sm:$0xff]
    %v1391 = vld [vmem:[#allocation8 + $0x50] sm:$0xff]
    %v1392 = vld [vmem:[#allocation8 + $0x58] sm:$0xff]
    %v1393 = vld [vmem:[#allocation8 + $0x60] sm:$0xff]
    %v1394 = vld [vmem:[#allocation8 + $0x68] sm:$0xff]
    %v1395 = vld [vmem:[#allocation8 + $0x70] sm:$0xff]
    %v1396 = vld [vmem:[#allocation8 + $0x78] sm:$0xff]
    %v1397 = vld [vmem:[#allocation8 + $0x80] sm:$0xff]
    %v1398 = vld [vmem:[#allocation8 + $0x88] sm:$0xff]
    %v1399 = vld [vmem:[#allocation8 + $0x90] sm:$0xff]
    %v1400 = vld [vmem:[#allocation8 + $0x98] sm:$0xff]
    %v1401 = vld [vmem:[#allocation8 + $0xa0] sm:$0xff]
    %v1402 = vld [vmem:[#allocation8 + $0xa8] sm:$0xff]
    %v1403 = vld [vmem:[#allocation8 + $0xb0] sm:$0xff]
    %v1404 = vld [vmem:[#allocation8 + $0xb8] sm:$0xff]
    %v1405 = vld [vmem:[#allocation8 + $0xc0] sm:$0xff]
    %v1406 = vld [vmem:[#allocation8 + $0xc8] sm:$0xff]
    %v1407 = vld [vmem:[#allocation8 + $0xd0] sm:$0xff]
    %v1408 = vld [vmem:[#allocation8 + $0xd8] sm:$0xff]
    %v1409 = vld [vmem:[#allocation8 + $0xe0] sm:$0xff]
    %v1410 = vld [vmem:[#allocation8 + $0xe8] sm:$0xff]
    %v1411 = vld [vmem:[#allocation8 + $0xf0] sm:$0xff]
    %v1412 = vld [vmem:[#allocation8 + $0xf8] sm:$0xff]
    %v1413 = vld [vmem:[#allocation8 + $0x100] sm:$0xff]
    %v1414 = vld [vmem:[#allocation8 + $0x108] sm:$0xff]
    %v1415 = vld [vmem:[#allocation8 + $0x110] sm:$0xff]
    %v1416 = vld [vmem:[#allocation8 + $0x118] sm:$0xff]
    %v1417 = vld [vmem:[#allocation8 + $0x120] sm:$0xff]
    %v1418 = vld [vmem:[#allocation8 + $0x128] sm:$0xff]
    %v1419 = vld [vmem:[#allocation8 + $0x130] sm:$0xff]
    %v1420 = vld [vmem:[#allocation8 + $0x138] sm:$0xff]
    %v1421 = vld [vmem:[#allocation8 + $0x140] sm:$0xff]
    %v1422 = vld [vmem:[#allocation8 + $0x148] sm:$0xff]
    %v1423 = vld [vmem:[#allocation8 + $0x150] sm:$0xff]
    %v1424 = vld [vmem:[#allocation8 + $0x158] sm:$0xff]
    %v1425 = vld [vmem:[#allocation8 + $0x160] sm:$0xff]
    %v1426 = vld [vmem:[#allocation8 + $0x168] sm:$0xff]
    %v1427 = vld [vmem:[#allocation8 + $0x170] sm:$0xff]
    %v1428 = vld [vmem:[#allocation8 + $0x178] sm:$0xff]
    %v1429 = vld [vmem:[#allocation8 + $0x180] sm:$0xff]
    %v1430 = vld [vmem:[#allocation8 + $0x188] sm:$0xff]
    %v1431 = vld [vmem:[#allocation8 + $0x190] sm:$0xff]
    %v1432 = vld [vmem:[#allocation8 + $0x198] sm:$0xff]
    %v1433 = vld [vmem:[#allocation8 + $0x1a0] sm:$0xff]
    %v1434 = vld [vmem:[#allocation8 + $0x1a8] sm:$0xff]
    %v1435 = vld [vmem:[#allocation8 + $0x1b0] sm:$0xff]
    %v1436 = vld [vmem:[#allocation8 + $0x1b8] sm:$0xff]
    %v1437 = vld [vmem:[#allocation8 + $0x1c0] sm:$0xff]
    %v1438 = vld [vmem:[#allocation8 + $0x1c8] sm:$0xff]
    %v1439 = vld [vmem:[#allocation8 + $0x1d0] sm:$0xff]
    %v1440 = vld [vmem:[#allocation8 + $0x1d8] sm:$0xff]
    %v1441 = vld [vmem:[#allocation8 + $0x1e0] sm:$0xff]
    %v1442 = vld [vmem:[#allocation8 + $0x1e8] sm:$0xff]
    %v1443 = vld [vmem:[#allocation8 + $0x1f0] sm:$0xff]
    %v1444 = vld [vmem:[#allocation8 + $0x1f8] sm:$0xff]
    %v1445 = vld [vmem:[#allocation8 + $0x200] sm:$0xff]
    %v1446 = vld [vmem:[#allocation8 + $0x208] sm:$0xff]
    %v1447 = vld [vmem:[#allocation8 + $0x210] sm:$0xff]
    %v1448 = vld [vmem:[#allocation8 + $0x218] sm:$0xff]
    %v1449 = vld [vmem:[#allocation8 + $0x220] sm:$0xff]
    %v1450 = vld [vmem:[#allocation8 + $0x228] sm:$0xff]
    %v1451 = vld [vmem:[#allocation8 + $0x230] sm:$0xff]
    %v1452 = vld [vmem:[#allocation8 + $0x238] sm:$0xff]
    %v1453 = vld [vmem:[#allocation8 + $0x240] sm:$0xff]
    %v1454 = vld [vmem:[#allocation8 + $0x248] sm:$0xff]
    %v1455 = vld [vmem:[#allocation8 + $0x250] sm:$0xff]
    %v1456 = vld [vmem:[#allocation8 + $0x258] sm:$0xff]
    %v1457 = vld [vmem:[#allocation8 + $0x260] sm:$0xff]
    %v1458 = vld [vmem:[#allocation8 + $0x268] sm:$0xff]
    %v1459 = vld [vmem:[#allocation8 + $0x270] sm:$0xff]
    %v1460 = vld [vmem:[#allocation8 + $0x278] sm:$0xff]
    %v1461 = vld [vmem:[#allocation8 + $0x280] sm:$0xff]
    %v1462 = vld [vmem:[#allocation8 + $0x288] sm:$0xff]
    %v1463 = vld [vmem:[#allocation8 + $0x290] sm:$0xff]
    %v1464 = vld [vmem:[#allocation8 + $0x298] sm:$0xff]
    %v1465 = vld [vmem:[#allocation8 + $0x2a0] sm:$0xff]
    %v1466 = vld [vmem:[#allocation8 + $0x2a8] sm:$0xff]
    %v1467 = vld [vmem:[#allocation8 + $0x2b0] sm:$0xff]
    %v1468 = vld [vmem:[#allocation8 + $0x2b8] sm:$0xff]
    %v1469 = vld [vmem:[#allocation8 + $0x2c0] sm:$0xff]
    %v1470 = vld [vmem:[#allocation8 + $0x2c8] sm:$0xff]
    %v1471 = vld [vmem:[#allocation8 + $0x2d0] sm:$0xff]
    %v1472 = vld [vmem:[#allocation8 + $0x2d8] sm:$0xff]
    %v1473 = vld [vmem:[#allocation8 + $0x2e0] sm:$0xff]
    %v1474 = vld [vmem:[#allocation8 + $0x2e8] sm:$0xff]
    %v1475 = vld [vmem:[#allocation8 + $0x2f0] sm:$0xff]
    %v1476 = vld [vmem:[#allocation8 + $0x2f8] sm:$0xff]
    %v1477 = vld [vmem:[#allocation10] sm:$0x3]
    %v1478 = vld [vmem:[#allocation11] sm:$0x3]
    %v1479 = vld [vmem:[#allocation13] sm:$0xff]
    %v1480 = vld [vmem:[#allocation13 + $0x8] sm:$0xff]
    %v1481 = vld [vmem:[#allocation13 + $0x10] sm:$0xff]
    %v1482 = vld [vmem:[#allocation13 + $0x18] sm:$0xff]
    %v1483 = vld [vmem:[#allocation13 + $0x20] sm:$0xff]
    %v1484 = vld [vmem:[#allocation13 + $0x28] sm:$0xff]
    %v1485 = vld [vmem:[#allocation13 + $0x30] sm:$0xff]
    %v1486 = vld [vmem:[#allocation13 + $0x38] sm:$0xff]
    %v1487 = vld [vmem:[#allocation13 + $0x40] sm:$0xff]
    %v1488 = vld [vmem:[#allocation13 + $0x48] sm:$0xff]
    %v1489 = vld [vmem:[#allocation13 + $0x50] sm:$0xff]
    %v1490 = vld [vmem:[#allocation13 + $0x58] sm:$0xff]
    %v1491 = vld [vmem:[#allocation13 + $0x60] sm:$0xff]
    %v1492 = vld [vmem:[#allocation13 + $0x68] sm:$0xff]
    %v1493 = vld [vmem:[#allocation13 + $0x70] sm:$0xff]
    %v1494 = vld [vmem:[#allocation13 + $0x78] sm:$0xff]
    %v1495 = vld [vmem:[#allocation13 + $0x80] sm:$0xff]
    %v1496 = vld [vmem:[#allocation13 + $0x88] sm:$0xff]
    %v1497 = vld [vmem:[#allocation13 + $0x90] sm:$0xff]
    %v1498 = vld [vmem:[#allocation13 + $0x98] sm:$0xff]
    %v1499 = vld [vmem:[#allocation13 + $0xa0] sm:$0xff]
    %v1500 = vld [vmem:[#allocation13 + $0xa8] sm:$0xff]
    %v1501 = vld [vmem:[#allocation13 + $0xb0] sm:$0xff]
    %v1502 = vld [vmem:[#allocation13 + $0xb8] sm:$0xff]
    %v1503 = vld [vmem:[#allocation13 + $0xc0] sm:$0xff]
    %v1504 = vld [vmem:[#allocation13 + $0xc8] sm:$0xff]
    %v1505 = vld [vmem:[#allocation13 + $0xd0] sm:$0xff]
    %v1506 = vld [vmem:[#allocation13 + $0xd8] sm:$0xff]
    %v1507 = vld [vmem:[#allocation13 + $0xe0] sm:$0xff]
    %v1508 = vld [vmem:[#allocation13 + $0xe8] sm:$0xff]
    %v1509 = vld [vmem:[#allocation13 + $0xf0] sm:$0xff]
    %v1510 = vld [vmem:[#allocation13 + $0xf8] sm:$0xff]
    %v1511 = vld [vmem:[#allocation13 + $0x100] sm:$0xff]
    %v1512 = vld [vmem:[#allocation13 + $0x108] sm:$0xff]
    %v1513 = vld [vmem:[#allocation13 + $0x110] sm:$0xff]
    %v1514 = vld [vmem:[#allocation13 + $0x118] sm:$0xff]
    %v1515 = vld [vmem:[#allocation13 + $0x120] sm:$0xff]
    %v1516 = vld [vmem:[#allocation13 + $0x128] sm:$0xff]
    %v1517 = vld [vmem:[#allocation13 + $0x130] sm:$0xff]
    %v1518 = vld [vmem:[#allocation13 + $0x138] sm:$0xff]
    %v1519 = vld [vmem:[#allocation13 + $0x140] sm:$0xff]
    %v1520 = vld [vmem:[#allocation13 + $0x148] sm:$0xff]
    %v1521 = vld [vmem:[#allocation13 + $0x150] sm:$0xff]
    %v1522 = vld [vmem:[#allocation13 + $0x158] sm:$0xff]
    %v1523 = vld [vmem:[#allocation13 + $0x160] sm:$0xff]
    %v1524 = vld [vmem:[#allocation13 + $0x168] sm:$0xff]
    %v1525 = vld [vmem:[#allocation13 + $0x170] sm:$0xff]
    %v1526 = vld [vmem:[#allocation13 + $0x178] sm:$0xff]
    %v1527 = vld [vmem:[#allocation13 + $0x180] sm:$0xff]
    %v1528 = vld [vmem:[#allocation13 + $0x188] sm:$0xff]
    %v1529 = vld [vmem:[#allocation13 + $0x190] sm:$0xff]
    %v1530 = vld [vmem:[#allocation13 + $0x198] sm:$0xff]
    %v1531 = vld [vmem:[#allocation13 + $0x1a0] sm:$0xff]
    %v1532 = vld [vmem:[#allocation13 + $0x1a8] sm:$0xff]
    %v1533 = vld [vmem:[#allocation13 + $0x1b0] sm:$0xff]
    %v1534 = vld [vmem:[#allocation13 + $0x1b8] sm:$0xff]
    %v1535 = vld [vmem:[#allocation13 + $0x1c0] sm:$0xff]
    %v1536 = vld [vmem:[#allocation13 + $0x1c8] sm:$0xff]
    %v1537 = vld [vmem:[#allocation13 + $0x1d0] sm:$0xff]
    %v1538 = vld [vmem:[#allocation13 + $0x1d8] sm:$0xff]
    %v1539 = vld [vmem:[#allocation13 + $0x1e0] sm:$0xff]
    %v1540 = vld [vmem:[#allocation13 + $0x1e8] sm:$0xff]
    %v1541 = vld [vmem:[#allocation13 + $0x1f0] sm:$0xff]
    %v1542 = vld [vmem:[#allocation13 + $0x1f8] sm:$0xff]
    %v1543 = vld [vmem:[#allocation13 + $0x200] sm:$0xff]
    %v1544 = vld [vmem:[#allocation13 + $0x208] sm:$0xff]
    %v1545 = vld [vmem:[#allocation13 + $0x210] sm:$0xff]
    %v1546 = vld [vmem:[#allocation13 + $0x218] sm:$0xff]
    %v1547 = vld [vmem:[#allocation13 + $0x220] sm:$0xff]
    %v1548 = vld [vmem:[#allocation13 + $0x228] sm:$0xff]
    %v1549 = vld [vmem:[#allocation13 + $0x230] sm:$0xff]
    %v1550 = vld [vmem:[#allocation13 + $0x238] sm:$0xff]
    %v1551 = vld [vmem:[#allocation13 + $0x240] sm:$0xff]
    %v1552 = vld [vmem:[#allocation13 + $0x248] sm:$0xff]
    %v1553 = vld [vmem:[#allocation13 + $0x250] sm:$0xff]
    %v1554 = vld [vmem:[#allocation13 + $0x258] sm:$0xff]
    %v1555 = vld [vmem:[#allocation13 + $0x260] sm:$0xff]
    %v1556 = vld [vmem:[#allocation13 + $0x268] sm:$0xff]
    %v1557 = vld [vmem:[#allocation13 + $0x270] sm:$0xff]
    %v1558 = vld [vmem:[#allocation13 + $0x278] sm:$0xff]
    %v1559 = vld [vmem:[#allocation13 + $0x280] sm:$0xff]
    %v1560 = vld [vmem:[#allocation13 + $0x288] sm:$0xff]
    %v1561 = vld [vmem:[#allocation13 + $0x290] sm:$0xff]
    %v1562 = vld [vmem:[#allocation13 + $0x298] sm:$0xff]
    %v1563 = vld [vmem:[#allocation13 + $0x2a0] sm:$0xff]
    %v1564 = vld [vmem:[#allocation13 + $0x2a8] sm:$0xff]
    %v1565 = vld [vmem:[#allocation13 + $0x2b0] sm:$0xff]
    %v1566 = vld [vmem:[#allocation13 + $0x2b8] sm:$0xff]
    %v1567 = vld [vmem:[#allocation13 + $0x2c0] sm:$0xff]
    %v1568 = vld [vmem:[#allocation13 + $0x2c8] sm:$0xff]
    %v1569 = vld [vmem:[#allocation13 + $0x2d0] sm:$0xff]
    %v1570 = vld [vmem:[#allocation13 + $0x2d8] sm:$0xff]
    %v1571 = vld [vmem:[#allocation13 + $0x2e0] sm:$0xff]
    %v1572 = vld [vmem:[#allocation13 + $0x2e8] sm:$0xff]
    %v1573 = vld [vmem:[#allocation13 + $0x2f0] sm:$0xff]
    %v1574 = vld [vmem:[#allocation13 + $0x2f8] sm:$0xff]
    %v1575 = vld [vmem:[#allocation14] sm:$0x3]
    %v1576 = vld [vmem:[#allocation16] sm:$0x3]
    %v1593 = vrot.slane %v1365, 7
    %v1594 = vrot.slane %v1366, 7
    %v1595 = vrot.slane %v1367, 7
    %v1596 = vsel %vm694, %v1593, %v1595
    %v1597 = vrot.slane %v1368, 7
    %v1598 = vsel %vm694, %v1594, %v1597
    %v1599 = vrot.slane %v1369, 7
    %v1600 = vsel %vm694, %v1595, %v1599
    %v1601 = vrot.slane %v1370, 7
    %v1602 = vsel %vm694, %v1597, %v1601
    %v1603 = vrot.slane %v1371, 7
    %v1604 = vsel %vm694, %v1599, %v1603
    %v1605 = vrot.slane %v1372, 7
    %v1606 = vsel %vm694, %v1601, %v1605
    %v1607 = vrot.slane %v1373, 7
    %v1608 = vsel %vm694, %v1603, %v1607
    %v1609 = vrot.slane %v1374, 7
    %v1610 = vsel %vm694, %v1605, %v1609
    %v1611 = vrot.slane %v1375, 7
    %v1612 = vsel %vm694, %v1607, %v1611
    %v1613 = vrot.slane %v1376, 7
    %v1614 = vsel %vm694, %v1609, %v1613
    %v1615 = vrot.slane %v1377, 7
    %v1616 = vsel %vm694, %v1611, %v1615
    %v1617 = vrot.slane %v1378, 7
    %v1618 = vsel %vm694, %v1613, %v1617
    %v1619 = vrot.slane %v1379, 7
    %v1620 = vsel %vm694, %v1615, %v1619
    %v1621 = vrot.slane %v1380, 7
    %v1622 = vsel %vm694, %v1617, %v1621
    %v1639 = vsel %vm694, 0.0, %v1593
    %v1640 = vsel %vm694, 0.0, %v1594
    %v1641 = vrot.slane %v1365, 1
    %v1642 = vrot.slane %v1367, 1
    %v1643 = vsel %vm719, %v1641, %v1642
    %v1644 = vrot.slane %v1366, 1
    %v1645 = vrot.slane %v1368, 1
    %v1646 = vsel %vm719, %v1644, %v1645
    %v1647 = vrot.slane %v1369, 1
    %v1648 = vsel %vm719, %v1642, %v1647
    %v1649 = vrot.slane %v1370, 1
    %v1650 = vsel %vm719, %v1645, %v1649
    %v1651 = vrot.slane %v1371, 1
    %v1652 = vsel %vm719, %v1647, %v1651
    %v1653 = vrot.slane %v1372, 1
    %v1654 = vsel %vm719, %v1649, %v1653
    %v1655 = vrot.slane %v1373, 1
    %v1656 = vsel %vm719, %v1651, %v1655
    %v1657 = vrot.slane %v1374, 1
    %v1658 = vsel %vm719, %v1653, %v1657
    %v1659 = vrot.slane %v1375, 1
    %v1660 = vsel %vm719, %v1655, %v1659
    %v1661 = vrot.slane %v1376, 1
    %v1662 = vsel %vm719, %v1657, %v1661
    %v1663 = vrot.slane %v1377, 1
    %v1664 = vsel %vm719, %v1659, %v1663
    %v1665 = vrot.slane %v1378, 1
    %v1666 = vsel %vm719, %v1661, %v1665
    %v1667 = vrot.slane %v1379, 1
    %v1668 = vsel %vm719, %v1663, %v1667
    %v1669 = vrot.slane %v1380, 1
    %v1670 = vsel %vm719, %v1665, %v1669
    %v1687 = vsel %vm719, %v1667, 0.0
    %v1688 = vsel %vm719, %v1669, 0.0
    %v1689 = vsel %vm865, 0.0, %v1639
    %v1690 = vsel %vm865, 0.0, %v1640
    %v1691 = vsel %vm866, 0.0, %v1596
    %v1692 = vsel %vm866, 0.0, %v1598
    %v1693 = vsel %vm867, 0.0, %v1600
    %v1694 = vsel %vm867, 0.0, %v1602
    %v1695 = vsel %vm868, 0.0, %v1604
    %v1696 = vsel %vm868, 0.0, %v1606
    %v1697 = vsel %vm869, 0.0, %v1608
    %v1698 = vsel %vm869, 0.0, %v1610
    %v1699 = vsel %vm870, 0.0, %v1612
    %v1700 = vsel %vm870, 0.0, %v1614
    %v1701 = vsel %vm871, 0.0, %v1616
    %v1702 = vsel %vm871, 0.0, %v1618
    %v1703 = vsel %vm872, 0.0, %v1620
    %v1704 = vsel %vm872, 0.0, %v1622
    %v1705 = vsel %vm897, 0.0, %v1643
    %v1706 = vsel %vm897, 0.0, %v1646
    %v1707 = vsel %vm898, 0.0, %v1648
    %v1708 = vsel %vm898, 0.0, %v1650
    %v1709 = vsel %vm899, 0.0, %v1652
    %v1710 = vsel %vm899, 0.0, %v1654
    %v1711 = vsel %vm900, 0.0, %v1656
    %v1712 = vsel %vm900, 0.0, %v1658
    %v1713 = vsel %vm901, 0.0, %v1660
    %v1714 = vsel %vm901, 0.0, %v1662
    %v1715 = vsel %vm902, 0.0, %v1664
    %v1716 = vsel %vm902, 0.0, %v1666
    %v1717 = vsel %vm903, 0.0, %v1668
    %v1718 = vsel %vm903, 0.0, %v1670
    %v1719 = vsel %vm904, 0.0, %v1687
    %v1720 = vsel %vm904, 0.0, %v1688
    %v1721 = vpack.c.bf16 %v1691, %v1689
    %v1722 = vpack.c.bf16 %v1692, %v1690
    %v1723 = vpack.c.bf16 %v1367, %v1365
    %v1724 = vpack.c.bf16 %v1368, %v1366
    %v1725 = vpack.c.bf16 %v1707, %v1705
    %v1726 = vpack.c.bf16 %v1708, %v1706
    %v1727 = vpack.c.bf16 %v1695, %v1693
    %v1728 = vpack.c.bf16 %v1696, %v1694
    %v1729 = vpack.c.bf16 %v1371, %v1369
    %v1730 = vpack.c.bf16 %v1372, %v1370
    %v1731 = vpack.c.bf16 %v1711, %v1709
    %v1732 = vpack.c.bf16 %v1712, %v1710
    %v1733 = vpack.c.bf16 %v1699, %v1697
    %v1734 = vpack.c.bf16 %v1700, %v1698
    %v1735 = vpack.c.bf16 %v1375, %v1373
    %v1736 = vpack.c.bf16 %v1376, %v1374
    %v1737 = vpack.c.bf16 %v1715, %v1713
    %v1738 = vpack.c.bf16 %v1716, %v1714
    %v1739 = vpack.c.bf16 %v1703, %v1701
    %v1740 = vpack.c.bf16 %v1704, %v1702
    %v1741 = vpack.c.bf16 %v1379, %v1377
    %v1742 = vpack.c.bf16 %v1380, %v1378
    %v1743 = vpack.c.bf16 %v1719, %v1717
    %v1744 = vpack.c.bf16 %v1720, %v1718
    %v1841 = vunpack.c.l.b16 %v1381
    %v1842 = vunpack.c.h.b16 %v1381
    %v1843 = vunpack.c.l.b16 %v1382
    %v1844 = vunpack.c.h.b16 %v1382
    %v1845 = vunpack.c.l.b16 %v1383
    %v1846 = vunpack.c.h.b16 %v1383
    %v1847 = vunpack.c.l.b16 %v1384
    %v1848 = vunpack.c.h.b16 %v1384
    %v1849 = vunpack.c.l.b16 %v1385
    %v1850 = vunpack.c.h.b16 %v1385
    %v1851 = vunpack.c.l.b16 %v1386
    %v1852 = vunpack.c.h.b16 %v1386
    %v1853 = vunpack.c.l.b16 %v1387
    %v1854 = vunpack.c.h.b16 %v1387
    %v1855 = vunpack.c.l.b16 %v1388
    %v1856 = vunpack.c.h.b16 %v1388
    %v1857 = vunpack.c.l.b16 %v1389
    %v1858 = vunpack.c.h.b16 %v1389
    %v1859 = vunpack.c.l.b16 %v1390
    %v1860 = vunpack.c.h.b16 %v1390
    %v1861 = vunpack.c.l.b16 %v1391
    %v1862 = vunpack.c.h.b16 %v1391
    %v1863 = vunpack.c.l.b16 %v1392
    %v1864 = vunpack.c.h.b16 %v1392
    %v1865 = vunpack.c.l.b16 %v1393
    %v1866 = vunpack.c.h.b16 %v1393
    %v1867 = vunpack.c.l.b16 %v1394
    %v1868 = vunpack.c.h.b16 %v1394
    %v1869 = vunpack.c.l.b16 %v1395
    %v1870 = vunpack.c.h.b16 %v1395
    %v1871 = vunpack.c.l.b16 %v1396
    %v1872 = vunpack.c.h.b16 %v1396
    %v1873 = vunpack.c.l.b16 %v1397
    %v1874 = vunpack.c.h.b16 %v1397
    %v1875 = vunpack.c.l.b16 %v1398
    %v1876 = vunpack.c.h.b16 %v1398
    %v1877 = vunpack.c.l.b16 %v1399
    %v1878 = vunpack.c.h.b16 %v1399
    %v1879 = vunpack.c.l.b16 %v1400
    %v1880 = vunpack.c.h.b16 %v1400
    %v1881 = vunpack.c.l.b16 %v1401
    %v1882 = vunpack.c.h.b16 %v1401
    %v1883 = vunpack.c.l.b16 %v1402
    %v1884 = vunpack.c.h.b16 %v1402
    %v1885 = vunpack.c.l.b16 %v1403
    %v1886 = vunpack.c.h.b16 %v1403
    %v1887 = vunpack.c.l.b16 %v1404
    %v1888 = vunpack.c.h.b16 %v1404
    %v1889 = vunpack.c.l.b16 %v1405
    %v1890 = vunpack.c.h.b16 %v1405
    %v1891 = vunpack.c.l.b16 %v1406
    %v1892 = vunpack.c.h.b16 %v1406
    %v1893 = vunpack.c.l.b16 %v1407
    %v1894 = vunpack.c.h.b16 %v1407
    %v1895 = vunpack.c.l.b16 %v1408
    %v1896 = vunpack.c.h.b16 %v1408
    %v1897 = vunpack.c.l.b16 %v1409
    %v1898 = vunpack.c.h.b16 %v1409
    %v1899 = vunpack.c.l.b16 %v1410
    %v1900 = vunpack.c.h.b16 %v1410
    %v1901 = vunpack.c.l.b16 %v1411
    %v1902 = vunpack.c.h.b16 %v1411
    %v1903 = vunpack.c.l.b16 %v1412
    %v1904 = vunpack.c.h.b16 %v1412
    %v1905 = vunpack.c.l.b16 %v1413
    %v1906 = vunpack.c.h.b16 %v1413
    %v1907 = vunpack.c.l.b16 %v1414
    %v1908 = vunpack.c.h.b16 %v1414
    %v1909 = vunpack.c.l.b16 %v1415
    %v1910 = vunpack.c.h.b16 %v1415
    %v1911 = vunpack.c.l.b16 %v1416
    %v1912 = vunpack.c.h.b16 %v1416
    %v1913 = vunpack.c.l.b16 %v1417
    %v1914 = vunpack.c.h.b16 %v1417
    %v1915 = vunpack.c.l.b16 %v1418
    %v1916 = vunpack.c.h.b16 %v1418
    %v1917 = vunpack.c.l.b16 %v1419
    %v1918 = vunpack.c.h.b16 %v1419
    %v1919 = vunpack.c.l.b16 %v1420
    %v1920 = vunpack.c.h.b16 %v1420
    %v1921 = vunpack.c.l.b16 %v1421
    %v1922 = vunpack.c.h.b16 %v1421
    %v1923 = vunpack.c.l.b16 %v1422
    %v1924 = vunpack.c.h.b16 %v1422
    %v1925 = vunpack.c.l.b16 %v1423
    %v1926 = vunpack.c.h.b16 %v1423
    %v1927 = vunpack.c.l.b16 %v1424
    %v1928 = vunpack.c.h.b16 %v1424
    %v1929 = vunpack.c.l.b16 %v1425
    %v1930 = vunpack.c.h.b16 %v1425
    %v1931 = vunpack.c.l.b16 %v1426
    %v1932 = vunpack.c.h.b16 %v1426
    %v1933 = vunpack.c.l.b16 %v1427
    %v1934 = vunpack.c.h.b16 %v1427
    %v1935 = vunpack.c.l.b16 %v1428
    %v1936 = vunpack.c.h.b16 %v1428
    %v1937 = vunpack.c.l.b16 %v1429
    %v1938 = vunpack.c.h.b16 %v1429
    %v1939 = vunpack.c.l.b16 %v1430
    %v1940 = vunpack.c.h.b16 %v1430
    %v1941 = vunpack.c.l.b16 %v1431
    %v1942 = vunpack.c.h.b16 %v1431
    %v1943 = vunpack.c.l.b16 %v1432
    %v1944 = vunpack.c.h.b16 %v1432
    %v1945 = vunpack.c.l.b16 %v1433
    %v1946 = vunpack.c.h.b16 %v1433
    %v1947 = vunpack.c.l.b16 %v1434
    %v1948 = vunpack.c.h.b16 %v1434
    %v1949 = vunpack.c.l.b16 %v1435
    %v1950 = vunpack.c.h.b16 %v1435
    %v1951 = vunpack.c.l.b16 %v1436
    %v1952 = vunpack.c.h.b16 %v1436
    %v1953 = vunpack.c.l.b16 %v1437
    %v1954 = vunpack.c.h.b16 %v1437
    %v1955 = vunpack.c.l.b16 %v1438
    %v1956 = vunpack.c.h.b16 %v1438
    %v1957 = vunpack.c.l.b16 %v1439
    %v1958 = vunpack.c.h.b16 %v1439
    %v1959 = vunpack.c.l.b16 %v1440
    %v1960 = vunpack.c.h.b16 %v1440
    %v1961 = vunpack.c.l.b16 %v1441
    %v1962 = vunpack.c.h.b16 %v1441
    %v1963 = vunpack.c.l.b16 %v1442
    %v1964 = vunpack.c.h.b16 %v1442
    %v1965 = vunpack.c.l.b16 %v1443
    %v1966 = vunpack.c.h.b16 %v1443
    %v1967 = vunpack.c.l.b16 %v1444
    %v1968 = vunpack.c.h.b16 %v1444
    %v1969 = vunpack.c.l.b16 %v1445
    %v1970 = vunpack.c.h.b16 %v1445
    %v1971 = vunpack.c.l.b16 %v1446
    %v1972 = vunpack.c.h.b16 %v1446
    %v1973 = vunpack.c.l.b16 %v1447
    %v1974 = vunpack.c.h.b16 %v1447
    %v1975 = vunpack.c.l.b16 %v1448
    %v1976 = vunpack.c.h.b16 %v1448
    %v1977 = vunpack.c.l.b16 %v1449
    %v1978 = vunpack.c.h.b16 %v1449
    %v1979 = vunpack.c.l.b16 %v1450
    %v1980 = vunpack.c.h.b16 %v1450
    %v1981 = vunpack.c.l.b16 %v1451
    %v1982 = vunpack.c.h.b16 %v1451
    %v1983 = vunpack.c.l.b16 %v1452
    %v1984 = vunpack.c.h.b16 %v1452
    %v1985 = vunpack.c.l.b16 %v1453
    %v1986 = vunpack.c.h.b16 %v1453
    %v1987 = vunpack.c.l.b16 %v1454
    %v1988 = vunpack.c.h.b16 %v1454
    %v1989 = vunpack.c.l.b16 %v1455
    %v1990 = vunpack.c.h.b16 %v1455
    %v1991 = vunpack.c.l.b16 %v1456
    %v1992 = vunpack.c.h.b16 %v1456
    %v1993 = vunpack.c.l.b16 %v1457
    %v1994 = vunpack.c.h.b16 %v1457
    %v1995 = vunpack.c.l.b16 %v1458
    %v1996 = vunpack.c.h.b16 %v1458
    %v1997 = vunpack.c.l.b16 %v1459
    %v1998 = vunpack.c.h.b16 %v1459
    %v1999 = vunpack.c.l.b16 %v1460
    %v2000 = vunpack.c.h.b16 %v1460
    %v2001 = vunpack.c.l.b16 %v1461
    %v2002 = vunpack.c.h.b16 %v1461
    %v2003 = vunpack.c.l.b16 %v1462
    %v2004 = vunpack.c.h.b16 %v1462
    %v2005 = vunpack.c.l.b16 %v1463
    %v2006 = vunpack.c.h.b16 %v1463
    %v2007 = vunpack.c.l.b16 %v1464
    %v2008 = vunpack.c.h.b16 %v1464
    %v2009 = vunpack.c.l.b16 %v1465
    %v2010 = vunpack.c.h.b16 %v1465
    %v2011 = vunpack.c.l.b16 %v1466
    %v2012 = vunpack.c.h.b16 %v1466
    %v2013 = vunpack.c.l.b16 %v1467
    %v2014 = vunpack.c.h.b16 %v1467
    %v2015 = vunpack.c.l.b16 %v1468
    %v2016 = vunpack.c.h.b16 %v1468
    %v2017 = vunpack.c.l.b16 %v1469
    %v2018 = vunpack.c.h.b16 %v1469
    %v2019 = vunpack.c.l.b16 %v1470
    %v2020 = vunpack.c.h.b16 %v1470
    %v2021 = vunpack.c.l.b16 %v1471
    %v2022 = vunpack.c.h.b16 %v1471
    %v2023 = vunpack.c.l.b16 %v1472
    %v2024 = vunpack.c.h.b16 %v1472
    %v2025 = vunpack.c.l.b16 %v1473
    %v2026 = vunpack.c.h.b16 %v1473
    %v2027 = vunpack.c.l.b16 %v1474
    %v2028 = vunpack.c.h.b16 %v1474
    %v2029 = vunpack.c.l.b16 %v1475
    %v2030 = vunpack.c.h.b16 %v1475
    %v2031 = vunpack.c.l.b16 %v1476
    %v2032 = vunpack.c.h.b16 %v1476
    %v2033 = vpack.c.b16 %v1843, %v1841
    %v2034 = vpack.c.b16 %v1844, %v1842
    %v2035 = vpack.c.b16 %v1847, %v1845
    %v2036 = vpack.c.b16 %v1848, %v1846
    %v2037 = vpack.c.b16 %v1851, %v1849
    %v2038 = vpack.c.b16 %v1852, %v1850
    %v2039 = vpack.c.b16 %v1855, %v1853
    %v2040 = vpack.c.b16 %v1856, %v1854
    %v2041 = vpack.c.b16 %v1859, %v1857
    %v2042 = vpack.c.b16 %v1860, %v1858
    %v2043 = vpack.c.b16 %v1863, %v1861
    %v2044 = vpack.c.b16 %v1864, %v1862
    %v2045 = vpack.c.b16 %v1867, %v1865
    %v2046 = vpack.c.b16 %v1868, %v1866
    %v2047 = vpack.c.b16 %v1871, %v1869
    %v2048 = vpack.c.b16 %v1872, %v1870
    %v2049 = vpack.c.b16 %v1875, %v1873
    %v2050 = vpack.c.b16 %v1876, %v1874
    %v2051 = vpack.c.b16 %v1879, %v1877
    %v2052 = vpack.c.b16 %v1880, %v1878
    %v2053 = vpack.c.b16 %v1883, %v1881
    %v2054 = vpack.c.b16 %v1884, %v1882
    %v2055 = vpack.c.b16 %v1887, %v1885
    %v2056 = vpack.c.b16 %v1888, %v1886
    %v2057 = vpack.c.b16 %v1891, %v1889
    %v2058 = vpack.c.b16 %v1892, %v1890
    %v2059 = vpack.c.b16 %v1895, %v1893
    %v2060 = vpack.c.b16 %v1896, %v1894
    %v2061 = vpack.c.b16 %v1899, %v1897
    %v2062 = vpack.c.b16 %v1900, %v1898
    %v2063 = vpack.c.b16 %v1903, %v1901
    %v2064 = vpack.c.b16 %v1904, %v1902
    %v2065 = vpack.c.b16 %v1907, %v1905
    %v2066 = vpack.c.b16 %v1908, %v1906
    %v2067 = vpack.c.b16 %v1911, %v1909
    %v2068 = vpack.c.b16 %v1912, %v1910
    %v2069 = vpack.c.b16 %v1915, %v1913
    %v2070 = vpack.c.b16 %v1916, %v1914
    %v2071 = vpack.c.b16 %v1919, %v1917
    %v2072 = vpack.c.b16 %v1920, %v1918
    %v2073 = vpack.c.b16 %v1923, %v1921
    %v2074 = vpack.c.b16 %v1924, %v1922
    %v2075 = vpack.c.b16 %v1927, %v1925
    %v2076 = vpack.c.b16 %v1928, %v1926
    %v2077 = vpack.c.b16 %v1931, %v1929
    %v2078 = vpack.c.b16 %v1932, %v1930
    %v2079 = vpack.c.b16 %v1935, %v1933
    %v2080 = vpack.c.b16 %v1936, %v1934
    %v2081 = vpack.c.b16 %v1939, %v1937
    %v2082 = vpack.c.b16 %v1940, %v1938
    %v2083 = vpack.c.b16 %v1943, %v1941
    %v2084 = vpack.c.b16 %v1944, %v1942
    %v2085 = vpack.c.b16 %v1947, %v1945
    %v2086 = vpack.c.b16 %v1948, %v1946
    %v2087 = vpack.c.b16 %v1951, %v1949
    %v2088 = vpack.c.b16 %v1952, %v1950
    %v2089 = vpack.c.b16 %v1955, %v1953
    %v2090 = vpack.c.b16 %v1956, %v1954
    %v2091 = vpack.c.b16 %v1959, %v1957
    %v2092 = vpack.c.b16 %v1960, %v1958
    %v2093 = vpack.c.b16 %v1963, %v1961
    %v2094 = vpack.c.b16 %v1964, %v1962
    %v2095 = vpack.c.b16 %v1967, %v1965
    %v2096 = vpack.c.b16 %v1968, %v1966
    %v2097 = vpack.c.b16 %v1971, %v1969
    %v2098 = vpack.c.b16 %v1972, %v1970
    %v2099 = vpack.c.b16 %v1975, %v1973
    %v2100 = vpack.c.b16 %v1976, %v1974
    %v2101 = vpack.c.b16 %v1979, %v1977
    %v2102 = vpack.c.b16 %v1980, %v1978
    %v2103 = vpack.c.b16 %v1983, %v1981
    %v2104 = vpack.c.b16 %v1984, %v1982
    %v2105 = vpack.c.b16 %v1987, %v1985
    %v2106 = vpack.c.b16 %v1988, %v1986
    %v2107 = vpack.c.b16 %v1991, %v1989
    %v2108 = vpack.c.b16 %v1992, %v1990
    %v2109 = vpack.c.b16 %v1995, %v1993
    %v2110 = vpack.c.b16 %v1996, %v1994
    %v2111 = vpack.c.b16 %v1999, %v1997
    %v2112 = vpack.c.b16 %v2000, %v1998
    %v2113 = vpack.c.b16 %v2003, %v2001
    %v2114 = vpack.c.b16 %v2004, %v2002
    %v2115 = vpack.c.b16 %v2007, %v2005
    %v2116 = vpack.c.b16 %v2008, %v2006
    %v2117 = vpack.c.b16 %v2011, %v2009
    %v2118 = vpack.c.b16 %v2012, %v2010
    %v2119 = vpack.c.b16 %v2015, %v2013
    %v2120 = vpack.c.b16 %v2016, %v2014
    %v2121 = vpack.c.b16 %v2019, %v2017
    %v2122 = vpack.c.b16 %v2020, %v2018
    %v2123 = vpack.c.b16 %v2023, %v2021
    %v2124 = vpack.c.b16 %v2024, %v2022
    %v2125 = vpack.c.b16 %v2027, %v2025
    %v2126 = vpack.c.b16 %v2028, %v2026
    %v2127 = vpack.c.b16 %v2031, %v2029
    %v2128 = vpack.c.b16 %v2032, %v2030
    %2225 = vmatprep.subr.bf16.mxu0 %v2048
    %2226 = vmatpush1.bf16.msra.mxu0 %v2047
    %2227 = vmatprep.subr.bf16.mxu0 %v2046
    %2228 = vmatpush1.bf16.msra.mxu0 %v2045
    %2229 = vmatprep.subr.bf16.mxu0 %v2044
    %2230 = vmatpush1.bf16.msra.mxu0 %v2043
    %2231 = vmatprep.subr.bf16.mxu0 %v2042
    %2232 = vmatpush1.bf16.msra.mxu0 %v2041
    %2233 = vmatprep.subr.bf16.mxu0 %v2040
    %2234 = vmatpush1.bf16.msra.mxu0 %v2039
    %2235 = vmatprep.subr.bf16.mxu0 %v2038
    %2236 = vmatpush1.bf16.msra.mxu0 %v2037
    %2237 = vmatprep.subr.bf16.mxu0 %v2036
    %2238 = vmatpush1.bf16.msra.mxu0 %v2035
    %2239 = vmatprep.subr.bf16.mxu0 %v2034
    %2240 = vmatpush1.bf16.msra.mxu0 %v2033
    %2241 = vmatprep.subr.bf16.mxu0 %v2064
    %2242 = vmatpush2.bf16.msra.mxu0 %v2063
    %2243 = vmatprep.subr.bf16.mxu0 %v2062
    %2244 = vmatpush2.bf16.msra.mxu0 %v2061
    %2245 = vmatprep.subr.bf16.mxu0 %v2060
    %2246 = vmatpush2.bf16.msra.mxu0 %v2059
    %2247 = vmatprep.subr.bf16.mxu0 %v2058
    %2248 = vmatpush2.bf16.msra.mxu0 %v2057
    %2249 = vmatprep.subr.bf16.mxu0 %v2056
    %2250 = vmatpush2.bf16.msra.mxu0 %v2055
    %2251 = vmatprep.subr.bf16.mxu0 %v2054
    %2252 = vmatpush2.bf16.msra.mxu0 %v2053
    %2253 = vmatprep.subr.bf16.mxu0 %v2052
    %2254 = vmatpush2.bf16.msra.mxu0 %v2051
    %2255 = vmatprep.subr.bf16.mxu0 %v2050
    %2256 = vmatpush2.bf16.msra.mxu0 %v2049
    %2257 = vmatprep.mubr.bf16.mxu0 %v1722
    %2258 = vmatmul.mubr.bf16.gmra.mxu0 %v1721
    %v2259 = vpop.f32.mrf.mxu0
    %v2260 = vadd.f32 0.0, %v2259
    %v2261 = vpop.f32.mrf.mxu0
    %v2262 = vadd.f32 0.0, %v2261
    %v2263 = vpop.f32.mrf.mxu0
    %v2264 = vadd.f32 0.0, %v2263
    %v2265 = vpop.f32.mrf.mxu0
    %v2266 = vadd.f32 0.0, %v2265
    %2267 = vmatprep.mubr.bf16.mxu0 %v1728
    %2268 = vmatmul.mubr.bf16.gmra.mxu0 %v1727
    %v2269 = vpop.f32.mrf.mxu0
    %v2270 = vadd.f32 0.0, %v2269
    %v2271 = vpop.f32.mrf.mxu0
    %v2272 = vadd.f32 0.0, %v2271
    %v2273 = vpop.f32.mrf.mxu0
    %v2274 = vadd.f32 0.0, %v2273
    %v2275 = vpop.f32.mrf.mxu0
    %v2276 = vadd.f32 0.0, %v2275
    %2277 = vmatprep.mubr.bf16.mxu0 %v1734
    %2278 = vmatmul.mubr.bf16.gmra.mxu0 %v1733
    %v2279 = vpop.f32.mrf.mxu0
    %v2280 = vadd.f32 0.0, %v2279
    %v2281 = vpop.f32.mrf.mxu0
    %v2282 = vadd.f32 0.0, %v2281
    %v2283 = vpop.f32.mrf.mxu0
    %v2284 = vadd.f32 0.0, %v2283
    %v2285 = vpop.f32.mrf.mxu0
    %v2286 = vadd.f32 0.0, %v2285
    %2287 = vmatprep.mubr.bf16.mxu0 %v1740
    %2288 = vmatmul.mubr.bf16.gmra.mxu0 %v1739
    %v2289 = vpop.f32.mrf.mxu0
    %v2290 = vadd.f32 0.0, %v2289
    %v2291 = vpop.f32.mrf.mxu0
    %v2292 = vadd.f32 0.0, %v2291
    %v2293 = vpop.f32.mrf.mxu0
    %v2294 = vadd.f32 0.0, %v2293
    %v2295 = vpop.f32.mrf.mxu0
    %v2296 = vadd.f32 0.0, %v2295
    %2297 = vdwg.mxu0
    %2298 = vmatprep.subr.bf16.mxu0 %v2080
    %2299 = vmatpush1.bf16.msra.mxu0 %v2079
    %2300 = vmatprep.subr.bf16.mxu0 %v2078
    %2301 = vmatpush1.bf16.msra.mxu0 %v2077
    %2302 = vmatprep.subr.bf16.mxu0 %v2076
    %2303 = vmatpush1.bf16.msra.mxu0 %v2075
    %2304 = vmatprep.subr.bf16.mxu0 %v2074
    %2305 = vmatpush1.bf16.msra.mxu0 %v2073
    %2306 = vmatprep.subr.bf16.mxu0 %v2072
    %2307 = vmatpush1.bf16.msra.mxu0 %v2071
    %2308 = vmatprep.subr.bf16.mxu0 %v2070
    %2309 = vmatpush1.bf16.msra.mxu0 %v2069
    %2310 = vmatprep.subr.bf16.mxu0 %v2068
    %2311 = vmatpush1.bf16.msra.mxu0 %v2067
    %2312 = vmatprep.subr.bf16.mxu0 %v2066
    %2313 = vmatpush1.bf16.msra.mxu0 %v2065
    %2314 = vmatprep.subr.bf16.mxu0 %v2096
    %2315 = vmatpush2.bf16.msra.mxu0 %v2095
    %2316 = vmatprep.subr.bf16.mxu0 %v2094
    %2317 = vmatpush2.bf16.msra.mxu0 %v2093
    %2318 = vmatprep.subr.bf16.mxu0 %v2092
    %2319 = vmatpush2.bf16.msra.mxu0 %v2091
    %2320 = vmatprep.subr.bf16.mxu0 %v2090
    %2321 = vmatpush2.bf16.msra.mxu0 %v2089
    %2322 = vmatprep.subr.bf16.mxu0 %v2088
    %2323 = vmatpush2.bf16.msra.mxu0 %v2087
    %2324 = vmatprep.subr.bf16.mxu0 %v2086
    %2325 = vmatpush2.bf16.msra.mxu0 %v2085
    %2326 = vmatprep.subr.bf16.mxu0 %v2084
    %2327 = vmatpush2.bf16.msra.mxu0 %v2083
    %2328 = vmatprep.subr.bf16.mxu0 %v2082
    %2329 = vmatpush2.bf16.msra.mxu0 %v2081
    %2330 = vmatprep.mubr.bf16.mxu0 %v1724
    %2331 = vmatmul.mubr.bf16.gmra.mxu0 %v1723
    %v2332 = vpop.f32.mrf.mxu0
    %v2333 = vadd.f32 %v2260, %v2332
    %v2334 = vpop.f32.mrf.mxu0
    %v2335 = vadd.f32 %v2262, %v2334
    %v2336 = vpop.f32.mrf.mxu0
    %v2337 = vadd.f32 %v2264, %v2336
    %v2338 = vpop.f32.mrf.mxu0
    %v2339 = vadd.f32 %v2266, %v2338
    %2340 = vmatprep.mubr.bf16.mxu0 %v1730
    %2341 = vmatmul.mubr.bf16.gmra.mxu0 %v1729
    %v2342 = vpop.f32.mrf.mxu0
    %v2343 = vadd.f32 %v2270, %v2342
    %v2344 = vpop.f32.mrf.mxu0
    %v2345 = vadd.f32 %v2272, %v2344
    %v2346 = vpop.f32.mrf.mxu0
    %v2347 = vadd.f32 %v2274, %v2346
    %v2348 = vpop.f32.mrf.mxu0
    %v2349 = vadd.f32 %v2276, %v2348
    %2350 = vmatprep.mubr.bf16.mxu0 %v1736
    %2351 = vmatmul.mubr.bf16.gmra.mxu0 %v1735
    %v2352 = vpop.f32.mrf.mxu0
    %v2353 = vadd.f32 %v2280, %v2352
    %v2354 = vpop.f32.mrf.mxu0
    %v2355 = vadd.f32 %v2282, %v2354
    %v2356 = vpop.f32.mrf.mxu0
    %v2357 = vadd.f32 %v2284, %v2356
    %v2358 = vpop.f32.mrf.mxu0
    %v2359 = vadd.f32 %v2286, %v2358
    %2360 = vmatprep.mubr.bf16.mxu0 %v1742
    %2361 = vmatmul.mubr.bf16.gmra.mxu0 %v1741
    %v2362 = vpop.f32.mrf.mxu0
    %v2363 = vadd.f32 %v2290, %v2362
    %v2364 = vpop.f32.mrf.mxu0
    %v2365 = vadd.f32 %v2292, %v2364
    %v2366 = vpop.f32.mrf.mxu0
    %v2367 = vadd.f32 %v2294, %v2366
    %v2368 = vpop.f32.mrf.mxu0
    %v2369 = vadd.f32 %v2296, %v2368
    %2370 = vdwg.mxu0
    %2371 = vmatprep.subr.bf16.mxu0 %v2112
    %2372 = vmatpush1.bf16.msra.mxu0 %v2111
    %2373 = vmatprep.subr.bf16.mxu0 %v2110
    %2374 = vmatpush1.bf16.msra.mxu0 %v2109
    %2375 = vmatprep.subr.bf16.mxu0 %v2108
    %2376 = vmatpush1.bf16.msra.mxu0 %v2107
    %2377 = vmatprep.subr.bf16.mxu0 %v2106
    %2378 = vmatpush1.bf16.msra.mxu0 %v2105
    %2379 = vmatprep.subr.bf16.mxu0 %v2104
    %2380 = vmatpush1.bf16.msra.mxu0 %v2103
    %2381 = vmatprep.subr.bf16.mxu0 %v2102
    %2382 = vmatpush1.bf16.msra.mxu0 %v2101
    %2383 = vmatprep.subr.bf16.mxu0 %v2100
    %2384 = vmatpush1.bf16.msra.mxu0 %v2099
    %2385 = vmatprep.subr.bf16.mxu0 %v2098
    %2386 = vmatpush1.bf16.msra.mxu0 %v2097
    %2387 = vmatprep.subr.bf16.mxu0 %v2128
    %2388 = vmatpush2.bf16.msra.mxu0 %v2127
    %2389 = vmatprep.subr.bf16.mxu0 %v2126
    %2390 = vmatpush2.bf16.msra.mxu0 %v2125
    %2391 = vmatprep.subr.bf16.mxu0 %v2124
    %2392 = vmatpush2.bf16.msra.mxu0 %v2123
    %2393 = vmatprep.subr.bf16.mxu0 %v2122
    %2394 = vmatpush2.bf16.msra.mxu0 %v2121
    %2395 = vmatprep.subr.bf16.mxu0 %v2120
    %2396 = vmatpush2.bf16.msra.mxu0 %v2119
    %2397 = vmatprep.subr.bf16.mxu0 %v2118
    %2398 = vmatpush2.bf16.msra.mxu0 %v2117
    %2399 = vmatprep.subr.bf16.mxu0 %v2116
    %2400 = vmatpush2.bf16.msra.mxu0 %v2115
    %2401 = vmatprep.subr.bf16.mxu0 %v2114
    %2402 = vmatpush2.bf16.msra.mxu0 %v2113
    %2403 = vmatprep.mubr.bf16.mxu0 %v1726
    %2404 = vmatmul.mubr.bf16.gmra.mxu0 %v1725
    %v2405 = vpop.f32.mrf.mxu0
    %v2406 = vadd.f32 %v2333, %v2405
    %v2407 = vpop.f32.mrf.mxu0
    %v2408 = vadd.f32 %v2335, %v2407
    %v2409 = vpop.f32.mrf.mxu0
    %v2410 = vadd.f32 %v2337, %v2409
    %v2411 = vpop.f32.mrf.mxu0
    %v2412 = vadd.f32 %v2339, %v2411
    %2413 = vmatprep.mubr.bf16.mxu0 %v1732
    %2414 = vmatmul.mubr.bf16.gmra.mxu0 %v1731
    %v2415 = vpop.f32.mrf.mxu0
    %v2416 = vadd.f32 %v2343, %v2415
    %v2417 = vpop.f32.mrf.mxu0
    %v2418 = vadd.f32 %v2345, %v2417
    %v2419 = vpop.f32.mrf.mxu0
    %v2420 = vadd.f32 %v2347, %v2419
    %v2421 = vpop.f32.mrf.mxu0
    %v2422 = vadd.f32 %v2349, %v2421
    %2423 = vmatprep.mubr.bf16.mxu0 %v1738
    %2424 = vmatmul.mubr.bf16.gmra.mxu0 %v1737
    %v2425 = vpop.f32.mrf.mxu0
    %v2426 = vadd.f32 %v2353, %v2425
    %v2427 = vpop.f32.mrf.mxu0
    %v2428 = vadd.f32 %v2355, %v2427
    %v2429 = vpop.f32.mrf.mxu0
    %v2430 = vadd.f32 %v2357, %v2429
    %v2431 = vpop.f32.mrf.mxu0
    %v2432 = vadd.f32 %v2359, %v2431
    %2433 = vmatprep.mubr.bf16.mxu0 %v1744
    %2434 = vmatmul.mubr.bf16.gmra.mxu0 %v1743
    %v2435 = vpop.f32.mrf.mxu0
    %v2436 = vadd.f32 %v2363, %v2435
    %v2437 = vpop.f32.mrf.mxu0
    %v2438 = vadd.f32 %v2365, %v2437
    %v2439 = vpop.f32.mrf.mxu0
    %v2440 = vadd.f32 %v2367, %v2439
    %v2441 = vpop.f32.mrf.mxu0
    %v2442 = vadd.f32 %v2369, %v2441
    %2443 = vdwg.mxu0
    %v2445 = vlaneseq
    %v2446 = vshrl.u32 %v2445, 7
    %v2447 = vsub.s32 0, %v2446
    %v2448 = vrot.slane %v1477, %v2447
    %v2449 = vlaneseq
    %v2450 = vshrl.u32 %v2449, 7
    %v2451 = vsub.s32 1, %v2450
    %v2452 = vrot.slane %v1477, %v2451
    %v2455 = vmul.f32 %v2406, %v2448
    %v2456 = vmul.f32 %v2408, %v2452
    %v2457 = vmul.f32 %v2410, %v2448
    %v2458 = vmul.f32 %v2412, %v2452
    %v2459 = vmul.f32 %v2416, %v2448
    %v2460 = vmul.f32 %v2418, %v2452
    %v2461 = vmul.f32 %v2420, %v2448
    %v2462 = vmul.f32 %v2422, %v2452
    %v2463 = vmul.f32 %v2426, %v2448
    %v2464 = vmul.f32 %v2428, %v2452
    %v2465 = vmul.f32 %v2430, %v2448
    %v2466 = vmul.f32 %v2432, %v2452
    %v2467 = vmul.f32 %v2436, %v2448
    %v2468 = vmul.f32 %v2438, %v2452
    %v2469 = vmul.f32 %v2440, %v2448
    %v2470 = vmul.f32 %v2442, %v2452
    %v2472 = vlaneseq
    %v2473 = vshrl.u32 %v2472, 7
    %v2474 = vsub.s32 0, %v2473
    %v2475 = vrot.slane %v1478, %v2474
    %v2476 = vlaneseq
    %v2477 = vshrl.u32 %v2476, 7
    %v2478 = vsub.s32 1, %v2477
    %v2479 = vrot.slane %v1478, %v2478
    %v2482 = vadd.f32 %v2455, %v2475
    %v2483 = vadd.f32 %v2456, %v2479
    %v2484 = vadd.f32 %v2457, %v2475
    %v2485 = vadd.f32 %v2458, %v2479
    %v2486 = vadd.f32 %v2459, %v2475
    %v2487 = vadd.f32 %v2460, %v2479
    %v2488 = vadd.f32 %v2461, %v2475
    %v2489 = vadd.f32 %v2462, %v2479
    %v2490 = vadd.f32 %v2463, %v2475
    %v2491 = vadd.f32 %v2464, %v2479
    %v2492 = vadd.f32 %v2465, %v2475
    %v2493 = vadd.f32 %v2466, %v2479
    %v2494 = vadd.f32 %v2467, %v2475
    %v2495 = vadd.f32 %v2468, %v2479
    %v2496 = vadd.f32 %v2469, %v2475
    %v2497 = vadd.f32 %v2470, %v2479
    %v2498 = vmax.f32 %v2482, 0.0
    %v2499 = vmax.f32 %v2483, 0.0
    %v2500 = vmax.f32 %v2484, 0.0
    %v2501 = vmax.f32 %v2485, 0.0
    %v2502 = vmax.f32 %v2486, 0.0
    %v2503 = vmax.f32 %v2487, 0.0
    %v2504 = vmax.f32 %v2488, 0.0
    %v2505 = vmax.f32 %v2489, 0.0
    %v2506 = vmax.f32 %v2490, 0.0
    %v2507 = vmax.f32 %v2491, 0.0
    %v2508 = vmax.f32 %v2492, 0.0
    %v2509 = vmax.f32 %v2493, 0.0
    %v2510 = vmax.f32 %v2494, 0.0
    %v2511 = vmax.f32 %v2495, 0.0
    %v2512 = vmax.f32 %v2496, 0.0
    %v2513 = vmax.f32 %v2497, 0.0
    %v2530 = vrot.slane %v2498, 7
    %v2531 = vrot.slane %v2499, 7
    %v2532 = vrot.slane %v2500, 7
    %v2533 = vsel %vm694, %v2530, %v2532
    %v2534 = vrot.slane %v2501, 7
    %v2535 = vsel %vm694, %v2531, %v2534
    %v2536 = vrot.slane %v2502, 7
    %v2537 = vsel %vm694, %v2532, %v2536
    %v2538 = vrot.slane %v2503, 7
    %v2539 = vsel %vm694, %v2534, %v2538
    %v2540 = vrot.slane %v2504, 7
    %v2541 = vsel %vm694, %v2536, %v2540
    %v2542 = vrot.slane %v2505, 7
    %v2543 = vsel %vm694, %v2538, %v2542
    %v2544 = vrot.slane %v2506, 7
    %v2545 = vsel %vm694, %v2540, %v2544
    %v2546 = vrot.slane %v2507, 7
    %v2547 = vsel %vm694, %v2542, %v2546
    %v2548 = vrot.slane %v2508, 7
    %v2549 = vsel %vm694, %v2544, %v2548
    %v2550 = vrot.slane %v2509, 7
    %v2551 = vsel %vm694, %v2546, %v2550
    %v2552 = vrot.slane %v2510, 7
    %v2553 = vsel %vm694, %v2548, %v2552
    %v2554 = vrot.slane %v2511, 7
    %v2555 = vsel %vm694, %v2550, %v2554
    %v2556 = vrot.slane %v2512, 7
    %v2557 = vsel %vm694, %v2552, %v2556
    %v2558 = vrot.slane %v2513, 7
    %v2559 = vsel %vm694, %v2554, %v2558
    %v2576 = vsel %vm694, 0.0, %v2530
    %v2577 = vsel %vm694, 0.0, %v2531
    %v2578 = vrot.slane %v2498, 1
    %v2579 = vrot.slane %v2500, 1
    %v2580 = vsel %vm719, %v2578, %v2579
    %v2581 = vrot.slane %v2499, 1
    %v2582 = vrot.slane %v2501, 1
    %v2583 = vsel %vm719, %v2581, %v2582
    %v2584 = vrot.slane %v2502, 1
    %v2585 = vsel %vm719, %v2579, %v2584
    %v2586 = vrot.slane %v2503, 1
    %v2587 = vsel %vm719, %v2582, %v2586
    %v2588 = vrot.slane %v2504, 1
    %v2589 = vsel %vm719, %v2584, %v2588
    %v2590 = vrot.slane %v2505, 1
    %v2591 = vsel %vm719, %v2586, %v2590
    %v2592 = vrot.slane %v2506, 1
    %v2593 = vsel %vm719, %v2588, %v2592
    %v2594 = vrot.slane %v2507, 1
    %v2595 = vsel %vm719, %v2590, %v2594
    %v2596 = vrot.slane %v2508, 1
    %v2597 = vsel %vm719, %v2592, %v2596
    %v2598 = vrot.slane %v2509, 1
    %v2599 = vsel %vm719, %v2594, %v2598
    %v2600 = vrot.slane %v2510, 1
    %v2601 = vsel %vm719, %v2596, %v2600
    %v2602 = vrot.slane %v2511, 1
    %v2603 = vsel %vm719, %v2598, %v2602
    %v2604 = vrot.slane %v2512, 1
    %v2605 = vsel %vm719, %v2600, %v2604
    %v2606 = vrot.slane %v2513, 1
    %v2607 = vsel %vm719, %v2602, %v2606
    %v2624 = vsel %vm719, %v2604, 0.0
    %v2625 = vsel %vm719, %v2606, 0.0
    %v2626 = vsel %vm865, 0.0, %v2576
    %v2627 = vsel %vm865, 0.0, %v2577
    %v2628 = vsel %vm866, 0.0, %v2533
    %v2629 = vsel %vm866, 0.0, %v2535
    %v2630 = vsel %vm867, 0.0, %v2537
    %v2631 = vsel %vm867, 0.0, %v2539
    %v2632 = vsel %vm868, 0.0, %v2541
    %v2633 = vsel %vm868, 0.0, %v2543
    %v2634 = vsel %vm869, 0.0, %v2545
    %v2635 = vsel %vm869, 0.0, %v2547
    %v2636 = vsel %vm870, 0.0, %v2549
    %v2637 = vsel %vm870, 0.0, %v2551
    %v2638 = vsel %vm871, 0.0, %v2553
    %v2639 = vsel %vm871, 0.0, %v2555
    %v2640 = vsel %vm872, 0.0, %v2557
    %v2641 = vsel %vm872, 0.0, %v2559
    %v2642 = vsel %vm897, 0.0, %v2580
    %v2643 = vsel %vm897, 0.0, %v2583
    %v2644 = vsel %vm898, 0.0, %v2585
    %v2645 = vsel %vm898, 0.0, %v2587
    %v2646 = vsel %vm899, 0.0, %v2589
    %v2647 = vsel %vm899, 0.0, %v2591
    %v2648 = vsel %vm900, 0.0, %v2593
    %v2649 = vsel %vm900, 0.0, %v2595
    %v2650 = vsel %vm901, 0.0, %v2597
    %v2651 = vsel %vm901, 0.0, %v2599
    %v2652 = vsel %vm902, 0.0, %v2601
    %v2653 = vsel %vm902, 0.0, %v2603
    %v2654 = vsel %vm903, 0.0, %v2605
    %v2655 = vsel %vm903, 0.0, %v2607
    %v2656 = vsel %vm904, 0.0, %v2624
    %v2657 = vsel %vm904, 0.0, %v2625
    %v2658 = vpack.c.bf16 %v2628, %v2626
    %v2659 = vpack.c.bf16 %v2629, %v2627
    %v2660 = vpack.c.bf16 %v2500, %v2498
    %v2661 = vpack.c.bf16 %v2501, %v2499
    %v2662 = vpack.c.bf16 %v2644, %v2642
    %v2663 = vpack.c.bf16 %v2645, %v2643
    %v2664 = vpack.c.bf16 %v2632, %v2630
    %v2665 = vpack.c.bf16 %v2633, %v2631
    %v2666 = vpack.c.bf16 %v2504, %v2502
    %v2667 = vpack.c.bf16 %v2505, %v2503
    %v2668 = vpack.c.bf16 %v2648, %v2646
    %v2669 = vpack.c.bf16 %v2649, %v2647
    %v2670 = vpack.c.bf16 %v2636, %v2634
    %v2671 = vpack.c.bf16 %v2637, %v2635
    %v2672 = vpack.c.bf16 %v2508, %v2506
    %v2673 = vpack.c.bf16 %v2509, %v2507
    %v2674 = vpack.c.bf16 %v2652, %v2650
    %v2675 = vpack.c.bf16 %v2653, %v2651
    %v2676 = vpack.c.bf16 %v2640, %v2638
    %v2677 = vpack.c.bf16 %v2641, %v2639
    %v2678 = vpack.c.bf16 %v2512, %v2510
    %v2679 = vpack.c.bf16 %v2513, %v2511
    %v2680 = vpack.c.bf16 %v2656, %v2654
    %v2681 = vpack.c.bf16 %v2657, %v2655
    %v2778 = vunpack.c.l.b16 %v1479
    %v2779 = vunpack.c.h.b16 %v1479
    %v2780 = vunpack.c.l.b16 %v1480
    %v2781 = vunpack.c.h.b16 %v1480
    %v2782 = vunpack.c.l.b16 %v1481
    %v2783 = vunpack.c.h.b16 %v1481
    %v2784 = vunpack.c.l.b16 %v1482
    %v2785 = vunpack.c.h.b16 %v1482
    %v2786 = vunpack.c.l.b16 %v1483
    %v2787 = vunpack.c.h.b16 %v1483
    %v2788 = vunpack.c.l.b16 %v1484
    %v2789 = vunpack.c.h.b16 %v1484
    %v2790 = vunpack.c.l.b16 %v1485
    %v2791 = vunpack.c.h.b16 %v1485
    %v2792 = vunpack.c.l.b16 %v1486
    %v2793 = vunpack.c.h.b16 %v1486
    %v2794 = vunpack.c.l.b16 %v1487
    %v2795 = vunpack.c.h.b16 %v1487
    %v2796 = vunpack.c.l.b16 %v1488
    %v2797 = vunpack.c.h.b16 %v1488
    %v2798 = vunpack.c.l.b16 %v1489
    %v2799 = vunpack.c.h.b16 %v1489
    %v2800 = vunpack.c.l.b16 %v1490
    %v2801 = vunpack.c.h.b16 %v1490
    %v2802 = vunpack.c.l.b16 %v1491
    %v2803 = vunpack.c.h.b16 %v1491
    %v2804 = vunpack.c.l.b16 %v1492
    %v2805 = vunpack.c.h.b16 %v1492
    %v2806 = vunpack.c.l.b16 %v1493
    %v2807 = vunpack.c.h.b16 %v1493
    %v2808 = vunpack.c.l.b16 %v1494
    %v2809 = vunpack.c.h.b16 %v1494
    %v2810 = vunpack.c.l.b16 %v1495
    %v2811 = vunpack.c.h.b16 %v1495
    %v2812 = vunpack.c.l.b16 %v1496
    %v2813 = vunpack.c.h.b16 %v1496
    %v2814 = vunpack.c.l.b16 %v1497
    %v2815 = vunpack.c.h.b16 %v1497
    %v2816 = vunpack.c.l.b16 %v1498
    %v2817 = vunpack.c.h.b16 %v1498
    %v2818 = vunpack.c.l.b16 %v1499
    %v2819 = vunpack.c.h.b16 %v1499
    %v2820 = vunpack.c.l.b16 %v1500
    %v2821 = vunpack.c.h.b16 %v1500
    %v2822 = vunpack.c.l.b16 %v1501
    %v2823 = vunpack.c.h.b16 %v1501
    %v2824 = vunpack.c.l.b16 %v1502
    %v2825 = vunpack.c.h.b16 %v1502
    %v2826 = vunpack.c.l.b16 %v1503
    %v2827 = vunpack.c.h.b16 %v1503
    %v2828 = vunpack.c.l.b16 %v1504
    %v2829 = vunpack.c.h.b16 %v1504
    %v2830 = vunpack.c.l.b16 %v1505
    %v2831 = vunpack.c.h.b16 %v1505
    %v2832 = vunpack.c.l.b16 %v1506
    %v2833 = vunpack.c.h.b16 %v1506
    %v2834 = vunpack.c.l.b16 %v1507
    %v2835 = vunpack.c.h.b16 %v1507
    %v2836 = vunpack.c.l.b16 %v1508
    %v2837 = vunpack.c.h.b16 %v1508
    %v2838 = vunpack.c.l.b16 %v1509
    %v2839 = vunpack.c.h.b16 %v1509
    %v2840 = vunpack.c.l.b16 %v1510
    %v2841 = vunpack.c.h.b16 %v1510
    %v2842 = vunpack.c.l.b16 %v1511
    %v2843 = vunpack.c.h.b16 %v1511
    %v2844 = vunpack.c.l.b16 %v1512
    %v2845 = vunpack.c.h.b16 %v1512
    %v2846 = vunpack.c.l.b16 %v1513
    %v2847 = vunpack.c.h.b16 %v1513
    %v2848 = vunpack.c.l.b16 %v1514
    %v2849 = vunpack.c.h.b16 %v1514
    %v2850 = vunpack.c.l.b16 %v1515
    %v2851 = vunpack.c.h.b16 %v1515
    %v2852 = vunpack.c.l.b16 %v1516
    %v2853 = vunpack.c.h.b16 %v1516
    %v2854 = vunpack.c.l.b16 %v1517
    %v2855 = vunpack.c.h.b16 %v1517
    %v2856 = vunpack.c.l.b16 %v1518
    %v2857 = vunpack.c.h.b16 %v1518
    %v2858 = vunpack.c.l.b16 %v1519
    %v2859 = vunpack.c.h.b16 %v1519
    %v2860 = vunpack.c.l.b16 %v1520
    %v2861 = vunpack.c.h.b16 %v1520
    %v2862 = vunpack.c.l.b16 %v1521
    %v2863 = vunpack.c.h.b16 %v1521
    %v2864 = vunpack.c.l.b16 %v1522
    %v2865 = vunpack.c.h.b16 %v1522
    %v2866 = vunpack.c.l.b16 %v1523
    %v2867 = vunpack.c.h.b16 %v1523
    %v2868 = vunpack.c.l.b16 %v1524
    %v2869 = vunpack.c.h.b16 %v1524
    %v2870 = vunpack.c.l.b16 %v1525
    %v2871 = vunpack.c.h.b16 %v1525
    %v2872 = vunpack.c.l.b16 %v1526
    %v2873 = vunpack.c.h.b16 %v1526
    %v2874 = vunpack.c.l.b16 %v1527
    %v2875 = vunpack.c.h.b16 %v1527
    %v2876 = vunpack.c.l.b16 %v1528
    %v2877 = vunpack.c.h.b16 %v1528
    %v2878 = vunpack.c.l.b16 %v1529
    %v2879 = vunpack.c.h.b16 %v1529
    %v2880 = vunpack.c.l.b16 %v1530
    %v2881 = vunpack.c.h.b16 %v1530
    %v2882 = vunpack.c.l.b16 %v1531
    %v2883 = vunpack.c.h.b16 %v1531
    %v2884 = vunpack.c.l.b16 %v1532
    %v2885 = vunpack.c.h.b16 %v1532
    %v2886 = vunpack.c.l.b16 %v1533
    %v2887 = vunpack.c.h.b16 %v1533
    %v2888 = vunpack.c.l.b16 %v1534
    %v2889 = vunpack.c.h.b16 %v1534
    %v2890 = vunpack.c.l.b16 %v1535
    %v2891 = vunpack.c.h.b16 %v1535
    %v2892 = vunpack.c.l.b16 %v1536
    %v2893 = vunpack.c.h.b16 %v1536
    %v2894 = vunpack.c.l.b16 %v1537
    %v2895 = vunpack.c.h.b16 %v1537
    %v2896 = vunpack.c.l.b16 %v1538
    %v2897 = vunpack.c.h.b16 %v1538
    %v2898 = vunpack.c.l.b16 %v1539
    %v2899 = vunpack.c.h.b16 %v1539
    %v2900 = vunpack.c.l.b16 %v1540
    %v2901 = vunpack.c.h.b16 %v1540
    %v2902 = vunpack.c.l.b16 %v1541
    %v2903 = vunpack.c.h.b16 %v1541
    %v2904 = vunpack.c.l.b16 %v1542
    %v2905 = vunpack.c.h.b16 %v1542
    %v2906 = vunpack.c.l.b16 %v1543
    %v2907 = vunpack.c.h.b16 %v1543
    %v2908 = vunpack.c.l.b16 %v1544
    %v2909 = vunpack.c.h.b16 %v1544
    %v2910 = vunpack.c.l.b16 %v1545
    %v2911 = vunpack.c.h.b16 %v1545
    %v2912 = vunpack.c.l.b16 %v1546
    %v2913 = vunpack.c.h.b16 %v1546
    %v2914 = vunpack.c.l.b16 %v1547
    %v2915 = vunpack.c.h.b16 %v1547
    %v2916 = vunpack.c.l.b16 %v1548
    %v2917 = vunpack.c.h.b16 %v1548
    %v2918 = vunpack.c.l.b16 %v1549
    %v2919 = vunpack.c.h.b16 %v1549
    %v2920 = vunpack.c.l.b16 %v1550
    %v2921 = vunpack.c.h.b16 %v1550
    %v2922 = vunpack.c.l.b16 %v1551
    %v2923 = vunpack.c.h.b16 %v1551
    %v2924 = vunpack.c.l.b16 %v1552
    %v2925 = vunpack.c.h.b16 %v1552
    %v2926 = vunpack.c.l.b16 %v1553
    %v2927 = vunpack.c.h.b16 %v1553
    %v2928 = vunpack.c.l.b16 %v1554
    %v2929 = vunpack.c.h.b16 %v1554
    %v2930 = vunpack.c.l.b16 %v1555
    %v2931 = vunpack.c.h.b16 %v1555
    %v2932 = vunpack.c.l.b16 %v1556
    %v2933 = vunpack.c.h.b16 %v1556
    %v2934 = vunpack.c.l.b16 %v1557
    %v2935 = vunpack.c.h.b16 %v1557
    %v2936 = vunpack.c.l.b16 %v1558
    %v2937 = vunpack.c.h.b16 %v1558
    %v2938 = vunpack.c.l.b16 %v1559
    %v2939 = vunpack.c.h.b16 %v1559
    %v2940 = vunpack.c.l.b16 %v1560
    %v2941 = vunpack.c.h.b16 %v1560
    %v2942 = vunpack.c.l.b16 %v1561
    %v2943 = vunpack.c.h.b16 %v1561
    %v2944 = vunpack.c.l.b16 %v1562
    %v2945 = vunpack.c.h.b16 %v1562
    %v2946 = vunpack.c.l.b16 %v1563
    %v2947 = vunpack.c.h.b16 %v1563
    %v2948 = vunpack.c.l.b16 %v1564
    %v2949 = vunpack.c.h.b16 %v1564
    %v2950 = vunpack.c.l.b16 %v1565
    %v2951 = vunpack.c.h.b16 %v1565
    %v2952 = vunpack.c.l.b16 %v1566
    %v2953 = vunpack.c.h.b16 %v1566
    %v2954 = vunpack.c.l.b16 %v1567
    %v2955 = vunpack.c.h.b16 %v1567
    %v2956 = vunpack.c.l.b16 %v1568
    %v2957 = vunpack.c.h.b16 %v1568
    %v2958 = vunpack.c.l.b16 %v1569
    %v2959 = vunpack.c.h.b16 %v1569
    %v2960 = vunpack.c.l.b16 %v1570
    %v2961 = vunpack.c.h.b16 %v1570
    %v2962 = vunpack.c.l.b16 %v1571
    %v2963 = vunpack.c.h.b16 %v1571
    %v2964 = vunpack.c.l.b16 %v1572
    %v2965 = vunpack.c.h.b16 %v1572
    %v2966 = vunpack.c.l.b16 %v1573
    %v2967 = vunpack.c.h.b16 %v1573
    %v2968 = vunpack.c.l.b16 %v1574
    %v2969 = vunpack.c.h.b16 %v1574
    %v2970 = vpack.c.b16 %v2780, %v2778
    %v2971 = vpack.c.b16 %v2781, %v2779
    %v2972 = vpack.c.b16 %v2784, %v2782
    %v2973 = vpack.c.b16 %v2785, %v2783
    %v2974 = vpack.c.b16 %v2788, %v2786
    %v2975 = vpack.c.b16 %v2789, %v2787
    %v2976 = vpack.c.b16 %v2792, %v2790
    %v2977 = vpack.c.b16 %v2793, %v2791
    %v2978 = vpack.c.b16 %v2796, %v2794
    %v2979 = vpack.c.b16 %v2797, %v2795
    %v2980 = vpack.c.b16 %v2800, %v2798
    %v2981 = vpack.c.b16 %v2801, %v2799
    %v2982 = vpack.c.b16 %v2804, %v2802
    %v2983 = vpack.c.b16 %v2805, %v2803
    %v2984 = vpack.c.b16 %v2808, %v2806
    %v2985 = vpack.c.b16 %v2809, %v2807
    %v2986 = vpack.c.b16 %v2812, %v2810
    %v2987 = vpack.c.b16 %v2813, %v2811
    %v2988 = vpack.c.b16 %v2816, %v2814
    %v2989 = vpack.c.b16 %v2817, %v2815
    %v2990 = vpack.c.b16 %v2820, %v2818
    %v2991 = vpack.c.b16 %v2821, %v2819
    %v2992 = vpack.c.b16 %v2824, %v2822
    %v2993 = vpack.c.b16 %v2825, %v2823
    %v2994 = vpack.c.b16 %v2828, %v2826
    %v2995 = vpack.c.b16 %v2829, %v2827
    %v2996 = vpack.c.b16 %v2832, %v2830
    %v2997 = vpack.c.b16 %v2833, %v2831
    %v2998 = vpack.c.b16 %v2836, %v2834
    %v2999 = vpack.c.b16 %v2837, %v2835
    %v3000 = vpack.c.b16 %v2840, %v2838
    %v3001 = vpack.c.b16 %v2841, %v2839
    %v3002 = vpack.c.b16 %v2844, %v2842
    %v3003 = vpack.c.b16 %v2845, %v2843
    %v3004 = vpack.c.b16 %v2848, %v2846
    %v3005 = vpack.c.b16 %v2849, %v2847
    %v3006 = vpack.c.b16 %v2852, %v2850
    %v3007 = vpack.c.b16 %v2853, %v2851
    %v3008 = vpack.c.b16 %v2856, %v2854
    %v3009 = vpack.c.b16 %v2857, %v2855
    %v3010 = vpack.c.b16 %v2860, %v2858
    %v3011 = vpack.c.b16 %v2861, %v2859
    %v3012 = vpack.c.b16 %v2864, %v2862
    %v3013 = vpack.c.b16 %v2865, %v2863
    %v3014 = vpack.c.b16 %v2868, %v2866
    %v3015 = vpack.c.b16 %v2869, %v2867
    %v3016 = vpack.c.b16 %v2872, %v2870
    %v3017 = vpack.c.b16 %v2873, %v2871
    %v3018 = vpack.c.b16 %v2876, %v2874
    %v3019 = vpack.c.b16 %v2877, %v2875
    %v3020 = vpack.c.b16 %v2880, %v2878
    %v3021 = vpack.c.b16 %v2881, %v2879
    %v3022 = vpack.c.b16 %v2884, %v2882
    %v3023 = vpack.c.b16 %v2885, %v2883
    %v3024 = vpack.c.b16 %v2888, %v2886
    %v3025 = vpack.c.b16 %v2889, %v2887
    %v3026 = vpack.c.b16 %v2892, %v2890
    %v3027 = vpack.c.b16 %v2893, %v2891
    %v3028 = vpack.c.b16 %v2896, %v2894
    %v3029 = vpack.c.b16 %v2897, %v2895
    %v3030 = vpack.c.b16 %v2900, %v2898
    %v3031 = vpack.c.b16 %v2901, %v2899
    %v3032 = vpack.c.b16 %v2904, %v2902
    %v3033 = vpack.c.b16 %v2905, %v2903
    %v3034 = vpack.c.b16 %v2908, %v2906
    %v3035 = vpack.c.b16 %v2909, %v2907
    %v3036 = vpack.c.b16 %v2912, %v2910
    %v3037 = vpack.c.b16 %v2913, %v2911
    %v3038 = vpack.c.b16 %v2916, %v2914
    %v3039 = vpack.c.b16 %v2917, %v2915
    %v3040 = vpack.c.b16 %v2920, %v2918
    %v3041 = vpack.c.b16 %v2921, %v2919
    %v3042 = vpack.c.b16 %v2924, %v2922
    %v3043 = vpack.c.b16 %v2925, %v2923
    %v3044 = vpack.c.b16 %v2928, %v2926
    %v3045 = vpack.c.b16 %v2929, %v2927
    %v3046 = vpack.c.b16 %v2932, %v2930
    %v3047 = vpack.c.b16 %v2933, %v2931
    %v3048 = vpack.c.b16 %v2936, %v2934
    %v3049 = vpack.c.b16 %v2937, %v2935
    %v3050 = vpack.c.b16 %v2940, %v2938
    %v3051 = vpack.c.b16 %v2941, %v2939
    %v3052 = vpack.c.b16 %v2944, %v2942
    %v3053 = vpack.c.b16 %v2945, %v2943
    %v3054 = vpack.c.b16 %v2948, %v2946
    %v3055 = vpack.c.b16 %v2949, %v2947
    %v3056 = vpack.c.b16 %v2952, %v2950
    %v3057 = vpack.c.b16 %v2953, %v2951
    %v3058 = vpack.c.b16 %v2956, %v2954
    %v3059 = vpack.c.b16 %v2957, %v2955
    %v3060 = vpack.c.b16 %v2960, %v2958
    %v3061 = vpack.c.b16 %v2961, %v2959
    %v3062 = vpack.c.b16 %v2964, %v2962
    %v3063 = vpack.c.b16 %v2965, %v2963
    %v3064 = vpack.c.b16 %v2968, %v2966
    %v3065 = vpack.c.b16 %v2969, %v2967
    %3162 = vmatprep.subr.bf16.mxu0 %v2985
    %3163 = vmatpush1.bf16.msra.mxu0 %v2984
    %3164 = vmatprep.subr.bf16.mxu0 %v2983
    %3165 = vmatpush1.bf16.msra.mxu0 %v2982
    %3166 = vmatprep.subr.bf16.mxu0 %v2981
    %3167 = vmatpush1.bf16.msra.mxu0 %v2980
    %3168 = vmatprep.subr.bf16.mxu0 %v2979
    %3169 = vmatpush1.bf16.msra.mxu0 %v2978
    %3170 = vmatprep.subr.bf16.mxu0 %v2977
    %3171 = vmatpush1.bf16.msra.mxu0 %v2976
    %3172 = vmatprep.subr.bf16.mxu0 %v2975
    %3173 = vmatpush1.bf16.msra.mxu0 %v2974
    %3174 = vmatprep.subr.bf16.mxu0 %v2973
    %3175 = vmatpush1.bf16.msra.mxu0 %v2972
    %3176 = vmatprep.subr.bf16.mxu0 %v2971
    %3177 = vmatpush1.bf16.msra.mxu0 %v2970
    %3178 = vmatprep.subr.bf16.mxu0 %v3001
    %3179 = vmatpush2.bf16.msra.mxu0 %v3000
    %3180 = vmatprep.subr.bf16.mxu0 %v2999
    %3181 = vmatpush2.bf16.msra.mxu0 %v2998
    %3182 = vmatprep.subr.bf16.mxu0 %v2997
    %3183 = vmatpush2.bf16.msra.mxu0 %v2996
    %3184 = vmatprep.subr.bf16.mxu0 %v2995
    %3185 = vmatpush2.bf16.msra.mxu0 %v2994
    %3186 = vmatprep.subr.bf16.mxu0 %v2993
    %3187 = vmatpush2.bf16.msra.mxu0 %v2992
    %3188 = vmatprep.subr.bf16.mxu0 %v2991
    %3189 = vmatpush2.bf16.msra.mxu0 %v2990
    %3190 = vmatprep.subr.bf16.mxu0 %v2989
    %3191 = vmatpush2.bf16.msra.mxu0 %v2988
    %3192 = vmatprep.subr.bf16.mxu0 %v2987
    %3193 = vmatpush2.bf16.msra.mxu0 %v2986
    %3194 = vmatprep.mubr.bf16.mxu0 %v2659
    %3195 = vmatmul.mubr.bf16.gmra.mxu0 %v2658
    %v3196 = vpop.f32.mrf.mxu0
    %v3197 = vadd.f32 0.0, %v3196
    %v3198 = vpop.f32.mrf.mxu0
    %v3199 = vadd.f32 0.0, %v3198
    %v3200 = vpop.f32.mrf.mxu0
    %v3201 = vadd.f32 0.0, %v3200
    %v3202 = vpop.f32.mrf.mxu0
    %v3203 = vadd.f32 0.0, %v3202
    %3204 = vmatprep.mubr.bf16.mxu0 %v2665
    %3205 = vmatmul.mubr.bf16.gmra.mxu0 %v2664
    %v3206 = vpop.f32.mrf.mxu0
    %v3207 = vadd.f32 0.0, %v3206
    %v3208 = vpop.f32.mrf.mxu0
    %v3209 = vadd.f32 0.0, %v3208
    %v3210 = vpop.f32.mrf.mxu0
    %v3211 = vadd.f32 0.0, %v3210
    %v3212 = vpop.f32.mrf.mxu0
    %v3213 = vadd.f32 0.0, %v3212
    %3214 = vmatprep.mubr.bf16.mxu0 %v2671
    %3215 = vmatmul.mubr.bf16.gmra.mxu0 %v2670
    %v3216 = vpop.f32.mrf.mxu0
    %v3217 = vadd.f32 0.0, %v3216
    %v3218 = vpop.f32.mrf.mxu0
    %v3219 = vadd.f32 0.0, %v3218
    %v3220 = vpop.f32.mrf.mxu0
    %v3221 = vadd.f32 0.0, %v3220
    %v3222 = vpop.f32.mrf.mxu0
    %v3223 = vadd.f32 0.0, %v3222
    %3224 = vmatprep.mubr.bf16.mxu0 %v2677
    %3225 = vmatmul.mubr.bf16.gmra.mxu0 %v2676
    %v3226 = vpop.f32.mrf.mxu0
    %v3227 = vadd.f32 0.0, %v3226
    %v3228 = vpop.f32.mrf.mxu0
    %v3229 = vadd.f32 0.0, %v3228
    %v3230 = vpop.f32.mrf.mxu0
    %v3231 = vadd.f32 0.0, %v3230
    %v3232 = vpop.f32.mrf.mxu0
    %v3233 = vadd.f32 0.0, %v3232
    %3234 = vdwg.mxu0
    %3235 = vmatprep.subr.bf16.mxu0 %v3017
    %3236 = vmatpush1.bf16.msra.mxu0 %v3016
    %3237 = vmatprep.subr.bf16.mxu0 %v3015
    %3238 = vmatpush1.bf16.msra.mxu0 %v3014
    %3239 = vmatprep.subr.bf16.mxu0 %v3013
    %3240 = vmatpush1.bf16.msra.mxu0 %v3012
    %3241 = vmatprep.subr.bf16.mxu0 %v3011
    %3242 = vmatpush1.bf16.msra.mxu0 %v3010
    %3243 = vmatprep.subr.bf16.mxu0 %v3009
    %3244 = vmatpush1.bf16.msra.mxu0 %v3008
    %3245 = vmatprep.subr.bf16.mxu0 %v3007
    %3246 = vmatpush1.bf16.msra.mxu0 %v3006
    %3247 = vmatprep.subr.bf16.mxu0 %v3005
    %3248 = vmatpush1.bf16.msra.mxu0 %v3004
    %3249 = vmatprep.subr.bf16.mxu0 %v3003
    %3250 = vmatpush1.bf16.msra.mxu0 %v3002
    %3251 = vmatprep.subr.bf16.mxu0 %v3033
    %3252 = vmatpush2.bf16.msra.mxu0 %v3032
    %3253 = vmatprep.subr.bf16.mxu0 %v3031
    %3254 = vmatpush2.bf16.msra.mxu0 %v3030
    %3255 = vmatprep.subr.bf16.mxu0 %v3029
    %3256 = vmatpush2.bf16.msra.mxu0 %v3028
    %3257 = vmatprep.subr.bf16.mxu0 %v3027
    %3258 = vmatpush2.bf16.msra.mxu0 %v3026
    %3259 = vmatprep.subr.bf16.mxu0 %v3025
    %3260 = vmatpush2.bf16.msra.mxu0 %v3024
    %3261 = vmatprep.subr.bf16.mxu0 %v3023
    %3262 = vmatpush2.bf16.msra.mxu0 %v3022
    %3263 = vmatprep.subr.bf16.mxu0 %v3021
    %3264 = vmatpush2.bf16.msra.mxu0 %v3020
    %3265 = vmatprep.subr.bf16.mxu0 %v3019
    %3266 = vmatpush2.bf16.msra.mxu0 %v3018
    %3267 = vmatprep.mubr.bf16.mxu0 %v2661
    %3268 = vmatmul.mubr.bf16.gmra.mxu0 %v2660
    %v3269 = vpop.f32.mrf.mxu0
    %v3270 = vadd.f32 %v3197, %v3269
    %v3271 = vpop.f32.mrf.mxu0
    %v3272 = vadd.f32 %v3199, %v3271
    %v3273 = vpop.f32.mrf.mxu0
    %v3274 = vadd.f32 %v3201, %v3273
    %v3275 = vpop.f32.mrf.mxu0
    %v3276 = vadd.f32 %v3203, %v3275
    %3277 = vmatprep.mubr.bf16.mxu0 %v2667
    %3278 = vmatmul.mubr.bf16.gmra.mxu0 %v2666
    %v3279 = vpop.f32.mrf.mxu0
    %v3280 = vadd.f32 %v3207, %v3279
    %v3281 = vpop.f32.mrf.mxu0
    %v3282 = vadd.f32 %v3209, %v3281
    %v3283 = vpop.f32.mrf.mxu0
    %v3284 = vadd.f32 %v3211, %v3283
    %v3285 = vpop.f32.mrf.mxu0
    %v3286 = vadd.f32 %v3213, %v3285
    %3287 = vmatprep.mubr.bf16.mxu0 %v2673
    %3288 = vmatmul.mubr.bf16.gmra.mxu0 %v2672
    %v3289 = vpop.f32.mrf.mxu0
    %v3290 = vadd.f32 %v3217, %v3289
    %v3291 = vpop.f32.mrf.mxu0
    %v3292 = vadd.f32 %v3219, %v3291
    %v3293 = vpop.f32.mrf.mxu0
    %v3294 = vadd.f32 %v3221, %v3293
    %v3295 = vpop.f32.mrf.mxu0
    %v3296 = vadd.f32 %v3223, %v3295
    %3297 = vmatprep.mubr.bf16.mxu0 %v2679
    %3298 = vmatmul.mubr.bf16.gmra.mxu0 %v2678
    %v3299 = vpop.f32.mrf.mxu0
    %v3300 = vadd.f32 %v3227, %v3299
    %v3301 = vpop.f32.mrf.mxu0
    %v3302 = vadd.f32 %v3229, %v3301
    %v3303 = vpop.f32.mrf.mxu0
    %v3304 = vadd.f32 %v3231, %v3303
    %v3305 = vpop.f32.mrf.mxu0
    %v3306 = vadd.f32 %v3233, %v3305
    %3307 = vdwg.mxu0
    %3308 = vmatprep.subr.bf16.mxu0 %v3049
    %3309 = vmatpush1.bf16.msra.mxu0 %v3048
    %3310 = vmatprep.subr.bf16.mxu0 %v3047
    %3311 = vmatpush1.bf16.msra.mxu0 %v3046
    %3312 = vmatprep.subr.bf16.mxu0 %v3045
    %3313 = vmatpush1.bf16.msra.mxu0 %v3044
    %3314 = vmatprep.subr.bf16.mxu0 %v3043
    %3315 = vmatpush1.bf16.msra.mxu0 %v3042
    %3316 = vmatprep.subr.bf16.mxu0 %v3041
    %3317 = vmatpush1.bf16.msra.mxu0 %v3040
    %3318 = vmatprep.subr.bf16.mxu0 %v3039
    %3319 = vmatpush1.bf16.msra.mxu0 %v3038
    %3320 = vmatprep.subr.bf16.mxu0 %v3037
    %3321 = vmatpush1.bf16.msra.mxu0 %v3036
    %3322 = vmatprep.subr.bf16.mxu0 %v3035
    %3323 = vmatpush1.bf16.msra.mxu0 %v3034
    %3324 = vmatprep.subr.bf16.mxu0 %v3065
    %3325 = vmatpush2.bf16.msra.mxu0 %v3064
    %3326 = vmatprep.subr.bf16.mxu0 %v3063
    %3327 = vmatpush2.bf16.msra.mxu0 %v3062
    %3328 = vmatprep.subr.bf16.mxu0 %v3061
    %3329 = vmatpush2.bf16.msra.mxu0 %v3060
    %3330 = vmatprep.subr.bf16.mxu0 %v3059
    %3331 = vmatpush2.bf16.msra.mxu0 %v3058
    %3332 = vmatprep.subr.bf16.mxu0 %v3057
    %3333 = vmatpush2.bf16.msra.mxu0 %v3056
    %3334 = vmatprep.subr.bf16.mxu0 %v3055
    %3335 = vmatpush2.bf16.msra.mxu0 %v3054
    %3336 = vmatprep.subr.bf16.mxu0 %v3053
    %3337 = vmatpush2.bf16.msra.mxu0 %v3052
    %3338 = vmatprep.subr.bf16.mxu0 %v3051
    %3339 = vmatpush2.bf16.msra.mxu0 %v3050
    %3340 = vmatprep.mubr.bf16.mxu0 %v2663
    %3341 = vmatmul.mubr.bf16.gmra.mxu0 %v2662
    %v3342 = vpop.f32.mrf.mxu0
    %v3343 = vadd.f32 %v3270, %v3342
    %v3344 = vpop.f32.mrf.mxu0
    %v3345 = vadd.f32 %v3272, %v3344
    %v3346 = vpop.f32.mrf.mxu0
    %v3347 = vadd.f32 %v3274, %v3346
    %v3348 = vpop.f32.mrf.mxu0
    %v3349 = vadd.f32 %v3276, %v3348
    %3350 = vmatprep.mubr.bf16.mxu0 %v2669
    %3351 = vmatmul.mubr.bf16.gmra.mxu0 %v2668
    %v3352 = vpop.f32.mrf.mxu0
    %v3353 = vadd.f32 %v3280, %v3352
    %v3354 = vpop.f32.mrf.mxu0
    %v3355 = vadd.f32 %v3282, %v3354
    %v3356 = vpop.f32.mrf.mxu0
    %v3357 = vadd.f32 %v3284, %v3356
    %v3358 = vpop.f32.mrf.mxu0
    %v3359 = vadd.f32 %v3286, %v3358
    %3360 = vmatprep.mubr.bf16.mxu0 %v2675
    %3361 = vmatmul.mubr.bf16.gmra.mxu0 %v2674
    %v3362 = vpop.f32.mrf.mxu0
    %v3363 = vadd.f32 %v3290, %v3362
    %v3364 = vpop.f32.mrf.mxu0
    %v3365 = vadd.f32 %v3292, %v3364
    %v3366 = vpop.f32.mrf.mxu0
    %v3367 = vadd.f32 %v3294, %v3366
    %v3368 = vpop.f32.mrf.mxu0
    %v3369 = vadd.f32 %v3296, %v3368
    %3370 = vmatprep.mubr.bf16.mxu0 %v2681
    %3371 = vmatmul.mubr.bf16.gmra.mxu0 %v2680
    %v3372 = vpop.f32.mrf.mxu0
    %v3373 = vadd.f32 %v3300, %v3372
    %v3374 = vpop.f32.mrf.mxu0
    %v3375 = vadd.f32 %v3302, %v3374
    %v3376 = vpop.f32.mrf.mxu0
    %v3377 = vadd.f32 %v3304, %v3376
    %v3378 = vpop.f32.mrf.mxu0
    %v3379 = vadd.f32 %v3306, %v3378
    %3380 = vdwg.mxu0
    %v3382 = vlaneseq
    %v3383 = vshrl.u32 %v3382, 7
    %v3384 = vsub.s32 0, %v3383
    %v3385 = vrot.slane %v1575, %v3384
    %v3386 = vlaneseq
    %v3387 = vshrl.u32 %v3386, 7
    %v3388 = vsub.s32 1, %v3387
    %v3389 = vrot.slane %v1575, %v3388
    %v3392 = vmul.f32 %v3343, %v3385
    %v3393 = vmul.f32 %v3345, %v3389
    %v3394 = vmul.f32 %v3347, %v3385
    %v3395 = vmul.f32 %v3349, %v3389
    %v3396 = vmul.f32 %v3353, %v3385
    %v3397 = vmul.f32 %v3355, %v3389
    %v3398 = vmul.f32 %v3357, %v3385
    %v3399 = vmul.f32 %v3359, %v3389
    %v3400 = vmul.f32 %v3363, %v3385
    %v3401 = vmul.f32 %v3365, %v3389
    %v3402 = vmul.f32 %v3367, %v3385
    %v3403 = vmul.f32 %v3369, %v3389
    %v3404 = vmul.f32 %v3373, %v3385
    %v3405 = vmul.f32 %v3375, %v3389
    %v3406 = vmul.f32 %v3377, %v3385
    %v3407 = vmul.f32 %v3379, %v3389
    %v3409 = vlaneseq
    %v3410 = vshrl.u32 %v3409, 7
    %v3411 = vsub.s32 0, %v3410
    %v3412 = vrot.slane %v1576, %v3411
    %v3413 = vlaneseq
    %v3414 = vshrl.u32 %v3413, 7
    %v3415 = vsub.s32 1, %v3414
    %v3416 = vrot.slane %v1576, %v3415
    %v3419 = vadd.f32 %v3392, %v3412
    %v3420 = vadd.f32 %v3393, %v3416
    %v3421 = vadd.f32 %v3394, %v3412
    %v3422 = vadd.f32 %v3395, %v3416
    %v3423 = vadd.f32 %v3396, %v3412
    %v3424 = vadd.f32 %v3397, %v3416
    %v3425 = vadd.f32 %v3398, %v3412
    %v3426 = vadd.f32 %v3399, %v3416
    %v3427 = vadd.f32 %v3400, %v3412
    %v3428 = vadd.f32 %v3401, %v3416
    %v3429 = vadd.f32 %v3402, %v3412
    %v3430 = vadd.f32 %v3403, %v3416
    %v3431 = vadd.f32 %v3404, %v3412
    %v3432 = vadd.f32 %v3405, %v3416
    %v3433 = vadd.f32 %v3406, %v3412
    %v3434 = vadd.f32 %v3407, %v3416
    %v3435 = vadd.f32 %v3419, %v1365
    %v3436 = vadd.f32 %v3420, %v1366
    %v3437 = vadd.f32 %v3421, %v1367
    %v3438 = vadd.f32 %v3422, %v1368
    %v3439 = vadd.f32 %v3423, %v1369
    %v3440 = vadd.f32 %v3424, %v1370
    %v3441 = vadd.f32 %v3425, %v1371
    %v3442 = vadd.f32 %v3426, %v1372
    %v3443 = vadd.f32 %v3427, %v1373
    %v3444 = vadd.f32 %v3428, %v1374
    %v3445 = vadd.f32 %v3429, %v1375
    %v3446 = vadd.f32 %v3430, %v1376
    %v3447 = vadd.f32 %v3431, %v1377
    %v3448 = vadd.f32 %v3432, %v1378
    %v3449 = vadd.f32 %v3433, %v1379
    %v3450 = vadd.f32 %v3434, %v1380
    %v3451 = vmax.f32 %v3435, 0.0
    %v3452 = vmax.f32 %v3436, 0.0
    %v3453 = vmax.f32 %v3437, 0.0
    %v3454 = vmax.f32 %v3438, 0.0
    %v3455 = vmax.f32 %v3439, 0.0
    %v3456 = vmax.f32 %v3440, 0.0
    %v3457 = vmax.f32 %v3441, 0.0
    %v3458 = vmax.f32 %v3442, 0.0
    %v3459 = vmax.f32 %v3443, 0.0
    %v3460 = vmax.f32 %v3444, 0.0
    %v3461 = vmax.f32 %v3445, 0.0
    %v3462 = vmax.f32 %v3446, 0.0
    %v3463 = vmax.f32 %v3447, 0.0
    %v3464 = vmax.f32 %v3448, 0.0
    %v3465 = vmax.f32 %v3449, 0.0
    %v3466 = vmax.f32 %v3450, 0.0
    %v3467 = vld [vmem:[#allocation17] sm:$0xf]
    %v3468 = vld [vmem:[#allocation17 + $0x4] sm:$0xf]
    %v3469 = vld [vmem:[#allocation17 + $0x8] sm:$0xf]
    %v3470 = vld [vmem:[#allocation17 + $0xc] sm:$0xf]
    %v3471 = vld [vmem:[#allocation19] sm:$0xff]
    %v3472 = vld [vmem:[#allocation19 + $0x8] sm:$0xff]
    %v3473 = vld [vmem:[#allocation19 + $0x10] sm:$0xff]
    %v3474 = vld [vmem:[#allocation19 + $0x18] sm:$0xff]
    %v3475 = vld [vmem:[#allocation19 + $0x20] sm:$0xff]
    %v3476 = vld [vmem:[#allocation19 + $0x28] sm:$0xff]
    %v3477 = vld [vmem:[#allocation19 + $0x30] sm:$0xff]
    %v3478 = vld [vmem:[#allocation19 + $0x38] sm:$0xff]
    %v3479 = vld [vmem:[#allocation19 + $0x40] sm:$0xff]
    %v3480 = vld [vmem:[#allocation19 + $0x48] sm:$0xff]
    %v3481 = vld [vmem:[#allocation19 + $0x50] sm:$0xff]
    %v3482 = vld [vmem:[#allocation19 + $0x58] sm:$0xff]
    %v3483 = vld [vmem:[#allocation19 + $0x60] sm:$0xff]
    %v3484 = vld [vmem:[#allocation19 + $0x68] sm:$0xff]
    %v3485 = vld [vmem:[#allocation19 + $0x70] sm:$0xff]
    %v3486 = vld [vmem:[#allocation19 + $0x78] sm:$0xff]
    %v3487 = vld [vmem:[#allocation19 + $0x80] sm:$0xff]
    %v3488 = vld [vmem:[#allocation19 + $0x88] sm:$0xff]
    %v3489 = vld [vmem:[#allocation19 + $0x90] sm:$0xff]
    %v3490 = vld [vmem:[#allocation19 + $0x98] sm:$0xff]
    %v3491 = vld [vmem:[#allocation19 + $0xa0] sm:$0xff]
    %v3492 = vld [vmem:[#allocation19 + $0xa8] sm:$0xff]
    %v3493 = vld [vmem:[#allocation19 + $0xb0] sm:$0xff]
    %v3494 = vld [vmem:[#allocation19 + $0xb8] sm:$0xff]
    %v3495 = vld [vmem:[#allocation19 + $0xc0] sm:$0xff]
    %v3496 = vld [vmem:[#allocation19 + $0xc8] sm:$0xff]
    %v3497 = vld [vmem:[#allocation19 + $0xd0] sm:$0xff]
    %v3498 = vld [vmem:[#allocation19 + $0xd8] sm:$0xff]
    %v3499 = vld [vmem:[#allocation19 + $0xe0] sm:$0xff]
    %v3500 = vld [vmem:[#allocation19 + $0xe8] sm:$0xff]
    %v3501 = vld [vmem:[#allocation19 + $0xf0] sm:$0xff]
    %v3502 = vld [vmem:[#allocation19 + $0xf8] sm:$0xff]
    %v3503 = vld [vmem:[#allocation19 + $0x100] sm:$0xff]
    %v3504 = vld [vmem:[#allocation19 + $0x108] sm:$0xff]
    %v3505 = vld [vmem:[#allocation19 + $0x110] sm:$0xff]
    %v3506 = vld [vmem:[#allocation19 + $0x118] sm:$0xff]
    %v3507 = vld [vmem:[#allocation19 + $0x120] sm:$0xff]
    %v3508 = vld [vmem:[#allocation19 + $0x128] sm:$0xff]
    %v3509 = vld [vmem:[#allocation19 + $0x130] sm:$0xff]
    %v3510 = vld [vmem:[#allocation19 + $0x138] sm:$0xff]
    %v3511 = vld [vmem:[#allocation19 + $0x140] sm:$0xff]
    %v3512 = vld [vmem:[#allocation19 + $0x148] sm:$0xff]
    %v3513 = vld [vmem:[#allocation19 + $0x150] sm:$0xff]
    %v3514 = vld [vmem:[#allocation19 + $0x158] sm:$0xff]
    %v3515 = vld [vmem:[#allocation19 + $0x160] sm:$0xff]
    %v3516 = vld [vmem:[#allocation19 + $0x168] sm:$0xff]
    %v3517 = vld [vmem:[#allocation19 + $0x170] sm:$0xff]
    %v3518 = vld [vmem:[#allocation19 + $0x178] sm:$0xff]
    %v3519 = vld [vmem:[#allocation19 + $0x180] sm:$0xff]
    %v3520 = vld [vmem:[#allocation19 + $0x188] sm:$0xff]
    %v3521 = vld [vmem:[#allocation19 + $0x190] sm:$0xff]
    %v3522 = vld [vmem:[#allocation19 + $0x198] sm:$0xff]
    %v3523 = vld [vmem:[#allocation19 + $0x1a0] sm:$0xff]
    %v3524 = vld [vmem:[#allocation19 + $0x1a8] sm:$0xff]
    %v3525 = vld [vmem:[#allocation19 + $0x1b0] sm:$0xff]
    %v3526 = vld [vmem:[#allocation19 + $0x1b8] sm:$0xff]
    %v3527 = vld [vmem:[#allocation19 + $0x1c0] sm:$0xff]
    %v3528 = vld [vmem:[#allocation19 + $0x1c8] sm:$0xff]
    %v3529 = vld [vmem:[#allocation19 + $0x1d0] sm:$0xff]
    %v3530 = vld [vmem:[#allocation19 + $0x1d8] sm:$0xff]
    %v3531 = vld [vmem:[#allocation19 + $0x1e0] sm:$0xff]
    %v3532 = vld [vmem:[#allocation19 + $0x1e8] sm:$0xff]
    %v3533 = vld [vmem:[#allocation19 + $0x1f0] sm:$0xff]
    %v3534 = vld [vmem:[#allocation19 + $0x1f8] sm:$0xff]
    %v3535 = vld [vmem:[#allocation19 + $0x200] sm:$0xff]
    %v3536 = vld [vmem:[#allocation19 + $0x208] sm:$0xff]
    %v3537 = vld [vmem:[#allocation19 + $0x210] sm:$0xff]
    %v3538 = vld [vmem:[#allocation19 + $0x218] sm:$0xff]
    %v3539 = vld [vmem:[#allocation19 + $0x220] sm:$0xff]
    %v3540 = vld [vmem:[#allocation19 + $0x228] sm:$0xff]
    %v3541 = vld [vmem:[#allocation19 + $0x230] sm:$0xff]
    %v3542 = vld [vmem:[#allocation19 + $0x238] sm:$0xff]
    %v3543 = vld [vmem:[#allocation19 + $0x240] sm:$0xff]
    %v3544 = vld [vmem:[#allocation19 + $0x248] sm:$0xff]
    %v3545 = vld [vmem:[#allocation19 + $0x250] sm:$0xff]
    %v3546 = vld [vmem:[#allocation19 + $0x258] sm:$0xff]
    %v3547 = vld [vmem:[#allocation19 + $0x260] sm:$0xff]
    %v3548 = vld [vmem:[#allocation19 + $0x268] sm:$0xff]
    %v3549 = vld [vmem:[#allocation19 + $0x270] sm:$0xff]
    %v3550 = vld [vmem:[#allocation19 + $0x278] sm:$0xff]
    %v3551 = vld [vmem:[#allocation19 + $0x280] sm:$0xff]
    %v3552 = vld [vmem:[#allocation19 + $0x288] sm:$0xff]
    %v3553 = vld [vmem:[#allocation19 + $0x290] sm:$0xff]
    %v3554 = vld [vmem:[#allocation19 + $0x298] sm:$0xff]
    %v3555 = vld [vmem:[#allocation19 + $0x2a0] sm:$0xff]
    %v3556 = vld [vmem:[#allocation19 + $0x2a8] sm:$0xff]
    %v3557 = vld [vmem:[#allocation19 + $0x2b0] sm:$0xff]
    %v3558 = vld [vmem:[#allocation19 + $0x2b8] sm:$0xff]
    %v3559 = vld [vmem:[#allocation19 + $0x2c0] sm:$0xff]
    %v3560 = vld [vmem:[#allocation19 + $0x2c8] sm:$0xff]
    %v3561 = vld [vmem:[#allocation19 + $0x2d0] sm:$0xff]
    %v3562 = vld [vmem:[#allocation19 + $0x2d8] sm:$0xff]
    %v3563 = vld [vmem:[#allocation19 + $0x2e0] sm:$0xff]
    %v3564 = vld [vmem:[#allocation19 + $0x2e8] sm:$0xff]
    %v3565 = vld [vmem:[#allocation19 + $0x2f0] sm:$0xff]
    %v3566 = vld [vmem:[#allocation19 + $0x2f8] sm:$0xff]
    %v3567 = vld [vmem:[#allocation20] sm:$0x3]
    %v3568 = vld [vmem:[#allocation22] sm:$0x3]
    %v3569 = vld [vmem:[%s29] sm:$0xff]
    %v3570 = vld [vmem:[%s29 + $0x8] sm:$0xff]
    %v3571 = vld [vmem:[%s29 + $0x10] sm:$0xff]
    %v3572 = vld [vmem:[%s29 + $0x18] sm:$0xff]
    %v3573 = vld [vmem:[%s29 + $0x20] sm:$0xff]
    %v3574 = vld [vmem:[%s29 + $0x28] sm:$0xff]
    %v3575 = vld [vmem:[%s29 + $0x30] sm:$0xff]
    %v3576 = vld [vmem:[%s29 + $0x38] sm:$0xff]
    %v3577 = vld [vmem:[%s29 + $0x40] sm:$0xff]
    %v3578 = vld [vmem:[%s29 + $0x48] sm:$0xff]
    %v3579 = vld [vmem:[%s29 + $0x50] sm:$0xff]
    %v3580 = vld [vmem:[%s29 + $0x58] sm:$0xff]
    %v3581 = vld [vmem:[%s29 + $0x60] sm:$0xff]
    %v3582 = vld [vmem:[%s29 + $0x68] sm:$0xff]
    %v3583 = vld [vmem:[%s29 + $0x70] sm:$0xff]
    %v3584 = vld [vmem:[%s29 + $0x78] sm:$0xff]
    %v3585 = vld [vmem:[%s29 + $0x80] sm:$0xff]
    %v3586 = vld [vmem:[%s29 + $0x88] sm:$0xff]
    %v3587 = vld [vmem:[%s29 + $0x90] sm:$0xff]
    %v3588 = vld [vmem:[%s29 + $0x98] sm:$0xff]
    %v3589 = vld [vmem:[%s29 + $0xa0] sm:$0xff]
    %v3590 = vld [vmem:[%s29 + $0xa8] sm:$0xff]
    %v3591 = vld [vmem:[%s29 + $0xb0] sm:$0xff]
    %v3592 = vld [vmem:[%s29 + $0xb8] sm:$0xff]
    %v3593 = vld [vmem:[%s29 + $0xc0] sm:$0xff]
    %v3594 = vld [vmem:[%s29 + $0xc8] sm:$0xff]
    %v3595 = vld [vmem:[%s29 + $0xd0] sm:$0xff]
    %v3596 = vld [vmem:[%s29 + $0xd8] sm:$0xff]
    %v3597 = vld [vmem:[%s29 + $0xe0] sm:$0xff]
    %v3598 = vld [vmem:[%s29 + $0xe8] sm:$0xff]
    %v3599 = vld [vmem:[%s29 + $0xf0] sm:$0xff]
    %v3600 = vld [vmem:[%s29 + $0xf8] sm:$0xff]
    %v3601 = vld [vmem:[%s29 + $0x100] sm:$0xff]
    %v3602 = vld [vmem:[%s29 + $0x108] sm:$0xff]
    %v3603 = vld [vmem:[%s29 + $0x110] sm:$0xff]
    %v3604 = vld [vmem:[%s29 + $0x118] sm:$0xff]
    %v3605 = vld [vmem:[%s29 + $0x120] sm:$0xff]
    %v3606 = vld [vmem:[%s29 + $0x128] sm:$0xff]
    %v3607 = vld [vmem:[%s29 + $0x130] sm:$0xff]
    %v3608 = vld [vmem:[%s29 + $0x138] sm:$0xff]
    %v3609 = vld [vmem:[%s29 + $0x140] sm:$0xff]
    %v3610 = vld [vmem:[%s29 + $0x148] sm:$0xff]
    %v3611 = vld [vmem:[%s29 + $0x150] sm:$0xff]
    %v3612 = vld [vmem:[%s29 + $0x158] sm:$0xff]
    %v3613 = vld [vmem:[%s29 + $0x160] sm:$0xff]
    %v3614 = vld [vmem:[%s29 + $0x168] sm:$0xff]
    %v3615 = vld [vmem:[%s29 + $0x170] sm:$0xff]
    %v3616 = vld [vmem:[%s29 + $0x178] sm:$0xff]
    %v3617 = vld [vmem:[%s29 + $0x180] sm:$0xff]
    %v3618 = vld [vmem:[%s29 + $0x188] sm:$0xff]
    %v3619 = vld [vmem:[%s29 + $0x190] sm:$0xff]
    %v3620 = vld [vmem:[%s29 + $0x198] sm:$0xff]
    %v3621 = vld [vmem:[%s29 + $0x1a0] sm:$0xff]
    %v3622 = vld [vmem:[%s29 + $0x1a8] sm:$0xff]
    %v3623 = vld [vmem:[%s29 + $0x1b0] sm:$0xff]
    %v3624 = vld [vmem:[%s29 + $0x1b8] sm:$0xff]
    %v3625 = vld [vmem:[%s29 + $0x1c0] sm:$0xff]
    %v3626 = vld [vmem:[%s29 + $0x1c8] sm:$0xff]
    %v3627 = vld [vmem:[%s29 + $0x1d0] sm:$0xff]
    %v3628 = vld [vmem:[%s29 + $0x1d8] sm:$0xff]
    %v3629 = vld [vmem:[%s29 + $0x1e0] sm:$0xff]
    %v3630 = vld [vmem:[%s29 + $0x1e8] sm:$0xff]
    %v3631 = vld [vmem:[%s29 + $0x1f0] sm:$0xff]
    %v3632 = vld [vmem:[%s29 + $0x1f8] sm:$0xff]
    %v3633 = vld [vmem:[%s29 + $0x200] sm:$0xff]
    %v3634 = vld [vmem:[%s29 + $0x208] sm:$0xff]
    %v3635 = vld [vmem:[%s29 + $0x210] sm:$0xff]
    %v3636 = vld [vmem:[%s29 + $0x218] sm:$0xff]
    %v3637 = vld [vmem:[%s29 + $0x220] sm:$0xff]
    %v3638 = vld [vmem:[%s29 + $0x228] sm:$0xff]
    %v3639 = vld [vmem:[%s29 + $0x230] sm:$0xff]
    %v3640 = vld [vmem:[%s29 + $0x238] sm:$0xff]
    %v3641 = vld [vmem:[%s29 + $0x240] sm:$0xff]
    %v3642 = vld [vmem:[%s29 + $0x248] sm:$0xff]
    %v3643 = vld [vmem:[%s29 + $0x250] sm:$0xff]
    %v3644 = vld [vmem:[%s29 + $0x258] sm:$0xff]
    %v3645 = vld [vmem:[%s29 + $0x260] sm:$0xff]
    %v3646 = vld [vmem:[%s29 + $0x268] sm:$0xff]
    %v3647 = vld [vmem:[%s29 + $0x270] sm:$0xff]
    %v3648 = vld [vmem:[%s29 + $0x278] sm:$0xff]
    %v3649 = vld [vmem:[%s29 + $0x280] sm:$0xff]
    %v3650 = vld [vmem:[%s29 + $0x288] sm:$0xff]
    %v3651 = vld [vmem:[%s29 + $0x290] sm:$0xff]
    %v3652 = vld [vmem:[%s29 + $0x298] sm:$0xff]
    %v3653 = vld [vmem:[%s29 + $0x2a0] sm:$0xff]
    %v3654 = vld [vmem:[%s29 + $0x2a8] sm:$0xff]
    %v3655 = vld [vmem:[%s29 + $0x2b0] sm:$0xff]
    %v3656 = vld [vmem:[%s29 + $0x2b8] sm:$0xff]
    %v3657 = vld [vmem:[%s29 + $0x2c0] sm:$0xff]
    %v3658 = vld [vmem:[%s29 + $0x2c8] sm:$0xff]
    %v3659 = vld [vmem:[%s29 + $0x2d0] sm:$0xff]
    %v3660 = vld [vmem:[%s29 + $0x2d8] sm:$0xff]
    %v3661 = vld [vmem:[%s29 + $0x2e0] sm:$0xff]
    %v3662 = vld [vmem:[%s29 + $0x2e8] sm:$0xff]
    %v3663 = vld [vmem:[%s29 + $0x2f0] sm:$0xff]
    %v3664 = vld [vmem:[%s29 + $0x2f8] sm:$0xff]
    %v3665 = vld [vmem:[#allocation23] sm:$0x3]
    %v3666 = vld [vmem:[#allocation25] sm:$0x3]
    %v3667 = vld [vmem:[%s35] sm:$0xff]
    %v3668 = vld [vmem:[%s35 + $0x8] sm:$0xff]
    %v3669 = vld [vmem:[%s35 + $0x10] sm:$0xff]
    %v3670 = vld [vmem:[%s35 + $0x18] sm:$0xff]
    %v3671 = vld [vmem:[%s35 + $0x20] sm:$0xff]
    %v3672 = vld [vmem:[%s35 + $0x28] sm:$0xff]
    %v3673 = vld [vmem:[%s35 + $0x30] sm:$0xff]
    %v3674 = vld [vmem:[%s35 + $0x38] sm:$0xff]
    %v3675 = vld [vmem:[%s35 + $0x40] sm:$0xff]
    %v3676 = vld [vmem:[%s35 + $0x48] sm:$0xff]
    %v3677 = vld [vmem:[%s35 + $0x50] sm:$0xff]
    %v3678 = vld [vmem:[%s35 + $0x58] sm:$0xff]
    %v3679 = vld [vmem:[%s35 + $0x60] sm:$0xff]
    %v3680 = vld [vmem:[%s35 + $0x68] sm:$0xff]
    %v3681 = vld [vmem:[%s35 + $0x70] sm:$0xff]
    %v3682 = vld [vmem:[%s35 + $0x78] sm:$0xff]
    %v3683 = vld [vmem:[%s35 + $0x80] sm:$0xff]
    %v3684 = vld [vmem:[%s35 + $0x88] sm:$0xff]
    %v3685 = vld [vmem:[%s35 + $0x90] sm:$0xff]
    %v3686 = vld [vmem:[%s35 + $0x98] sm:$0xff]
    %v3687 = vld [vmem:[%s35 + $0xa0] sm:$0xff]
    %v3688 = vld [vmem:[%s35 + $0xa8] sm:$0xff]
    %v3689 = vld [vmem:[%s35 + $0xb0] sm:$0xff]
    %v3690 = vld [vmem:[%s35 + $0xb8] sm:$0xff]
    %v3691 = vld [vmem:[%s35 + $0xc0] sm:$0xff]
    %v3692 = vld [vmem:[%s35 + $0xc8] sm:$0xff]
    %v3693 = vld [vmem:[%s35 + $0xd0] sm:$0xff]
    %v3694 = vld [vmem:[%s35 + $0xd8] sm:$0xff]
    %v3695 = vld [vmem:[%s35 + $0xe0] sm:$0xff]
    %v3696 = vld [vmem:[%s35 + $0xe8] sm:$0xff]
    %v3697 = vld [vmem:[%s35 + $0xf0] sm:$0xff]
    %v3698 = vld [vmem:[%s35 + $0xf8] sm:$0xff]
    %v3699 = vld [vmem:[#allocation26] sm:$0x3]
    %v3700 = vld [vmem:[%s39] sm:$0x3]
    %v3717 = vrot.slane %v3451, 7
    %v3718 = vrot.slane %v3452, 7
    %v3719 = vrot.slane %v3453, 7
    %v3720 = vsel %vm694, %v3717, %v3719
    %v3721 = vrot.slane %v3454, 7
    %v3722 = vsel %vm694, %v3718, %v3721
    %v3723 = vrot.slane %v3455, 7
    %v3724 = vsel %vm694, %v3719, %v3723
    %v3725 = vrot.slane %v3456, 7
    %v3726 = vsel %vm694, %v3721, %v3725
    %v3727 = vrot.slane %v3457, 7
    %v3728 = vsel %vm694, %v3723, %v3727
    %v3729 = vrot.slane %v3458, 7
    %v3730 = vsel %vm694, %v3725, %v3729
    %v3731 = vrot.slane %v3459, 7
    %v3732 = vsel %vm694, %v3727, %v3731
    %v3733 = vrot.slane %v3460, 7
    %v3734 = vsel %vm694, %v3729, %v3733
    %v3735 = vrot.slane %v3461, 7
    %v3736 = vsel %vm694, %v3731, %v3735
    %v3737 = vrot.slane %v3462, 7
    %v3738 = vsel %vm694, %v3733, %v3737
    %v3739 = vrot.slane %v3463, 7
    %v3740 = vsel %vm694, %v3735, %v3739
    %v3741 = vrot.slane %v3464, 7
    %v3742 = vsel %vm694, %v3737, %v3741
    %v3743 = vrot.slane %v3465, 7
    %v3744 = vsel %vm694, %v3739, %v3743
    %v3745 = vrot.slane %v3466, 7
    %v3746 = vsel %vm694, %v3741, %v3745
    %v3763 = vsel %vm694, 0.0, %v3717
    %v3764 = vsel %vm694, 0.0, %v3718
    %v3765 = vrot.slane %v3451, 1
    %v3766 = vrot.slane %v3453, 1
    %v3767 = vsel %vm719, %v3765, %v3766
    %v3768 = vrot.slane %v3452, 1
    %v3769 = vrot.slane %v3454, 1
    %v3770 = vsel %vm719, %v3768, %v3769
    %v3771 = vrot.slane %v3455, 1
    %v3772 = vsel %vm719, %v3766, %v3771
    %v3773 = vrot.slane %v3456, 1
    %v3774 = vsel %vm719, %v3769, %v3773
    %v3775 = vrot.slane %v3457, 1
    %v3776 = vsel %vm719, %v3771, %v3775
    %v3777 = vrot.slane %v3458, 1
    %v3778 = vsel %vm719, %v3773, %v3777
    %v3779 = vrot.slane %v3459, 1
    %v3780 = vsel %vm719, %v3775, %v3779
    %v3781 = vrot.slane %v3460, 1
    %v3782 = vsel %vm719, %v3777, %v3781
    %v3783 = vrot.slane %v3461, 1
    %v3784 = vsel %vm719, %v3779, %v3783
    %v3785 = vrot.slane %v3462, 1
    %v3786 = vsel %vm719, %v3781, %v3785
    %v3787 = vrot.slane %v3463, 1
    %v3788 = vsel %vm719, %v3783, %v3787
    %v3789 = vrot.slane %v3464, 1
    %v3790 = vsel %vm719, %v3785, %v3789
    %v3791 = vrot.slane %v3465, 1
    %v3792 = vsel %vm719, %v3787, %v3791
    %v3793 = vrot.slane %v3466, 1
    %v3794 = vsel %vm719, %v3789, %v3793
    %v3811 = vsel %vm719, %v3791, 0.0
    %v3812 = vsel %vm719, %v3793, 0.0
    %v3813 = vsel %vm865, 0.0, %v3763
    %v3814 = vsel %vm865, 0.0, %v3764
    %v3815 = vsel %vm866, 0.0, %v3720
    %v3816 = vsel %vm866, 0.0, %v3722
    %v3817 = vsel %vm867, 0.0, %v3724
    %v3818 = vsel %vm867, 0.0, %v3726
    %v3819 = vsel %vm868, 0.0, %v3728
    %v3820 = vsel %vm868, 0.0, %v3730
    %v3821 = vsel %vm869, 0.0, %v3732
    %v3822 = vsel %vm869, 0.0, %v3734
    %v3823 = vsel %vm870, 0.0, %v3736
    %v3824 = vsel %vm870, 0.0, %v3738
    %v3825 = vsel %vm871, 0.0, %v3740
    %v3826 = vsel %vm871, 0.0, %v3742
    %v3827 = vsel %vm872, 0.0, %v3744
    %v3828 = vsel %vm872, 0.0, %v3746
    %v3829 = vsel %vm897, 0.0, %v3767
    %v3830 = vsel %vm897, 0.0, %v3770
    %v3831 = vsel %vm898, 0.0, %v3772
    %v3832 = vsel %vm898, 0.0, %v3774
    %v3833 = vsel %vm899, 0.0, %v3776
    %v3834 = vsel %vm899, 0.0, %v3778
    %v3835 = vsel %vm900, 0.0, %v3780
    %v3836 = vsel %vm900, 0.0, %v3782
    %v3837 = vsel %vm901, 0.0, %v3784
    %v3838 = vsel %vm901, 0.0, %v3786
    %v3839 = vsel %vm902, 0.0, %v3788
    %v3840 = vsel %vm902, 0.0, %v3790
    %v3841 = vsel %vm903, 0.0, %v3792
    %v3842 = vsel %vm903, 0.0, %v3794
    %v3843 = vsel %vm904, 0.0, %v3811
    %v3844 = vsel %vm904, 0.0, %v3812
    %v3845 = vpack.c.bf16 %v3815, %v3813
    %v3846 = vpack.c.bf16 %v3816, %v3814
    %v3847 = vpack.c.bf16 %v3453, %v3451
    %v3848 = vpack.c.bf16 %v3454, %v3452
    %v3849 = vpack.c.bf16 %v3831, %v3829
    %v3850 = vpack.c.bf16 %v3832, %v3830
    %v3851 = vpack.c.bf16 %v3819, %v3817
    %v3852 = vpack.c.bf16 %v3820, %v3818
    %v3853 = vpack.c.bf16 %v3457, %v3455
    %v3854 = vpack.c.bf16 %v3458, %v3456
    %v3855 = vpack.c.bf16 %v3835, %v3833
    %v3856 = vpack.c.bf16 %v3836, %v3834
    %v3857 = vpack.c.bf16 %v3823, %v3821
    %v3858 = vpack.c.bf16 %v3824, %v3822
    %v3859 = vpack.c.bf16 %v3461, %v3459
    %v3860 = vpack.c.bf16 %v3462, %v3460
    %v3861 = vpack.c.bf16 %v3839, %v3837
    %v3862 = vpack.c.bf16 %v3840, %v3838
    %v3863 = vpack.c.bf16 %v3827, %v3825
    %v3864 = vpack.c.bf16 %v3828, %v3826
    %v3865 = vpack.c.bf16 %v3465, %v3463
    %v3866 = vpack.c.bf16 %v3466, %v3464
    %v3867 = vpack.c.bf16 %v3843, %v3841
    %v3868 = vpack.c.bf16 %v3844, %v3842
    %v3873 = vunpack.c.l.b16 %v3467
    %v3874 = vunpack.c.l.b16 %v3468
    %v3875 = vunpack.c.l.b16 %v3469
    %v3876 = vunpack.c.l.b16 %v3470
    %v3877 = vpack.c.b16 %v3874, %v3873
    %v3878 = vpack.c.b16 %v3876, %v3875
    %vm3879 = vcmask 523264
    %v3881 = vsel %vm3879, %v3877, 0
    %v3884 = vsel %vm3879, %v3878, 0
    %3886 = vmatprep.subr.bf16.mxu0 0
    %3887 = vmatpush1.bf16.msra.mxu0 0
    %3888 = vmatprep.subr.bf16.mxu0 0
    %3889 = vmatpush1.bf16.msra.mxu0 0
    %3890 = vmatprep.subr.bf16.mxu0 0
    %3891 = vmatpush1.bf16.msra.mxu0 0
    %3892 = vmatprep.subr.bf16.mxu0 0
    %3893 = vmatpush1.bf16.msra.mxu0 0
    %3894 = vmatprep.subr.bf16.mxu0 %v3864
    %3895 = vmatpush1.bf16.msra.mxu0 %v3863
    %3896 = vmatprep.subr.bf16.mxu0 %v3858
    %3897 = vmatpush1.bf16.msra.mxu0 %v3857
    %3898 = vmatprep.subr.bf16.mxu0 %v3852
    %3899 = vmatpush1.bf16.msra.mxu0 %v3851
    %3900 = vmatprep.subr.bf16.mxu0 %v3846
    %3901 = vmatpush1.bf16.msra.mxu0 %v3845
    %3902 = vmatprep.subr.bf16.mxu0 0
    %3903 = vmatpush2.bf16.msra.mxu0 0
    %3904 = vmatprep.subr.bf16.mxu0 0
    %3905 = vmatpush2.bf16.msra.mxu0 0
    %3906 = vmatprep.subr.bf16.mxu0 0
    %3907 = vmatpush2.bf16.msra.mxu0 0
    %3908 = vmatprep.subr.bf16.mxu0 0
    %3909 = vmatpush2.bf16.msra.mxu0 0
    %3910 = vmatprep.subr.bf16.mxu0 0
    %3911 = vmatpush2.bf16.msra.mxu0 0
    %3912 = vmatprep.subr.bf16.mxu0 0
    %3913 = vmatpush2.bf16.msra.mxu0 0
    %3914 = vmatprep.subr.bf16.mxu0 0
    %3915 = vmatpush2.bf16.msra.mxu0 0
    %3916 = vmatprep.subr.bf16.mxu0 0
    %3917 = vmatpush2.bf16.msra.mxu0 0
    %3918 = vmatprep.mubr.bf16.mxu0 0
    %3919 = vmatmul.mubr.bf16.gmra.mxu0 %v3881
    %v3920 = vpop.f32.mrf.mxu0
    %v3921 = vadd.f32 0.0, %v3920
    %v3922 = vpop.f32.mrf.mxu0
    %v3923 = vadd.f32 0.0, %v3922
    %v3924 = vpop.f32.mrf.mxu0
    %v3925 = vadd.f32 0.0, %v3924
    %v3926 = vpop.f32.mrf.mxu0
    %v3927 = vadd.f32 0.0, %v3926
    %3928 = vmatprep.mubr.bf16.mxu0 0
    %3929 = vmatmul.mubr.bf16.gmra.mxu0 %v3884
    %v3930 = vpop.f32.mrf.mxu0
    %v3931 = vadd.f32 0.0, %v3930
    %v3932 = vpop.f32.mrf.mxu0
    %v3933 = vadd.f32 0.0, %v3932
    %v3934 = vpop.f32.mrf.mxu0
    %v3935 = vadd.f32 0.0, %v3934
    %v3936 = vpop.f32.mrf.mxu0
    %v3937 = vadd.f32 0.0, %v3936
    %3938 = vdwg.mxu0
    %3939 = vmatprep.subr.bf16.mxu0 0
    %3940 = vmatpush1.bf16.msra.mxu0 0
    %3941 = vmatprep.subr.bf16.mxu0 0
    %3942 = vmatpush1.bf16.msra.mxu0 0
    %3943 = vmatprep.subr.bf16.mxu0 0
    %3944 = vmatpush1.bf16.msra.mxu0 0
    %3945 = vmatprep.subr.bf16.mxu0 0
    %3946 = vmatpush1.bf16.msra.mxu0 0
    %3947 = vmatprep.subr.bf16.mxu0 %v3866
    %3948 = vmatpush1.bf16.msra.mxu0 %v3865
    %3949 = vmatprep.subr.bf16.mxu0 %v3860
    %3950 = vmatpush1.bf16.msra.mxu0 %v3859
    %3951 = vmatprep.subr.bf16.mxu0 %v3854
    %3952 = vmatpush1.bf16.msra.mxu0 %v3853
    %3953 = vmatprep.subr.bf16.mxu0 %v3848
    %3954 = vmatpush1.bf16.msra.mxu0 %v3847
    %3955 = vmatprep.subr.bf16.mxu0 0
    %3956 = vmatpush2.bf16.msra.mxu0 0
    %3957 = vmatprep.subr.bf16.mxu0 0
    %3958 = vmatpush2.bf16.msra.mxu0 0
    %3959 = vmatprep.subr.bf16.mxu0 0
    %3960 = vmatpush2.bf16.msra.mxu0 0
    %3961 = vmatprep.subr.bf16.mxu0 0
    %3962 = vmatpush2.bf16.msra.mxu0 0
    %3963 = vmatprep.subr.bf16.mxu0 0
    %3964 = vmatpush2.bf16.msra.mxu0 0
    %3965 = vmatprep.subr.bf16.mxu0 0
    %3966 = vmatpush2.bf16.msra.mxu0 0
    %3967 = vmatprep.subr.bf16.mxu0 0
    %3968 = vmatpush2.bf16.msra.mxu0 0
    %3969 = vmatprep.subr.bf16.mxu0 0
    %3970 = vmatpush2.bf16.msra.mxu0 0
    %3971 = vmatprep.mubr.bf16.mxu0 0
    %3972 = vmatmul.mubr.bf16.gmra.mxu0 %v3881
    %v3973 = vpop.f32.mrf.mxu0
    %v3974 = vadd.f32 0.0, %v3973
    %v3975 = vpop.f32.mrf.mxu0
    %v3976 = vadd.f32 0.0, %v3975
    %v3977 = vpop.f32.mrf.mxu0
    %v3978 = vadd.f32 0.0, %v3977
    %v3979 = vpop.f32.mrf.mxu0
    %v3980 = vadd.f32 0.0, %v3979
    %3981 = vmatprep.mubr.bf16.mxu0 0
    %3982 = vmatmul.mubr.bf16.gmra.mxu0 %v3884
    %v3983 = vpop.f32.mrf.mxu0
    %v3984 = vadd.f32 0.0, %v3983
    %v3985 = vpop.f32.mrf.mxu0
    %v3986 = vadd.f32 0.0, %v3985
    %v3987 = vpop.f32.mrf.mxu0
    %v3988 = vadd.f32 0.0, %v3987
    %v3989 = vpop.f32.mrf.mxu0
    %v3990 = vadd.f32 0.0, %v3989
    %3991 = vdwg.mxu0
    %3992 = vmatprep.subr.bf16.mxu0 0
    %3993 = vmatpush1.bf16.msra.mxu0 0
    %3994 = vmatprep.subr.bf16.mxu0 0
    %3995 = vmatpush1.bf16.msra.mxu0 0
    %3996 = vmatprep.subr.bf16.mxu0 0
    %3997 = vmatpush1.bf16.msra.mxu0 0
    %3998 = vmatprep.subr.bf16.mxu0 0
    %3999 = vmatpush1.bf16.msra.mxu0 0
    %4000 = vmatprep.subr.bf16.mxu0 %v3868
    %4001 = vmatpush1.bf16.msra.mxu0 %v3867
    %4002 = vmatprep.subr.bf16.mxu0 %v3862
    %4003 = vmatpush1.bf16.msra.mxu0 %v3861
    %4004 = vmatprep.subr.bf16.mxu0 %v3856
    %4005 = vmatpush1.bf16.msra.mxu0 %v3855
    %4006 = vmatprep.subr.bf16.mxu0 %v3850
    %4007 = vmatpush1.bf16.msra.mxu0 %v3849
    %4008 = vmatprep.subr.bf16.mxu0 0
    %4009 = vmatpush2.bf16.msra.mxu0 0
    %4010 = vmatprep.subr.bf16.mxu0 0
    %4011 = vmatpush2.bf16.msra.mxu0 0
    %4012 = vmatprep.subr.bf16.mxu0 0
    %4013 = vmatpush2.bf16.msra.mxu0 0
    %4014 = vmatprep.subr.bf16.mxu0 0
    %4015 = vmatpush2.bf16.msra.mxu0 0
    %4016 = vmatprep.subr.bf16.mxu0 0
    %4017 = vmatpush2.bf16.msra.mxu0 0
    %4018 = vmatprep.subr.bf16.mxu0 0
    %4019 = vmatpush2.bf16.msra.mxu0 0
    %4020 = vmatprep.subr.bf16.mxu0 0
    %4021 = vmatpush2.bf16.msra.mxu0 0
    %4022 = vmatprep.subr.bf16.mxu0 0
    %4023 = vmatpush2.bf16.msra.mxu0 0
    %4024 = vmatprep.mubr.bf16.mxu0 0
    %4025 = vmatmul.mubr.bf16.gmra.mxu0 %v3881
    %v4026 = vpop.f32.mrf.mxu0
    %v4027 = vadd.f32 0.0, %v4026
    %v4028 = vpop.f32.mrf.mxu0
    %v4029 = vadd.f32 0.0, %v4028
    %v4030 = vpop.f32.mrf.mxu0
    %v4031 = vadd.f32 0.0, %v4030
    %v4032 = vpop.f32.mrf.mxu0
    %v4033 = vadd.f32 0.0, %v4032
    %4034 = vmatprep.mubr.bf16.mxu0 0
    %4035 = vmatmul.mubr.bf16.gmra.mxu0 %v3884
    %v4036 = vpop.f32.mrf.mxu0
    %v4037 = vadd.f32 0.0, %v4036
    %v4038 = vpop.f32.mrf.mxu0
    %v4039 = vadd.f32 0.0, %v4038
    %v4040 = vpop.f32.mrf.mxu0
    %v4041 = vadd.f32 0.0, %v4040
    %v4042 = vpop.f32.mrf.mxu0
    %v4043 = vadd.f32 0.0, %v4042
    %4044 = vdwg.mxu0
    %v4045 = vpack.c.bf16 %v3925, %v3921
    %v4046 = vpack.c.bf16 %v3927, %v3923
    %v4047 = vpack.c.bf16 %v3978, %v3974
    %v4048 = vpack.c.bf16 %v3980, %v3976
    %v4049 = vpack.c.bf16 %v4031, %v4027
    %v4050 = vpack.c.bf16 %v4033, %v4029
    %v4051 = vpack.c.bf16 %v3935, %v3931
    %v4052 = vpack.c.bf16 %v3937, %v3933
    %v4053 = vpack.c.bf16 %v3988, %v3984
    %v4054 = vpack.c.bf16 %v3990, %v3986
    %v4055 = vpack.c.bf16 %v4041, %v4037
    %v4056 = vpack.c.bf16 %v4043, %v4039
    %v4153 = vunpack.c.l.b16 %v3471
    %v4154 = vunpack.c.h.b16 %v3471
    %v4155 = vunpack.c.l.b16 %v3472
    %v4156 = vunpack.c.h.b16 %v3472
    %v4157 = vunpack.c.l.b16 %v3473
    %v4158 = vunpack.c.h.b16 %v3473
    %v4159 = vunpack.c.l.b16 %v3474
    %v4160 = vunpack.c.h.b16 %v3474
    %v4161 = vunpack.c.l.b16 %v3475
    %v4162 = vunpack.c.h.b16 %v3475
    %v4163 = vunpack.c.l.b16 %v3476
    %v4164 = vunpack.c.h.b16 %v3476
    %v4165 = vunpack.c.l.b16 %v3477
    %v4166 = vunpack.c.h.b16 %v3477
    %v4167 = vunpack.c.l.b16 %v3478
    %v4168 = vunpack.c.h.b16 %v3478
    %v4169 = vunpack.c.l.b16 %v3479
    %v4170 = vunpack.c.h.b16 %v3479
    %v4171 = vunpack.c.l.b16 %v3480
    %v4172 = vunpack.c.h.b16 %v3480
    %v4173 = vunpack.c.l.b16 %v3481
    %v4174 = vunpack.c.h.b16 %v3481
    %v4175 = vunpack.c.l.b16 %v3482
    %v4176 = vunpack.c.h.b16 %v3482
    %v4177 = vunpack.c.l.b16 %v3483
    %v4178 = vunpack.c.h.b16 %v3483
    %v4179 = vunpack.c.l.b16 %v3484
    %v4180 = vunpack.c.h.b16 %v3484
    %v4181 = vunpack.c.l.b16 %v3485
    %v4182 = vunpack.c.h.b16 %v3485
    %v4183 = vunpack.c.l.b16 %v3486
    %v4184 = vunpack.c.h.b16 %v3486
    %v4185 = vunpack.c.l.b16 %v3487
    %v4186 = vunpack.c.h.b16 %v3487
    %v4187 = vunpack.c.l.b16 %v3488
    %v4188 = vunpack.c.h.b16 %v3488
    %v4189 = vunpack.c.l.b16 %v3489
    %v4190 = vunpack.c.h.b16 %v3489
    %v4191 = vunpack.c.l.b16 %v3490
    %v4192 = vunpack.c.h.b16 %v3490
    %v4193 = vunpack.c.l.b16 %v3491
    %v4194 = vunpack.c.h.b16 %v3491
    %v4195 = vunpack.c.l.b16 %v3492
    %v4196 = vunpack.c.h.b16 %v3492
    %v4197 = vunpack.c.l.b16 %v3493
    %v4198 = vunpack.c.h.b16 %v3493
    %v4199 = vunpack.c.l.b16 %v3494
    %v4200 = vunpack.c.h.b16 %v3494
    %v4201 = vunpack.c.l.b16 %v3495
    %v4202 = vunpack.c.h.b16 %v3495
    %v4203 = vunpack.c.l.b16 %v3496
    %v4204 = vunpack.c.h.b16 %v3496
    %v4205 = vunpack.c.l.b16 %v3497
    %v4206 = vunpack.c.h.b16 %v3497
    %v4207 = vunpack.c.l.b16 %v3498
    %v4208 = vunpack.c.h.b16 %v3498
    %v4209 = vunpack.c.l.b16 %v3499
    %v4210 = vunpack.c.h.b16 %v3499
    %v4211 = vunpack.c.l.b16 %v3500
    %v4212 = vunpack.c.h.b16 %v3500
    %v4213 = vunpack.c.l.b16 %v3501
    %v4214 = vunpack.c.h.b16 %v3501
    %v4215 = vunpack.c.l.b16 %v3502
    %v4216 = vunpack.c.h.b16 %v3502
    %v4217 = vunpack.c.l.b16 %v3503
    %v4218 = vunpack.c.h.b16 %v3503
    %v4219 = vunpack.c.l.b16 %v3504
    %v4220 = vunpack.c.h.b16 %v3504
    %v4221 = vunpack.c.l.b16 %v3505
    %v4222 = vunpack.c.h.b16 %v3505
    %v4223 = vunpack.c.l.b16 %v3506
    %v4224 = vunpack.c.h.b16 %v3506
    %v4225 = vunpack.c.l.b16 %v3507
    %v4226 = vunpack.c.h.b16 %v3507
    %v4227 = vunpack.c.l.b16 %v3508
    %v4228 = vunpack.c.h.b16 %v3508
    %v4229 = vunpack.c.l.b16 %v3509
    %v4230 = vunpack.c.h.b16 %v3509
    %v4231 = vunpack.c.l.b16 %v3510
    %v4232 = vunpack.c.h.b16 %v3510
    %v4233 = vunpack.c.l.b16 %v3511
    %v4234 = vunpack.c.h.b16 %v3511
    %v4235 = vunpack.c.l.b16 %v3512
    %v4236 = vunpack.c.h.b16 %v3512
    %v4237 = vunpack.c.l.b16 %v3513
    %v4238 = vunpack.c.h.b16 %v3513
    %v4239 = vunpack.c.l.b16 %v3514
    %v4240 = vunpack.c.h.b16 %v3514
    %v4241 = vunpack.c.l.b16 %v3515
    %v4242 = vunpack.c.h.b16 %v3515
    %v4243 = vunpack.c.l.b16 %v3516
    %v4244 = vunpack.c.h.b16 %v3516
    %v4245 = vunpack.c.l.b16 %v3517
    %v4246 = vunpack.c.h.b16 %v3517
    %v4247 = vunpack.c.l.b16 %v3518
    %v4248 = vunpack.c.h.b16 %v3518
    %v4249 = vunpack.c.l.b16 %v3519
    %v4250 = vunpack.c.h.b16 %v3519
    %v4251 = vunpack.c.l.b16 %v3520
    %v4252 = vunpack.c.h.b16 %v3520
    %v4253 = vunpack.c.l.b16 %v3521
    %v4254 = vunpack.c.h.b16 %v3521
    %v4255 = vunpack.c.l.b16 %v3522
    %v4256 = vunpack.c.h.b16 %v3522
    %v4257 = vunpack.c.l.b16 %v3523
    %v4258 = vunpack.c.h.b16 %v3523
    %v4259 = vunpack.c.l.b16 %v3524
    %v4260 = vunpack.c.h.b16 %v3524
    %v4261 = vunpack.c.l.b16 %v3525
    %v4262 = vunpack.c.h.b16 %v3525
    %v4263 = vunpack.c.l.b16 %v3526
    %v4264 = vunpack.c.h.b16 %v3526
    %v4265 = vunpack.c.l.b16 %v3527
    %v4266 = vunpack.c.h.b16 %v3527
    %v4267 = vunpack.c.l.b16 %v3528
    %v4268 = vunpack.c.h.b16 %v3528
    %v4269 = vunpack.c.l.b16 %v3529
    %v4270 = vunpack.c.h.b16 %v3529
    %v4271 = vunpack.c.l.b16 %v3530
    %v4272 = vunpack.c.h.b16 %v3530
    %v4273 = vunpack.c.l.b16 %v3531
    %v4274 = vunpack.c.h.b16 %v3531
    %v4275 = vunpack.c.l.b16 %v3532
    %v4276 = vunpack.c.h.b16 %v3532
    %v4277 = vunpack.c.l.b16 %v3533
    %v4278 = vunpack.c.h.b16 %v3533
    %v4279 = vunpack.c.l.b16 %v3534
    %v4280 = vunpack.c.h.b16 %v3534
    %v4281 = vunpack.c.l.b16 %v3535
    %v4282 = vunpack.c.h.b16 %v3535
    %v4283 = vunpack.c.l.b16 %v3536
    %v4284 = vunpack.c.h.b16 %v3536
    %v4285 = vunpack.c.l.b16 %v3537
    %v4286 = vunpack.c.h.b16 %v3537
    %v4287 = vunpack.c.l.b16 %v3538
    %v4288 = vunpack.c.h.b16 %v3538
    %v4289 = vunpack.c.l.b16 %v3539
    %v4290 = vunpack.c.h.b16 %v3539
    %v4291 = vunpack.c.l.b16 %v3540
    %v4292 = vunpack.c.h.b16 %v3540
    %v4293 = vunpack.c.l.b16 %v3541
    %v4294 = vunpack.c.h.b16 %v3541
    %v4295 = vunpack.c.l.b16 %v3542
    %v4296 = vunpack.c.h.b16 %v3542
    %v4297 = vunpack.c.l.b16 %v3543
    %v4298 = vunpack.c.h.b16 %v3543
    %v4299 = vunpack.c.l.b16 %v3544
    %v4300 = vunpack.c.h.b16 %v3544
    %v4301 = vunpack.c.l.b16 %v3545
    %v4302 = vunpack.c.h.b16 %v3545
    %v4303 = vunpack.c.l.b16 %v3546
    %v4304 = vunpack.c.h.b16 %v3546
    %v4305 = vunpack.c.l.b16 %v3547
    %v4306 = vunpack.c.h.b16 %v3547
    %v4307 = vunpack.c.l.b16 %v3548
    %v4308 = vunpack.c.h.b16 %v3548
    %v4309 = vunpack.c.l.b16 %v3549
    %v4310 = vunpack.c.h.b16 %v3549
    %v4311 = vunpack.c.l.b16 %v3550
    %v4312 = vunpack.c.h.b16 %v3550
    %v4313 = vunpack.c.l.b16 %v3551
    %v4314 = vunpack.c.h.b16 %v3551
    %v4315 = vunpack.c.l.b16 %v3552
    %v4316 = vunpack.c.h.b16 %v3552
    %v4317 = vunpack.c.l.b16 %v3553
    %v4318 = vunpack.c.h.b16 %v3553
    %v4319 = vunpack.c.l.b16 %v3554
    %v4320 = vunpack.c.h.b16 %v3554
    %v4321 = vunpack.c.l.b16 %v3555
    %v4322 = vunpack.c.h.b16 %v3555
    %v4323 = vunpack.c.l.b16 %v3556
    %v4324 = vunpack.c.h.b16 %v3556
    %v4325 = vunpack.c.l.b16 %v3557
    %v4326 = vunpack.c.h.b16 %v3557
    %v4327 = vunpack.c.l.b16 %v3558
    %v4328 = vunpack.c.h.b16 %v3558
    %v4329 = vunpack.c.l.b16 %v3559
    %v4330 = vunpack.c.h.b16 %v3559
    %v4331 = vunpack.c.l.b16 %v3560
    %v4332 = vunpack.c.h.b16 %v3560
    %v4333 = vunpack.c.l.b16 %v3561
    %v4334 = vunpack.c.h.b16 %v3561
    %v4335 = vunpack.c.l.b16 %v3562
    %v4336 = vunpack.c.h.b16 %v3562
    %v4337 = vunpack.c.l.b16 %v3563
    %v4338 = vunpack.c.h.b16 %v3563
    %v4339 = vunpack.c.l.b16 %v3564
    %v4340 = vunpack.c.h.b16 %v3564
    %v4341 = vunpack.c.l.b16 %v3565
    %v4342 = vunpack.c.h.b16 %v3565
    %v4343 = vunpack.c.l.b16 %v3566
    %v4344 = vunpack.c.h.b16 %v3566
    %v4345 = vpack.c.b16 %v4155, %v4153
    %v4346 = vpack.c.b16 %v4156, %v4154
    %v4347 = vpack.c.b16 %v4159, %v4157
    %v4348 = vpack.c.b16 %v4160, %v4158
    %v4349 = vpack.c.b16 %v4163, %v4161
    %v4350 = vpack.c.b16 %v4164, %v4162
    %v4351 = vpack.c.b16 %v4167, %v4165
    %v4352 = vpack.c.b16 %v4168, %v4166
    %v4353 = vpack.c.b16 %v4171, %v4169
    %v4354 = vpack.c.b16 %v4172, %v4170
    %v4355 = vpack.c.b16 %v4175, %v4173
    %v4356 = vpack.c.b16 %v4176, %v4174
    %v4357 = vpack.c.b16 %v4179, %v4177
    %v4358 = vpack.c.b16 %v4180, %v4178
    %v4359 = vpack.c.b16 %v4183, %v4181
    %v4360 = vpack.c.b16 %v4184, %v4182
    %v4361 = vpack.c.b16 %v4187, %v4185
    %v4362 = vpack.c.b16 %v4188, %v4186
    %v4363 = vpack.c.b16 %v4191, %v4189
    %v4364 = vpack.c.b16 %v4192, %v4190
    %v4365 = vpack.c.b16 %v4195, %v4193
    %v4366 = vpack.c.b16 %v4196, %v4194
    %v4367 = vpack.c.b16 %v4199, %v4197
    %v4368 = vpack.c.b16 %v4200, %v4198
    %v4369 = vpack.c.b16 %v4203, %v4201
    %v4370 = vpack.c.b16 %v4204, %v4202
    %v4371 = vpack.c.b16 %v4207, %v4205
    %v4372 = vpack.c.b16 %v4208, %v4206
    %v4373 = vpack.c.b16 %v4211, %v4209
    %v4374 = vpack.c.b16 %v4212, %v4210
    %v4375 = vpack.c.b16 %v4215, %v4213
    %v4376 = vpack.c.b16 %v4216, %v4214
    %v4377 = vpack.c.b16 %v4219, %v4217
    %v4378 = vpack.c.b16 %v4220, %v4218
    %v4379 = vpack.c.b16 %v4223, %v4221
    %v4380 = vpack.c.b16 %v4224, %v4222
    %v4381 = vpack.c.b16 %v4227, %v4225
    %v4382 = vpack.c.b16 %v4228, %v4226
    %v4383 = vpack.c.b16 %v4231, %v4229
    %v4384 = vpack.c.b16 %v4232, %v4230
    %v4385 = vpack.c.b16 %v4235, %v4233
    %v4386 = vpack.c.b16 %v4236, %v4234
    %v4387 = vpack.c.b16 %v4239, %v4237
    %v4388 = vpack.c.b16 %v4240, %v4238
    %v4389 = vpack.c.b16 %v4243, %v4241
    %v4390 = vpack.c.b16 %v4244, %v4242
    %v4391 = vpack.c.b16 %v4247, %v4245
    %v4392 = vpack.c.b16 %v4248, %v4246
    %v4393 = vpack.c.b16 %v4251, %v4249
    %v4394 = vpack.c.b16 %v4252, %v4250
    %v4395 = vpack.c.b16 %v4255, %v4253
    %v4396 = vpack.c.b16 %v4256, %v4254
    %v4397 = vpack.c.b16 %v4259, %v4257
    %v4398 = vpack.c.b16 %v4260, %v4258
    %v4399 = vpack.c.b16 %v4263, %v4261
    %v4400 = vpack.c.b16 %v4264, %v4262
    %v4401 = vpack.c.b16 %v4267, %v4265
    %v4402 = vpack.c.b16 %v4268, %v4266
    %v4403 = vpack.c.b16 %v4271, %v4269
    %v4404 = vpack.c.b16 %v4272, %v4270
    %v4405 = vpack.c.b16 %v4275, %v4273
    %v4406 = vpack.c.b16 %v4276, %v4274
    %v4407 = vpack.c.b16 %v4279, %v4277
    %v4408 = vpack.c.b16 %v4280, %v4278
    %v4409 = vpack.c.b16 %v4283, %v4281
    %v4410 = vpack.c.b16 %v4284, %v4282
    %v4411 = vpack.c.b16 %v4287, %v4285
    %v4412 = vpack.c.b16 %v4288, %v4286
    %v4413 = vpack.c.b16 %v4291, %v4289
    %v4414 = vpack.c.b16 %v4292, %v4290
    %v4415 = vpack.c.b16 %v4295, %v4293
    %v4416 = vpack.c.b16 %v4296, %v4294
    %v4417 = vpack.c.b16 %v4299, %v4297
    %v4418 = vpack.c.b16 %v4300, %v4298
    %v4419 = vpack.c.b16 %v4303, %v4301
    %v4420 = vpack.c.b16 %v4304, %v4302
    %v4421 = vpack.c.b16 %v4307, %v4305
    %v4422 = vpack.c.b16 %v4308, %v4306
    %v4423 = vpack.c.b16 %v4311, %v4309
    %v4424 = vpack.c.b16 %v4312, %v4310
    %v4425 = vpack.c.b16 %v4315, %v4313
    %v4426 = vpack.c.b16 %v4316, %v4314
    %v4427 = vpack.c.b16 %v4319, %v4317
    %v4428 = vpack.c.b16 %v4320, %v4318
    %v4429 = vpack.c.b16 %v4323, %v4321
    %v4430 = vpack.c.b16 %v4324, %v4322
    %v4431 = vpack.c.b16 %v4327, %v4325
    %v4432 = vpack.c.b16 %v4328, %v4326
    %v4433 = vpack.c.b16 %v4331, %v4329
    %v4434 = vpack.c.b16 %v4332, %v4330
    %v4435 = vpack.c.b16 %v4335, %v4333
    %v4436 = vpack.c.b16 %v4336, %v4334
    %v4437 = vpack.c.b16 %v4339, %v4337
    %v4438 = vpack.c.b16 %v4340, %v4338
    %v4439 = vpack.c.b16 %v4343, %v4341
    %v4440 = vpack.c.b16 %v4344, %v4342
    %4537 = vmatprep.subr.bf16.mxu0 %v4360
    %4538 = vmatpush1.bf16.msra.mxu0 %v4359
    %4539 = vmatprep.subr.bf16.mxu0 %v4358
    %4540 = vmatpush1.bf16.msra.mxu0 %v4357
    %4541 = vmatprep.subr.bf16.mxu0 %v4356
    %4542 = vmatpush1.bf16.msra.mxu0 %v4355
    %4543 = vmatprep.subr.bf16.mxu0 %v4354
    %4544 = vmatpush1.bf16.msra.mxu0 %v4353
    %4545 = vmatprep.subr.bf16.mxu0 %v4352
    %4546 = vmatpush1.bf16.msra.mxu0 %v4351
    %4547 = vmatprep.subr.bf16.mxu0 %v4350
    %4548 = vmatpush1.bf16.msra.mxu0 %v4349
    %4549 = vmatprep.subr.bf16.mxu0 %v4348
    %4550 = vmatpush1.bf16.msra.mxu0 %v4347
    %4551 = vmatprep.subr.bf16.mxu0 %v4346
    %4552 = vmatpush1.bf16.msra.mxu0 %v4345
    %4553 = vmatprep.subr.bf16.mxu0 %v4376
    %4554 = vmatpush2.bf16.msra.mxu0 %v4375
    %4555 = vmatprep.subr.bf16.mxu0 %v4374
    %4556 = vmatpush2.bf16.msra.mxu0 %v4373
    %4557 = vmatprep.subr.bf16.mxu0 %v4372
    %4558 = vmatpush2.bf16.msra.mxu0 %v4371
    %4559 = vmatprep.subr.bf16.mxu0 %v4370
    %4560 = vmatpush2.bf16.msra.mxu0 %v4369
    %4561 = vmatprep.subr.bf16.mxu0 %v4368
    %4562 = vmatpush2.bf16.msra.mxu0 %v4367
    %4563 = vmatprep.subr.bf16.mxu0 %v4366
    %4564 = vmatpush2.bf16.msra.mxu0 %v4365
    %4565 = vmatprep.subr.bf16.mxu0 %v4364
    %4566 = vmatpush2.bf16.msra.mxu0 %v4363
    %4567 = vmatprep.subr.bf16.mxu0 %v4362
    %4568 = vmatpush2.bf16.msra.mxu0 %v4361
    %4569 = vmatprep.mubr.bf16.mxu0 %v4046
    %4570 = vmatmul.mubr.bf16.gmra.mxu0 %v4045
    %v4571 = vpop.f32.mrf.mxu0
    %v4572 = vadd.f32 0.0, %v4571
    %v4573 = vpop.f32.mrf.mxu0
    %v4574 = vadd.f32 0.0, %v4573
    %v4575 = vpop.f32.mrf.mxu0
    %v4576 = vadd.f32 0.0, %v4575
    %v4577 = vpop.f32.mrf.mxu0
    %v4578 = vadd.f32 0.0, %v4577
    %4579 = vmatprep.mubr.bf16.mxu0 %v4052
    %4580 = vmatmul.mubr.bf16.gmra.mxu0 %v4051
    %v4581 = vpop.f32.mrf.mxu0
    %v4582 = vadd.f32 0.0, %v4581
    %v4583 = vpop.f32.mrf.mxu0
    %v4584 = vadd.f32 0.0, %v4583
    %v4585 = vpop.f32.mrf.mxu0
    %v4586 = vadd.f32 0.0, %v4585
    %v4587 = vpop.f32.mrf.mxu0
    %v4588 = vadd.f32 0.0, %v4587
    %4589 = vdwg.mxu0
    %4590 = vmatprep.subr.bf16.mxu0 %v4392
    %4591 = vmatpush1.bf16.msra.mxu0 %v4391
    %4592 = vmatprep.subr.bf16.mxu0 %v4390
    %4593 = vmatpush1.bf16.msra.mxu0 %v4389
    %4594 = vmatprep.subr.bf16.mxu0 %v4388
    %4595 = vmatpush1.bf16.msra.mxu0 %v4387
    %4596 = vmatprep.subr.bf16.mxu0 %v4386
    %4597 = vmatpush1.bf16.msra.mxu0 %v4385
    %4598 = vmatprep.subr.bf16.mxu0 %v4384
    %4599 = vmatpush1.bf16.msra.mxu0 %v4383
    %4600 = vmatprep.subr.bf16.mxu0 %v4382
    %4601 = vmatpush1.bf16.msra.mxu0 %v4381
    %4602 = vmatprep.subr.bf16.mxu0 %v4380
    %4603 = vmatpush1.bf16.msra.mxu0 %v4379
    %4604 = vmatprep.subr.bf16.mxu0 %v4378
    %4605 = vmatpush1.bf16.msra.mxu0 %v4377
    %4606 = vmatprep.subr.bf16.mxu0 %v4408
    %4607 = vmatpush2.bf16.msra.mxu0 %v4407
    %4608 = vmatprep.subr.bf16.mxu0 %v4406
    %4609 = vmatpush2.bf16.msra.mxu0 %v4405
    %4610 = vmatprep.subr.bf16.mxu0 %v4404
    %4611 = vmatpush2.bf16.msra.mxu0 %v4403
    %4612 = vmatprep.subr.bf16.mxu0 %v4402
    %4613 = vmatpush2.bf16.msra.mxu0 %v4401
    %4614 = vmatprep.subr.bf16.mxu0 %v4400
    %4615 = vmatpush2.bf16.msra.mxu0 %v4399
    %4616 = vmatprep.subr.bf16.mxu0 %v4398
    %4617 = vmatpush2.bf16.msra.mxu0 %v4397
    %4618 = vmatprep.subr.bf16.mxu0 %v4396
    %4619 = vmatpush2.bf16.msra.mxu0 %v4395
    %4620 = vmatprep.subr.bf16.mxu0 %v4394
    %4621 = vmatpush2.bf16.msra.mxu0 %v4393
    %4622 = vmatprep.mubr.bf16.mxu0 %v4048
    %4623 = vmatmul.mubr.bf16.gmra.mxu0 %v4047
    %v4624 = vpop.f32.mrf.mxu0
    %v4625 = vadd.f32 %v4572, %v4624
    %v4626 = vpop.f32.mrf.mxu0
    %v4627 = vadd.f32 %v4574, %v4626
    %v4628 = vpop.f32.mrf.mxu0
    %v4629 = vadd.f32 %v4576, %v4628
    %v4630 = vpop.f32.mrf.mxu0
    %v4631 = vadd.f32 %v4578, %v4630
    %4632 = vmatprep.mubr.bf16.mxu0 %v4054
    %4633 = vmatmul.mubr.bf16.gmra.mxu0 %v4053
    %v4634 = vpop.f32.mrf.mxu0
    %v4635 = vadd.f32 %v4582, %v4634
    %v4636 = vpop.f32.mrf.mxu0
    %v4637 = vadd.f32 %v4584, %v4636
    %v4638 = vpop.f32.mrf.mxu0
    %v4639 = vadd.f32 %v4586, %v4638
    %v4640 = vpop.f32.mrf.mxu0
    %v4641 = vadd.f32 %v4588, %v4640
    %4642 = vdwg.mxu0
    %4643 = vmatprep.subr.bf16.mxu0 %v4424
    %4644 = vmatpush1.bf16.msra.mxu0 %v4423
    %4645 = vmatprep.subr.bf16.mxu0 %v4422
    %4646 = vmatpush1.bf16.msra.mxu0 %v4421
    %4647 = vmatprep.subr.bf16.mxu0 %v4420
    %4648 = vmatpush1.bf16.msra.mxu0 %v4419
    %4649 = vmatprep.subr.bf16.mxu0 %v4418
    %4650 = vmatpush1.bf16.msra.mxu0 %v4417
    %4651 = vmatprep.subr.bf16.mxu0 %v4416
    %4652 = vmatpush1.bf16.msra.mxu0 %v4415
    %4653 = vmatprep.subr.bf16.mxu0 %v4414
    %4654 = vmatpush1.bf16.msra.mxu0 %v4413
    %4655 = vmatprep.subr.bf16.mxu0 %v4412
    %4656 = vmatpush1.bf16.msra.mxu0 %v4411
    %4657 = vmatprep.subr.bf16.mxu0 %v4410
    %4658 = vmatpush1.bf16.msra.mxu0 %v4409
    %4659 = vmatprep.subr.bf16.mxu0 %v4440
    %4660 = vmatpush2.bf16.msra.mxu0 %v4439
    %4661 = vmatprep.subr.bf16.mxu0 %v4438
    %4662 = vmatpush2.bf16.msra.mxu0 %v4437
    %4663 = vmatprep.subr.bf16.mxu0 %v4436
    %4664 = vmatpush2.bf16.msra.mxu0 %v4435
    %4665 = vmatprep.subr.bf16.mxu0 %v4434
    %4666 = vmatpush2.bf16.msra.mxu0 %v4433
    %4667 = vmatprep.subr.bf16.mxu0 %v4432
    %4668 = vmatpush2.bf16.msra.mxu0 %v4431
    %4669 = vmatprep.subr.bf16.mxu0 %v4430
    %4670 = vmatpush2.bf16.msra.mxu0 %v4429
    %4671 = vmatprep.subr.bf16.mxu0 %v4428
    %4672 = vmatpush2.bf16.msra.mxu0 %v4427
    %4673 = vmatprep.subr.bf16.mxu0 %v4426
    %4674 = vmatpush2.bf16.msra.mxu0 %v4425
    %4675 = vmatprep.mubr.bf16.mxu0 %v4050
    %4676 = vmatmul.mubr.bf16.gmra.mxu0 %v4049
    %v4677 = vpop.f32.mrf.mxu0
    %v4678 = vadd.f32 %v4625, %v4677
    %v4679 = vpop.f32.mrf.mxu0
    %v4680 = vadd.f32 %v4627, %v4679
    %v4681 = vpop.f32.mrf.mxu0
    %v4682 = vadd.f32 %v4629, %v4681
    %v4683 = vpop.f32.mrf.mxu0
    %v4684 = vadd.f32 %v4631, %v4683
    %4685 = vmatprep.mubr.bf16.mxu0 %v4056
    %4686 = vmatmul.mubr.bf16.gmra.mxu0 %v4055
    %v4687 = vpop.f32.mrf.mxu0
    %v4688 = vadd.f32 %v4635, %v4687
    %v4689 = vpop.f32.mrf.mxu0
    %v4690 = vadd.f32 %v4637, %v4689
    %v4691 = vpop.f32.mrf.mxu0
    %v4692 = vadd.f32 %v4639, %v4691
    %v4693 = vpop.f32.mrf.mxu0
    %v4694 = vadd.f32 %v4641, %v4693
    %4695 = vdwg.mxu0
    %v4697 = vlaneseq
    %v4698 = vshrl.u32 %v4697, 7
    %v4699 = vsub.s32 0, %v4698
    %v4700 = vrot.slane %v3567, %v4699
    %v4701 = vlaneseq
    %v4702 = vshrl.u32 %v4701, 7
    %v4703 = vsub.s32 1, %v4702
    %v4704 = vrot.slane %v3567, %v4703
    %v4707 = vmul.f32 %v4678, %v4700
    %v4708 = vmul.f32 %v4680, %v4704
    %v4709 = vmul.f32 %v4682, %v4700
    %v4710 = vmul.f32 %v4684, %v4704
    %v4711 = vmul.f32 %v4688, %v4700
    %v4712 = vmul.f32 %v4690, %v4704
    %v4713 = vmul.f32 %v4692, %v4700
    %v4714 = vmul.f32 %v4694, %v4704
    %v4716 = vlaneseq
    %v4717 = vshrl.u32 %v4716, 7
    %v4718 = vsub.s32 0, %v4717
    %v4719 = vrot.slane %v3568, %v4718
    %v4720 = vlaneseq
    %v4721 = vshrl.u32 %v4720, 7
    %v4722 = vsub.s32 1, %v4721
    %v4723 = vrot.slane %v3568, %v4722
    %v4726 = vadd.f32 %v4707, %v4719
    %v4727 = vadd.f32 %v4708, %v4723
    %v4728 = vadd.f32 %v4709, %v4719
    %v4729 = vadd.f32 %v4710, %v4723
    %v4730 = vadd.f32 %v4711, %v4719
    %v4731 = vadd.f32 %v4712, %v4723
    %v4732 = vadd.f32 %v4713, %v4719
    %v4733 = vadd.f32 %v4714, %v4723
    %v4734 = vmax.f32 %v4726, 0.0
    %v4735 = vmax.f32 %v4727, 0.0
    %v4736 = vmax.f32 %v4728, 0.0
    %v4737 = vmax.f32 %v4729, 0.0
    %v4738 = vmax.f32 %v4730, 0.0
    %v4739 = vmax.f32 %v4731, 0.0
    %v4740 = vmax.f32 %v4732, 0.0
    %v4741 = vmax.f32 %v4733, 0.0
    %v4750 = vrot.slane %v4734, 7
    %v4751 = vrot.slane %v4735, 7
    %v4752 = vrot.slane %v4736, 7
    %v4753 = vsel %vm694, %v4750, %v4752
    %v4754 = vrot.slane %v4737, 7
    %v4755 = vsel %vm694, %v4751, %v4754
    %v4756 = vrot.slane %v4738, 7
    %v4757 = vsel %vm694, %v4752, %v4756
    %v4758 = vrot.slane %v4739, 7
    %v4759 = vsel %vm694, %v4754, %v4758
    %v4760 = vrot.slane %v4740, 7
    %v4761 = vsel %vm694, %v4756, %v4760
    %v4762 = vrot.slane %v4741, 7
    %v4763 = vsel %vm694, %v4758, %v4762
    %v4772 = vsel %vm694, 0.0, %v4750
    %v4773 = vsel %vm694, 0.0, %v4751
    %v4774 = vrot.slane %v4734, 1
    %v4775 = vrot.slane %v4736, 1
    %v4776 = vsel %vm719, %v4774, %v4775
    %v4777 = vrot.slane %v4735, 1
    %v4778 = vrot.slane %v4737, 1
    %v4779 = vsel %vm719, %v4777, %v4778
    %v4780 = vrot.slane %v4738, 1
    %v4781 = vsel %vm719, %v4775, %v4780
    %v4782 = vrot.slane %v4739, 1
    %v4783 = vsel %vm719, %v4778, %v4782
    %v4784 = vrot.slane %v4740, 1
    %v4785 = vsel %vm719, %v4780, %v4784
    %v4786 = vrot.slane %v4741, 1
    %v4787 = vsel %vm719, %v4782, %v4786
    %v4796 = vsel %vm719, %v4784, 0.0
    %v4797 = vsel %vm719, %v4786, 0.0
    %vm4798 = vcmp.lt.s32.totalorder %v745, 0
    %v4799 = vsub.s32 0, %v745
    %v4800 = vsel %vm4798, %v4799, %v745
    %v4801 = vshrl.u32 %v4800, 4
    %v4802 = vand.u32 %v4800, 15
    %v4803 = vsub.s32 0, %v4802
    %v4804 = vsel %vm4798, %v4803, %v4802
    %vm4805 = vcmp.lt.s32.totalorder %v746, 0
    %v4806 = vsub.s32 0, %v746
    %v4807 = vsel %vm4805, %v4806, %v746
    %v4808 = vshrl.u32 %v4807, 4
    %v4809 = vand.u32 %v4807, 15
    %v4810 = vsub.s32 0, %v4809
    %v4811 = vsel %vm4805, %v4810, %v4809
    %vm4812 = vcmp.lt.s32.totalorder %v747, 0
    %v4813 = vsub.s32 0, %v747
    %v4814 = vsel %vm4812, %v4813, %v747
    %v4815 = vshrl.u32 %v4814, 4
    %v4816 = vand.u32 %v4814, 15
    %v4817 = vsub.s32 0, %v4816
    %v4818 = vsel %vm4812, %v4817, %v4816
    %vm4819 = vcmp.lt.s32.totalorder %v748, 0
    %v4820 = vsub.s32 0, %v748
    %v4821 = vsel %vm4819, %v4820, %v748
    %v4822 = vshrl.u32 %v4821, 4
    %v4823 = vand.u32 %v4821, 15
    %v4824 = vsub.s32 0, %v4823
    %v4825 = vsel %vm4819, %v4824, %v4823
    %vm4826 = vcmp.ne.s32.totalorder %v4804, 0
    %vm4827 = vcmp.ne.s32.totalorder %v4811, 0
    %vm4828 = vcmp.ne.s32.totalorder %v4818, 0
    %vm4829 = vcmp.ne.s32.totalorder %v4825, 0
    %vm4830 = vcmp.lt.s32.totalorder %v4804, 0
    %vm4831 = vcmp.lt.s32.totalorder %v4811, 0
    %vm4832 = vcmp.lt.s32.totalorder %v4818, 0
    %vm4833 = vcmp.lt.s32.totalorder %v4825, 0
    %vm4834 = vmand %vm4830, %vm4826
    %vm4835 = vmand %vm4831, %vm4827
    %vm4836 = vmand %vm4832, %vm4828
    %vm4837 = vmand %vm4833, %vm4829
    %v4838 = vadd.s32 %v4804, 16
    %v4839 = vadd.s32 %v4811, 16
    %v4840 = vadd.s32 %v4818, 16
    %v4841 = vadd.s32 %v4825, 16
    %v4842 = vsel %vm4834, %v4838, %v4804
    %v4843 = vsel %vm4835, %v4839, %v4811
    %v4844 = vsel %vm4836, %v4840, %v4818
    %v4845 = vsel %vm4837, %v4841, %v4825
    %vm4846 = vcmp.eq.s32.totalorder %v4842, 0
    %vm4847 = vcmp.eq.s32.totalorder %v4843, 0
    %vm4848 = vcmp.eq.s32.totalorder %v4844, 0
    %vm4849 = vcmp.eq.s32.totalorder %v4845, 0
    %v4850 = vsel %vm4846, 1, 0
    %v4851 = vsel %vm4847, 1, 0
    %v4852 = vsel %vm4848, 1, 0
    %v4853 = vsel %vm4849, 1, 0
    %vm4854 = vcmp.eq.s32.totalorder %v4850, 1
    %vm4855 = vcmp.eq.s32.totalorder %v4851, 1
    %vm4856 = vcmp.eq.s32.totalorder %v4852, 1
    %vm4857 = vcmp.eq.s32.totalorder %v4853, 1
    %v4858 = vsel %vm4854, 0.0, %v4772
    %v4859 = vsel %vm4854, 0.0, %v4773
    %v4860 = vsel %vm4855, 0.0, %v4753
    %v4861 = vsel %vm4855, 0.0, %v4755
    %v4862 = vsel %vm4856, 0.0, %v4757
    %v4863 = vsel %vm4856, 0.0, %v4759
    %v4864 = vsel %vm4857, 0.0, %v4761
    %v4865 = vsel %vm4857, 0.0, %v4763
    %vm4866 = vcmp.eq.s32.totalorder %v4842, 15
    %vm4867 = vcmp.eq.s32.totalorder %v4843, 15
    %vm4868 = vcmp.eq.s32.totalorder %v4844, 15
    %vm4869 = vcmp.eq.s32.totalorder %v4845, 15
    %v4870 = vsel %vm4866, 1, 0
    %v4871 = vsel %vm4867, 1, 0
    %v4872 = vsel %vm4868, 1, 0
    %v4873 = vsel %vm4869, 1, 0
    %vm4874 = vcmp.eq.s32.totalorder %v4870, 1
    %vm4875 = vcmp.eq.s32.totalorder %v4871, 1
    %vm4876 = vcmp.eq.s32.totalorder %v4872, 1
    %vm4877 = vcmp.eq.s32.totalorder %v4873, 1
    %v4878 = vsel %vm4874, 0.0, %v4776
    %v4879 = vsel %vm4874, 0.0, %v4779
    %v4880 = vsel %vm4875, 0.0, %v4781
    %v4881 = vsel %vm4875, 0.0, %v4783
    %v4882 = vsel %vm4876, 0.0, %v4785
    %v4883 = vsel %vm4876, 0.0, %v4787
    %v4884 = vsel %vm4877, 0.0, %v4796
    %v4885 = vsel %vm4877, 0.0, %v4797
    %v4886 = vpack.c.bf16 %v4860, %v4858
    %v4887 = vpack.c.bf16 %v4861, %v4859
    %v4888 = vpack.c.bf16 %v4736, %v4734
    %v4889 = vpack.c.bf16 %v4737, %v4735
    %v4890 = vpack.c.bf16 %v4880, %v4878
    %v4891 = vpack.c.bf16 %v4881, %v4879
    %v4892 = vpack.c.bf16 %v4864, %v4862
    %v4893 = vpack.c.bf16 %v4865, %v4863
    %v4894 = vpack.c.bf16 %v4740, %v4738
    %v4895 = vpack.c.bf16 %v4741, %v4739
    %v4896 = vpack.c.bf16 %v4884, %v4882
    %v4897 = vpack.c.bf16 %v4885, %v4883
    %v4994 = vunpack.c.l.b16 %v3569
    %v4995 = vunpack.c.h.b16 %v3569
    %v4996 = vunpack.c.l.b16 %v3570
    %v4997 = vunpack.c.h.b16 %v3570
    %v4998 = vunpack.c.l.b16 %v3571
    %v4999 = vunpack.c.h.b16 %v3571
    %v5000 = vunpack.c.l.b16 %v3572
    %v5001 = vunpack.c.h.b16 %v3572
    %v5002 = vunpack.c.l.b16 %v3573
    %v5003 = vunpack.c.h.b16 %v3573
    %v5004 = vunpack.c.l.b16 %v3574
    %v5005 = vunpack.c.h.b16 %v3574
    %v5006 = vunpack.c.l.b16 %v3575
    %v5007 = vunpack.c.h.b16 %v3575
    %v5008 = vunpack.c.l.b16 %v3576
    %v5009 = vunpack.c.h.b16 %v3576
    %v5010 = vunpack.c.l.b16 %v3577
    %v5011 = vunpack.c.h.b16 %v3577
    %v5012 = vunpack.c.l.b16 %v3578
    %v5013 = vunpack.c.h.b16 %v3578
    %v5014 = vunpack.c.l.b16 %v3579
    %v5015 = vunpack.c.h.b16 %v3579
    %v5016 = vunpack.c.l.b16 %v3580
    %v5017 = vunpack.c.h.b16 %v3580
    %v5018 = vunpack.c.l.b16 %v3581
    %v5019 = vunpack.c.h.b16 %v3581
    %v5020 = vunpack.c.l.b16 %v3582
    %v5021 = vunpack.c.h.b16 %v3582
    %v5022 = vunpack.c.l.b16 %v3583
    %v5023 = vunpack.c.h.b16 %v3583
    %v5024 = vunpack.c.l.b16 %v3584
    %v5025 = vunpack.c.h.b16 %v3584
    %v5026 = vunpack.c.l.b16 %v3585
    %v5027 = vunpack.c.h.b16 %v3585
    %v5028 = vunpack.c.l.b16 %v3586
    %v5029 = vunpack.c.h.b16 %v3586
    %v5030 = vunpack.c.l.b16 %v3587
    %v5031 = vunpack.c.h.b16 %v3587
    %v5032 = vunpack.c.l.b16 %v3588
    %v5033 = vunpack.c.h.b16 %v3588
    %v5034 = vunpack.c.l.b16 %v3589
    %v5035 = vunpack.c.h.b16 %v3589
    %v5036 = vunpack.c.l.b16 %v3590
    %v5037 = vunpack.c.h.b16 %v3590
    %v5038 = vunpack.c.l.b16 %v3591
    %v5039 = vunpack.c.h.b16 %v3591
    %v5040 = vunpack.c.l.b16 %v3592
    %v5041 = vunpack.c.h.b16 %v3592
    %v5042 = vunpack.c.l.b16 %v3593
    %v5043 = vunpack.c.h.b16 %v3593
    %v5044 = vunpack.c.l.b16 %v3594
    %v5045 = vunpack.c.h.b16 %v3594
    %v5046 = vunpack.c.l.b16 %v3595
    %v5047 = vunpack.c.h.b16 %v3595
    %v5048 = vunpack.c.l.b16 %v3596
    %v5049 = vunpack.c.h.b16 %v3596
    %v5050 = vunpack.c.l.b16 %v3597
    %v5051 = vunpack.c.h.b16 %v3597
    %v5052 = vunpack.c.l.b16 %v3598
    %v5053 = vunpack.c.h.b16 %v3598
    %v5054 = vunpack.c.l.b16 %v3599
    %v5055 = vunpack.c.h.b16 %v3599
    %v5056 = vunpack.c.l.b16 %v3600
    %v5057 = vunpack.c.h.b16 %v3600
    %v5058 = vunpack.c.l.b16 %v3601
    %v5059 = vunpack.c.h.b16 %v3601
    %v5060 = vunpack.c.l.b16 %v3602
    %v5061 = vunpack.c.h.b16 %v3602
    %v5062 = vunpack.c.l.b16 %v3603
    %v5063 = vunpack.c.h.b16 %v3603
    %v5064 = vunpack.c.l.b16 %v3604
    %v5065 = vunpack.c.h.b16 %v3604
    %v5066 = vunpack.c.l.b16 %v3605
    %v5067 = vunpack.c.h.b16 %v3605
    %v5068 = vunpack.c.l.b16 %v3606
    %v5069 = vunpack.c.h.b16 %v3606
    %v5070 = vunpack.c.l.b16 %v3607
    %v5071 = vunpack.c.h.b16 %v3607
    %v5072 = vunpack.c.l.b16 %v3608
    %v5073 = vunpack.c.h.b16 %v3608
    %v5074 = vunpack.c.l.b16 %v3609
    %v5075 = vunpack.c.h.b16 %v3609
    %v5076 = vunpack.c.l.b16 %v3610
    %v5077 = vunpack.c.h.b16 %v3610
    %v5078 = vunpack.c.l.b16 %v3611
    %v5079 = vunpack.c.h.b16 %v3611
    %v5080 = vunpack.c.l.b16 %v3612
    %v5081 = vunpack.c.h.b16 %v3612
    %v5082 = vunpack.c.l.b16 %v3613
    %v5083 = vunpack.c.h.b16 %v3613
    %v5084 = vunpack.c.l.b16 %v3614
    %v5085 = vunpack.c.h.b16 %v3614
    %v5086 = vunpack.c.l.b16 %v3615
    %v5087 = vunpack.c.h.b16 %v3615
    %v5088 = vunpack.c.l.b16 %v3616
    %v5089 = vunpack.c.h.b16 %v3616
    %v5090 = vunpack.c.l.b16 %v3617
    %v5091 = vunpack.c.h.b16 %v3617
    %v5092 = vunpack.c.l.b16 %v3618
    %v5093 = vunpack.c.h.b16 %v3618
    %v5094 = vunpack.c.l.b16 %v3619
    %v5095 = vunpack.c.h.b16 %v3619
    %v5096 = vunpack.c.l.b16 %v3620
    %v5097 = vunpack.c.h.b16 %v3620
    %v5098 = vunpack.c.l.b16 %v3621
    %v5099 = vunpack.c.h.b16 %v3621
    %v5100 = vunpack.c.l.b16 %v3622
    %v5101 = vunpack.c.h.b16 %v3622
    %v5102 = vunpack.c.l.b16 %v3623
    %v5103 = vunpack.c.h.b16 %v3623
    %v5104 = vunpack.c.l.b16 %v3624
    %v5105 = vunpack.c.h.b16 %v3624
    %v5106 = vunpack.c.l.b16 %v3625
    %v5107 = vunpack.c.h.b16 %v3625
    %v5108 = vunpack.c.l.b16 %v3626
    %v5109 = vunpack.c.h.b16 %v3626
    %v5110 = vunpack.c.l.b16 %v3627
    %v5111 = vunpack.c.h.b16 %v3627
    %v5112 = vunpack.c.l.b16 %v3628
    %v5113 = vunpack.c.h.b16 %v3628
    %v5114 = vunpack.c.l.b16 %v3629
    %v5115 = vunpack.c.h.b16 %v3629
    %v5116 = vunpack.c.l.b16 %v3630
    %v5117 = vunpack.c.h.b16 %v3630
    %v5118 = vunpack.c.l.b16 %v3631
    %v5119 = vunpack.c.h.b16 %v3631
    %v5120 = vunpack.c.l.b16 %v3632
    %v5121 = vunpack.c.h.b16 %v3632
    %v5122 = vunpack.c.l.b16 %v3633
    %v5123 = vunpack.c.h.b16 %v3633
    %v5124 = vunpack.c.l.b16 %v3634
    %v5125 = vunpack.c.h.b16 %v3634
    %v5126 = vunpack.c.l.b16 %v3635
    %v5127 = vunpack.c.h.b16 %v3635
    %v5128 = vunpack.c.l.b16 %v3636
    %v5129 = vunpack.c.h.b16 %v3636
    %v5130 = vunpack.c.l.b16 %v3637
    %v5131 = vunpack.c.h.b16 %v3637
    %v5132 = vunpack.c.l.b16 %v3638
    %v5133 = vunpack.c.h.b16 %v3638
    %v5134 = vunpack.c.l.b16 %v3639
    %v5135 = vunpack.c.h.b16 %v3639
    %v5136 = vunpack.c.l.b16 %v3640
    %v5137 = vunpack.c.h.b16 %v3640
    %v5138 = vunpack.c.l.b16 %v3641
    %v5139 = vunpack.c.h.b16 %v3641
    %v5140 = vunpack.c.l.b16 %v3642
    %v5141 = vunpack.c.h.b16 %v3642
    %v5142 = vunpack.c.l.b16 %v3643
    %v5143 = vunpack.c.h.b16 %v3643
    %v5144 = vunpack.c.l.b16 %v3644
    %v5145 = vunpack.c.h.b16 %v3644
    %v5146 = vunpack.c.l.b16 %v3645
    %v5147 = vunpack.c.h.b16 %v3645
    %v5148 = vunpack.c.l.b16 %v3646
    %v5149 = vunpack.c.h.b16 %v3646
    %v5150 = vunpack.c.l.b16 %v3647
    %v5151 = vunpack.c.h.b16 %v3647
    %v5152 = vunpack.c.l.b16 %v3648
    %v5153 = vunpack.c.h.b16 %v3648
    %v5154 = vunpack.c.l.b16 %v3649
    %v5155 = vunpack.c.h.b16 %v3649
    %v5156 = vunpack.c.l.b16 %v3650
    %v5157 = vunpack.c.h.b16 %v3650
    %v5158 = vunpack.c.l.b16 %v3651
    %v5159 = vunpack.c.h.b16 %v3651
    %v5160 = vunpack.c.l.b16 %v3652
    %v5161 = vunpack.c.h.b16 %v3652
    %v5162 = vunpack.c.l.b16 %v3653
    %v5163 = vunpack.c.h.b16 %v3653
    %v5164 = vunpack.c.l.b16 %v3654
    %v5165 = vunpack.c.h.b16 %v3654
    %v5166 = vunpack.c.l.b16 %v3655
    %v5167 = vunpack.c.h.b16 %v3655
    %v5168 = vunpack.c.l.b16 %v3656
    %v5169 = vunpack.c.h.b16 %v3656
    %v5170 = vunpack.c.l.b16 %v3657
    %v5171 = vunpack.c.h.b16 %v3657
    %v5172 = vunpack.c.l.b16 %v3658
    %v5173 = vunpack.c.h.b16 %v3658
    %v5174 = vunpack.c.l.b16 %v3659
    %v5175 = vunpack.c.h.b16 %v3659
    %v5176 = vunpack.c.l.b16 %v3660
    %v5177 = vunpack.c.h.b16 %v3660
    %v5178 = vunpack.c.l.b16 %v3661
    %v5179 = vunpack.c.h.b16 %v3661
    %v5180 = vunpack.c.l.b16 %v3662
    %v5181 = vunpack.c.h.b16 %v3662
    %v5182 = vunpack.c.l.b16 %v3663
    %v5183 = vunpack.c.h.b16 %v3663
    %v5184 = vunpack.c.l.b16 %v3664
    %v5185 = vunpack.c.h.b16 %v3664
    %v5186 = vpack.c.b16 %v4996, %v4994
    %v5187 = vpack.c.b16 %v4997, %v4995
    %v5188 = vpack.c.b16 %v5000, %v4998
    %v5189 = vpack.c.b16 %v5001, %v4999
    %v5190 = vpack.c.b16 %v5004, %v5002
    %v5191 = vpack.c.b16 %v5005, %v5003
    %v5192 = vpack.c.b16 %v5008, %v5006
    %v5193 = vpack.c.b16 %v5009, %v5007
    %v5194 = vpack.c.b16 %v5012, %v5010
    %v5195 = vpack.c.b16 %v5013, %v5011
    %v5196 = vpack.c.b16 %v5016, %v5014
    %v5197 = vpack.c.b16 %v5017, %v5015
    %v5198 = vpack.c.b16 %v5020, %v5018
    %v5199 = vpack.c.b16 %v5021, %v5019
    %v5200 = vpack.c.b16 %v5024, %v5022
    %v5201 = vpack.c.b16 %v5025, %v5023
    %v5202 = vpack.c.b16 %v5028, %v5026
    %v5203 = vpack.c.b16 %v5029, %v5027
    %v5204 = vpack.c.b16 %v5032, %v5030
    %v5205 = vpack.c.b16 %v5033, %v5031
    %v5206 = vpack.c.b16 %v5036, %v5034
    %v5207 = vpack.c.b16 %v5037, %v5035
    %v5208 = vpack.c.b16 %v5040, %v5038
    %v5209 = vpack.c.b16 %v5041, %v5039
    %v5210 = vpack.c.b16 %v5044, %v5042
    %v5211 = vpack.c.b16 %v5045, %v5043
    %v5212 = vpack.c.b16 %v5048, %v5046
    %v5213 = vpack.c.b16 %v5049, %v5047
    %v5214 = vpack.c.b16 %v5052, %v5050
    %v5215 = vpack.c.b16 %v5053, %v5051
    %v5216 = vpack.c.b16 %v5056, %v5054
    %v5217 = vpack.c.b16 %v5057, %v5055
    %v5218 = vpack.c.b16 %v5060, %v5058
    %v5219 = vpack.c.b16 %v5061, %v5059
    %v5220 = vpack.c.b16 %v5064, %v5062
    %v5221 = vpack.c.b16 %v5065, %v5063
    %v5222 = vpack.c.b16 %v5068, %v5066
    %v5223 = vpack.c.b16 %v5069, %v5067
    %v5224 = vpack.c.b16 %v5072, %v5070
    %v5225 = vpack.c.b16 %v5073, %v5071
    %v5226 = vpack.c.b16 %v5076, %v5074
    %v5227 = vpack.c.b16 %v5077, %v5075
    %v5228 = vpack.c.b16 %v5080, %v5078
    %v5229 = vpack.c.b16 %v5081, %v5079
    %v5230 = vpack.c.b16 %v5084, %v5082
    %v5231 = vpack.c.b16 %v5085, %v5083
    %v5232 = vpack.c.b16 %v5088, %v5086
    %v5233 = vpack.c.b16 %v5089, %v5087
    %v5234 = vpack.c.b16 %v5092, %v5090
    %v5235 = vpack.c.b16 %v5093, %v5091
    %v5236 = vpack.c.b16 %v5096, %v5094
    %v5237 = vpack.c.b16 %v5097, %v5095
    %v5238 = vpack.c.b16 %v5100, %v5098
    %v5239 = vpack.c.b16 %v5101, %v5099
    %v5240 = vpack.c.b16 %v5104, %v5102
    %v5241 = vpack.c.b16 %v5105, %v5103
    %v5242 = vpack.c.b16 %v5108, %v5106
    %v5243 = vpack.c.b16 %v5109, %v5107
    %v5244 = vpack.c.b16 %v5112, %v5110
    %v5245 = vpack.c.b16 %v5113, %v5111
    %v5246 = vpack.c.b16 %v5116, %v5114
    %v5247 = vpack.c.b16 %v5117, %v5115
    %v5248 = vpack.c.b16 %v5120, %v5118
    %v5249 = vpack.c.b16 %v5121, %v5119
    %v5250 = vpack.c.b16 %v5124, %v5122
    %v5251 = vpack.c.b16 %v5125, %v5123
    %v5252 = vpack.c.b16 %v5128, %v5126
    %v5253 = vpack.c.b16 %v5129, %v5127
    %v5254 = vpack.c.b16 %v5132, %v5130
    %v5255 = vpack.c.b16 %v5133, %v5131
    %v5256 = vpack.c.b16 %v5136, %v5134
    %v5257 = vpack.c.b16 %v5137, %v5135
    %v5258 = vpack.c.b16 %v5140, %v5138
    %v5259 = vpack.c.b16 %v5141, %v5139
    %v5260 = vpack.c.b16 %v5144, %v5142
    %v5261 = vpack.c.b16 %v5145, %v5143
    %v5262 = vpack.c.b16 %v5148, %v5146
    %v5263 = vpack.c.b16 %v5149, %v5147
    %v5264 = vpack.c.b16 %v5152, %v5150
    %v5265 = vpack.c.b16 %v5153, %v5151
    %v5266 = vpack.c.b16 %v5156, %v5154
    %v5267 = vpack.c.b16 %v5157, %v5155
    %v5268 = vpack.c.b16 %v5160, %v5158
    %v5269 = vpack.c.b16 %v5161, %v5159
    %v5270 = vpack.c.b16 %v5164, %v5162
    %v5271 = vpack.c.b16 %v5165, %v5163
    %v5272 = vpack.c.b16 %v5168, %v5166
    %v5273 = vpack.c.b16 %v5169, %v5167
    %v5274 = vpack.c.b16 %v5172, %v5170
    %v5275 = vpack.c.b16 %v5173, %v5171
    %v5276 = vpack.c.b16 %v5176, %v5174
    %v5277 = vpack.c.b16 %v5177, %v5175
    %v5278 = vpack.c.b16 %v5180, %v5178
    %v5279 = vpack.c.b16 %v5181, %v5179
    %v5280 = vpack.c.b16 %v5184, %v5182
    %v5281 = vpack.c.b16 %v5185, %v5183
    %5378 = vmatprep.subr.bf16.mxu0 %v5201
    %5379 = vmatpush1.bf16.msra.mxu0 %v5200
    %5380 = vmatprep.subr.bf16.mxu0 %v5199
    %5381 = vmatpush1.bf16.msra.mxu0 %v5198
    %5382 = vmatprep.subr.bf16.mxu0 %v5197
    %5383 = vmatpush1.bf16.msra.mxu0 %v5196
    %5384 = vmatprep.subr.bf16.mxu0 %v5195
    %5385 = vmatpush1.bf16.msra.mxu0 %v5194
    %5386 = vmatprep.subr.bf16.mxu0 %v5193
    %5387 = vmatpush1.bf16.msra.mxu0 %v5192
    %5388 = vmatprep.subr.bf16.mxu0 %v5191
    %5389 = vmatpush1.bf16.msra.mxu0 %v5190
    %5390 = vmatprep.subr.bf16.mxu0 %v5189
    %5391 = vmatpush1.bf16.msra.mxu0 %v5188
    %5392 = vmatprep.subr.bf16.mxu0 %v5187
    %5393 = vmatpush1.bf16.msra.mxu0 %v5186
    %5394 = vmatprep.subr.bf16.mxu0 %v5217
    %5395 = vmatpush2.bf16.msra.mxu0 %v5216
    %5396 = vmatprep.subr.bf16.mxu0 %v5215
    %5397 = vmatpush2.bf16.msra.mxu0 %v5214
    %5398 = vmatprep.subr.bf16.mxu0 %v5213
    %5399 = vmatpush2.bf16.msra.mxu0 %v5212
    %5400 = vmatprep.subr.bf16.mxu0 %v5211
    %5401 = vmatpush2.bf16.msra.mxu0 %v5210
    %5402 = vmatprep.subr.bf16.mxu0 %v5209
    %5403 = vmatpush2.bf16.msra.mxu0 %v5208
    %5404 = vmatprep.subr.bf16.mxu0 %v5207
    %5405 = vmatpush2.bf16.msra.mxu0 %v5206
    %5406 = vmatprep.subr.bf16.mxu0 %v5205
    %5407 = vmatpush2.bf16.msra.mxu0 %v5204
    %5408 = vmatprep.subr.bf16.mxu0 %v5203
    %5409 = vmatpush2.bf16.msra.mxu0 %v5202
    %5410 = vmatprep.mubr.bf16.mxu0 %v4887
    %5411 = vmatmul.mubr.bf16.gmra.mxu0 %v4886
    %v5412 = vpop.f32.mrf.mxu0
    %v5413 = vadd.f32 0.0, %v5412
    %v5414 = vpop.f32.mrf.mxu0
    %v5415 = vadd.f32 0.0, %v5414
    %v5416 = vpop.f32.mrf.mxu0
    %v5417 = vadd.f32 0.0, %v5416
    %v5418 = vpop.f32.mrf.mxu0
    %v5419 = vadd.f32 0.0, %v5418
    %5420 = vmatprep.mubr.bf16.mxu0 %v4893
    %5421 = vmatmul.mubr.bf16.gmra.mxu0 %v4892
    %v5422 = vpop.f32.mrf.mxu0
    %v5423 = vadd.f32 0.0, %v5422
    %v5424 = vpop.f32.mrf.mxu0
    %v5425 = vadd.f32 0.0, %v5424
    %v5426 = vpop.f32.mrf.mxu0
    %v5427 = vadd.f32 0.0, %v5426
    %v5428 = vpop.f32.mrf.mxu0
    %v5429 = vadd.f32 0.0, %v5428
    %5430 = vdwg.mxu0
    %5431 = vmatprep.subr.bf16.mxu0 %v5233
    %5432 = vmatpush1.bf16.msra.mxu0 %v5232
    %5433 = vmatprep.subr.bf16.mxu0 %v5231
    %5434 = vmatpush1.bf16.msra.mxu0 %v5230
    %5435 = vmatprep.subr.bf16.mxu0 %v5229
    %5436 = vmatpush1.bf16.msra.mxu0 %v5228
    %5437 = vmatprep.subr.bf16.mxu0 %v5227
    %5438 = vmatpush1.bf16.msra.mxu0 %v5226
    %5439 = vmatprep.subr.bf16.mxu0 %v5225
    %5440 = vmatpush1.bf16.msra.mxu0 %v5224
    %5441 = vmatprep.subr.bf16.mxu0 %v5223
    %5442 = vmatpush1.bf16.msra.mxu0 %v5222
    %5443 = vmatprep.subr.bf16.mxu0 %v5221
    %5444 = vmatpush1.bf16.msra.mxu0 %v5220
    %5445 = vmatprep.subr.bf16.mxu0 %v5219
    %5446 = vmatpush1.bf16.msra.mxu0 %v5218
    %5447 = vmatprep.subr.bf16.mxu0 %v5249
    %5448 = vmatpush2.bf16.msra.mxu0 %v5248
    %5449 = vmatprep.subr.bf16.mxu0 %v5247
    %5450 = vmatpush2.bf16.msra.mxu0 %v5246
    %5451 = vmatprep.subr.bf16.mxu0 %v5245
    %5452 = vmatpush2.bf16.msra.mxu0 %v5244
    %5453 = vmatprep.subr.bf16.mxu0 %v5243
    %5454 = vmatpush2.bf16.msra.mxu0 %v5242
    %5455 = vmatprep.subr.bf16.mxu0 %v5241
    %5456 = vmatpush2.bf16.msra.mxu0 %v5240
    %5457 = vmatprep.subr.bf16.mxu0 %v5239
    %5458 = vmatpush2.bf16.msra.mxu0 %v5238
    %5459 = vmatprep.subr.bf16.mxu0 %v5237
    %5460 = vmatpush2.bf16.msra.mxu0 %v5236
    %5461 = vmatprep.subr.bf16.mxu0 %v5235
    %5462 = vmatpush2.bf16.msra.mxu0 %v5234
    %5463 = vmatprep.mubr.bf16.mxu0 %v4889
    %5464 = vmatmul.mubr.bf16.gmra.mxu0 %v4888
    %v5465 = vpop.f32.mrf.mxu0
    %v5466 = vadd.f32 %v5413, %v5465
    %v5467 = vpop.f32.mrf.mxu0
    %v5468 = vadd.f32 %v5415, %v5467
    %v5469 = vpop.f32.mrf.mxu0
    %v5470 = vadd.f32 %v5417, %v5469
    %v5471 = vpop.f32.mrf.mxu0
    %v5472 = vadd.f32 %v5419, %v5471
    %5473 = vmatprep.mubr.bf16.mxu0 %v4895
    %5474 = vmatmul.mubr.bf16.gmra.mxu0 %v4894
    %v5475 = vpop.f32.mrf.mxu0
    %v5476 = vadd.f32 %v5423, %v5475
    %v5477 = vpop.f32.mrf.mxu0
    %v5478 = vadd.f32 %v5425, %v5477
    %v5479 = vpop.f32.mrf.mxu0
    %v5480 = vadd.f32 %v5427, %v5479
    %v5481 = vpop.f32.mrf.mxu0
    %v5482 = vadd.f32 %v5429, %v5481
    %5483 = vdwg.mxu0
    %5484 = vmatprep.subr.bf16.mxu0 %v5265
    %5485 = vmatpush1.bf16.msra.mxu0 %v5264
    %5486 = vmatprep.subr.bf16.mxu0 %v5263
    %5487 = vmatpush1.bf16.msra.mxu0 %v5262
    %5488 = vmatprep.subr.bf16.mxu0 %v5261
    %5489 = vmatpush1.bf16.msra.mxu0 %v5260
    %5490 = vmatprep.subr.bf16.mxu0 %v5259
    %5491 = vmatpush1.bf16.msra.mxu0 %v5258
    %5492 = vmatprep.subr.bf16.mxu0 %v5257
    %5493 = vmatpush1.bf16.msra.mxu0 %v5256
    %5494 = vmatprep.subr.bf16.mxu0 %v5255
    %5495 = vmatpush1.bf16.msra.mxu0 %v5254
    %5496 = vmatprep.subr.bf16.mxu0 %v5253
    %5497 = vmatpush1.bf16.msra.mxu0 %v5252
    %5498 = vmatprep.subr.bf16.mxu0 %v5251
    %5499 = vmatpush1.bf16.msra.mxu0 %v5250
    %5500 = vmatprep.subr.bf16.mxu0 %v5281
    %5501 = vmatpush2.bf16.msra.mxu0 %v5280
    %5502 = vmatprep.subr.bf16.mxu0 %v5279
    %5503 = vmatpush2.bf16.msra.mxu0 %v5278
    %5504 = vmatprep.subr.bf16.mxu0 %v5277
    %5505 = vmatpush2.bf16.msra.mxu0 %v5276
    %5506 = vmatprep.subr.bf16.mxu0 %v5275
    %5507 = vmatpush2.bf16.msra.mxu0 %v5274
    %5508 = vmatprep.subr.bf16.mxu0 %v5273
    %5509 = vmatpush2.bf16.msra.mxu0 %v5272
    %5510 = vmatprep.subr.bf16.mxu0 %v5271
    %5511 = vmatpush2.bf16.msra.mxu0 %v5270
    %5512 = vmatprep.subr.bf16.mxu0 %v5269
    %5513 = vmatpush2.bf16.msra.mxu0 %v5268
    %5514 = vmatprep.subr.bf16.mxu0 %v5267
    %5515 = vmatpush2.bf16.msra.mxu0 %v5266
    %5516 = vmatprep.mubr.bf16.mxu0 %v4891
    %5517 = vmatmul.mubr.bf16.gmra.mxu0 %v4890
    %v5518 = vpop.f32.mrf.mxu0
    %v5519 = vadd.f32 %v5466, %v5518
    %v5520 = vpop.f32.mrf.mxu0
    %v5521 = vadd.f32 %v5468, %v5520
    %v5522 = vpop.f32.mrf.mxu0
    %v5523 = vadd.f32 %v5470, %v5522
    %v5524 = vpop.f32.mrf.mxu0
    %v5525 = vadd.f32 %v5472, %v5524
    %5526 = vmatprep.mubr.bf16.mxu0 %v4897
    %5527 = vmatmul.mubr.bf16.gmra.mxu0 %v4896
    %v5528 = vpop.f32.mrf.mxu0
    %v5529 = vadd.f32 %v5476, %v5528
    %v5530 = vpop.f32.mrf.mxu0
    %v5531 = vadd.f32 %v5478, %v5530
    %v5532 = vpop.f32.mrf.mxu0
    %v5533 = vadd.f32 %v5480, %v5532
    %v5534 = vpop.f32.mrf.mxu0
    %v5535 = vadd.f32 %v5482, %v5534
    %5536 = vdwg.mxu0
    %v5538 = vlaneseq
    %v5539 = vshrl.u32 %v5538, 7
    %v5540 = vsub.s32 0, %v5539
    %v5541 = vrot.slane %v3665, %v5540
    %v5542 = vlaneseq
    %v5543 = vshrl.u32 %v5542, 7
    %v5544 = vsub.s32 1, %v5543
    %v5545 = vrot.slane %v3665, %v5544
    %v5548 = vmul.f32 %v5519, %v5541
    %v5549 = vmul.f32 %v5521, %v5545
    %v5550 = vmul.f32 %v5523, %v5541
    %v5551 = vmul.f32 %v5525, %v5545
    %v5552 = vmul.f32 %v5529, %v5541
    %v5553 = vmul.f32 %v5531, %v5545
    %v5554 = vmul.f32 %v5533, %v5541
    %v5555 = vmul.f32 %v5535, %v5545
    %v5557 = vlaneseq
    %v5558 = vshrl.u32 %v5557, 7
    %v5559 = vsub.s32 0, %v5558
    %v5560 = vrot.slane %v3666, %v5559
    %v5561 = vlaneseq
    %v5562 = vshrl.u32 %v5561, 7
    %v5563 = vsub.s32 1, %v5562
    %v5564 = vrot.slane %v3666, %v5563
    %v5567 = vadd.f32 %v5548, %v5560
    %v5568 = vadd.f32 %v5549, %v5564
    %v5569 = vadd.f32 %v5550, %v5560
    %v5570 = vadd.f32 %v5551, %v5564
    %v5571 = vadd.f32 %v5552, %v5560
    %v5572 = vadd.f32 %v5553, %v5564
    %v5573 = vadd.f32 %v5554, %v5560
    %v5574 = vadd.f32 %v5555, %v5564
    %v5607 = vunpack.c.l.b16 %v3667
    %v5608 = vunpack.c.h.b16 %v3667
    %v5609 = vunpack.c.l.b16 %v3668
    %v5610 = vunpack.c.h.b16 %v3668
    %v5611 = vunpack.c.l.b16 %v3669
    %v5612 = vunpack.c.h.b16 %v3669
    %v5613 = vunpack.c.l.b16 %v3670
    %v5614 = vunpack.c.h.b16 %v3670
    %v5615 = vunpack.c.l.b16 %v3671
    %v5616 = vunpack.c.h.b16 %v3671
    %v5617 = vunpack.c.l.b16 %v3672
    %v5618 = vunpack.c.h.b16 %v3672
    %v5619 = vunpack.c.l.b16 %v3673
    %v5620 = vunpack.c.h.b16 %v3673
    %v5621 = vunpack.c.l.b16 %v3674
    %v5622 = vunpack.c.h.b16 %v3674
    %v5623 = vunpack.c.l.b16 %v3675
    %v5624 = vunpack.c.h.b16 %v3675
    %v5625 = vunpack.c.l.b16 %v3676
    %v5626 = vunpack.c.h.b16 %v3676
    %v5627 = vunpack.c.l.b16 %v3677
    %v5628 = vunpack.c.h.b16 %v3677
    %v5629 = vunpack.c.l.b16 %v3678
    %v5630 = vunpack.c.h.b16 %v3678
    %v5631 = vunpack.c.l.b16 %v3679
    %v5632 = vunpack.c.h.b16 %v3679
    %v5633 = vunpack.c.l.b16 %v3680
    %v5634 = vunpack.c.h.b16 %v3680
    %v5635 = vunpack.c.l.b16 %v3681
    %v5636 = vunpack.c.h.b16 %v3681
    %v5637 = vunpack.c.l.b16 %v3682
    %v5638 = vunpack.c.h.b16 %v3682
    %v5639 = vunpack.c.l.b16 %v3683
    %v5640 = vunpack.c.h.b16 %v3683
    %v5641 = vunpack.c.l.b16 %v3684
    %v5642 = vunpack.c.h.b16 %v3684
    %v5643 = vunpack.c.l.b16 %v3685
    %v5644 = vunpack.c.h.b16 %v3685
    %v5645 = vunpack.c.l.b16 %v3686
    %v5646 = vunpack.c.h.b16 %v3686
    %v5647 = vunpack.c.l.b16 %v3687
    %v5648 = vunpack.c.h.b16 %v3687
    %v5649 = vunpack.c.l.b16 %v3688
    %v5650 = vunpack.c.h.b16 %v3688
    %v5651 = vunpack.c.l.b16 %v3689
    %v5652 = vunpack.c.h.b16 %v3689
    %v5653 = vunpack.c.l.b16 %v3690
    %v5654 = vunpack.c.h.b16 %v3690
    %v5655 = vunpack.c.l.b16 %v3691
    %v5656 = vunpack.c.h.b16 %v3691
    %v5657 = vunpack.c.l.b16 %v3692
    %v5658 = vunpack.c.h.b16 %v3692
    %v5659 = vunpack.c.l.b16 %v3693
    %v5660 = vunpack.c.h.b16 %v3693
    %v5661 = vunpack.c.l.b16 %v3694
    %v5662 = vunpack.c.h.b16 %v3694
    %v5663 = vunpack.c.l.b16 %v3695
    %v5664 = vunpack.c.h.b16 %v3695
    %v5665 = vunpack.c.l.b16 %v3696
    %v5666 = vunpack.c.h.b16 %v3696
    %v5667 = vunpack.c.l.b16 %v3697
    %v5668 = vunpack.c.h.b16 %v3697
    %v5669 = vunpack.c.l.b16 %v3698
    %v5670 = vunpack.c.h.b16 %v3698
    %v5671 = vpack.c.b16 %v5609, %v5607
    %v5672 = vpack.c.b16 %v5610, %v5608
    %v5673 = vpack.c.b16 %v5613, %v5611
    %v5674 = vpack.c.b16 %v5614, %v5612
    %v5675 = vpack.c.b16 %v5617, %v5615
    %v5676 = vpack.c.b16 %v5618, %v5616
    %v5677 = vpack.c.b16 %v5621, %v5619
    %v5678 = vpack.c.b16 %v5622, %v5620
    %v5679 = vpack.c.b16 %v5625, %v5623
    %v5680 = vpack.c.b16 %v5626, %v5624
    %v5681 = vpack.c.b16 %v5629, %v5627
    %v5682 = vpack.c.b16 %v5630, %v5628
    %v5683 = vpack.c.b16 %v5633, %v5631
    %v5684 = vpack.c.b16 %v5634, %v5632
    %v5685 = vpack.c.b16 %v5637, %v5635
    %v5686 = vpack.c.b16 %v5638, %v5636
    %v5687 = vpack.c.b16 %v5641, %v5639
    %v5688 = vpack.c.b16 %v5642, %v5640
    %v5689 = vpack.c.b16 %v5645, %v5643
    %v5690 = vpack.c.b16 %v5646, %v5644
    %v5691 = vpack.c.b16 %v5649, %v5647
    %v5692 = vpack.c.b16 %v5650, %v5648
    %v5693 = vpack.c.b16 %v5653, %v5651
    %v5694 = vpack.c.b16 %v5654, %v5652
    %v5695 = vpack.c.b16 %v5657, %v5655
    %v5696 = vpack.c.b16 %v5658, %v5656
    %v5697 = vpack.c.b16 %v5661, %v5659
    %v5698 = vpack.c.b16 %v5662, %v5660
    %v5699 = vpack.c.b16 %v5665, %v5663
    %v5700 = vpack.c.b16 %v5666, %v5664
    %v5701 = vpack.c.b16 %v5669, %v5667
    %v5702 = vpack.c.b16 %v5670, %v5668
    %5735 = vmatprep.subr.bf16.mxu0 %v5686
    %5736 = vmatpush1.bf16.msra.mxu0 %v5685
    %5737 = vmatprep.subr.bf16.mxu0 %v5684
    %5738 = vmatpush1.bf16.msra.mxu0 %v5683
    %5739 = vmatprep.subr.bf16.mxu0 %v5682
    %5740 = vmatpush1.bf16.msra.mxu0 %v5681
    %5741 = vmatprep.subr.bf16.mxu0 %v5680
    %5742 = vmatpush1.bf16.msra.mxu0 %v5679
    %5743 = vmatprep.subr.bf16.mxu0 %v5678
    %5744 = vmatpush1.bf16.msra.mxu0 %v5677
    %5745 = vmatprep.subr.bf16.mxu0 %v5676
    %5746 = vmatpush1.bf16.msra.mxu0 %v5675
    %5747 = vmatprep.subr.bf16.mxu0 %v5674
    %5748 = vmatpush1.bf16.msra.mxu0 %v5673
    %5749 = vmatprep.subr.bf16.mxu0 %v5672
    %5750 = vmatpush1.bf16.msra.mxu0 %v5671
    %5751 = vmatprep.subr.bf16.mxu0 %v5702
    %5752 = vmatpush2.bf16.msra.mxu0 %v5701
    %5753 = vmatprep.subr.bf16.mxu0 %v5700
    %5754 = vmatpush2.bf16.msra.mxu0 %v5699
    %5755 = vmatprep.subr.bf16.mxu0 %v5698
    %5756 = vmatpush2.bf16.msra.mxu0 %v5697
    %5757 = vmatprep.subr.bf16.mxu0 %v5696
    %5758 = vmatpush2.bf16.msra.mxu0 %v5695
    %5759 = vmatprep.subr.bf16.mxu0 %v5694
    %5760 = vmatpush2.bf16.msra.mxu0 %v5693
    %5761 = vmatprep.subr.bf16.mxu0 %v5692
    %5762 = vmatpush2.bf16.msra.mxu0 %v5691
    %5763 = vmatprep.subr.bf16.mxu0 %v5690
    %5764 = vmatpush2.bf16.msra.mxu0 %v5689
    %5765 = vmatprep.subr.bf16.mxu0 %v5688
    %5766 = vmatpush2.bf16.msra.mxu0 %v5687
    %5767 = vmatprep.mubr.bf16.mxu0 %v4048
    %5768 = vmatmul.mubr.bf16.gmra.mxu0 %v4047
    %v5769 = vpop.f32.mrf.mxu0
    %v5770 = vadd.f32 0.0, %v5769
    %v5771 = vpop.f32.mrf.mxu0
    %v5772 = vadd.f32 0.0, %v5771
    %v5773 = vpop.f32.mrf.mxu0
    %v5774 = vadd.f32 0.0, %v5773
    %v5775 = vpop.f32.mrf.mxu0
    %v5776 = vadd.f32 0.0, %v5775
    %5777 = vmatprep.mubr.bf16.mxu0 %v4054
    %5778 = vmatmul.mubr.bf16.gmra.mxu0 %v4053
    %v5779 = vpop.f32.mrf.mxu0
    %v5780 = vadd.f32 0.0, %v5779
    %v5781 = vpop.f32.mrf.mxu0
    %v5782 = vadd.f32 0.0, %v5781
    %v5783 = vpop.f32.mrf.mxu0
    %v5784 = vadd.f32 0.0, %v5783
    %v5785 = vpop.f32.mrf.mxu0
    %v5786 = vadd.f32 0.0, %v5785
    %5787 = vdwg.mxu0
    %v5789 = vlaneseq
    %v5790 = vshrl.u32 %v5789, 7
    %v5791 = vsub.s32 0, %v5790
    %v5792 = vrot.slane %v3699, %v5791
    %v5793 = vlaneseq
    %v5794 = vshrl.u32 %v5793, 7
    %v5795 = vsub.s32 1, %v5794
    %v5796 = vrot.slane %v3699, %v5795
    %v5799 = vmul.f32 %v5770, %v5792
    %v5800 = vmul.f32 %v5772, %v5796
    %v5801 = vmul.f32 %v5774, %v5792
    %v5802 = vmul.f32 %v5776, %v5796
    %v5803 = vmul.f32 %v5780, %v5792
    %v5804 = vmul.f32 %v5782, %v5796
    %v5805 = vmul.f32 %v5784, %v5792
    %v5806 = vmul.f32 %v5786, %v5796
    %v5808 = vlaneseq
    %v5809 = vshrl.u32 %v5808, 7
    %v5810 = vsub.s32 0, %v5809
    %v5811 = vrot.slane %v3700, %v5810
    %v5812 = vlaneseq
    %v5813 = vshrl.u32 %v5812, 7
    %v5814 = vsub.s32 1, %v5813
    %v5815 = vrot.slane %v3700, %v5814
    %v5818 = vadd.f32 %v5799, %v5811
    %v5819 = vadd.f32 %v5800, %v5815
    %v5820 = vadd.f32 %v5801, %v5811
    %v5821 = vadd.f32 %v5802, %v5815
    %v5822 = vadd.f32 %v5803, %v5811
    %v5823 = vadd.f32 %v5804, %v5815
    %v5824 = vadd.f32 %v5805, %v5811
    %v5825 = vadd.f32 %v5806, %v5815
    %v5826 = vadd.f32 %v5567, %v5818
    %v5827 = vadd.f32 %v5568, %v5819
    %v5828 = vadd.f32 %v5569, %v5820
    %v5829 = vadd.f32 %v5570, %v5821
    %v5830 = vadd.f32 %v5571, %v5822
    %v5831 = vadd.f32 %v5572, %v5823
    %v5832 = vadd.f32 %v5573, %v5824
    %v5833 = vadd.f32 %v5574, %v5825
    %v5834 = vmax.f32 %v5826, 0.0
    %v5835 = vmax.f32 %v5827, 0.0
    %v5836 = vmax.f32 %v5828, 0.0
    %v5837 = vmax.f32 %v5829, 0.0
    %v5838 = vmax.f32 %v5830, 0.0
    %v5839 = vmax.f32 %v5831, 0.0
    %v5840 = vmax.f32 %v5832, 0.0
    %v5841 = vmax.f32 %v5833, 0.0
    %v5842 = vld [vmem:[#allocation28] sm:$0xf]
    %v5843 = vld [vmem:[#allocation28 + $0x4] sm:$0xf]
    %v5844 = vld [vmem:[%s43] sm:$0xf]
    %v5845 = vld [vmem:[%s43 + $0x4] sm:$0xf]
    %v5846 = vld [vmem:[%s43 + $0x8] sm:$0xf]
    %v5847 = vld [vmem:[%s43 + $0xc] sm:$0xf]
    %v5848 = vld [vmem:[%s43 + $0x10] sm:$0xf]
    %v5849 = vld [vmem:[%s43 + $0x14] sm:$0xf]
    %v5850 = vld [vmem:[%s43 + $0x18] sm:$0xf]
    %v5851 = vld [vmem:[%s43 + $0x1c] sm:$0xf]
    %v5852 = vld [vmem:[%s43 + $0x20] sm:$0xf]
    %v5853 = vld [vmem:[%s43 + $0x24] sm:$0xf]
    %v5854 = vld [vmem:[%s43 + $0x28] sm:$0xf]
    %v5855 = vld [vmem:[%s43 + $0x2c] sm:$0xf]
    %v5856 = vld [vmem:[%s43 + $0x30] sm:$0xf]
    %v5857 = vld [vmem:[%s43 + $0x34] sm:$0xf]
    %v5858 = vld [vmem:[%s43 + $0x38] sm:$0xf]
    %v5859 = vld [vmem:[%s43 + $0x3c] sm:$0xf]
    %v5860 = vld [vmem:[%s43 + $0x40] sm:$0xf]
    %v5861 = vld [vmem:[%s43 + $0x44] sm:$0xf]
    %v5862 = vld [vmem:[%s43 + $0x48] sm:$0xf]
    %v5863 = vld [vmem:[%s43 + $0x4c] sm:$0xf]
    %v5864 = vld [vmem:[%s43 + $0x50] sm:$0xf]
    %v5865 = vld [vmem:[%s43 + $0x54] sm:$0xf]
    %v5866 = vld [vmem:[%s43 + $0x58] sm:$0xf]
    %v5867 = vld [vmem:[%s43 + $0x5c] sm:$0xf]
    %v5868 = vld [vmem:[%s43 + $0x60] sm:$0xf]
    %v5869 = vld [vmem:[%s43 + $0x64] sm:$0xf]
    %v5870 = vld [vmem:[%s43 + $0x68] sm:$0xf]
    %v5871 = vld [vmem:[%s43 + $0x6c] sm:$0xf]
    %v5872 = vld [vmem:[%s43 + $0x70] sm:$0xf]
    %v5873 = vld [vmem:[%s43 + $0x74] sm:$0xf]
    %v5874 = vld [vmem:[%s43 + $0x78] sm:$0xf]
    %v5875 = vld [vmem:[%s43 + $0x7c] sm:$0xf]
    %v5876 = vld [vmem:[%s43 + $0x80] sm:$0xf]
    %v5877 = vld [vmem:[%s43 + $0x84] sm:$0xf]
    %v5878 = vld [vmem:[%s43 + $0x88] sm:$0xf]
    %v5879 = vld [vmem:[%s43 + $0x8c] sm:$0xf]
    %v5880 = vld [vmem:[%s43 + $0x90] sm:$0xf]
    %v5881 = vld [vmem:[%s43 + $0x94] sm:$0xf]
    %v5882 = vld [vmem:[%s43 + $0x98] sm:$0xf]
    %v5883 = vld [vmem:[%s43 + $0x9c] sm:$0xf]
    %v5884 = vld [vmem:[%s43 + $0xa0] sm:$0xf]
    %v5885 = vld [vmem:[%s43 + $0xa4] sm:$0xf]
    %v5886 = vld [vmem:[%s43 + $0xa8] sm:$0xf]
    %v5887 = vld [vmem:[%s43 + $0xac] sm:$0xf]
    %v5888 = vld [vmem:[%s43 + $0xb0] sm:$0xf]
    %v5889 = vld [vmem:[%s43 + $0xb4] sm:$0xf]
    %v5890 = vld [vmem:[%s43 + $0xb8] sm:$0xf]
    %v5891 = vld [vmem:[%s43 + $0xbc] sm:$0xf]
    %v5892 = vld [vmem:[%s43 + $0xc0] sm:$0xf]
    %v5893 = vld [vmem:[%s43 + $0xc4] sm:$0xf]
    %v5894 = vld [vmem:[%s43 + $0xc8] sm:$0xf]
    %v5895 = vld [vmem:[%s43 + $0xcc] sm:$0xf]
    %v5896 = vld [vmem:[%s43 + $0xd0] sm:$0xf]
    %v5897 = vld [vmem:[%s43 + $0xd4] sm:$0xf]
    %v5898 = vld [vmem:[%s43 + $0xd8] sm:$0xf]
    %v5899 = vld [vmem:[%s43 + $0xdc] sm:$0xf]
    %v5900 = vld [vmem:[%s43 + $0xe0] sm:$0xf]
    %v5901 = vld [vmem:[%s43 + $0xe4] sm:$0xf]
    %v5902 = vld [vmem:[%s43 + $0xe8] sm:$0xf]
    %v5903 = vld [vmem:[%s43 + $0xec] sm:$0xf]
    %v5904 = vld [vmem:[%s43 + $0xf0] sm:$0xf]
    %v5905 = vld [vmem:[%s43 + $0xf4] sm:$0xf]
    %v5906 = vld [vmem:[%s43 + $0xf8] sm:$0xf]
    %v5907 = vld [vmem:[%s43 + $0xfc] sm:$0xf]
    %v5908 = vld [vmem:[%s43 + $0x100] sm:$0xf]
    %v5909 = vld [vmem:[%s43 + $0x104] sm:$0xf]
    %v5910 = vld [vmem:[%s43 + $0x108] sm:$0xf]
    %v5911 = vld [vmem:[%s43 + $0x10c] sm:$0xf]
    %v5912 = vld [vmem:[%s43 + $0x110] sm:$0xf]
    %v5913 = vld [vmem:[%s43 + $0x114] sm:$0xf]
    %v5914 = vld [vmem:[%s43 + $0x118] sm:$0xf]
    %v5915 = vld [vmem:[%s43 + $0x11c] sm:$0xf]
    %v5916 = vld [vmem:[%s43 + $0x120] sm:$0xf]
    %v5917 = vld [vmem:[%s43 + $0x124] sm:$0xf]
    %v5918 = vld [vmem:[%s43 + $0x128] sm:$0xf]
    %v5919 = vld [vmem:[%s43 + $0x12c] sm:$0xf]
    %v5920 = vld [vmem:[%s43 + $0x130] sm:$0xf]
    %v5921 = vld [vmem:[%s43 + $0x134] sm:$0xf]
    %v5922 = vld [vmem:[%s43 + $0x138] sm:$0xf]
    %v5923 = vld [vmem:[%s43 + $0x13c] sm:$0xf]
    %v5924 = vld [vmem:[%s43 + $0x140] sm:$0xf]
    %v5925 = vld [vmem:[%s43 + $0x144] sm:$0xf]
    %v5926 = vld [vmem:[%s43 + $0x148] sm:$0xf]
    %v5927 = vld [vmem:[%s43 + $0x14c] sm:$0xf]
    %v5928 = vld [vmem:[%s43 + $0x150] sm:$0xf]
    %v5929 = vld [vmem:[%s43 + $0x154] sm:$0xf]
    %v5930 = vld [vmem:[%s43 + $0x158] sm:$0xf]
    %v5931 = vld [vmem:[%s43 + $0x15c] sm:$0xf]
    %v5932 = vld [vmem:[%s43 + $0x160] sm:$0xf]
    %v5933 = vld [vmem:[%s43 + $0x164] sm:$0xf]
    %v5934 = vld [vmem:[%s43 + $0x168] sm:$0xf]
    %v5935 = vld [vmem:[%s43 + $0x16c] sm:$0xf]
    %v5936 = vld [vmem:[%s43 + $0x170] sm:$0xf]
    %v5937 = vld [vmem:[%s43 + $0x174] sm:$0xf]
    %v5938 = vld [vmem:[%s43 + $0x178] sm:$0xf]
    %v5939 = vld [vmem:[%s43 + $0x17c] sm:$0xf]
    %v5940 = vld [vmem:[#allocation29] sm:$0x1]
    %v5941 = vld [vmem:[#allocation31] sm:$0x1]
    %v5942 = vld [vmem:[#allocation32] sm:$0xf]
    %v5943 = vld [vmem:[#allocation32 + $0x4] sm:$0xf]
    %v5944 = vld [vmem:[#allocation32 + $0x8] sm:$0xf]
    %v5945 = vld [vmem:[#allocation32 + $0xc] sm:$0xf]
    %v5946 = vld [vmem:[#allocation32 + $0x10] sm:$0xf]
    %v5947 = vld [vmem:[#allocation32 + $0x14] sm:$0xf]
    %v5948 = vld [vmem:[#allocation32 + $0x18] sm:$0xf]
    %v5949 = vld [vmem:[#allocation32 + $0x1c] sm:$0xf]
    %v5950 = vld [vmem:[#allocation32 + $0x20] sm:$0xf]
    %v5951 = vld [vmem:[#allocation32 + $0x24] sm:$0xf]
    %v5952 = vld [vmem:[#allocation32 + $0x28] sm:$0xf]
    %v5953 = vld [vmem:[#allocation32 + $0x2c] sm:$0xf]
    %v5954 = vld [vmem:[#allocation32 + $0x30] sm:$0xf]
    %v5955 = vld [vmem:[#allocation32 + $0x34] sm:$0xf]
    %v5956 = vld [vmem:[#allocation32 + $0x38] sm:$0xf]
    %v5957 = vld [vmem:[#allocation32 + $0x3c] sm:$0xf]
    %v5958 = vld [vmem:[#allocation32 + $0x40] sm:$0xf]
    %v5959 = vld [vmem:[#allocation32 + $0x44] sm:$0xf]
    %v5960 = vld [vmem:[#allocation32 + $0x48] sm:$0xf]
    %v5961 = vld [vmem:[#allocation32 + $0x4c] sm:$0xf]
    %v5962 = vld [vmem:[#allocation32 + $0x50] sm:$0xf]
    %v5963 = vld [vmem:[#allocation32 + $0x54] sm:$0xf]
    %v5964 = vld [vmem:[#allocation32 + $0x58] sm:$0xf]
    %v5965 = vld [vmem:[#allocation32 + $0x5c] sm:$0xf]
    %v5966 = vld [vmem:[#allocation32 + $0x60] sm:$0xf]
    %v5967 = vld [vmem:[#allocation32 + $0x64] sm:$0xf]
    %v5968 = vld [vmem:[#allocation32 + $0x68] sm:$0xf]
    %v5969 = vld [vmem:[#allocation32 + $0x6c] sm:$0xf]
    %v5970 = vld [vmem:[#allocation32 + $0x70] sm:$0xf]
    %v5971 = vld [vmem:[#allocation32 + $0x74] sm:$0xf]
    %v5972 = vld [vmem:[#allocation32 + $0x78] sm:$0xf]
    %v5973 = vld [vmem:[#allocation32 + $0x7c] sm:$0xf]
    %v5974 = vld [vmem:[#allocation32 + $0x80] sm:$0xf]
    %v5975 = vld [vmem:[#allocation32 + $0x84] sm:$0xf]
    %v5976 = vld [vmem:[#allocation32 + $0x88] sm:$0xf]
    %v5977 = vld [vmem:[#allocation32 + $0x8c] sm:$0xf]
    %v5978 = vld [vmem:[#allocation32 + $0x90] sm:$0xf]
    %v5979 = vld [vmem:[#allocation32 + $0x94] sm:$0xf]
    %v5980 = vld [vmem:[#allocation32 + $0x98] sm:$0xf]
    %v5981 = vld [vmem:[#allocation32 + $0x9c] sm:$0xf]
    %v5982 = vld [vmem:[#allocation32 + $0xa0] sm:$0xf]
    %v5983 = vld [vmem:[#allocation32 + $0xa4] sm:$0xf]
    %v5984 = vld [vmem:[#allocation32 + $0xa8] sm:$0xf]
    %v5985 = vld [vmem:[#allocation32 + $0xac] sm:$0xf]
    %v5986 = vld [vmem:[#allocation32 + $0xb0] sm:$0xf]
    %v5987 = vld [vmem:[#allocation32 + $0xb4] sm:$0xf]
    %v5988 = vld [vmem:[#allocation32 + $0xb8] sm:$0xf]
    %v5989 = vld [vmem:[#allocation32 + $0xbc] sm:$0xf]
    %v5990 = vld [vmem:[#allocation34] sm:$0x1]
    %v5991 = vld [vmem:[#allocation35] sm:$0x1]
    %v5992 = vld [vmem:[#allocation37] sm:$0xf]
    %v5993 = vld [vmem:[#allocation37 + $0x4] sm:$0xf]
    %v5994 = vld [vmem:[#allocation37 + $0x8] sm:$0xf]
    %v5995 = vld [vmem:[#allocation37 + $0xc] sm:$0xf]
    %v5996 = vld [vmem:[#allocation37 + $0x10] sm:$0xf]
    %v5997 = vld [vmem:[#allocation37 + $0x14] sm:$0xf]
    %v5998 = vld [vmem:[#allocation37 + $0x18] sm:$0xf]
    %v5999 = vld [vmem:[#allocation37 + $0x1c] sm:$0xf]
    %v6000 = vld [vmem:[#allocation37 + $0x20] sm:$0xf]
    %v6001 = vld [vmem:[#allocation37 + $0x24] sm:$0xf]
    %v6002 = vld [vmem:[#allocation37 + $0x28] sm:$0xf]
    %v6003 = vld [vmem:[#allocation37 + $0x2c] sm:$0xf]
    %v6004 = vld [vmem:[#allocation37 + $0x30] sm:$0xf]
    %v6005 = vld [vmem:[#allocation37 + $0x34] sm:$0xf]
    %v6006 = vld [vmem:[#allocation37 + $0x38] sm:$0xf]
    %v6007 = vld [vmem:[#allocation37 + $0x3c] sm:$0xf]
    %v6008 = vld [vmem:[#allocation37 + $0x40] sm:$0xf]
    %v6009 = vld [vmem:[#allocation37 + $0x44] sm:$0xf]
    %v6010 = vld [vmem:[#allocation37 + $0x48] sm:$0xf]
    %v6011 = vld [vmem:[#allocation37 + $0x4c] sm:$0xf]
    %v6012 = vld [vmem:[#allocation37 + $0x50] sm:$0xf]
    %v6013 = vld [vmem:[#allocation37 + $0x54] sm:$0xf]
    %v6014 = vld [vmem:[#allocation37 + $0x58] sm:$0xf]
    %v6015 = vld [vmem:[#allocation37 + $0x5c] sm:$0xf]
    %v6016 = vld [vmem:[#allocation37 + $0x60] sm:$0xf]
    %v6017 = vld [vmem:[#allocation37 + $0x64] sm:$0xf]
    %v6018 = vld [vmem:[#allocation37 + $0x68] sm:$0xf]
    %v6019 = vld [vmem:[#allocation37 + $0x6c] sm:$0xf]
    %v6020 = vld [vmem:[#allocation37 + $0x70] sm:$0xf]
    %v6021 = vld [vmem:[#allocation37 + $0x74] sm:$0xf]
    %v6022 = vld [vmem:[#allocation37 + $0x78] sm:$0xf]
    %v6023 = vld [vmem:[#allocation37 + $0x7c] sm:$0xf]
    %v6024 = vld [vmem:[#allocation38] sm:$0x1]
    %v6025 = vld [vmem:[#allocation40] sm:$0x1]
    %v6034 = vrot.slane %v5834, 7
    %v6035 = vrot.slane %v5835, 7
    %v6036 = vrot.slane %v5836, 7
    %v6037 = vsel %vm694, %v6034, %v6036
    %v6038 = vrot.slane %v5837, 7
    %v6039 = vsel %vm694, %v6035, %v6038
    %v6040 = vrot.slane %v5838, 7
    %v6041 = vsel %vm694, %v6036, %v6040
    %v6042 = vrot.slane %v5839, 7
    %v6043 = vsel %vm694, %v6038, %v6042
    %v6044 = vrot.slane %v5840, 7
    %v6045 = vsel %vm694, %v6040, %v6044
    %v6046 = vrot.slane %v5841, 7
    %v6047 = vsel %vm694, %v6042, %v6046
    %v6056 = vsel %vm694, 0.0, %v6034
    %v6057 = vsel %vm694, 0.0, %v6035
    %v6058 = vrot.slane %v5834, 1
    %v6059 = vrot.slane %v5836, 1
    %v6060 = vsel %vm719, %v6058, %v6059
    %v6061 = vrot.slane %v5835, 1
    %v6062 = vrot.slane %v5837, 1
    %v6063 = vsel %vm719, %v6061, %v6062
    %v6064 = vrot.slane %v5838, 1
    %v6065 = vsel %vm719, %v6059, %v6064
    %v6066 = vrot.slane %v5839, 1
    %v6067 = vsel %vm719, %v6062, %v6066
    %v6068 = vrot.slane %v5840, 1
    %v6069 = vsel %vm719, %v6064, %v6068
    %v6070 = vrot.slane %v5841, 1
    %v6071 = vsel %vm719, %v6066, %v6070
    %v6080 = vsel %vm719, %v6068, 0.0
    %v6081 = vsel %vm719, %v6070, 0.0
    %v6082 = vsel %vm4854, 0.0, %v6056
    %v6083 = vsel %vm4854, 0.0, %v6057
    %v6084 = vsel %vm4855, 0.0, %v6037
    %v6085 = vsel %vm4855, 0.0, %v6039
    %v6086 = vsel %vm4856, 0.0, %v6041
    %v6087 = vsel %vm4856, 0.0, %v6043
    %v6088 = vsel %vm4857, 0.0, %v6045
    %v6089 = vsel %vm4857, 0.0, %v6047
    %v6090 = vsel %vm4874, 0.0, %v6060
    %v6091 = vsel %vm4874, 0.0, %v6063
    %v6092 = vsel %vm4875, 0.0, %v6065
    %v6093 = vsel %vm4875, 0.0, %v6067
    %v6094 = vsel %vm4876, 0.0, %v6069
    %v6095 = vsel %vm4876, 0.0, %v6071
    %v6096 = vsel %vm4877, 0.0, %v6080
    %v6097 = vsel %vm4877, 0.0, %v6081
    %v6098 = vpack.c.bf16 %v6084, %v6082
    %v6099 = vpack.c.bf16 %v6085, %v6083
    %v6100 = vpack.c.bf16 %v5836, %v5834
    %v6101 = vpack.c.bf16 %v5837, %v5835
    %v6102 = vpack.c.bf16 %v6092, %v6090
    %v6103 = vpack.c.bf16 %v6093, %v6091
    %v6104 = vpack.c.bf16 %v6088, %v6086
    %v6105 = vpack.c.bf16 %v6089, %v6087
    %v6106 = vpack.c.bf16 %v5840, %v5838
    %v6107 = vpack.c.bf16 %v5841, %v5839
    %v6108 = vpack.c.bf16 %v6096, %v6094
    %v6109 = vpack.c.bf16 %v6097, %v6095
    %v6112 = vunpack.c.l.b16 %v5842
    %v6113 = vunpack.c.l.b16 %v5843
    %v6114 = vpack.c.b16 %v6113, %v6112
    %vm6115 = vcmask 261120
    %v6117 = vsel %vm6115, %v6114, 0
    %6119 = vmatprep.subr.bf16.mxu0 0
    %6120 = vmatpush1.bf16.msra.mxu0 0
    %6121 = vmatprep.subr.bf16.mxu0 0
    %6122 = vmatpush1.bf16.msra.mxu0 0
    %6123 = vmatprep.subr.bf16.mxu0 0
    %6124 = vmatpush1.bf16.msra.mxu0 0
    %6125 = vmatprep.subr.bf16.mxu0 0
    %6126 = vmatpush1.bf16.msra.mxu0 0
    %6127 = vmatprep.subr.bf16.mxu0 0
    %6128 = vmatpush1.bf16.msra.mxu0 0
    %6129 = vmatprep.subr.bf16.mxu0 0
    %6130 = vmatpush1.bf16.msra.mxu0 0
    %6131 = vmatprep.subr.bf16.mxu0 %v6105
    %6132 = vmatpush1.bf16.msra.mxu0 %v6104
    %6133 = vmatprep.subr.bf16.mxu0 %v6099
    %6134 = vmatpush1.bf16.msra.mxu0 %v6098
    %6135 = vmatprep.subr.bf16.mxu0 0
    %6136 = vmatpush2.bf16.msra.mxu0 0
    %6137 = vmatprep.subr.bf16.mxu0 0
    %6138 = vmatpush2.bf16.msra.mxu0 0
    %6139 = vmatprep.subr.bf16.mxu0 0
    %6140 = vmatpush2.bf16.msra.mxu0 0
    %6141 = vmatprep.subr.bf16.mxu0 0
    %6142 = vmatpush2.bf16.msra.mxu0 0
    %6143 = vmatprep.subr.bf16.mxu0 0
    %6144 = vmatpush2.bf16.msra.mxu0 0
    %6145 = vmatprep.subr.bf16.mxu0 0
    %6146 = vmatpush2.bf16.msra.mxu0 0
    %6147 = vmatprep.subr.bf16.mxu0 0
    %6148 = vmatpush2.bf16.msra.mxu0 0
    %6149 = vmatprep.subr.bf16.mxu0 0
    %6150 = vmatpush2.bf16.msra.mxu0 0
    %6151 = vmatprep.mubr.bf16.mxu0 0
    %6152 = vmatmul.mubr.bf16.gmra.mxu0 %v6117
    %v6153 = vpop.f32.mrf.mxu0
    %v6154 = vadd.f32 0.0, %v6153
    %v6155 = vpop.f32.mrf.mxu0
    %v6156 = vadd.f32 0.0, %v6155
    %v6157 = vpop.f32.mrf.mxu0
    %v6158 = vadd.f32 0.0, %v6157
    %v6159 = vpop.f32.mrf.mxu0
    %v6160 = vadd.f32 0.0, %v6159
    %6161 = vdwg.mxu0
    %6162 = vmatprep.subr.bf16.mxu0 0
    %6163 = vmatpush1.bf16.msra.mxu0 0
    %6164 = vmatprep.subr.bf16.mxu0 0
    %6165 = vmatpush1.bf16.msra.mxu0 0
    %6166 = vmatprep.subr.bf16.mxu0 0
    %6167 = vmatpush1.bf16.msra.mxu0 0
    %6168 = vmatprep.subr.bf16.mxu0 0
    %6169 = vmatpush1.bf16.msra.mxu0 0
    %6170 = vmatprep.subr.bf16.mxu0 0
    %6171 = vmatpush1.bf16.msra.mxu0 0
    %6172 = vmatprep.subr.bf16.mxu0 0
    %6173 = vmatpush1.bf16.msra.mxu0 0
    %6174 = vmatprep.subr.bf16.mxu0 %v6107
    %6175 = vmatpush1.bf16.msra.mxu0 %v6106
    %6176 = vmatprep.subr.bf16.mxu0 %v6101
    %6177 = vmatpush1.bf16.msra.mxu0 %v6100
    %6178 = vmatprep.subr.bf16.mxu0 0
    %6179 = vmatpush2.bf16.msra.mxu0 0
    %6180 = vmatprep.subr.bf16.mxu0 0
    %6181 = vmatpush2.bf16.msra.mxu0 0
    %6182 = vmatprep.subr.bf16.mxu0 0
    %6183 = vmatpush2.bf16.msra.mxu0 0
    %6184 = vmatprep.subr.bf16.mxu0 0
    %6185 = vmatpush2.bf16.msra.mxu0 0
    %6186 = vmatprep.subr.bf16.mxu0 0
    %6187 = vmatpush2.bf16.msra.mxu0 0
    %6188 = vmatprep.subr.bf16.mxu0 0
    %6189 = vmatpush2.bf16.msra.mxu0 0
    %6190 = vmatprep.subr.bf16.mxu0 0
    %6191 = vmatpush2.bf16.msra.mxu0 0
    %6192 = vmatprep.subr.bf16.mxu0 0
    %6193 = vmatpush2.bf16.msra.mxu0 0
    %6194 = vmatprep.mubr.bf16.mxu0 0
    %6195 = vmatmul.mubr.bf16.gmra.mxu0 %v6117
    %v6196 = vpop.f32.mrf.mxu0
    %v6197 = vadd.f32 0.0, %v6196
    %v6198 = vpop.f32.mrf.mxu0
    %v6199 = vadd.f32 0.0, %v6198
    %v6200 = vpop.f32.mrf.mxu0
    %v6201 = vadd.f32 0.0, %v6200
    %v6202 = vpop.f32.mrf.mxu0
    %v6203 = vadd.f32 0.0, %v6202
    %6204 = vdwg.mxu0
    %6205 = vmatprep.subr.bf16.mxu0 0
    %6206 = vmatpush1.bf16.msra.mxu0 0
    %6207 = vmatprep.subr.bf16.mxu0 0
    %6208 = vmatpush1.bf16.msra.mxu0 0
    %6209 = vmatprep.subr.bf16.mxu0 0
    %6210 = vmatpush1.bf16.msra.mxu0 0
    %6211 = vmatprep.subr.bf16.mxu0 0
    %6212 = vmatpush1.bf16.msra.mxu0 0
    %6213 = vmatprep.subr.bf16.mxu0 0
    %6214 = vmatpush1.bf16.msra.mxu0 0
    %6215 = vmatprep.subr.bf16.mxu0 0
    %6216 = vmatpush1.bf16.msra.mxu0 0
    %6217 = vmatprep.subr.bf16.mxu0 %v6109
    %6218 = vmatpush1.bf16.msra.mxu0 %v6108
    %6219 = vmatprep.subr.bf16.mxu0 %v6103
    %6220 = vmatpush1.bf16.msra.mxu0 %v6102
    %6221 = vmatprep.subr.bf16.mxu0 0
    %6222 = vmatpush2.bf16.msra.mxu0 0
    %6223 = vmatprep.subr.bf16.mxu0 0
    %6224 = vmatpush2.bf16.msra.mxu0 0
    %6225 = vmatprep.subr.bf16.mxu0 0
    %6226 = vmatpush2.bf16.msra.mxu0 0
    %6227 = vmatprep.subr.bf16.mxu0 0
    %6228 = vmatpush2.bf16.msra.mxu0 0
    %6229 = vmatprep.subr.bf16.mxu0 0
    %6230 = vmatpush2.bf16.msra.mxu0 0
    %6231 = vmatprep.subr.bf16.mxu0 0
    %6232 = vmatpush2.bf16.msra.mxu0 0
    %6233 = vmatprep.subr.bf16.mxu0 0
    %6234 = vmatpush2.bf16.msra.mxu0 0
    %6235 = vmatprep.subr.bf16.mxu0 0
    %6236 = vmatpush2.bf16.msra.mxu0 0
    %6237 = vmatprep.mubr.bf16.mxu0 0
    %6238 = vmatmul.mubr.bf16.gmra.mxu0 %v6117
    %v6239 = vpop.f32.mrf.mxu0
    %v6240 = vadd.f32 0.0, %v6239
    %v6241 = vpop.f32.mrf.mxu0
    %v6242 = vadd.f32 0.0, %v6241
    %v6243 = vpop.f32.mrf.mxu0
    %v6244 = vadd.f32 0.0, %v6243
    %v6245 = vpop.f32.mrf.mxu0
    %v6246 = vadd.f32 0.0, %v6245
    %6247 = vdwg.mxu0
    %v6248 = vpack.c.bf16 %v6158, %v6154
    %v6249 = vpack.c.bf16 %v6160, %v6156
    %v6250 = vpack.c.bf16 %v6201, %v6197
    %v6251 = vpack.c.bf16 %v6203, %v6199
    %v6252 = vpack.c.bf16 %v6244, %v6240
    %v6253 = vpack.c.bf16 %v6246, %v6242
    %v6350 = vunpack.c.l.b16 %v5844
    %v6351 = vunpack.c.l.b16 %v5845
    %v6352 = vunpack.c.l.b16 %v5846
    %v6353 = vunpack.c.l.b16 %v5847
    %v6354 = vunpack.c.l.b16 %v5848
    %v6355 = vunpack.c.l.b16 %v5849
    %v6356 = vunpack.c.l.b16 %v5850
    %v6357 = vunpack.c.l.b16 %v5851
    %v6358 = vunpack.c.l.b16 %v5852
    %v6359 = vunpack.c.l.b16 %v5853
    %v6360 = vunpack.c.l.b16 %v5854
    %v6361 = vunpack.c.l.b16 %v5855
    %v6362 = vunpack.c.l.b16 %v5856
    %v6363 = vunpack.c.l.b16 %v5857
    %v6364 = vunpack.c.l.b16 %v5858
    %v6365 = vunpack.c.l.b16 %v5859
    %v6366 = vunpack.c.l.b16 %v5860
    %v6367 = vunpack.c.l.b16 %v5861
    %v6368 = vunpack.c.l.b16 %v5862
    %v6369 = vunpack.c.l.b16 %v5863
    %v6370 = vunpack.c.l.b16 %v5864
    %v6371 = vunpack.c.l.b16 %v5865
    %v6372 = vunpack.c.l.b16 %v5866
    %v6373 = vunpack.c.l.b16 %v5867
    %v6374 = vunpack.c.l.b16 %v5868
    %v6375 = vunpack.c.l.b16 %v5869
    %v6376 = vunpack.c.l.b16 %v5870
    %v6377 = vunpack.c.l.b16 %v5871
    %v6378 = vunpack.c.l.b16 %v5872
    %v6379 = vunpack.c.l.b16 %v5873
    %v6380 = vunpack.c.l.b16 %v5874
    %v6381 = vunpack.c.l.b16 %v5875
    %v6382 = vunpack.c.l.b16 %v5876
    %v6383 = vunpack.c.l.b16 %v5877
    %v6384 = vunpack.c.l.b16 %v5878
    %v6385 = vunpack.c.l.b16 %v5879
    %v6386 = vunpack.c.l.b16 %v5880
    %v6387 = vunpack.c.l.b16 %v5881
    %v6388 = vunpack.c.l.b16 %v5882
    %v6389 = vunpack.c.l.b16 %v5883
    %v6390 = vunpack.c.l.b16 %v5884
    %v6391 = vunpack.c.l.b16 %v5885
    %v6392 = vunpack.c.l.b16 %v5886
    %v6393 = vunpack.c.l.b16 %v5887
    %v6394 = vunpack.c.l.b16 %v5888
    %v6395 = vunpack.c.l.b16 %v5889
    %v6396 = vunpack.c.l.b16 %v5890
    %v6397 = vunpack.c.l.b16 %v5891
    %v6398 = vunpack.c.l.b16 %v5892
    %v6399 = vunpack.c.l.b16 %v5893
    %v6400 = vunpack.c.l.b16 %v5894
    %v6401 = vunpack.c.l.b16 %v5895
    %v6402 = vunpack.c.l.b16 %v5896
    %v6403 = vunpack.c.l.b16 %v5897
    %v6404 = vunpack.c.l.b16 %v5898
    %v6405 = vunpack.c.l.b16 %v5899
    %v6406 = vunpack.c.l.b16 %v5900
    %v6407 = vunpack.c.l.b16 %v5901
    %v6408 = vunpack.c.l.b16 %v5902
    %v6409 = vunpack.c.l.b16 %v5903
    %v6410 = vunpack.c.l.b16 %v5904
    %v6411 = vunpack.c.l.b16 %v5905
    %v6412 = vunpack.c.l.b16 %v5906
    %v6413 = vunpack.c.l.b16 %v5907
    %v6414 = vunpack.c.l.b16 %v5908
    %v6415 = vunpack.c.l.b16 %v5909
    %v6416 = vunpack.c.l.b16 %v5910
    %v6417 = vunpack.c.l.b16 %v5911
    %v6418 = vunpack.c.l.b16 %v5912
    %v6419 = vunpack.c.l.b16 %v5913
    %v6420 = vunpack.c.l.b16 %v5914
    %v6421 = vunpack.c.l.b16 %v5915
    %v6422 = vunpack.c.l.b16 %v5916
    %v6423 = vunpack.c.l.b16 %v5917
    %v6424 = vunpack.c.l.b16 %v5918
    %v6425 = vunpack.c.l.b16 %v5919
    %v6426 = vunpack.c.l.b16 %v5920
    %v6427 = vunpack.c.l.b16 %v5921
    %v6428 = vunpack.c.l.b16 %v5922
    %v6429 = vunpack.c.l.b16 %v5923
    %v6430 = vunpack.c.l.b16 %v5924
    %v6431 = vunpack.c.l.b16 %v5925
    %v6432 = vunpack.c.l.b16 %v5926
    %v6433 = vunpack.c.l.b16 %v5927
    %v6434 = vunpack.c.l.b16 %v5928
    %v6435 = vunpack.c.l.b16 %v5929
    %v6436 = vunpack.c.l.b16 %v5930
    %v6437 = vunpack.c.l.b16 %v5931
    %v6438 = vunpack.c.l.b16 %v5932
    %v6439 = vunpack.c.l.b16 %v5933
    %v6440 = vunpack.c.l.b16 %v5934
    %v6441 = vunpack.c.l.b16 %v5935
    %v6442 = vunpack.c.l.b16 %v5936
    %v6443 = vunpack.c.l.b16 %v5937
    %v6444 = vunpack.c.l.b16 %v5938
    %v6445 = vunpack.c.l.b16 %v5939
    %v6446 = vpack.c.b16 %v6351, %v6350
    %v6447 = vpack.c.b16 %v6353, %v6352
    %v6448 = vpack.c.b16 %v6355, %v6354
    %v6449 = vpack.c.b16 %v6357, %v6356
    %v6450 = vpack.c.b16 %v6359, %v6358
    %v6451 = vpack.c.b16 %v6361, %v6360
    %v6452 = vpack.c.b16 %v6363, %v6362
    %v6453 = vpack.c.b16 %v6365, %v6364
    %v6454 = vpack.c.b16 %v6367, %v6366
    %v6455 = vpack.c.b16 %v6369, %v6368
    %v6456 = vpack.c.b16 %v6371, %v6370
    %v6457 = vpack.c.b16 %v6373, %v6372
    %v6458 = vpack.c.b16 %v6375, %v6374
    %v6459 = vpack.c.b16 %v6377, %v6376
    %v6460 = vpack.c.b16 %v6379, %v6378
    %v6461 = vpack.c.b16 %v6381, %v6380
    %v6462 = vpack.c.b16 %v6383, %v6382
    %v6463 = vpack.c.b16 %v6385, %v6384
    %v6464 = vpack.c.b16 %v6387, %v6386
    %v6465 = vpack.c.b16 %v6389, %v6388
    %v6466 = vpack.c.b16 %v6391, %v6390
    %v6467 = vpack.c.b16 %v6393, %v6392
    %v6468 = vpack.c.b16 %v6395, %v6394
    %v6469 = vpack.c.b16 %v6397, %v6396
    %v6470 = vpack.c.b16 %v6399, %v6398
    %v6471 = vpack.c.b16 %v6401, %v6400
    %v6472 = vpack.c.b16 %v6403, %v6402
    %v6473 = vpack.c.b16 %v6405, %v6404
    %v6474 = vpack.c.b16 %v6407, %v6406
    %v6475 = vpack.c.b16 %v6409, %v6408
    %v6476 = vpack.c.b16 %v6411, %v6410
    %v6477 = vpack.c.b16 %v6413, %v6412
    %v6478 = vpack.c.b16 %v6415, %v6414
    %v6479 = vpack.c.b16 %v6417, %v6416
    %v6480 = vpack.c.b16 %v6419, %v6418
    %v6481 = vpack.c.b16 %v6421, %v6420
    %v6482 = vpack.c.b16 %v6423, %v6422
    %v6483 = vpack.c.b16 %v6425, %v6424
    %v6484 = vpack.c.b16 %v6427, %v6426
    %v6485 = vpack.c.b16 %v6429, %v6428
    %v6486 = vpack.c.b16 %v6431, %v6430
    %v6487 = vpack.c.b16 %v6433, %v6432
    %v6488 = vpack.c.b16 %v6435, %v6434
    %v6489 = vpack.c.b16 %v6437, %v6436
    %v6490 = vpack.c.b16 %v6439, %v6438
    %v6491 = vpack.c.b16 %v6441, %v6440
    %v6492 = vpack.c.b16 %v6443, %v6442
    %v6493 = vpack.c.b16 %v6445, %v6444
    %6542 = vmatprep.subr.bf16.mxu0 0
    %6543 = vmatpush1.bf16.msra.mxu0 %v6453
    %6544 = vmatprep.subr.bf16.mxu0 0
    %6545 = vmatpush1.bf16.msra.mxu0 %v6452
    %6546 = vmatprep.subr.bf16.mxu0 0
    %6547 = vmatpush1.bf16.msra.mxu0 %v6451
    %6548 = vmatprep.subr.bf16.mxu0 0
    %6549 = vmatpush1.bf16.msra.mxu0 %v6450
    %6550 = vmatprep.subr.bf16.mxu0 0
    %6551 = vmatpush1.bf16.msra.mxu0 %v6449
    %6552 = vmatprep.subr.bf16.mxu0 0
    %6553 = vmatpush1.bf16.msra.mxu0 %v6448
    %6554 = vmatprep.subr.bf16.mxu0 0
    %6555 = vmatpush1.bf16.msra.mxu0 %v6447
    %6556 = vmatprep.subr.bf16.mxu0 0
    %6557 = vmatpush1.bf16.msra.mxu0 %v6446
    %6558 = vmatprep.subr.bf16.mxu0 0
    %6559 = vmatpush2.bf16.msra.mxu0 %v6461
    %6560 = vmatprep.subr.bf16.mxu0 0
    %6561 = vmatpush2.bf16.msra.mxu0 %v6460
    %6562 = vmatprep.subr.bf16.mxu0 0
    %6563 = vmatpush2.bf16.msra.mxu0 %v6459
    %6564 = vmatprep.subr.bf16.mxu0 0
    %6565 = vmatpush2.bf16.msra.mxu0 %v6458
    %6566 = vmatprep.subr.bf16.mxu0 0
    %6567 = vmatpush2.bf16.msra.mxu0 %v6457
    %6568 = vmatprep.subr.bf16.mxu0 0
    %6569 = vmatpush2.bf16.msra.mxu0 %v6456
    %6570 = vmatprep.subr.bf16.mxu0 0
    %6571 = vmatpush2.bf16.msra.mxu0 %v6455
    %6572 = vmatprep.subr.bf16.mxu0 0
    %6573 = vmatpush2.bf16.msra.mxu0 %v6454
    %6574 = vmatprep.mubr.bf16.mxu0 %v6249
    %6575 = vmatmul.mubr.bf16.gmra.mxu0 %v6248
    %v6576 = vpop.f32.mrf.mxu0
    %v6577 = vadd.f32 0.0, %v6576
    %v6578 = vpop.f32.mrf.mxu0
    %v6579 = vpop.f32.mrf.mxu0
    %v6580 = vadd.f32 0.0, %v6579
    %v6581 = vpop.f32.mrf.mxu0
    %6582 = vdwg.mxu0
    %6583 = vmatprep.subr.bf16.mxu0 0
    %6584 = vmatpush1.bf16.msra.mxu0 %v6469
    %6585 = vmatprep.subr.bf16.mxu0 0
    %6586 = vmatpush1.bf16.msra.mxu0 %v6468
    %6587 = vmatprep.subr.bf16.mxu0 0
    %6588 = vmatpush1.bf16.msra.mxu0 %v6467
    %6589 = vmatprep.subr.bf16.mxu0 0
    %6590 = vmatpush1.bf16.msra.mxu0 %v6466
    %6591 = vmatprep.subr.bf16.mxu0 0
    %6592 = vmatpush1.bf16.msra.mxu0 %v6465
    %6593 = vmatprep.subr.bf16.mxu0 0
    %6594 = vmatpush1.bf16.msra.mxu0 %v6464
    %6595 = vmatprep.subr.bf16.mxu0 0
    %6596 = vmatpush1.bf16.msra.mxu0 %v6463
    %6597 = vmatprep.subr.bf16.mxu0 0
    %6598 = vmatpush1.bf16.msra.mxu0 %v6462
    %6599 = vmatprep.subr.bf16.mxu0 0
    %6600 = vmatpush2.bf16.msra.mxu0 %v6477
    %6601 = vmatprep.subr.bf16.mxu0 0
    %6602 = vmatpush2.bf16.msra.mxu0 %v6476
    %6603 = vmatprep.subr.bf16.mxu0 0
    %6604 = vmatpush2.bf16.msra.mxu0 %v6475
    %6605 = vmatprep.subr.bf16.mxu0 0
    %6606 = vmatpush2.bf16.msra.mxu0 %v6474
    %6607 = vmatprep.subr.bf16.mxu0 0
    %6608 = vmatpush2.bf16.msra.mxu0 %v6473
    %6609 = vmatprep.subr.bf16.mxu0 0
    %6610 = vmatpush2.bf16.msra.mxu0 %v6472
    %6611 = vmatprep.subr.bf16.mxu0 0
    %6612 = vmatpush2.bf16.msra.mxu0 %v6471
    %6613 = vmatprep.subr.bf16.mxu0 0
    %6614 = vmatpush2.bf16.msra.mxu0 %v6470
    %6615 = vmatprep.mubr.bf16.mxu0 %v6251
    %6616 = vmatmul.mubr.bf16.gmra.mxu0 %v6250
    %v6617 = vpop.f32.mrf.mxu0
    %v6618 = vadd.f32 %v6577, %v6617
    %v6619 = vpop.f32.mrf.mxu0
    %v6620 = vpop.f32.mrf.mxu0
    %v6621 = vadd.f32 %v6580, %v6620
    %v6622 = vpop.f32.mrf.mxu0
    %6623 = vdwg.mxu0
    %6624 = vmatprep.subr.bf16.mxu0 0
    %6625 = vmatpush1.bf16.msra.mxu0 %v6485
    %6626 = vmatprep.subr.bf16.mxu0 0
    %6627 = vmatpush1.bf16.msra.mxu0 %v6484
    %6628 = vmatprep.subr.bf16.mxu0 0
    %6629 = vmatpush1.bf16.msra.mxu0 %v6483
    %6630 = vmatprep.subr.bf16.mxu0 0
    %6631 = vmatpush1.bf16.msra.mxu0 %v6482
    %6632 = vmatprep.subr.bf16.mxu0 0
    %6633 = vmatpush1.bf16.msra.mxu0 %v6481
    %6634 = vmatprep.subr.bf16.mxu0 0
    %6635 = vmatpush1.bf16.msra.mxu0 %v6480
    %6636 = vmatprep.subr.bf16.mxu0 0
    %6637 = vmatpush1.bf16.msra.mxu0 %v6479
    %6638 = vmatprep.subr.bf16.mxu0 0
    %6639 = vmatpush1.bf16.msra.mxu0 %v6478
    %6640 = vmatprep.subr.bf16.mxu0 0
    %6641 = vmatpush2.bf16.msra.mxu0 %v6493
    %6642 = vmatprep.subr.bf16.mxu0 0
    %6643 = vmatpush2.bf16.msra.mxu0 %v6492
    %6644 = vmatprep.subr.bf16.mxu0 0
    %6645 = vmatpush2.bf16.msra.mxu0 %v6491
    %6646 = vmatprep.subr.bf16.mxu0 0
    %6647 = vmatpush2.bf16.msra.mxu0 %v6490
    %6648 = vmatprep.subr.bf16.mxu0 0
    %6649 = vmatpush2.bf16.msra.mxu0 %v6489
    %6650 = vmatprep.subr.bf16.mxu0 0
    %6651 = vmatpush2.bf16.msra.mxu0 %v6488
    %6652 = vmatprep.subr.bf16.mxu0 0
    %6653 = vmatpush2.bf16.msra.mxu0 %v6487
    %6654 = vmatprep.subr.bf16.mxu0 0
    %6655 = vmatpush2.bf16.msra.mxu0 %v6486
    %6656 = vmatprep.mubr.bf16.mxu0 %v6253
    %6657 = vmatmul.mubr.bf16.gmra.mxu0 %v6252
    %v6658 = vpop.f32.mrf.mxu0
    %v6659 = vadd.f32 %v6618, %v6658
    %v6660 = vpop.f32.mrf.mxu0
    %v6661 = vpop.f32.mrf.mxu0
    %v6662 = vadd.f32 %v6621, %v6661
    %v6663 = vpop.f32.mrf.mxu0
    %6664 = vdwg.mxu0
    %v6666 = vlaneseq
    %v6667 = vshrl.u32 %v6666, 7
    %v6668 = vsub.s32 0, %v6667
    %v6669 = vrot.slane %v5940, %v6668
    %v6671 = vmul.f32 %v6659, %v6669
    %v6672 = vmul.f32 %v6662, %v6669
    %v6674 = vlaneseq
    %v6675 = vshrl.u32 %v6674, 7
    %v6676 = vsub.s32 0, %v6675
    %v6677 = vrot.slane %v5941, %v6676
    %v6679 = vadd.f32 %v6671, %v6677
    %v6680 = vadd.f32 %v6672, %v6677
    %v6681 = vmax.f32 %v6679, 0.0
    %v6682 = vmax.f32 %v6680, 0.0
    %v6685 = vrot.slane %v6681, 7
    %v6686 = vrot.slane %v6682, 7
    %v6687 = vsel %vm694, %v6685, %v6686
    %v6690 = vsel %vm694, 0.0, %v6685
    %v6691 = vrot.slane %v6681, 1
    %v6692 = vrot.slane %v6682, 1
    %v6693 = vsel %vm719, %v6691, %v6692
    %v6696 = vsel %vm719, %v6692, 0.0
    %vm6697 = vcmp.lt.s32.totalorder %v745, 0
    %v6698 = vsub.s32 0, %v745
    %v6699 = vsel %vm6697, %v6698, %v745
    %v6700 = vshrl.u32 %v6699, 3
    %v6701 = vand.u32 %v6699, 7
    %v6702 = vsub.s32 0, %v6701
    %v6703 = vsel %vm6697, %v6702, %v6701
    %vm6704 = vcmp.lt.s32.totalorder %v746, 0
    %v6705 = vsub.s32 0, %v746
    %v6706 = vsel %vm6704, %v6705, %v746
    %v6707 = vshrl.u32 %v6706, 3
    %v6708 = vand.u32 %v6706, 7
    %v6709 = vsub.s32 0, %v6708
    %v6710 = vsel %vm6704, %v6709, %v6708
    %vm6711 = vcmp.ne.s32.totalorder %v6703, 0
    %vm6712 = vcmp.ne.s32.totalorder %v6710, 0
    %vm6713 = vcmp.lt.s32.totalorder %v6703, 0
    %vm6714 = vcmp.lt.s32.totalorder %v6710, 0
    %vm6715 = vmand %vm6713, %vm6711
    %vm6716 = vmand %vm6714, %vm6712
    %v6717 = vadd.s32 %v6703, 8
    %v6718 = vadd.s32 %v6710, 8
    %v6719 = vsel %vm6715, %v6717, %v6703
    %v6720 = vsel %vm6716, %v6718, %v6710
    %vm6721 = vcmp.eq.s32.totalorder %v6719, 0
    %vm6722 = vcmp.eq.s32.totalorder %v6720, 0
    %v6723 = vsel %vm6721, 1, 0
    %v6724 = vsel %vm6722, 1, 0
    %vm6725 = vcmp.eq.s32.totalorder %v6723, 1
    %vm6726 = vcmp.eq.s32.totalorder %v6724, 1
    %v6727 = vsel %vm6725, 0.0, %v6690
    %v6728 = vsel %vm6726, 0.0, %v6687
    %vm6729 = vcmp.eq.s32.totalorder %v6719, 7
    %vm6730 = vcmp.eq.s32.totalorder %v6720, 7
    %v6731 = vsel %vm6729, 1, 0
    %v6732 = vsel %vm6730, 1, 0
    %vm6733 = vcmp.eq.s32.totalorder %v6731, 1
    %vm6734 = vcmp.eq.s32.totalorder %v6732, 1
    %v6735 = vsel %vm6733, 0.0, %v6693
    %v6736 = vsel %vm6734, 0.0, %v6696
    %v6737 = vpack.c.bf16 %v6728, %v6727
    %v6738 = vpack.c.bf16 %v6682, %v6681
    %v6739 = vpack.c.bf16 %v6736, %v6735
    %v6788 = vunpack.c.l.b16 %v5942
    %v6789 = vunpack.c.l.b16 %v5943
    %v6790 = vunpack.c.l.b16 %v5944
    %v6791 = vunpack.c.l.b16 %v5945
    %v6792 = vunpack.c.l.b16 %v5946
    %v6793 = vunpack.c.l.b16 %v5947
    %v6794 = vunpack.c.l.b16 %v5948
    %v6795 = vunpack.c.l.b16 %v5949
    %v6796 = vunpack.c.l.b16 %v5950
    %v6797 = vunpack.c.l.b16 %v5951
    %v6798 = vunpack.c.l.b16 %v5952
    %v6799 = vunpack.c.l.b16 %v5953
    %v6800 = vunpack.c.l.b16 %v5954
    %v6801 = vunpack.c.l.b16 %v5955
    %v6802 = vunpack.c.l.b16 %v5956
    %v6803 = vunpack.c.l.b16 %v5957
    %v6804 = vunpack.c.l.b16 %v5958
    %v6805 = vunpack.c.l.b16 %v5959
    %v6806 = vunpack.c.l.b16 %v5960
    %v6807 = vunpack.c.l.b16 %v5961
    %v6808 = vunpack.c.l.b16 %v5962
    %v6809 = vunpack.c.l.b16 %v5963
    %v6810 = vunpack.c.l.b16 %v5964
    %v6811 = vunpack.c.l.b16 %v5965
    %v6812 = vunpack.c.l.b16 %v5966
    %v6813 = vunpack.c.l.b16 %v5967
    %v6814 = vunpack.c.l.b16 %v5968
    %v6815 = vunpack.c.l.b16 %v5969
    %v6816 = vunpack.c.l.b16 %v5970
    %v6817 = vunpack.c.l.b16 %v5971
    %v6818 = vunpack.c.l.b16 %v5972
    %v6819 = vunpack.c.l.b16 %v5973
    %v6820 = vunpack.c.l.b16 %v5974
    %v6821 = vunpack.c.l.b16 %v5975
    %v6822 = vunpack.c.l.b16 %v5976
    %v6823 = vunpack.c.l.b16 %v5977
    %v6824 = vunpack.c.l.b16 %v5978
    %v6825 = vunpack.c.l.b16 %v5979
    %v6826 = vunpack.c.l.b16 %v5980
    %v6827 = vunpack.c.l.b16 %v5981
    %v6828 = vunpack.c.l.b16 %v5982
    %v6829 = vunpack.c.l.b16 %v5983
    %v6830 = vunpack.c.l.b16 %v5984
    %v6831 = vunpack.c.l.b16 %v5985
    %v6832 = vunpack.c.l.b16 %v5986
    %v6833 = vunpack.c.l.b16 %v5987
    %v6834 = vunpack.c.l.b16 %v5988
    %v6835 = vunpack.c.l.b16 %v5989
    %v6836 = vpack.c.b16 %v6789, %v6788
    %v6837 = vpack.c.b16 %v6791, %v6790
    %v6838 = vpack.c.b16 %v6793, %v6792
    %v6839 = vpack.c.b16 %v6795, %v6794
    %v6840 = vpack.c.b16 %v6797, %v6796
    %v6841 = vpack.c.b16 %v6799, %v6798
    %v6842 = vpack.c.b16 %v6801, %v6800
    %v6843 = vpack.c.b16 %v6803, %v6802
    %v6844 = vpack.c.b16 %v6805, %v6804
    %v6845 = vpack.c.b16 %v6807, %v6806
    %v6846 = vpack.c.b16 %v6809, %v6808
    %v6847 = vpack.c.b16 %v6811, %v6810
    %v6848 = vpack.c.b16 %v6813, %v6812
    %v6849 = vpack.c.b16 %v6815, %v6814
    %v6850 = vpack.c.b16 %v6817, %v6816
    %v6851 = vpack.c.b16 %v6819, %v6818
    %v6852 = vpack.c.b16 %v6821, %v6820
    %v6853 = vpack.c.b16 %v6823, %v6822
    %v6854 = vpack.c.b16 %v6825, %v6824
    %v6855 = vpack.c.b16 %v6827, %v6826
    %v6856 = vpack.c.b16 %v6829, %v6828
    %v6857 = vpack.c.b16 %v6831, %v6830
    %v6858 = vpack.c.b16 %v6833, %v6832
    %v6859 = vpack.c.b16 %v6835, %v6834
    %6884 = vmatprep.subr.bf16.mxu0 0
    %6885 = vmatpush1.bf16.msra.mxu0 %v6843
    %6886 = vmatprep.subr.bf16.mxu0 0
    %6887 = vmatpush1.bf16.msra.mxu0 %v6842
    %6888 = vmatprep.subr.bf16.mxu0 0
    %6889 = vmatpush1.bf16.msra.mxu0 %v6841
    %6890 = vmatprep.subr.bf16.mxu0 0
    %6891 = vmatpush1.bf16.msra.mxu0 %v6840
    %6892 = vmatprep.subr.bf16.mxu0 0
    %6893 = vmatpush1.bf16.msra.mxu0 %v6839
    %6894 = vmatprep.subr.bf16.mxu0 0
    %6895 = vmatpush1.bf16.msra.mxu0 %v6838
    %6896 = vmatprep.subr.bf16.mxu0 0
    %6897 = vmatpush1.bf16.msra.mxu0 %v6837
    %6898 = vmatprep.subr.bf16.mxu0 0
    %6899 = vmatpush1.bf16.msra.mxu0 %v6836
    %6900 = vmatprep.subr.bf16.mxu0 0
    %6901 = vmatpush2.bf16.msra.mxu0 %v6851
    %6902 = vmatprep.subr.bf16.mxu0 0
    %6903 = vmatpush2.bf16.msra.mxu0 %v6850
    %6904 = vmatprep.subr.bf16.mxu0 0
    %6905 = vmatpush2.bf16.msra.mxu0 %v6849
    %6906 = vmatprep.subr.bf16.mxu0 0
    %6907 = vmatpush2.bf16.msra.mxu0 %v6848
    %6908 = vmatprep.subr.bf16.mxu0 0
    %6909 = vmatpush2.bf16.msra.mxu0 %v6847
    %6910 = vmatprep.subr.bf16.mxu0 0
    %6911 = vmatpush2.bf16.msra.mxu0 %v6846
    %6912 = vmatprep.subr.bf16.mxu0 0
    %6913 = vmatpush2.bf16.msra.mxu0 %v6845
    %6914 = vmatprep.subr.bf16.mxu0 0
    %6915 = vmatpush2.bf16.msra.mxu0 %v6844
    %6916 = vmatprep.mubr.bf16.mxu0 %v6738
    %6917 = vmatmul.mubr.bf16.gmra.mxu0 %v6737
    %v6918 = vpop.f32.mrf.mxu0
    %v6919 = vadd.f32 0.0, %v6918
    %v6920 = vpop.f32.mrf.mxu0
    %v6921 = vpop.f32.mrf.mxu0
    %v6922 = vadd.f32 0.0, %v6921
    %v6923 = vpop.f32.mrf.mxu0
    %6924 = vdwg.mxu0
    %6925 = vmatprep.subr.bf16.mxu0 0
    %6926 = vmatpush1.bf16.msra.mxu0 %v6859
    %6927 = vmatprep.subr.bf16.mxu0 0
    %6928 = vmatpush1.bf16.msra.mxu0 %v6858
    %6929 = vmatprep.subr.bf16.mxu0 0
    %6930 = vmatpush1.bf16.msra.mxu0 %v6857
    %6931 = vmatprep.subr.bf16.mxu0 0
    %6932 = vmatpush1.bf16.msra.mxu0 %v6856
    %6933 = vmatprep.subr.bf16.mxu0 0
    %6934 = vmatpush1.bf16.msra.mxu0 %v6855
    %6935 = vmatprep.subr.bf16.mxu0 0
    %6936 = vmatpush1.bf16.msra.mxu0 %v6854
    %6937 = vmatprep.subr.bf16.mxu0 0
    %6938 = vmatpush1.bf16.msra.mxu0 %v6853
    %6939 = vmatprep.subr.bf16.mxu0 0
    %6940 = vmatpush1.bf16.msra.mxu0 %v6852
    %6941 = vmatprep.subr.bf16.mxu0 0
    %6942 = vmatpush2.bf16.msra.mxu0 0
    %6943 = vmatprep.subr.bf16.mxu0 0
    %6944 = vmatpush2.bf16.msra.mxu0 0
    %6945 = vmatprep.subr.bf16.mxu0 0
    %6946 = vmatpush2.bf16.msra.mxu0 0
    %6947 = vmatprep.subr.bf16.mxu0 0
    %6948 = vmatpush2.bf16.msra.mxu0 0
    %6949 = vmatprep.subr.bf16.mxu0 0
    %6950 = vmatpush2.bf16.msra.mxu0 0
    %6951 = vmatprep.subr.bf16.mxu0 0
    %6952 = vmatpush2.bf16.msra.mxu0 0
    %6953 = vmatprep.subr.bf16.mxu0 0
    %6954 = vmatpush2.bf16.msra.mxu0 0
    %6955 = vmatprep.subr.bf16.mxu0 0
    %6956 = vmatpush2.bf16.msra.mxu0 0
    %6957 = vmatprep.mubr.bf16.mxu0 0
    %6958 = vmatmul.mubr.bf16.gmra.mxu0 %v6739
    %v6959 = vpop.f32.mrf.mxu0
    %v6960 = vadd.f32 %v6919, %v6959
    %v6961 = vpop.f32.mrf.mxu0
    %v6962 = vpop.f32.mrf.mxu0
    %v6963 = vadd.f32 %v6922, %v6962
    %v6964 = vpop.f32.mrf.mxu0
    %6965 = vdwg.mxu0
    %v6967 = vlaneseq
    %v6968 = vshrl.u32 %v6967, 7
    %v6969 = vsub.s32 0, %v6968
    %v6970 = vrot.slane %v5990, %v6969
    %v6972 = vmul.f32 %v6960, %v6970
    %v6973 = vmul.f32 %v6963, %v6970
    %v6975 = vlaneseq
    %v6976 = vshrl.u32 %v6975, 7
    %v6977 = vsub.s32 0, %v6976
    %v6978 = vrot.slane %v5991, %v6977
    %v6980 = vadd.f32 %v6972, %v6978
    %v6981 = vadd.f32 %v6973, %v6978
    %v7014 = vunpack.c.l.b16 %v5992
    %v7015 = vunpack.c.l.b16 %v5993
    %v7016 = vunpack.c.l.b16 %v5994
    %v7017 = vunpack.c.l.b16 %v5995
    %v7018 = vunpack.c.l.b16 %v5996
    %v7019 = vunpack.c.l.b16 %v5997
    %v7020 = vunpack.c.l.b16 %v5998
    %v7021 = vunpack.c.l.b16 %v5999
    %v7022 = vunpack.c.l.b16 %v6000
    %v7023 = vunpack.c.l.b16 %v6001
    %v7024 = vunpack.c.l.b16 %v6002
    %v7025 = vunpack.c.l.b16 %v6003
    %v7026 = vunpack.c.l.b16 %v6004
    %v7027 = vunpack.c.l.b16 %v6005
    %v7028 = vunpack.c.l.b16 %v6006
    %v7029 = vunpack.c.l.b16 %v6007
    %v7030 = vunpack.c.l.b16 %v6008
    %v7031 = vunpack.c.l.b16 %v6009
    %v7032 = vunpack.c.l.b16 %v6010
    %v7033 = vunpack.c.l.b16 %v6011
    %v7034 = vunpack.c.l.b16 %v6012
    %v7035 = vunpack.c.l.b16 %v6013
    %v7036 = vunpack.c.l.b16 %v6014
    %v7037 = vunpack.c.l.b16 %v6015
    %v7038 = vunpack.c.l.b16 %v6016
    %v7039 = vunpack.c.l.b16 %v6017
    %v7040 = vunpack.c.l.b16 %v6018
    %v7041 = vunpack.c.l.b16 %v6019
    %v7042 = vunpack.c.l.b16 %v6020
    %v7043 = vunpack.c.l.b16 %v6021
    %v7044 = vunpack.c.l.b16 %v6022
    %v7045 = vunpack.c.l.b16 %v6023
    %v7046 = vpack.c.b16 %v7015, %v7014
    %v7047 = vpack.c.b16 %v7017, %v7016
    %v7048 = vpack.c.b16 %v7019, %v7018
    %v7049 = vpack.c.b16 %v7021, %v7020
    %v7050 = vpack.c.b16 %v7023, %v7022
    %v7051 = vpack.c.b16 %v7025, %v7024
    %v7052 = vpack.c.b16 %v7027, %v7026
    %v7053 = vpack.c.b16 %v7029, %v7028
    %v7054 = vpack.c.b16 %v7031, %v7030
    %v7055 = vpack.c.b16 %v7033, %v7032
    %v7056 = vpack.c.b16 %v7035, %v7034
    %v7057 = vpack.c.b16 %v7037, %v7036
    %v7058 = vpack.c.b16 %v7039, %v7038
    %v7059 = vpack.c.b16 %v7041, %v7040
    %v7060 = vpack.c.b16 %v7043, %v7042
    %v7061 = vpack.c.b16 %v7045, %v7044
    %7078 = vmatprep.subr.bf16.mxu0 0
    %7079 = vmatpush1.bf16.msra.mxu0 %v7053
    %7080 = vmatprep.subr.bf16.mxu0 0
    %7081 = vmatpush1.bf16.msra.mxu0 %v7052
    %7082 = vmatprep.subr.bf16.mxu0 0
    %7083 = vmatpush1.bf16.msra.mxu0 %v7051
    %7084 = vmatprep.subr.bf16.mxu0 0
    %7085 = vmatpush1.bf16.msra.mxu0 %v7050
    %7086 = vmatprep.subr.bf16.mxu0 0
    %7087 = vmatpush1.bf16.msra.mxu0 %v7049
    %7088 = vmatprep.subr.bf16.mxu0 0
    %7089 = vmatpush1.bf16.msra.mxu0 %v7048
    %7090 = vmatprep.subr.bf16.mxu0 0
    %7091 = vmatpush1.bf16.msra.mxu0 %v7047
    %7092 = vmatprep.subr.bf16.mxu0 0
    %7093 = vmatpush1.bf16.msra.mxu0 %v7046
    %7094 = vmatprep.subr.bf16.mxu0 0
    %7095 = vmatpush2.bf16.msra.mxu0 %v7061
    %7096 = vmatprep.subr.bf16.mxu0 0
    %7097 = vmatpush2.bf16.msra.mxu0 %v7060
    %7098 = vmatprep.subr.bf16.mxu0 0
    %7099 = vmatpush2.bf16.msra.mxu0 %v7059
    %7100 = vmatprep.subr.bf16.mxu0 0
    %7101 = vmatpush2.bf16.msra.mxu0 %v7058
    %7102 = vmatprep.subr.bf16.mxu0 0
    %7103 = vmatpush2.bf16.msra.mxu0 %v7057
    %7104 = vmatprep.subr.bf16.mxu0 0
    %7105 = vmatpush2.bf16.msra.mxu0 %v7056
    %7106 = vmatprep.subr.bf16.mxu0 0
    %7107 = vmatpush2.bf16.msra.mxu0 %v7055
    %7108 = vmatprep.subr.bf16.mxu0 0
    %7109 = vmatpush2.bf16.msra.mxu0 %v7054
    %7110 = vmatprep.mubr.bf16.mxu0 %v6251
    %7111 = vmatmul.mubr.bf16.gmra.mxu0 %v6250
    %v7112 = vpop.f32.mrf.mxu0
    %v7113 = vadd.f32 0.0, %v7112
    %v7114 = vpop.f32.mrf.mxu0
    %v7115 = vpop.f32.mrf.mxu0
    %v7116 = vadd.f32 0.0, %v7115
    %v7117 = vpop.f32.mrf.mxu0
    %7118 = vdwg.mxu0
    %v7120 = vlaneseq
    %v7121 = vshrl.u32 %v7120, 7
    %v7122 = vsub.s32 0, %v7121
    %v7123 = vrot.slane %v6024, %v7122
    %v7125 = vmul.f32 %v7113, %v7123
    %v7126 = vmul.f32 %v7116, %v7123
    %v7128 = vlaneseq
    %v7129 = vshrl.u32 %v7128, 7
    %v7130 = vsub.s32 0, %v7129
    %v7131 = vrot.slane %v6025, %v7130
    %v7133 = vadd.f32 %v7125, %v7131
    %v7134 = vadd.f32 %v7126, %v7131
    %v7135 = vadd.f32 %v6980, %v7133
    %v7136 = vadd.f32 %v6981, %v7134
    %v7137 = vmax.f32 %v7135, 0.0
    %v7138 = vmax.f32 %v7136, 0.0
    %v7139 = vld [vmem:[#allocation41] sm:$0xf]
    %v7140 = vld [vmem:[#allocation43] sm:$0xf]
    %v7141 = vld [vmem:[#allocation43 + $0x4] sm:$0xf]
    %v7142 = vld [vmem:[#allocation43 + $0x8] sm:$0xf]
    %v7143 = vld [vmem:[#allocation43 + $0xc] sm:$0xf]
    %v7144 = vld [vmem:[#allocation43 + $0x10] sm:$0xf]
    %v7145 = vld [vmem:[#allocation43 + $0x14] sm:$0xf]
    %v7146 = vld [vmem:[#allocation43 + $0x18] sm:$0xf]
    %v7147 = vld [vmem:[#allocation43 + $0x1c] sm:$0xf]
    %v7148 = vld [vmem:[#allocation43 + $0x20] sm:$0xf]
    %v7149 = vld [vmem:[#allocation43 + $0x24] sm:$0xf]
    %v7150 = vld [vmem:[#allocation43 + $0x28] sm:$0xf]
    %v7151 = vld [vmem:[#allocation43 + $0x2c] sm:$0xf]
    %v7152 = vld [vmem:[#allocation43 + $0x30] sm:$0xf]
    %v7153 = vld [vmem:[#allocation43 + $0x34] sm:$0xf]
    %v7154 = vld [vmem:[#allocation43 + $0x38] sm:$0xf]
    %v7155 = vld [vmem:[#allocation43 + $0x3c] sm:$0xf]
    %v7156 = vld [vmem:[#allocation43 + $0x40] sm:$0xf]
    %v7157 = vld [vmem:[#allocation43 + $0x44] sm:$0xf]
    %v7158 = vld [vmem:[#allocation43 + $0x48] sm:$0xf]
    %v7159 = vld [vmem:[#allocation43 + $0x4c] sm:$0xf]
    %v7160 = vld [vmem:[#allocation43 + $0x50] sm:$0xf]
    %v7161 = vld [vmem:[#allocation43 + $0x54] sm:$0xf]
    %v7162 = vld [vmem:[#allocation43 + $0x58] sm:$0xf]
    %v7163 = vld [vmem:[#allocation43 + $0x5c] sm:$0xf]
    %v7164 = vld [vmem:[#allocation43 + $0x60] sm:$0xf]
    %v7165 = vld [vmem:[#allocation43 + $0x64] sm:$0xf]
    %v7166 = vld [vmem:[#allocation43 + $0x68] sm:$0xf]
    %v7167 = vld [vmem:[#allocation43 + $0x6c] sm:$0xf]
    %v7168 = vld [vmem:[#allocation43 + $0x70] sm:$0xf]
    %v7169 = vld [vmem:[#allocation43 + $0x74] sm:$0xf]
    %v7170 = vld [vmem:[#allocation43 + $0x78] sm:$0xf]
    %v7171 = vld [vmem:[#allocation43 + $0x7c] sm:$0xf]
    %v7172 = vld [vmem:[#allocation43 + $0x80] sm:$0xf]
    %v7173 = vld [vmem:[#allocation43 + $0x84] sm:$0xf]
    %v7174 = vld [vmem:[#allocation43 + $0x88] sm:$0xf]
    %v7175 = vld [vmem:[#allocation43 + $0x8c] sm:$0xf]
    %v7176 = vld [vmem:[#allocation43 + $0x90] sm:$0xf]
    %v7177 = vld [vmem:[#allocation43 + $0x94] sm:$0xf]
    %v7178 = vld [vmem:[#allocation43 + $0x98] sm:$0xf]
    %v7179 = vld [vmem:[#allocation43 + $0x9c] sm:$0xf]
    %v7180 = vld [vmem:[#allocation43 + $0xa0] sm:$0xf]
    %v7181 = vld [vmem:[#allocation43 + $0xa4] sm:$0xf]
    %v7182 = vld [vmem:[#allocation43 + $0xa8] sm:$0xf]
    %v7183 = vld [vmem:[#allocation43 + $0xac] sm:$0xf]
    %v7184 = vld [vmem:[#allocation43 + $0xb0] sm:$0xf]
    %v7185 = vld [vmem:[#allocation43 + $0xb4] sm:$0xf]
    %v7186 = vld [vmem:[#allocation43 + $0xb8] sm:$0xf]
    %v7187 = vld [vmem:[#allocation43 + $0xbc] sm:$0xf]
    %v7188 = vld [vmem:[#allocation44] sm:$0x1]
    %v7189 = vld [vmem:[#allocation46] sm:$0x1]
    %v7190 = vld [vmem:[#allocation47] sm:$0xf]
    %v7191 = vld [vmem:[#allocation47 + $0x4] sm:$0xf]
    %v7192 = vld [vmem:[#allocation47 + $0x8] sm:$0xf]
    %v7193 = vld [vmem:[#allocation47 + $0xc] sm:$0xf]
    %v7194 = vld [vmem:[#allocation47 + $0x10] sm:$0xf]
    %v7195 = vld [vmem:[#allocation47 + $0x14] sm:$0xf]
    %v7196 = vld [vmem:[#allocation47 + $0x18] sm:$0xf]
    %v7197 = vld [vmem:[#allocation47 + $0x1c] sm:$0xf]
    %v7198 = vld [vmem:[#allocation47 + $0x20] sm:$0xf]
    %v7199 = vld [vmem:[#allocation47 + $0x24] sm:$0xf]
    %v7200 = vld [vmem:[#allocation47 + $0x28] sm:$0xf]
    %v7201 = vld [vmem:[#allocation47 + $0x2c] sm:$0xf]
    %v7202 = vld [vmem:[#allocation47 + $0x30] sm:$0xf]
    %v7203 = vld [vmem:[#allocation47 + $0x34] sm:$0xf]
    %v7204 = vld [vmem:[#allocation47 + $0x38] sm:$0xf]
    %v7205 = vld [vmem:[#allocation47 + $0x3c] sm:$0xf]
    %v7206 = vld [vmem:[#allocation47 + $0x40] sm:$0xf]
    %v7207 = vld [vmem:[#allocation47 + $0x44] sm:$0xf]
    %v7208 = vld [vmem:[#allocation47 + $0x48] sm:$0xf]
    %v7209 = vld [vmem:[#allocation47 + $0x4c] sm:$0xf]
    %v7210 = vld [vmem:[#allocation47 + $0x50] sm:$0xf]
    %v7211 = vld [vmem:[#allocation47 + $0x54] sm:$0xf]
    %v7212 = vld [vmem:[#allocation47 + $0x58] sm:$0xf]
    %v7213 = vld [vmem:[#allocation47 + $0x5c] sm:$0xf]
    %v7214 = vld [vmem:[#allocation47 + $0x60] sm:$0xf]
    %v7215 = vld [vmem:[#allocation47 + $0x64] sm:$0xf]
    %v7216 = vld [vmem:[#allocation47 + $0x68] sm:$0xf]
    %v7217 = vld [vmem:[#allocation47 + $0x6c] sm:$0xf]
    %v7218 = vld [vmem:[#allocation47 + $0x70] sm:$0xf]
    %v7219 = vld [vmem:[#allocation47 + $0x74] sm:$0xf]
    %v7220 = vld [vmem:[#allocation47 + $0x78] sm:$0xf]
    %v7221 = vld [vmem:[#allocation47 + $0x7c] sm:$0xf]
    %v7222 = vld [vmem:[#allocation47 + $0x80] sm:$0xf]
    %v7223 = vld [vmem:[#allocation47 + $0x84] sm:$0xf]
    %v7224 = vld [vmem:[#allocation47 + $0x88] sm:$0xf]
    %v7225 = vld [vmem:[#allocation47 + $0x8c] sm:$0xf]
    %v7226 = vld [vmem:[#allocation47 + $0x90] sm:$0xf]
    %v7227 = vld [vmem:[#allocation47 + $0x94] sm:$0xf]
    %v7228 = vld [vmem:[#allocation47 + $0x98] sm:$0xf]
    %v7229 = vld [vmem:[#allocation47 + $0x9c] sm:$0xf]
    %v7230 = vld [vmem:[#allocation47 + $0xa0] sm:$0xf]
    %v7231 = vld [vmem:[#allocation47 + $0xa4] sm:$0xf]
    %v7232 = vld [vmem:[#allocation47 + $0xa8] sm:$0xf]
    %v7233 = vld [vmem:[#allocation47 + $0xac] sm:$0xf]
    %v7234 = vld [vmem:[#allocation47 + $0xb0] sm:$0xf]
    %v7235 = vld [vmem:[#allocation47 + $0xb4] sm:$0xf]
    %v7236 = vld [vmem:[#allocation47 + $0xb8] sm:$0xf]
    %v7237 = vld [vmem:[#allocation47 + $0xbc] sm:$0xf]
    %v7238 = vld [vmem:[#allocation49] sm:$0x1]
    %v7239 = vld [vmem:[#allocation50] sm:$0x1]
    %v7240 = vld [vmem:[#allocation52] sm:$0xf]
    %v7241 = vld [vmem:[#allocation52 + $0x4] sm:$0xf]
    %v7242 = vld [vmem:[#allocation52 + $0x8] sm:$0xf]
    %v7243 = vld [vmem:[#allocation52 + $0xc] sm:$0xf]
    %v7244 = vld [vmem:[#allocation52 + $0x10] sm:$0xf]
    %v7245 = vld [vmem:[#allocation52 + $0x14] sm:$0xf]
    %v7246 = vld [vmem:[#allocation52 + $0x18] sm:$0xf]
    %v7247 = vld [vmem:[#allocation52 + $0x1c] sm:$0xf]
    %v7248 = vld [vmem:[#allocation52 + $0x20] sm:$0xf]
    %v7249 = vld [vmem:[#allocation52 + $0x24] sm:$0xf]
    %v7250 = vld [vmem:[#allocation52 + $0x28] sm:$0xf]
    %v7251 = vld [vmem:[#allocation52 + $0x2c] sm:$0xf]
    %v7252 = vld [vmem:[#allocation52 + $0x30] sm:$0xf]
    %v7253 = vld [vmem:[#allocation52 + $0x34] sm:$0xf]
    %v7254 = vld [vmem:[#allocation52 + $0x38] sm:$0xf]
    %v7255 = vld [vmem:[#allocation52 + $0x3c] sm:$0xf]
    %v7256 = vld [vmem:[#allocation53] sm:$0x1]
    %v7257 = vld [vmem:[#allocation55] sm:$0x1]
    %v7260 = vrot.slane %v7137, 7
    %v7261 = vrot.slane %v7138, 7
    %v7262 = vsel %vm694, %v7260, %v7261
    %v7265 = vsel %vm694, 0.0, %v7260
    %v7266 = vrot.slane %v7137, 1
    %v7267 = vrot.slane %v7138, 1
    %v7268 = vsel %vm719, %v7266, %v7267
    %v7271 = vsel %vm719, %v7267, 0.0
    %v7272 = vsel %vm6725, 0.0, %v7265
    %v7273 = vsel %vm6726, 0.0, %v7262
    %v7274 = vsel %vm6733, 0.0, %v7268
    %v7275 = vsel %vm6734, 0.0, %v7271
    %v7276 = vpack.c.bf16 %v7273, %v7272
    %v7277 = vpack.c.bf16 %v7138, %v7137
    %v7278 = vpack.c.bf16 %v7275, %v7274
    %vm7279 = vcmask 130048
    %v7281 = vsel %vm7279, %v7139, 0
    %7283 = vmatprep.subr.bf16.mxu0 0
    %7284 = vmatpush1.bf16.msra.mxu0 0
    %7285 = vmatprep.subr.bf16.mxu0 0
    %7286 = vmatpush1.bf16.msra.mxu0 0
    %7287 = vmatprep.subr.bf16.mxu0 0
    %7288 = vmatpush1.bf16.msra.mxu0 0
    %7289 = vmatprep.subr.bf16.mxu0 0
    %7290 = vmatpush1.bf16.msra.mxu0 0
    %7291 = vmatprep.subr.bf16.mxu0 0
    %7292 = vmatpush1.bf16.msra.mxu0 0
    %7293 = vmatprep.subr.bf16.mxu0 0
    %7294 = vmatpush1.bf16.msra.mxu0 0
    %7295 = vmatprep.subr.bf16.mxu0 0
    %7296 = vmatpush1.bf16.msra.mxu0 0
    %7297 = vmatprep.subr.bf16.mxu0 %v7277
    %7298 = vmatpush1.bf16.msra.mxu0 %v7276
    %7299 = vmatprep.subr.bf16.mxu0 0
    %7300 = vmatpush2.bf16.msra.mxu0 0
    %7301 = vmatprep.subr.bf16.mxu0 0
    %7302 = vmatpush2.bf16.msra.mxu0 0
    %7303 = vmatprep.subr.bf16.mxu0 0
    %7304 = vmatpush2.bf16.msra.mxu0 0
    %7305 = vmatprep.subr.bf16.mxu0 0
    %7306 = vmatpush2.bf16.msra.mxu0 0
    %7307 = vmatprep.subr.bf16.mxu0 0
    %7308 = vmatpush2.bf16.msra.mxu0 0
    %7309 = vmatprep.subr.bf16.mxu0 0
    %7310 = vmatpush2.bf16.msra.mxu0 0
    %7311 = vmatprep.subr.bf16.mxu0 0
    %7312 = vmatpush2.bf16.msra.mxu0 0
    %7313 = vmatprep.subr.bf16.mxu0 0
    %7314 = vmatpush2.bf16.msra.mxu0 0
    %7315 = vmatprep.mubr.bf16.mxu0 0
    %7316 = vmatmul.mubr.bf16.gmra.mxu0 %v7281
    %v7317 = vpop.f32.mrf.mxu0
    %v7318 = vadd.f32 0.0, %v7317
    %v7319 = vpop.f32.mrf.mxu0
    %v7320 = vadd.f32 0.0, %v7319
    %v7321 = vpop.f32.mrf.mxu0
    %v7322 = vpop.f32.mrf.mxu0
    %7323 = vdwg.mxu0
    %7324 = vmatprep.subr.bf16.mxu0 0
    %7325 = vmatpush1.bf16.msra.mxu0 0
    %7326 = vmatprep.subr.bf16.mxu0 0
    %7327 = vmatpush1.bf16.msra.mxu0 0
    %7328 = vmatprep.subr.bf16.mxu0 0
    %7329 = vmatpush1.bf16.msra.mxu0 0
    %7330 = vmatprep.subr.bf16.mxu0 0
    %7331 = vmatpush1.bf16.msra.mxu0 0
    %7332 = vmatprep.subr.bf16.mxu0 0
    %7333 = vmatpush1.bf16.msra.mxu0 0
    %7334 = vmatprep.subr.bf16.mxu0 0
    %7335 = vmatpush1.bf16.msra.mxu0 0
    %7336 = vmatprep.subr.bf16.mxu0 0
    %7337 = vmatpush1.bf16.msra.mxu0 0
    %7338 = vmatprep.subr.bf16.mxu0 0
    %7339 = vmatpush1.bf16.msra.mxu0 %v7278
    %7340 = vmatprep.subr.bf16.mxu0 0
    %7341 = vmatpush2.bf16.msra.mxu0 0
    %7342 = vmatprep.subr.bf16.mxu0 0
    %7343 = vmatpush2.bf16.msra.mxu0 0
    %7344 = vmatprep.subr.bf16.mxu0 0
    %7345 = vmatpush2.bf16.msra.mxu0 0
    %7346 = vmatprep.subr.bf16.mxu0 0
    %7347 = vmatpush2.bf16.msra.mxu0 0
    %7348 = vmatprep.subr.bf16.mxu0 0
    %7349 = vmatpush2.bf16.msra.mxu0 0
    %7350 = vmatprep.subr.bf16.mxu0 0
    %7351 = vmatpush2.bf16.msra.mxu0 0
    %7352 = vmatprep.subr.bf16.mxu0 0
    %7353 = vmatpush2.bf16.msra.mxu0 0
    %7354 = vmatprep.subr.bf16.mxu0 0
    %7355 = vmatpush2.bf16.msra.mxu0 0
    %7356 = vmatprep.mubr.bf16.mxu0 0
    %7357 = vmatmul.mubr.bf16.gmra.mxu0 %v7281
    %v7358 = vpop.f32.mrf.mxu0
    %v7359 = vadd.f32 0.0, %v7358
    %v7360 = vpop.f32.mrf.mxu0
    %v7361 = vpop.f32.mrf.mxu0
    %v7362 = vpop.f32.mrf.mxu0
    %7363 = vdwg.mxu0
    %v7364 = vpack.c.bf16 %v7318, %v7318
    %v7365 = vpack.c.bf16 %v7320, %v7320
    %v7366 = vpack.c.bf16 %v7359, %v7359
    %v7415 = vunpack.c.l.b16 %v7140
    %v7416 = vunpack.c.l.b16 %v7141
    %v7417 = vunpack.c.l.b16 %v7142
    %v7418 = vunpack.c.l.b16 %v7143
    %v7419 = vunpack.c.l.b16 %v7144
    %v7420 = vunpack.c.l.b16 %v7145
    %v7421 = vunpack.c.l.b16 %v7146
    %v7422 = vunpack.c.l.b16 %v7147
    %v7423 = vunpack.c.l.b16 %v7148
    %v7424 = vunpack.c.l.b16 %v7149
    %v7425 = vunpack.c.l.b16 %v7150
    %v7426 = vunpack.c.l.b16 %v7151
    %v7427 = vunpack.c.l.b16 %v7152
    %v7428 = vunpack.c.l.b16 %v7153
    %v7429 = vunpack.c.l.b16 %v7154
    %v7430 = vunpack.c.l.b16 %v7155
    %v7431 = vunpack.c.l.b16 %v7156
    %v7432 = vunpack.c.l.b16 %v7157
    %v7433 = vunpack.c.l.b16 %v7158
    %v7434 = vunpack.c.l.b16 %v7159
    %v7435 = vunpack.c.l.b16 %v7160
    %v7436 = vunpack.c.l.b16 %v7161
    %v7437 = vunpack.c.l.b16 %v7162
    %v7438 = vunpack.c.l.b16 %v7163
    %v7439 = vunpack.c.l.b16 %v7164
    %v7440 = vunpack.c.l.b16 %v7165
    %v7441 = vunpack.c.l.b16 %v7166
    %v7442 = vunpack.c.l.b16 %v7167
    %v7443 = vunpack.c.l.b16 %v7168
    %v7444 = vunpack.c.l.b16 %v7169
    %v7445 = vunpack.c.l.b16 %v7170
    %v7446 = vunpack.c.l.b16 %v7171
    %v7447 = vunpack.c.l.b16 %v7172
    %v7448 = vunpack.c.l.b16 %v7173
    %v7449 = vunpack.c.l.b16 %v7174
    %v7450 = vunpack.c.l.b16 %v7175
    %v7451 = vunpack.c.l.b16 %v7176
    %v7452 = vunpack.c.l.b16 %v7177
    %v7453 = vunpack.c.l.b16 %v7178
    %v7454 = vunpack.c.l.b16 %v7179
    %v7455 = vunpack.c.l.b16 %v7180
    %v7456 = vunpack.c.l.b16 %v7181
    %v7457 = vunpack.c.l.b16 %v7182
    %v7458 = vunpack.c.l.b16 %v7183
    %v7459 = vunpack.c.l.b16 %v7184
    %v7460 = vunpack.c.l.b16 %v7185
    %v7461 = vunpack.c.l.b16 %v7186
    %v7462 = vunpack.c.l.b16 %v7187
    %v7463 = vpack.c.b16 %v7416, %v7415
    %v7464 = vpack.c.b16 %v7418, %v7417
    %v7465 = vpack.c.b16 %v7420, %v7419
    %v7466 = vpack.c.b16 %v7422, %v7421
    %v7467 = vpack.c.b16 %v7424, %v7423
    %v7468 = vpack.c.b16 %v7426, %v7425
    %v7469 = vpack.c.b16 %v7428, %v7427
    %v7470 = vpack.c.b16 %v7430, %v7429
    %v7471 = vpack.c.b16 %v7432, %v7431
    %v7472 = vpack.c.b16 %v7434, %v7433
    %v7473 = vpack.c.b16 %v7436, %v7435
    %v7474 = vpack.c.b16 %v7438, %v7437
    %v7475 = vpack.c.b16 %v7440, %v7439
    %v7476 = vpack.c.b16 %v7442, %v7441
    %v7477 = vpack.c.b16 %v7444, %v7443
    %v7478 = vpack.c.b16 %v7446, %v7445
    %v7479 = vpack.c.b16 %v7448, %v7447
    %v7480 = vpack.c.b16 %v7450, %v7449
    %v7481 = vpack.c.b16 %v7452, %v7451
    %v7482 = vpack.c.b16 %v7454, %v7453
    %v7483 = vpack.c.b16 %v7456, %v7455
    %v7484 = vpack.c.b16 %v7458, %v7457
    %v7485 = vpack.c.b16 %v7460, %v7459
    %v7486 = vpack.c.b16 %v7462, %v7461
    %7511 = vmatprep.subr.bf16.mxu0 0
    %7512 = vmatpush1.bf16.msra.mxu0 %v7470
    %7513 = vmatprep.subr.bf16.mxu0 0
    %7514 = vmatpush1.bf16.msra.mxu0 %v7469
    %7515 = vmatprep.subr.bf16.mxu0 0
    %7516 = vmatpush1.bf16.msra.mxu0 %v7468
    %7517 = vmatprep.subr.bf16.mxu0 0
    %7518 = vmatpush1.bf16.msra.mxu0 %v7467
    %7519 = vmatprep.subr.bf16.mxu0 0
    %7520 = vmatpush1.bf16.msra.mxu0 %v7466
    %7521 = vmatprep.subr.bf16.mxu0 0
    %7522 = vmatpush1.bf16.msra.mxu0 %v7465
    %7523 = vmatprep.subr.bf16.mxu0 0
    %7524 = vmatpush1.bf16.msra.mxu0 %v7464
    %7525 = vmatprep.subr.bf16.mxu0 0
    %7526 = vmatpush1.bf16.msra.mxu0 %v7463
    %7527 = vmatprep.subr.bf16.mxu0 0
    %7528 = vmatpush2.bf16.msra.mxu0 %v7478
    %7529 = vmatprep.subr.bf16.mxu0 0
    %7530 = vmatpush2.bf16.msra.mxu0 %v7477
    %7531 = vmatprep.subr.bf16.mxu0 0
    %7532 = vmatpush2.bf16.msra.mxu0 %v7476
    %7533 = vmatprep.subr.bf16.mxu0 0
    %7534 = vmatpush2.bf16.msra.mxu0 %v7475
    %7535 = vmatprep.subr.bf16.mxu0 0
    %7536 = vmatpush2.bf16.msra.mxu0 %v7474
    %7537 = vmatprep.subr.bf16.mxu0 0
    %7538 = vmatpush2.bf16.msra.mxu0 %v7473
    %7539 = vmatprep.subr.bf16.mxu0 0
    %7540 = vmatpush2.bf16.msra.mxu0 %v7472
    %7541 = vmatprep.subr.bf16.mxu0 0
    %7542 = vmatpush2.bf16.msra.mxu0 %v7471
    %7543 = vmatprep.mubr.bf16.mxu0 %v7365
    %7544 = vmatmul.mubr.bf16.gmra.mxu0 %v7364
    %v7545 = vpop.f32.mrf.mxu0
    %v7546 = vadd.f32 0.0, %v7545
    %v7547 = vpop.f32.mrf.mxu0
    %v7548 = vpop.f32.mrf.mxu0
    %v7549 = vpop.f32.mrf.mxu0
    %7550 = vdwg.mxu0
    %7551 = vmatprep.subr.bf16.mxu0 0
    %7552 = vmatpush1.bf16.msra.mxu0 %v7486
    %7553 = vmatprep.subr.bf16.mxu0 0
    %7554 = vmatpush1.bf16.msra.mxu0 %v7485
    %7555 = vmatprep.subr.bf16.mxu0 0
    %7556 = vmatpush1.bf16.msra.mxu0 %v7484
    %7557 = vmatprep.subr.bf16.mxu0 0
    %7558 = vmatpush1.bf16.msra.mxu0 %v7483
    %7559 = vmatprep.subr.bf16.mxu0 0
    %7560 = vmatpush1.bf16.msra.mxu0 %v7482
    %7561 = vmatprep.subr.bf16.mxu0 0
    %7562 = vmatpush1.bf16.msra.mxu0 %v7481
    %7563 = vmatprep.subr.bf16.mxu0 0
    %7564 = vmatpush1.bf16.msra.mxu0 %v7480
    %7565 = vmatprep.subr.bf16.mxu0 0
    %7566 = vmatpush1.bf16.msra.mxu0 %v7479
    %7567 = vmatprep.subr.bf16.mxu0 0
    %7568 = vmatpush2.bf16.msra.mxu0 0
    %7569 = vmatprep.subr.bf16.mxu0 0
    %7570 = vmatpush2.bf16.msra.mxu0 0
    %7571 = vmatprep.subr.bf16.mxu0 0
    %7572 = vmatpush2.bf16.msra.mxu0 0
    %7573 = vmatprep.subr.bf16.mxu0 0
    %7574 = vmatpush2.bf16.msra.mxu0 0
    %7575 = vmatprep.subr.bf16.mxu0 0
    %7576 = vmatpush2.bf16.msra.mxu0 0
    %7577 = vmatprep.subr.bf16.mxu0 0
    %7578 = vmatpush2.bf16.msra.mxu0 0
    %7579 = vmatprep.subr.bf16.mxu0 0
    %7580 = vmatpush2.bf16.msra.mxu0 0
    %7581 = vmatprep.subr.bf16.mxu0 0
    %7582 = vmatpush2.bf16.msra.mxu0 0
    %7583 = vmatprep.mubr.bf16.mxu0 0
    %7584 = vmatmul.mubr.bf16.gmra.mxu0 %v7366
    %v7585 = vpop.f32.mrf.mxu0
    %v7586 = vadd.f32 %v7546, %v7585
    %v7587 = vpop.f32.mrf.mxu0
    %v7588 = vpop.f32.mrf.mxu0
    %v7589 = vpop.f32.mrf.mxu0
    %7590 = vdwg.mxu0
    %v7592 = vlaneseq
    %v7593 = vshrl.u32 %v7592, 7
    %v7594 = vsub.s32 0, %v7593
    %v7595 = vrot.slane %v7188, %v7594
    %v7597 = vmul.f32 %v7586, %v7595
    %v7599 = vlaneseq
    %v7600 = vshrl.u32 %v7599, 7
    %v7601 = vsub.s32 0, %v7600
    %v7602 = vrot.slane %v7189, %v7601
    %v7604 = vadd.f32 %v7597, %v7602
    %v7605 = vmax.f32 %v7604, 0.0
    %v7607 = vrot.slane %v7605, 7
    %v7609 = vsel %vm694, 0.0, %v7607
    %v7610 = vrot.slane %v7605, 1
    %v7612 = vsel %vm719, %v7610, 0.0
    %vm7613 = vcmp.lt.s32.totalorder %v745, 0
    %v7614 = vsub.s32 0, %v745
    %v7615 = vsel %vm7613, %v7614, %v745
    %v7616 = vshrl.u32 %v7615, 2
    %v7617 = vand.u32 %v7615, 3
    %v7618 = vsub.s32 0, %v7617
    %v7619 = vsel %vm7613, %v7618, %v7617
    %vm7620 = vcmp.ne.s32.totalorder %v7619, 0
    %vm7621 = vcmp.lt.s32.totalorder %v7619, 0
    %vm7622 = vmand %vm7621, %vm7620
    %v7623 = vadd.s32 %v7619, 4
    %v7624 = vsel %vm7622, %v7623, %v7619
    %vm7625 = vcmp.eq.s32.totalorder %v7624, 0
    %v7626 = vsel %vm7625, 1, 0
    %vm7627 = vcmp.eq.s32.totalorder %v7626, 1
    %v7628 = vsel %vm7627, 0.0, %v7609
    %vm7629 = vcmp.eq.s32.totalorder %v7624, 3
    %v7630 = vsel %vm7629, 1, 0
    %vm7631 = vcmp.eq.s32.totalorder %v7630, 1
    %v7632 = vsel %vm7631, 0.0, %v7612
    %v7633 = vpack.c.bf16 %v7628, %v7628
    %v7634 = vpack.c.bf16 %v7605, %v7605
    %v7635 = vpack.c.bf16 %v7632, %v7632
    %v7684 = vunpack.c.l.b16 %v7190
    %v7685 = vunpack.c.l.b16 %v7191
    %v7686 = vunpack.c.l.b16 %v7192
    %v7687 = vunpack.c.l.b16 %v7193
    %v7688 = vunpack.c.l.b16 %v7194
    %v7689 = vunpack.c.l.b16 %v7195
    %v7690 = vunpack.c.l.b16 %v7196
    %v7691 = vunpack.c.l.b16 %v7197
    %v7692 = vunpack.c.l.b16 %v7198
    %v7693 = vunpack.c.l.b16 %v7199
    %v7694 = vunpack.c.l.b16 %v7200
    %v7695 = vunpack.c.l.b16 %v7201
    %v7696 = vunpack.c.l.b16 %v7202
    %v7697 = vunpack.c.l.b16 %v7203
    %v7698 = vunpack.c.l.b16 %v7204
    %v7699 = vunpack.c.l.b16 %v7205
    %v7700 = vunpack.c.l.b16 %v7206
    %v7701 = vunpack.c.l.b16 %v7207
    %v7702 = vunpack.c.l.b16 %v7208
    %v7703 = vunpack.c.l.b16 %v7209
    %v7704 = vunpack.c.l.b16 %v7210
    %v7705 = vunpack.c.l.b16 %v7211
    %v7706 = vunpack.c.l.b16 %v7212
    %v7707 = vunpack.c.l.b16 %v7213
    %v7708 = vunpack.c.l.b16 %v7214
    %v7709 = vunpack.c.l.b16 %v7215
    %v7710 = vunpack.c.l.b16 %v7216
    %v7711 = vunpack.c.l.b16 %v7217
    %v7712 = vunpack.c.l.b16 %v7218
    %v7713 = vunpack.c.l.b16 %v7219
    %v7714 = vunpack.c.l.b16 %v7220
    %v7715 = vunpack.c.l.b16 %v7221
    %v7716 = vunpack.c.l.b16 %v7222
    %v7717 = vunpack.c.l.b16 %v7223
    %v7718 = vunpack.c.l.b16 %v7224
    %v7719 = vunpack.c.l.b16 %v7225
    %v7720 = vunpack.c.l.b16 %v7226
    %v7721 = vunpack.c.l.b16 %v7227
    %v7722 = vunpack.c.l.b16 %v7228
    %v7723 = vunpack.c.l.b16 %v7229
    %v7724 = vunpack.c.l.b16 %v7230
    %v7725 = vunpack.c.l.b16 %v7231
    %v7726 = vunpack.c.l.b16 %v7232
    %v7727 = vunpack.c.l.b16 %v7233
    %v7728 = vunpack.c.l.b16 %v7234
    %v7729 = vunpack.c.l.b16 %v7235
    %v7730 = vunpack.c.l.b16 %v7236
    %v7731 = vunpack.c.l.b16 %v7237
    %v7732 = vpack.c.b16 %v7685, %v7684
    %v7733 = vpack.c.b16 %v7687, %v7686
    %v7734 = vpack.c.b16 %v7689, %v7688
    %v7735 = vpack.c.b16 %v7691, %v7690
    %v7736 = vpack.c.b16 %v7693, %v7692
    %v7737 = vpack.c.b16 %v7695, %v7694
    %v7738 = vpack.c.b16 %v7697, %v7696
    %v7739 = vpack.c.b16 %v7699, %v7698
    %v7740 = vpack.c.b16 %v7701, %v7700
    %v7741 = vpack.c.b16 %v7703, %v7702
    %v7742 = vpack.c.b16 %v7705, %v7704
    %v7743 = vpack.c.b16 %v7707, %v7706
    %v7744 = vpack.c.b16 %v7709, %v7708
    %v7745 = vpack.c.b16 %v7711, %v7710
    %v7746 = vpack.c.b16 %v7713, %v7712
    %v7747 = vpack.c.b16 %v7715, %v7714
    %v7748 = vpack.c.b16 %v7717, %v7716
    %v7749 = vpack.c.b16 %v7719, %v7718
    %v7750 = vpack.c.b16 %v7721, %v7720
    %v7751 = vpack.c.b16 %v7723, %v7722
    %v7752 = vpack.c.b16 %v7725, %v7724
    %v7753 = vpack.c.b16 %v7727, %v7726
    %v7754 = vpack.c.b16 %v7729, %v7728
    %v7755 = vpack.c.b16 %v7731, %v7730
    %7780 = vmatprep.subr.bf16.mxu0 0
    %7781 = vmatpush1.bf16.msra.mxu0 %v7739
    %7782 = vmatprep.subr.bf16.mxu0 0
    %7783 = vmatpush1.bf16.msra.mxu0 %v7738
    %7784 = vmatprep.subr.bf16.mxu0 0
    %7785 = vmatpush1.bf16.msra.mxu0 %v7737
    %7786 = vmatprep.subr.bf16.mxu0 0
    %7787 = vmatpush1.bf16.msra.mxu0 %v7736
    %7788 = vmatprep.subr.bf16.mxu0 0
    %7789 = vmatpush1.bf16.msra.mxu0 %v7735
    %7790 = vmatprep.subr.bf16.mxu0 0
    %7791 = vmatpush1.bf16.msra.mxu0 %v7734
    %7792 = vmatprep.subr.bf16.mxu0 0
    %7793 = vmatpush1.bf16.msra.mxu0 %v7733
    %7794 = vmatprep.subr.bf16.mxu0 0
    %7795 = vmatpush1.bf16.msra.mxu0 %v7732
    %7796 = vmatprep.subr.bf16.mxu0 0
    %7797 = vmatpush2.bf16.msra.mxu0 %v7747
    %7798 = vmatprep.subr.bf16.mxu0 0
    %7799 = vmatpush2.bf16.msra.mxu0 %v7746
    %7800 = vmatprep.subr.bf16.mxu0 0
    %7801 = vmatpush2.bf16.msra.mxu0 %v7745
    %7802 = vmatprep.subr.bf16.mxu0 0
    %7803 = vmatpush2.bf16.msra.mxu0 %v7744
    %7804 = vmatprep.subr.bf16.mxu0 0
    %7805 = vmatpush2.bf16.msra.mxu0 %v7743
    %7806 = vmatprep.subr.bf16.mxu0 0
    %7807 = vmatpush2.bf16.msra.mxu0 %v7742
    %7808 = vmatprep.subr.bf16.mxu0 0
    %7809 = vmatpush2.bf16.msra.mxu0 %v7741
    %7810 = vmatprep.subr.bf16.mxu0 0
    %7811 = vmatpush2.bf16.msra.mxu0 %v7740
    %7812 = vmatprep.mubr.bf16.mxu0 %v7634
    %7813 = vmatmul.mubr.bf16.gmra.mxu0 %v7633
    %v7814 = vpop.f32.mrf.mxu0
    %v7815 = vadd.f32 0.0, %v7814
    %v7816 = vpop.f32.mrf.mxu0
    %v7817 = vpop.f32.mrf.mxu0
    %v7818 = vpop.f32.mrf.mxu0
    %7819 = vdwg.mxu0
    %7820 = vmatprep.subr.bf16.mxu0 0
    %7821 = vmatpush1.bf16.msra.mxu0 %v7755
    %7822 = vmatprep.subr.bf16.mxu0 0
    %7823 = vmatpush1.bf16.msra.mxu0 %v7754
    %7824 = vmatprep.subr.bf16.mxu0 0
    %7825 = vmatpush1.bf16.msra.mxu0 %v7753
    %7826 = vmatprep.subr.bf16.mxu0 0
    %7827 = vmatpush1.bf16.msra.mxu0 %v7752
    %7828 = vmatprep.subr.bf16.mxu0 0
    %7829 = vmatpush1.bf16.msra.mxu0 %v7751
    %7830 = vmatprep.subr.bf16.mxu0 0
    %7831 = vmatpush1.bf16.msra.mxu0 %v7750
    %7832 = vmatprep.subr.bf16.mxu0 0
    %7833 = vmatpush1.bf16.msra.mxu0 %v7749
    %7834 = vmatprep.subr.bf16.mxu0 0
    %7835 = vmatpush1.bf16.msra.mxu0 %v7748
    %7836 = vmatprep.subr.bf16.mxu0 0
    %7837 = vmatpush2.bf16.msra.mxu0 0
    %7838 = vmatprep.subr.bf16.mxu0 0
    %7839 = vmatpush2.bf16.msra.mxu0 0
    %7840 = vmatprep.subr.bf16.mxu0 0
    %7841 = vmatpush2.bf16.msra.mxu0 0
    %7842 = vmatprep.subr.bf16.mxu0 0
    %7843 = vmatpush2.bf16.msra.mxu0 0
    %7844 = vmatprep.subr.bf16.mxu0 0
    %7845 = vmatpush2.bf16.msra.mxu0 0
    %7846 = vmatprep.subr.bf16.mxu0 0
    %7847 = vmatpush2.bf16.msra.mxu0 0
    %7848 = vmatprep.subr.bf16.mxu0 0
    %7849 = vmatpush2.bf16.msra.mxu0 0
    %7850 = vmatprep.subr.bf16.mxu0 0
    %7851 = vmatpush2.bf16.msra.mxu0 0
    %7852 = vmatprep.mubr.bf16.mxu0 0
    %7853 = vmatmul.mubr.bf16.gmra.mxu0 %v7635
    %v7854 = vpop.f32.mrf.mxu0
    %v7855 = vadd.f32 %v7815, %v7854
    %v7856 = vpop.f32.mrf.mxu0
    %v7857 = vpop.f32.mrf.mxu0
    %v7858 = vpop.f32.mrf.mxu0
    %7859 = vdwg.mxu0
    %v7861 = vlaneseq
    %v7862 = vshrl.u32 %v7861, 7
    %v7863 = vsub.s32 0, %v7862
    %v7864 = vrot.slane %v7238, %v7863
    %v7866 = vmul.f32 %v7855, %v7864
    %v7868 = vlaneseq
    %v7869 = vshrl.u32 %v7868, 7
    %v7870 = vsub.s32 0, %v7869
    %v7871 = vrot.slane %v7239, %v7870
    %v7873 = vadd.f32 %v7866, %v7871
    %v7890 = vunpack.c.l.b16 %v7240
    %v7891 = vunpack.c.l.b16 %v7241
    %v7892 = vunpack.c.l.b16 %v7242
    %v7893 = vunpack.c.l.b16 %v7243
    %v7894 = vunpack.c.l.b16 %v7244
    %v7895 = vunpack.c.l.b16 %v7245
    %v7896 = vunpack.c.l.b16 %v7246
    %v7897 = vunpack.c.l.b16 %v7247
    %v7898 = vunpack.c.l.b16 %v7248
    %v7899 = vunpack.c.l.b16 %v7249
    %v7900 = vunpack.c.l.b16 %v7250
    %v7901 = vunpack.c.l.b16 %v7251
    %v7902 = vunpack.c.l.b16 %v7252
    %v7903 = vunpack.c.l.b16 %v7253
    %v7904 = vunpack.c.l.b16 %v7254
    %v7905 = vunpack.c.l.b16 %v7255
    %v7906 = vpack.c.b16 %v7891, %v7890
    %v7907 = vpack.c.b16 %v7893, %v7892
    %v7908 = vpack.c.b16 %v7895, %v7894
    %v7909 = vpack.c.b16 %v7897, %v7896
    %v7910 = vpack.c.b16 %v7899, %v7898
    %v7911 = vpack.c.b16 %v7901, %v7900
    %v7912 = vpack.c.b16 %v7903, %v7902
    %v7913 = vpack.c.b16 %v7905, %v7904
    %7922 = vmatprep.subr.bf16.mxu0 0
    %7923 = vmatpush1.bf16.msra.mxu0 %v7913
    %7924 = vmatprep.subr.bf16.mxu0 0
    %7925 = vmatpush1.bf16.msra.mxu0 %v7912
    %7926 = vmatprep.subr.bf16.mxu0 0
    %7927 = vmatpush1.bf16.msra.mxu0 %v7911
    %7928 = vmatprep.subr.bf16.mxu0 0
    %7929 = vmatpush1.bf16.msra.mxu0 %v7910
    %7930 = vmatprep.subr.bf16.mxu0 0
    %7931 = vmatpush1.bf16.msra.mxu0 %v7909
    %7932 = vmatprep.subr.bf16.mxu0 0
    %7933 = vmatpush1.bf16.msra.mxu0 %v7908
    %7934 = vmatprep.subr.bf16.mxu0 0
    %7935 = vmatpush1.bf16.msra.mxu0 %v7907
    %7936 = vmatprep.subr.bf16.mxu0 0
    %7937 = vmatpush1.bf16.msra.mxu0 %v7906
    %7938 = vmatprep.subr.bf16.mxu0 0
    %7939 = vmatpush2.bf16.msra.mxu0 0
    %7940 = vmatprep.subr.bf16.mxu0 0
    %7941 = vmatpush2.bf16.msra.mxu0 0
    %7942 = vmatprep.subr.bf16.mxu0 0
    %7943 = vmatpush2.bf16.msra.mxu0 0
    %7944 = vmatprep.subr.bf16.mxu0 0
    %7945 = vmatpush2.bf16.msra.mxu0 0
    %7946 = vmatprep.subr.bf16.mxu0 0
    %7947 = vmatpush2.bf16.msra.mxu0 0
    %7948 = vmatprep.subr.bf16.mxu0 0
    %7949 = vmatpush2.bf16.msra.mxu0 0
    %7950 = vmatprep.subr.bf16.mxu0 0
    %7951 = vmatpush2.bf16.msra.mxu0 0
    %7952 = vmatprep.subr.bf16.mxu0 0
    %7953 = vmatpush2.bf16.msra.mxu0 0
    %7954 = vmatprep.mubr.bf16.mxu0 0
    %7955 = vmatmul.mubr.bf16.gmra.mxu0 %v7365
    %v7956 = vpop.f32.mrf.mxu0
    %v7957 = vadd.f32 0.0, %v7956
    %v7958 = vpop.f32.mrf.mxu0
    %v7959 = vpop.f32.mrf.mxu0
    %v7960 = vpop.f32.mrf.mxu0
    %7961 = vdwg.mxu0
    %v7963 = vlaneseq
    %v7964 = vshrl.u32 %v7963, 7
    %v7965 = vsub.s32 0, %v7964
    %v7966 = vrot.slane %v7256, %v7965
    %v7968 = vmul.f32 %v7957, %v7966
    %v7970 = vlaneseq
    %v7971 = vshrl.u32 %v7970, 7
    %v7972 = vsub.s32 0, %v7971
    %v7973 = vrot.slane %v7257, %v7972
    %v7975 = vadd.f32 %v7968, %v7973
    %v7976 = vadd.f32 %v7873, %v7975
    %v7977 = vmax.f32 %v7976, 0.0
    %v7978 = vld [vmem:[#allocation56] sm:$0x1]
    %v7979 = vld [vmem:[%s83] sm:$0xf]
    %v7980 = vld [vmem:[%s83 + $0x4] sm:$0xf]
    %v7981 = vld [vmem:[%s83 + $0x8] sm:$0xf]
    %v7982 = vld [vmem:[%s83 + $0xc] sm:$0xf]
    %v7983 = vld [vmem:[%s83 + $0x10] sm:$0xf]
    %v7984 = vld [vmem:[%s83 + $0x14] sm:$0xf]
    %v7985 = vld [vmem:[%s83 + $0x18] sm:$0xf]
    %v7986 = vld [vmem:[%s83 + $0x1c] sm:$0xf]
    %v7987 = vld [vmem:[%s83 + $0x20] sm:$0xf]
    %v7988 = vld [vmem:[%s83 + $0x24] sm:$0xf]
    %v7989 = vld [vmem:[%s83 + $0x28] sm:$0xf]
    %v7990 = vld [vmem:[%s83 + $0x2c] sm:$0xf]
    %v7991 = vld [vmem:[%s83 + $0x30] sm:$0xf]
    %v7992 = vld [vmem:[%s83 + $0x34] sm:$0xf]
    %v7993 = vld [vmem:[%s83 + $0x38] sm:$0xf]
    %v7994 = vld [vmem:[%s83 + $0x3c] sm:$0xf]
    %v7995 = vld [vmem:[#allocation58] sm:$0x1]
    %v7996 = vpack.c.bf16 %v7977, %v7977
    %vm7997 = vcmask 64512
    %v7999 = vsel %vm7997, %v7978, 0
    %vm8001 = vcmask 1043456
    %v8003 = vsel %vm8001, %v7996, 0
    %8005 = vmatprep.subr.bf16.mxu0 0
    %8006 = vmatpush1.bf16.msra.mxu0 0
    %8007 = vmatprep.subr.bf16.mxu0 0
    %8008 = vmatpush1.bf16.msra.mxu0 0
    %8009 = vmatprep.subr.bf16.mxu0 0
    %8010 = vmatpush1.bf16.msra.mxu0 0
    %8011 = vmatprep.subr.bf16.mxu0 0
    %8012 = vmatpush1.bf16.msra.mxu0 0
    %8013 = vmatprep.subr.bf16.mxu0 0
    %8014 = vmatpush1.bf16.msra.mxu0 0
    %8015 = vmatprep.subr.bf16.mxu0 0
    %8016 = vmatpush1.bf16.msra.mxu0 0
    %8017 = vmatprep.subr.bf16.mxu0 0
    %8018 = vmatpush1.bf16.msra.mxu0 0
    %8019 = vmatprep.subr.bf16.mxu0 0
    %8020 = vmatpush1.bf16.msra.mxu0 %v8003
    %8021 = vmatprep.subr.bf16.mxu0 0
    %8022 = vmatpush2.bf16.msra.mxu0 0
    %8023 = vmatprep.subr.bf16.mxu0 0
    %8024 = vmatpush2.bf16.msra.mxu0 0
    %8025 = vmatprep.subr.bf16.mxu0 0
    %8026 = vmatpush2.bf16.msra.mxu0 0
    %8027 = vmatprep.subr.bf16.mxu0 0
    %8028 = vmatpush2.bf16.msra.mxu0 0
    %8029 = vmatprep.subr.bf16.mxu0 0
    %8030 = vmatpush2.bf16.msra.mxu0 0
    %8031 = vmatprep.subr.bf16.mxu0 0
    %8032 = vmatpush2.bf16.msra.mxu0 0
    %8033 = vmatprep.subr.bf16.mxu0 0
    %8034 = vmatpush2.bf16.msra.mxu0 0
    %8035 = vmatprep.subr.bf16.mxu0 0
    %8036 = vmatpush2.bf16.msra.mxu0 0
    %8037 = vmatprep.mubr.bf16.mxu0 0
    %8038 = vmatmul.mubr.bf16.gmra.mxu0 %v7999
    %v8039 = vpop.f32.mrf.mxu0
    %v8040 = vadd.f32 0.0, %v8039
    %v8041 = vpop.f32.mrf.mxu0
    %v8042 = vpop.f32.mrf.mxu0
    %v8043 = vpop.f32.mrf.mxu0
    %8044 = vdwg.mxu0
    %v8045 = vpack.c.bf16 %v8040, %v8040
    %v8047 = vlaneseq
    %v8048 = vshrl.u32 %v8047, 7
    %v8049 = vsub.s32 0, %v8048
    %v8050 = vrot.slane %v7995, %v8049
    %v8068 = vunpack.c.l.b16 %v7979
    %v8069 = vunpack.c.l.b16 %v7980
    %v8070 = vunpack.c.l.b16 %v7981
    %v8071 = vunpack.c.l.b16 %v7982
    %v8072 = vunpack.c.l.b16 %v7983
    %v8073 = vunpack.c.l.b16 %v7984
    %v8074 = vunpack.c.l.b16 %v7985
    %v8075 = vunpack.c.l.b16 %v7986
    %v8076 = vunpack.c.l.b16 %v7987
    %v8077 = vunpack.c.l.b16 %v7988
    %v8078 = vunpack.c.l.b16 %v7989
    %v8079 = vunpack.c.l.b16 %v7990
    %v8080 = vunpack.c.l.b16 %v7991
    %v8081 = vunpack.c.l.b16 %v7992
    %v8082 = vunpack.c.l.b16 %v7993
    %v8083 = vunpack.c.l.b16 %v7994
    %v8084 = vpack.c.b16 %v8069, %v8068
    %v8085 = vpack.c.b16 %v8071, %v8070
    %v8086 = vpack.c.b16 %v8073, %v8072
    %v8087 = vpack.c.b16 %v8075, %v8074
    %v8088 = vpack.c.b16 %v8077, %v8076
    %v8089 = vpack.c.b16 %v8079, %v8078
    %v8090 = vpack.c.b16 %v8081, %v8080
    %v8091 = vpack.c.b16 %v8083, %v8082
    %8100 = vmatprep.subr.bf16.mxu0 0
    %8101 = vmatpush1.bf16.msra.mxu0 %v8091
    %8102 = vmatprep.subr.bf16.mxu0 0
    %8103 = vmatpush1.bf16.msra.mxu0 %v8090
    %8104 = vmatprep.subr.bf16.mxu0 0
    %8105 = vmatpush1.bf16.msra.mxu0 %v8089
    %8106 = vmatprep.subr.bf16.mxu0 0
    %8107 = vmatpush1.bf16.msra.mxu0 %v8088
    %8108 = vmatprep.subr.bf16.mxu0 0
    %8109 = vmatpush1.bf16.msra.mxu0 %v8087
    %8110 = vmatprep.subr.bf16.mxu0 0
    %8111 = vmatpush1.bf16.msra.mxu0 %v8086
    %8112 = vmatprep.subr.bf16.mxu0 0
    %8113 = vmatpush1.bf16.msra.mxu0 %v8085
    %8114 = vmatprep.subr.bf16.mxu0 0
    %8115 = vmatpush1.bf16.msra.mxu0 %v8084
    %8116 = vmatprep.subr.bf16.mxu0 0
    %8117 = vmatpush2.bf16.msra.mxu0 0
    %8118 = vmatprep.subr.bf16.mxu0 0
    %8119 = vmatpush2.bf16.msra.mxu0 0
    %8120 = vmatprep.subr.bf16.mxu0 0
    %8121 = vmatpush2.bf16.msra.mxu0 0
    %8122 = vmatprep.subr.bf16.mxu0 0
    %8123 = vmatpush2.bf16.msra.mxu0 0
    %8124 = vmatprep.subr.bf16.mxu0 0
    %8125 = vmatpush2.bf16.msra.mxu0 0
    %8126 = vmatprep.subr.bf16.mxu0 0
    %8127 = vmatpush2.bf16.msra.mxu0 0
    %8128 = vmatprep.subr.bf16.mxu0 0
    %8129 = vmatpush2.bf16.msra.mxu0 0
    %8130 = vmatprep.subr.bf16.mxu0 0
    %8131 = vmatpush2.bf16.msra.mxu0 0
    %8132 = vmatprep.mubr.bf16.mxu0 0
    %8133 = vmatmul.mubr.bf16.gmra.mxu0 %v8045
    %v8134 = vpop.f32.mrf.mxu0
    %v8135 = vadd.f32 %v8050, %v8134
    %v8136 = vpop.f32.mrf.mxu0
    %v8137 = vpop.f32.mrf.mxu0
    %v8138 = vpop.f32.mrf.mxu0
    %8139 = vdwg.mxu0
    %8140 = vst [vmem:[#allocation59] sm:$0x3] %v8135
    // Predicated region
    $region322: #{forward.1} parent=1 // pred_check
      _
    $region323: #{forward.1} parent=1 // pred_check_branch
      %8142 = sbr.rel (0) target = $region325
    $region324: #{forward.1} parent=1 // pred_region
      %s8144 = ssub.s32 32, 32
      %8145 = vsyncadd [#allocation4], %s8144
      %s8147 = sshll.u32 [#allocation59], 4
      %s8148 = int_to_ptr.vmem [resolvable:$true] %s8147
      %8150 = dma.vmem_to_hbm [thread:$0]  %s8148, 32, %s87, [#allocation4]
    $region325: #{forward.1} parent=1 // pred_fallthru
      _
    // Predicated region
    $region326: #{forward.1} parent=1 // pred_check
      _
    $region327: #{forward.1} parent=1 // pred_check_branch
      %8152 = sbr.rel (0) target = $region329
    $region328: #{forward.1} parent=1 // pred_region
      %8153 = dma.done [#allocation4], 32
    $region329: #{forward.1} parent=1 // pred_fallthru
      _
    %8154 = vsyncpa [#allocation3], 1
    %8155 = vsyncpa [#allocation6], 1
    %8156 = vsyncpa [#allocation9], 1
    %8157 = vsyncpa [#allocation12], 1
    %8158 = vsyncpa [#allocation15], 1
    %8159 = vsyncpa [#allocation18], 1
    %8160 = vsyncpa [#allocation21], 1
    %8161 = vsyncpa [#allocation24], 1
    %8162 = vsyncpa [#allocation27], 1
    %8163 = vsyncpa [#allocation30], 1
    %8164 = vsyncpa [#allocation33], 1
    %8165 = vsyncpa [#allocation36], 1
    %8166 = vsyncpa [#allocation39], 1
    %8167 = vsyncpa [#allocation42], 1
    %8168 = vsyncpa [#allocation45], 1
    %8169 = vsyncpa [#allocation48], 1
    %8170 = vsyncpa [#allocation51], 1
    %8171 = vsyncpa [#allocation54], 1
    %8172 = vsyncpa [#allocation57], 1
    %8173 = vsyncpa [#allocation4], 1

</llo_original>
